<compile_context>
chip_gen: v6e
topology: v6e:2x2x1
jax: 0.10.0
libtpu: 0.0.40
codegen_flags: <defaults>
</compile_context>

<pallas_src>
import functools

import jax
import jax.numpy as jnp
from jax.experimental import pallas as pl
from jax.experimental.pallas import tpu as pltpu

_MXU_DTYPE = jnp.bfloat16     # MXU operand dtype; accumulation is always f32
_LN_EPS = 1e-5
_LANES = 128


# ------------------------------ fused kernel --------------------------------

def _fwd_kernel(*refs, off_w, off_b, S, Sd, D, H, n_enc, n_dec,
                sos_token, use_target):
    if use_target:
        src_ref, dec_ref, pe_ref, w_ref, b_ref, out_ref = refs
    else:
        src_ref, pe_ref, w_ref, b_ref, out_ref = refs
        dec_ref = None

    Dh = D // H

    # ---- static-offset slab access ------------------------------------------
    def W(name):                              # bf16 weight (k, n)
        r, k, n = off_w[name]
        return w_ref[r:r + k, :n]

    def Bv(name):                             # f32 bias / LN vector (1, n)
        r, n = off_b[name]
        return b_ref[r:r + 1, :n]

    def mm(x_bf, name_w, name_b=None):
        y = jnp.dot(x_bf, W(name_w), preferred_element_type=jnp.float32)
        if name_b is not None:
            y = y + Bv(name_b)
        return y

    def layernorm(x, name):
        g, b = Bv(name + "_g"), Bv(name + "_b")
        mu = jnp.mean(x, axis=-1, keepdims=True)
        var = jnp.mean(jnp.square(x - mu), axis=-1, keepdims=True)
        return (x - mu) * jax.lax.rsqrt(var + _LN_EPS) * g + b

    # ---- multi-head attention (scale already folded into the Q projection) ---
    def mha(q_bf, k_bf, v_bf, w_out_name, b_out_name):
        # q_bf: (Sq, D) bf16; k_bf/v_bf: (Sk, D) bf16.
        w_out = W(w_out_name)                            # (D_out, D_in) bf16
        acc = jnp.zeros((q_bf.shape[0], D), jnp.float32)
        for h in range(H):
            sl = slice(h * Dh, (h + 1) * Dh)
            s = jnp.einsum("qd,kd->qk", q_bf[:, sl], k_bf[:, sl],
                           preferred_element_type=jnp.float32)        # (Sq, Sk)
            m = jnp.max(s, axis=-1, keepdims=True)
            e = jnp.exp(s - m)
            p = e * pl.reciprocal(jnp.sum(e, axis=-1, keepdims=True), approx=True)
            ctx = jnp.dot(p.astype(_MXU_DTYPE), v_bf[:, sl],
                          preferred_element_type=jnp.float32)          # (Sq, Dh)
            # Fold the output projection per head -> no lane-axis concatenate.
            acc = acc + jnp.einsum("sd,od->so", ctx.astype(_MXU_DTYPE),
                                   w_out[:, sl],
                                   preferred_element_type=jnp.float32)
        return acc + Bv(b_out_name)

    def ffn(x, pfx):
        h = jnp.maximum(mm(x.astype(_MXU_DTYPE), pfx + "ffn_w1", pfx + "ffn_b1"), 0.0)
        return mm(h.astype(_MXU_DTYPE), pfx + "ffn_w2", pfx + "ffn_b2")

    def encoder_layer(x, pfx):
        qkv_bf = mm(x.astype(_MXU_DTYPE), pfx + "sa_qkv_w",
                    pfx + "sa_qkv_b").astype(_MXU_DTYPE)               # (S, 3D)
        a = mha(qkv_bf[:, :D], qkv_bf[:, D:2 * D], qkv_bf[:, 2 * D:],
                pfx + "sa_out_w", pfx + "sa_out_b")
        x = layernorm(x + a, pfx + "ln1")
        x = layernorm(x + ffn(x, pfx), pfx + "ln2")
        return x

    def decoder_layer(x, mem_bf, pfx):
        # self-attention
        qkv_bf = mm(x.astype(_MXU_DTYPE), pfx + "sa_qkv_w",
                    pfx + "sa_qkv_b").astype(_MXU_DTYPE)
        a = mha(qkv_bf[:, :D], qkv_bf[:, D:2 * D], qkv_bf[:, 2 * D:],
                pfx + "sa_out_w", pfx + "sa_out_b")
        x = layernorm(x + a, pfx + "ln1")
        # cross-attention on encoder memory
        q_bf = mm(x.astype(_MXU_DTYPE), pfx + "ca_q_w",
                  pfx + "ca_q_b").astype(_MXU_DTYPE)                   # (Sd, D)
        kv_bf = mm(mem_bf, pfx + "ca_kv_w",
                   pfx + "ca_kv_b").astype(_MXU_DTYPE)                 # (S, 2D)
        a = mha(q_bf, kv_bf[:, :D], kv_bf[:, D:], pfx + "ca_out_w", pfx + "ca_out_b")
        x = layernorm(x + a, pfx + "ln2")
        # feed-forward
        x = layernorm(x + ffn(x, pfx), pfx + "ln3")
        return x

    pe = pe_ref[...]                                                   # (Smax, D)

    # ---- encoder --------------------------------------------------------------
    x = src_ref[0] + pe[:S, :]
    for i in range(n_enc):
        x = encoder_layer(x, f"enc{i}_")
    mem_bf = x.astype(_MXU_DTYPE)                 # cast once, reused by all dec layers

    # ---- decoder --------------------------------------------------------------
    if use_target:
        y = dec_ref[0] + pe[:Sd, :]
    else:
        y = jnp.full((Sd, D), sos_token, jnp.float32) + pe[:Sd, :]
    for i in range(n_dec):
        y = decoder_layer(y, mem_bf, f"dec{i}_")

    # ---- attention pooling over the decoded sequence --------------------------
    w_pool = Bv("pool_w")                                              # (1, D) f32
    sc = jnp.einsum("od,sd->os", w_pool, y,
                    preferred_element_type=jnp.float32)                # (1, Sd)
    m = jnp.max(sc, axis=-1, keepdims=True)
    e = jnp.exp(sc - m)
    p = e * pl.reciprocal(jnp.sum(e, axis=-1, keepdims=True), approx=True)
    out_ref[0] = jnp.dot(p, y, preferred_element_type=jnp.float32)     # (1, D)


# ------------------------------ model wrapper --------------------------------

def positional_encoding(seq_len, d_model):
    # Canonical sinusoidal PE; static-shape only -> constant-folded under jit.
    pos = jnp.arange(seq_len, dtype=jnp.float32)[:, None]
    div = jnp.exp(jnp.arange(0, d_model, 2, dtype=jnp.float32)
                  * (-jnp.log(10000.0) / d_model))
    pe = jnp.zeros((seq_len, d_model), jnp.float32)
    pe = pe.at[:, 0::2].set(jnp.sin(pos * div))
    pe = pe.at[:, 1::2].set(jnp.cos(pos * div))
    return pe


def my_transformer_forward(wslab, bslab, src, target=None, *, off_w, off_b,
                           nhead, n_enc, n_dec, sos_token=0.0):
    # src: (batch, seq, d_model).  Returns (batch, 1, d_model).
    B, S, D = src.shape
    use_target = target is not None
    Sd = target.shape[1] if use_target else S
    Smax = max(S, Sd)
    pe = positional_encoding(Smax, D)

    kernel = functools.partial(
        _fwd_kernel, off_w=off_w, off_b=off_b, S=S, Sd=Sd, D=D, H=nhead,
        n_enc=n_enc, n_dec=n_dec, sos_token=float(sos_token),
        use_target=use_target)

    operands = [src.astype(jnp.float32)]
    in_specs = [pl.BlockSpec((1, S, D), lambda b: (b, 0, 0))]
    if use_target:
        operands.append(target.astype(jnp.float32))
        in_specs.append(pl.BlockSpec((1, Sd, D), lambda b: (b, 0, 0)))
    operands += [pe, wslab, bslab]
    in_specs += [
        pl.BlockSpec((Smax, D), lambda b: (0, 0)),          # PE table (shared)
        pl.BlockSpec(tuple(wslab.shape), lambda b: (0, 0)),  # bf16 weight slab
        pl.BlockSpec(tuple(bslab.shape), lambda b: (0, 0)),  # f32 bias/LN slab
    ]

    return pl.pallas_call(
        kernel,
        out_shape=jax.ShapeDtypeStruct((B, 1, D), jnp.float32),
        grid=(B,),
        in_specs=in_specs,
        out_specs=pl.BlockSpec((1, 1, D), lambda b: (b, 0, 0)),
        compiler_params=pltpu.CompilerParams(
            dimension_semantics=("parallel",),     # both TCs on v7x; harmless on 1-TC chips
            vmem_limit_bytes=8 * 1024 * 1024,      # footprint is a few hundred KiB
        ),
    )(*operands)


# ------------------------------ param init / packing -------------------------

def init_params(key, d_model, nhead, num_enc, num_dec, dim_ff):
    D, F = d_model, dim_ff

    def rnd(k, shape):
        return jax.random.normal(k, shape, jnp.float32) * 0.02

    def ln(prefix, n):
        p = {}
        for i in range(1, n + 1):
            p[f"{prefix}{i}_g"] = jnp.ones((D,), jnp.float32)
            p[f"{prefix}{i}_b"] = jnp.zeros((D,), jnp.float32)
        return p

    def enc_layer(k):
        ks = jax.random.split(k, 8)
        p = dict(
            sa_in_w=rnd(ks[0], (3 * D, D)), sa_in_b=rnd(ks[1], (3 * D,)),
            sa_out_w=rnd(ks[2], (D, D)),    sa_out_b=rnd(ks[3], (D,)),
            ffn_w1=rnd(ks[4], (F, D)),      ffn_b1=rnd(ks[5], (F,)),
            ffn_w2=rnd(ks[6], (D, F)),      ffn_b2=rnd(ks[7], (D,)),
        )
        p.update(ln("ln", 2))
        return p

    def dec_layer(k):
        ks = jax.random.split(k, 12)
        p = dict(
            sa_in_w=rnd(ks[0], (3 * D, D)),  sa_in_b=rnd(ks[1], (3 * D,)),
            sa_out_w=rnd(ks[2], (D, D)),     sa_out_b=rnd(ks[3], (D,)),
            ca_in_w=rnd(ks[4], (3 * D, D)),  ca_in_b=rnd(ks[5], (3 * D,)),
            ca_out_w=rnd(ks[6], (D, D)),     ca_out_b=rnd(ks[7], (D,)),
            ffn_w1=rnd(ks[8], (F, D)),       ffn_b1=rnd(ks[9], (F,)),
            ffn_w2=rnd(ks[10], (D, F)),      ffn_b2=rnd(ks[11], (D,)),
        )
        p.update(ln("ln", 3))
        return p

    keys = jax.random.split(key, num_enc + num_dec + 1)
    return dict(
        encoder=[enc_layer(keys[i]) for i in range(num_enc)],
        decoder=[dec_layer(keys[num_enc + i]) for i in range(num_dec)],
        pool_w=rnd(keys[-1], (1, D)),        # attention_weights: Linear(d_model, 1)
        # final_projection / reduce_to_single_channel: unused in forward(), omitted.
    )


def pack_params(params, d_model, nhead):
    """Pack all parameters into one bf16 weight slab and one f32 bias/LN slab."""
    D = d_model
    Dh = D // nhead
    scale = 1.0 / (Dh ** 0.5)

    w_chunks, off_w, w_off = [], {}, 0
    b_rows, off_b = [], {}

    def add_w(name, w):                       # w: (k, n) f32, layout as consumed in-kernel
        nonlocal w_off
        k, n = int(w.shape[0]), int(w.shape[1])
        pad = jnp.zeros((k, _LANES), jnp.float32).at[:, :n].set(w)
        w_chunks.append(pad)
        off_w[name] = (w_off, k, n)
        w_off += k

    def add_b(name, vec):                     # vec: (n,) f32
        n = int(vec.shape[0])
        off_b[name] = (len(b_rows), n)
        b_rows.append(jnp.zeros((_LANES,), jnp.float32).at[:n].set(vec))

    def add_attn(prefix, in_w, in_b, out_w, out_b, fuse_qkv):
        # Fold 1/sqrt(Dh) into the Q projection (rows :D of in_proj) at pack time.
        in_w = in_w.at[:D].multiply(scale)
        in_b = in_b.at[:D].multiply(scale)
        if fuse_qkv:
            add_w(prefix + "qkv_w", in_w.T)               # (D, 3D)  x @ W form
            add_b(prefix + "qkv_b", in_b)
        else:
            add_w(prefix + "q_w", in_w[:D].T)             # (D, D)
            add_b(prefix + "q_b", in_b[:D])
            add_w(prefix + "kv_w", in_w[D:].T)            # (D, 2D)
            add_b(prefix + "kv_b", in_b[D:])
        # Out-projection kept UN-transposed (out, in): per-head access is a lane slice.
        add_w(prefix + "out_w", out_w)                    # (D, D)
        add_b(prefix + "out_b", out_b)

    def add_ffn_ln(prefix, lp, n_ln):
        add_w(prefix + "ffn_w1", lp["ffn_w1"].T)          # (D, F)
        add_b(prefix + "ffn_b1", lp["ffn_b1"])
        add_w(prefix + "ffn_w2", lp["ffn_w2"].T)          # (F, D)
        add_b(prefix + "ffn_b2", lp["ffn_b2"])
        for i in range(1, n_ln + 1):
            add_b(prefix + f"ln{i}_g", lp[f"ln{i}_g"])
            add_b(prefix + f"ln{i}_b", lp[f"ln{i}_b"])

    for i, lp in enumerate(params["encoder"]):
        add_attn(f"enc{i}_sa_", lp["sa_in_w"], lp["sa_in_b"],
                 lp["sa_out_w"], lp["sa_out_b"], fuse_qkv=True)
        add_ffn_ln(f"enc{i}_", lp, n_ln=2)

    for i, lp in enumerate(params["decoder"]):
        add_attn(f"dec{i}_sa_", lp["sa_in_w"], lp["sa_in_b"],
                 lp["sa_out_w"], lp["sa_out_b"], fuse_qkv=True)
        add_attn(f"dec{i}_ca_", lp["ca_in_w"], lp["ca_in_b"],
                 lp["ca_out_w"], lp["ca_out_b"], fuse_qkv=False)
        add_ffn_ln(f"dec{i}_", lp, n_ln=3)

    add_b("pool_w", params["pool_w"][0])
    # attention_weights bias dropped: softmax(scores + c) == softmax(scores).

    wslab = jnp.concatenate(w_chunks, axis=0)
    pad = (-wslab.shape[0]) % 16                          # bf16 sublane tile
    if pad:
        wslab = jnp.concatenate([wslab, jnp.zeros((pad, _LANES), jnp.float32)], axis=0)
    wslab = wslab.astype(_MXU_DTYPE)

    bslab = jnp.stack(b_rows, axis=0)
    pad = (-bslab.shape[0]) % 8                           # f32 sublane tile
    if pad:
        bslab = jnp.concatenate([bslab, jnp.zeros((pad, _LANES), jnp.float32)], axis=0)

    return wslab, bslab, off_w, off_b


# --------------------------------- main ---------------------------------------

if __name__ == "__main__":
    d_model, nhead = 32, 4
    num_encoder_layers, num_decoder_layers = 2, 2
    dim_feedforward = 64
    batch, seq = 2, 8

    key = jax.random.PRNGKey(0)
    kp, kx = jax.random.split(key)
    params = init_params(kp, d_model, nhead, num_encoder_layers,
                         num_decoder_layers, dim_feedforward)
    wslab, bslab, off_w, off_b = pack_params(params, d_model, nhead)

    src_with_angle = jax.random.normal(kx, (batch, seq, d_model), jnp.float32)

    fwd = jax.jit(functools.partial(
        my_transformer_forward,
        off_w=off_w, off_b=off_b, nhead=nhead,
        n_enc=num_encoder_layers, n_dec=num_decoder_layers, sos_token=0.0))

    out = fwd(wslab, bslab, src_with_angle)     # target_sequence=None path
    jax.block_until_ready(out)

    assert out.shape == (batch, 1, d_model), out.shape
    assert out.dtype == jnp.float32
    print("KERNEL_OK")
</pallas_src>

<mosaic_0001>
module attributes {stable_mosaic.version = 11 : i64} {
  func.func @_fwd_kernel(%arg0: i32, %arg1: memref<1x8x32xf32, #tpu.memory_space<vmem>>, %arg2: memref<8x32xf32, #tpu.memory_space<vmem>>, %arg3: memref<832x128xbf16, #tpu.memory_space<vmem>>, %arg4: memref<48x128xf32, #tpu.memory_space<vmem>>, %arg5: memref<1x1x32xf32, #tpu.memory_space<vmem>>) attributes {dimension_semantics = [#tpu.dimension_semantics<parallel>], iteration_bounds = array<i64: 2>, scalar_prefetch = 0 : i64, scratch_operands = 0 : i64, tpu.core_type = #tpu.core_type<tc>, window_params = [{transform_indices = @transform_0, window_bounds = array<i64: 1, 8, 32>}, {pipeline_mode = #tpu.pipeline_mode<synchronous>, transform_indices = @transform_1, window_bounds = array<i64: 8, 32>}, {pipeline_mode = #tpu.pipeline_mode<synchronous>, transform_indices = @transform_2, window_bounds = array<i64: 832, 128>}, {pipeline_mode = #tpu.pipeline_mode<synchronous>, transform_indices = @transform_3, window_bounds = array<i64: 48, 128>}, {transform_indices = @transform_4, window_bounds = array<i64: 1, 1, 32>}]} {
    %c0 = arith.constant 0 : index
    %c0_0 = arith.constant 0 : index
    %0 = vector.load %arg2[%c0, %c0_0] : memref<8x32xf32, #tpu.memory_space<vmem>>, vector<8x32xf32>
    %c0_1 = arith.constant 0 : index
    %c0_2 = arith.constant 0 : index
    %c0_3 = arith.constant 0 : index
    %1 = vector.load %arg1[%c0_1, %c0_2, %c0_3] : memref<1x8x32xf32, #tpu.memory_space<vmem>>, vector<1x8x32xf32>
    %2 = vector.shape_cast %1 : vector<1x8x32xf32> to vector<8x32xf32>
    %3 = arith.addf %2, %0 : vector<8x32xf32>
    %4 = arith.truncf %3 : vector<8x32xf32> to vector<8x32xbf16>
    %c0_4 = arith.constant 0 : index
    %c0_5 = arith.constant 0 : index
    %5 = vector.load %arg3[%c0_4, %c0_5] : memref<832x128xbf16, #tpu.memory_space<vmem>>, vector<32x96xbf16>
    %cst = arith.constant dense<0.000000e+00> : vector<8x96xf32>
    %6 = tpu.matmul %4, %5, %cst {dimension_numbers = #tpu.dot_dimension_numbers<[1], [0], [0], [1], [0, 0, 1, 1], [], []>} : vector<8x32xbf16>, vector<32x96xbf16>, vector<8x96xf32> -> vector<8x96xf32>
    %c0_6 = arith.constant 0 : index
    %c0_7 = arith.constant 0 : index
    %7 = vector.load %arg4[%c0_6, %c0_7] : memref<48x128xf32, #tpu.memory_space<vmem>>, vector<1x96xf32>
    %8 = vector.broadcast %7 : vector<1x96xf32> to vector<8x96xf32>
    %9 = arith.addf %6, %8 : vector<8x96xf32>
    %10 = arith.truncf %9 : vector<8x96xf32> to vector<8x96xbf16>
    %11 = vector.extract_strided_slice %10 {offsets = [0, 0], sizes = [8, 32], strides = [1, 1]} : vector<8x96xbf16> to vector<8x32xbf16>
    %12 = vector.extract_strided_slice %10 {offsets = [0, 32], sizes = [8, 32], strides = [1, 1]} : vector<8x96xbf16> to vector<8x32xbf16>
    %13 = vector.extract_strided_slice %10 {offsets = [0, 64], sizes = [8, 32], strides = [1, 1]} : vector<8x96xbf16> to vector<8x32xbf16>
    %c32 = arith.constant 32 : index
    %c0_8 = arith.constant 0 : index
    %14 = vector.load %arg3[%c32, %c0_8] : memref<832x128xbf16, #tpu.memory_space<vmem>>, vector<32x32xbf16>
    %cst_9 = arith.constant 0.000000e+00 : f32
    %15 = vector.broadcast %cst_9 : f32 to vector<8x32xf32>
    %16 = vector.extract_strided_slice %11 {offsets = [0, 0], sizes = [8, 8], strides = [1, 1]} : vector<8x32xbf16> to vector<8x8xbf16>
    %17 = vector.extract_strided_slice %12 {offsets = [0, 0], sizes = [8, 8], strides = [1, 1]} : vector<8x32xbf16> to vector<8x8xbf16>
    "tpu.trace_start"() <{level = 10 : i32, message = "qd,kd->qk"}> : () -> ()
    %cst_10 = arith.constant dense<0.000000e+00> : vector<8x8xf32>
    %18 = tpu.matmul %16, %17, %cst_10 {dimension_numbers = #tpu.dot_dimension_numbers<[1], [1], [0], [0], [0, 0, 1, 0], [], []>} : vector<8x8xbf16>, vector<8x8xbf16>, vector<8x8xf32> -> vector<8x8xf32>
    "tpu.trace_stop"() : () -> ()
    %cst_11 = arith.constant dense<0xFF800000> : vector<8xf32>
    %19 = vector.multi_reduction <maximumf>, %18, %cst_11 [1] : vector<8x8xf32> to vector<8xf32>
    %20 = vector.shape_cast %19 : vector<8xf32> to vector<8x1xf32>
    %21 = vector.broadcast %20 : vector<8x1xf32> to vector<8x8xf32>
    %22 = arith.subf %18, %21 : vector<8x8xf32>
    %23 = math.exp %22 : vector<8x8xf32>
    %cst_12 = arith.constant dense<0.000000e+00> : vector<8xf32>
    %24 = vector.multi_reduction <add>, %23, %cst_12 [1] : vector<8x8xf32> to vector<8xf32>
    %25 = vector.shape_cast %24 : vector<8xf32> to vector<8x1xf32>
    %26 = tpu.reciprocal %25 {approx = true} : vector<8x1xf32> -> vector<8x1xf32>
    %27 = vector.broadcast %26 : vector<8x1xf32> to vector<8x8xf32>
    %28 = arith.mulf %23, %27 : vector<8x8xf32>
    %29 = arith.truncf %28 : vector<8x8xf32> to vector<8x8xbf16>
    %30 = vector.extract_strided_slice %13 {offsets = [0, 0], sizes = [8, 8], strides = [1, 1]} : vector<8x32xbf16> to vector<8x8xbf16>
    %cst_13 = arith.constant dense<0.000000e+00> : vector<8x8xf32>
    %31 = tpu.matmul %29, %30, %cst_13 {dimension_numbers = #tpu.dot_dimension_numbers<[1], [0], [0], [1], [0, 0, 1, 1], [], []>} : vector<8x8xbf16>, vector<8x8xbf16>, vector<8x8xf32> -> vector<8x8xf32>
    %32 = arith.truncf %31 : vector<8x8xf32> to vector<8x8xbf16>
    %33 = vector.extract_strided_slice %14 {offsets = [0, 0], sizes = [32, 8], strides = [1, 1]} : vector<32x32xbf16> to vector<32x8xbf16>
    "tpu.trace_start"() <{level = 10 : i32, message = "sd,od->so"}> : () -> ()
    %cst_14 = arith.constant dense<0.000000e+00> : vector<8x32xf32>
    %34 = tpu.matmul %32, %33, %cst_14 {dimension_numbers = #tpu.dot_dimension_numbers<[1], [1], [0], [0], [0, 0, 1, 0], [], []>} : vector<8x8xbf16>, vector<32x8xbf16>, vector<8x32xf32> -> vector<8x32xf32>
    "tpu.trace_stop"() : () -> ()
    %35 = arith.addf %15, %34 : vector<8x32xf32>
    %36 = vector.extract_strided_slice %11 {offsets = [0, 8], sizes = [8, 8], strides = [1, 1]} : vector<8x32xbf16> to vector<8x8xbf16>
    %37 = vector.extract_strided_slice %12 {offsets = [0, 8], sizes = [8, 8], strides = [1, 1]} : vector<8x32xbf16> to vector<8x8xbf16>
    "tpu.trace_start"() <{level = 10 : i32, message = "qd,kd->qk"}> : () -> ()
    %cst_15 = arith.constant dense<0.000000e+00> : vector<8x8xf32>
    %38 = tpu.matmul %36, %37, %cst_15 {dimension_numbers = #tpu.dot_dimension_numbers<[1], [1], [0], [0], [0, 0, 1, 0], [], []>} : vector<8x8xbf16>, vector<8x8xbf16>, vector<8x8xf32> -> vector<8x8xf32>
    "tpu.trace_stop"() : () -> ()
    %cst_16 = arith.constant dense<0xFF800000> : vector<8xf32>
    %39 = vector.multi_reduction <maximumf>, %38, %cst_16 [1] : vector<8x8xf32> to vector<8xf32>
    %40 = vector.shape_cast %39 : vector<8xf32> to vector<8x1xf32>
    %41 = vector.broadcast %40 : vector<8x1xf32> to vector<8x8xf32>
    %42 = arith.subf %38, %41 : vector<8x8xf32>
    %43 = math.exp %42 : vector<8x8xf32>
    %cst_17 = arith.constant dense<0.000000e+00> : vector<8xf32>
    %44 = vector.multi_reduction <add>, %43, %cst_17 [1] : vector<8x8xf32> to vector<8xf32>
    %45 = vector.shape_cast %44 : vector<8xf32> to vector<8x1xf32>
    %46 = tpu.reciprocal %45 {approx = true} : vector<8x1xf32> -> vector<8x1xf32>
    %47 = vector.broadcast %46 : vector<8x1xf32> to vector<8x8xf32>
    %48 = arith.mulf %43, %47 : vector<8x8xf32>
    %49 = arith.truncf %48 : vector<8x8xf32> to vector<8x8xbf16>
    %50 = vector.extract_strided_slice %13 {offsets = [0, 8], sizes = [8, 8], strides = [1, 1]} : vector<8x32xbf16> to vector<8x8xbf16>
    %cst_18 = arith.constant dense<0.000000e+00> : vector<8x8xf32>
    %51 = tpu.matmul %49, %50, %cst_18 {dimension_numbers = #tpu.dot_dimension_numbers<[1], [0], [0], [1], [0, 0, 1, 1], [], []>} : vector<8x8xbf16>, vector<8x8xbf16>, vector<8x8xf32> -> vector<8x8xf32>
    %52 = arith.truncf %51 : vector<8x8xf32> to vector<8x8xbf16>
    %53 = vector.extract_strided_slice %14 {offsets = [0, 8], sizes = [32, 8], strides = [1, 1]} : vector<32x32xbf16> to vector<32x8xbf16>
    "tpu.trace_start"() <{level = 10 : i32, message = "sd,od->so"}> : () -> ()
    %cst_19 = arith.constant dense<0.000000e+00> : vector<8x32xf32>
    %54 = tpu.matmul %52, %53, %cst_19 {dimension_numbers = #tpu.dot_dimension_numbers<[1], [1], [0], [0], [0, 0, 1, 0], [], []>} : vector<8x8xbf16>, vector<32x8xbf16>, vector<8x32xf32> -> vector<8x32xf32>
    "tpu.trace_stop"() : () -> ()
    %55 = arith.addf %35, %54 : vector<8x32xf32>
    %56 = vector.extract_strided_slice %11 {offsets = [0, 16], sizes = [8, 8], strides = [1, 1]} : vector<8x32xbf16> to vector<8x8xbf16>
    %57 = vector.extract_strided_slice %12 {offsets = [0, 16], sizes = [8, 8], strides = [1, 1]} : vector<8x32xbf16> to vector<8x8xbf16>
    "tpu.trace_start"() <{level = 10 : i32, message = "qd,kd->qk"}> : () -> ()
    %cst_20 = arith.constant dense<0.000000e+00> : vector<8x8xf32>
    %58 = tpu.matmul %56, %57, %cst_20 {dimension_numbers = #tpu.dot_dimension_numbers<[1], [1], [0], [0], [0, 0, 1, 0], [], []>} : vector<8x8xbf16>, vector<8x8xbf16>, vector<8x8xf32> -> vector<8x8xf32>
    "tpu.trace_stop"() : () -> ()
    %cst_21 = arith.constant dense<0xFF800000> : vector<8xf32>
    %59 = vector.multi_reduction <maximumf>, %58, %cst_21 [1] : vector<8x8xf32> to vector<8xf32>
    %60 = vector.shape_cast %59 : vector<8xf32> to vector<8x1xf32>
    %61 = vector.broadcast %60 : vector<8x1xf32> to vector<8x8xf32>
    %62 = arith.subf %58, %61 : vector<8x8xf32>
    %63 = math.exp %62 : vector<8x8xf32>
    %cst_22 = arith.constant dense<0.000000e+00> : vector<8xf32>
    %64 = vector.multi_reduction <add>, %63, %cst_22 [1] : vector<8x8xf32> to vector<8xf32>
    %65 = vector.shape_cast %64 : vector<8xf32> to vector<8x1xf32>
    %66 = tpu.reciprocal %65 {approx = true} : vector<8x1xf32> -> vector<8x1xf32>
    %67 = vector.broadcast %66 : vector<8x1xf32> to vector<8x8xf32>
    %68 = arith.mulf %63, %67 : vector<8x8xf32>
    %69 = arith.truncf %68 : vector<8x8xf32> to vector<8x8xbf16>
    %70 = vector.extract_strided_slice %13 {offsets = [0, 16], sizes = [8, 8], strides = [1, 1]} : vector<8x32xbf16> to vector<8x8xbf16>
    %cst_23 = arith.constant dense<0.000000e+00> : vector<8x8xf32>
    %71 = tpu.matmul %69, %70, %cst_23 {dimension_numbers = #tpu.dot_dimension_numbers<[1], [0], [0], [1], [0, 0, 1, 1], [], []>} : vector<8x8xbf16>, vector<8x8xbf16>, vector<8x8xf32> -> vector<8x8xf32>
    %72 = arith.truncf %71 : vector<8x8xf32> to vector<8x8xbf16>
    %73 = vector.extract_strided_slice %14 {offsets = [0, 16], sizes = [32, 8], strides = [1, 1]} : vector<32x32xbf16> to vector<32x8xbf16>
    "tpu.trace_start"() <{level = 10 : i32, message = "sd,od->so"}> : () -> ()
    %cst_24 = arith.constant dense<0.000000e+00> : vector<8x32xf32>
    %74 = tpu.matmul %72, %73, %cst_24 {dimension_numbers = #tpu.dot_dimension_numbers<[1], [1], [0], [0], [0, 0, 1, 0], [], []>} : vector<8x8xbf16>, vector<32x8xbf16>, vector<8x32xf32> -> vector<8x32xf32>
    "tpu.trace_stop"() : () -> ()
    %75 = arith.addf %55, %74 : vector<8x32xf32>
    %76 = vector.extract_strided_slice %11 {offsets = [0, 24], sizes = [8, 8], strides = [1, 1]} : vector<8x32xbf16> to vector<8x8xbf16>
    %77 = vector.extract_strided_slice %12 {offsets = [0, 24], sizes = [8, 8], strides = [1, 1]} : vector<8x32xbf16> to vector<8x8xbf16>
    "tpu.trace_start"() <{level = 10 : i32, message = "qd,kd->qk"}> : () -> ()
    %cst_25 = arith.constant dense<0.000000e+00> : vector<8x8xf32>
    %78 = tpu.matmul %76, %77, %cst_25 {dimension_numbers = #tpu.dot_dimension_numbers<[1], [1], [0], [0], [0, 0, 1, 0], [], []>} : vector<8x8xbf16>, vector<8x8xbf16>, vector<8x8xf32> -> vector<8x8xf32>
    "tpu.trace_stop"() : () -> ()
    %cst_26 = arith.constant dense<0xFF800000> : vector<8xf32>
    %79 = vector.multi_reduction <maximumf>, %78, %cst_26 [1] : vector<8x8xf32> to vector<8xf32>
    %80 = vector.shape_cast %79 : vector<8xf32> to vector<8x1xf32>
    %81 = vector.broadcast %80 : vector<8x1xf32> to vector<8x8xf32>
    %82 = arith.subf %78, %81 : vector<8x8xf32>
    %83 = math.exp %82 : vector<8x8xf32>
    %cst_27 = arith.constant dense<0.000000e+00> : vector<8xf32>
    %84 = vector.multi_reduction <add>, %83, %cst_27 [1] : vector<8x8xf32> to vector<8xf32>
    %85 = vector.shape_cast %84 : vector<8xf32> to vector<8x1xf32>
    %86 = tpu.reciprocal %85 {approx = true} : vector<8x1xf32> -> vector<8x1xf32>
    %87 = vector.broadcast %86 : vector<8x1xf32> to vector<8x8xf32>
    %88 = arith.mulf %83, %87 : vector<8x8xf32>
    %89 = arith.truncf %88 : vector<8x8xf32> to vector<8x8xbf16>
    %90 = vector.extract_strided_slice %13 {offsets = [0, 24], sizes = [8, 8], strides = [1, 1]} : vector<8x32xbf16> to vector<8x8xbf16>
    %cst_28 = arith.constant dense<0.000000e+00> : vector<8x8xf32>
    %91 = tpu.matmul %89, %90, %cst_28 {dimension_numbers = #tpu.dot_dimension_numbers<[1], [0], [0], [1], [0, 0, 1, 1], [], []>} : vector<8x8xbf16>, vector<8x8xbf16>, vector<8x8xf32> -> vector<8x8xf32>
    %92 = arith.truncf %91 : vector<8x8xf32> to vector<8x8xbf16>
    %93 = vector.extract_strided_slice %14 {offsets = [0, 24], sizes = [32, 8], strides = [1, 1]} : vector<32x32xbf16> to vector<32x8xbf16>
    "tpu.trace_start"() <{level = 10 : i32, message = "sd,od->so"}> : () -> ()
    %cst_29 = arith.constant dense<0.000000e+00> : vector<8x32xf32>
    %94 = tpu.matmul %92, %93, %cst_29 {dimension_numbers = #tpu.dot_dimension_numbers<[1], [1], [0], [0], [0, 0, 1, 0], [], []>} : vector<8x8xbf16>, vector<32x8xbf16>, vector<8x32xf32> -> vector<8x32xf32>
    "tpu.trace_stop"() : () -> ()
    %95 = arith.addf %75, %94 : vector<8x32xf32>
    %c1 = arith.constant 1 : index
    %c0_30 = arith.constant 0 : index
    %96 = vector.load %arg4[%c1, %c0_30] : memref<48x128xf32, #tpu.memory_space<vmem>>, vector<1x32xf32>
    %97 = vector.broadcast %96 : vector<1x32xf32> to vector<8x32xf32>
    %98 = arith.addf %95, %97 : vector<8x32xf32>
    %99 = arith.addf %3, %98 : vector<8x32xf32>
    %c4 = arith.constant 4 : index
    %c0_31 = arith.constant 0 : index
    %100 = vector.load %arg4[%c4, %c0_31] : memref<48x128xf32, #tpu.memory_space<vmem>>, vector<1x32xf32>
    %c5 = arith.constant 5 : index
    %c0_32 = arith.constant 0 : index
    %101 = vector.load %arg4[%c5, %c0_32] : memref<48x128xf32, #tpu.memory_space<vmem>>, vector<1x32xf32>
    %cst_33 = arith.constant dense<0.000000e+00> : vector<8xf32>
    %102 = vector.multi_reduction <add>, %99, %cst_33 [1] : vector<8x32xf32> to vector<8xf32>
    %103 = vector.shape_cast %102 : vector<8xf32> to vector<8x1xf32>
    %cst_34 = arith.constant 3.200000e+01 : f32
    %104 = vector.broadcast %cst_34 : f32 to vector<8x1xf32>
    %105 = arith.divf %103, %104 : vector<8x1xf32>
    %106 = vector.broadcast %105 : vector<8x1xf32> to vector<8x32xf32>
    %107 = arith.subf %99, %106 : vector<8x32xf32>
    %108 = arith.mulf %107, %107 : vector<8x32xf32>
    %cst_35 = arith.constant dense<0.000000e+00> : vector<8xf32>
    %109 = vector.multi_reduction <add>, %108, %cst_35 [1] : vector<8x32xf32> to vector<8xf32>
    %110 = vector.shape_cast %109 : vector<8xf32> to vector<8x1xf32>
    %cst_36 = arith.constant 3.200000e+01 : f32
    %111 = vector.broadcast %cst_36 : f32 to vector<8x1xf32>
    %112 = arith.divf %110, %111 : vector<8x1xf32>
    %113 = vector.broadcast %105 : vector<8x1xf32> to vector<8x32xf32>
    %114 = arith.subf %99, %113 : vector<8x32xf32>
    %cst_37 = arith.constant 9.99999974E-6 : f32
    %115 = vector.broadcast %cst_37 : f32 to vector<8x1xf32>
    %116 = arith.addf %112, %115 : vector<8x1xf32>
    %117 = math.rsqrt %116 : vector<8x1xf32>
    %118 = vector.broadcast %117 : vector<8x1xf32> to vector<8x32xf32>
    %119 = arith.mulf %114, %118 : vector<8x32xf32>
    %120 = vector.broadcast %100 : vector<1x32xf32> to vector<8x32xf32>
    %121 = arith.mulf %119, %120 : vector<8x32xf32>
    %122 = vector.broadcast %101 : vector<1x32xf32> to vector<8x32xf32>
    %123 = arith.addf %121, %122 : vector<8x32xf32>
    %124 = arith.truncf %123 : vector<8x32xf32> to vector<8x32xbf16>
    %c64 = arith.constant 64 : index
    %c0_38 = arith.constant 0 : index
    %125 = vector.load %arg3[%c64, %c0_38] : memref<832x128xbf16, #tpu.memory_space<vmem>>, vector<32x64xbf16>
    %cst_39 = arith.constant dense<0.000000e+00> : vector<8x64xf32>
    %126 = tpu.matmul %124, %125, %cst_39 {dimension_numbers = #tpu.dot_dimension_numbers<[1], [0], [0], [1], [0, 0, 1, 1], [], []>} : vector<8x32xbf16>, vector<32x64xbf16>, vector<8x64xf32> -> vector<8x64xf32>
    %c2 = arith.constant 2 : index
    %c0_40 = arith.constant 0 : index
    %127 = vector.load %arg4[%c2, %c0_40] : memref<48x128xf32, #tpu.memory_space<vmem>>, vector<1x64xf32>
    %128 = vector.broadcast %127 : vector<1x64xf32> to vector<8x64xf32>
    %129 = arith.addf %126, %128 : vector<8x64xf32>
    %cst_41 = arith.constant 0.000000e+00 : f32
    %130 = vector.broadcast %cst_41 : f32 to vector<8x64xf32>
    %131 = arith.maximumf %129, %130 : vector<8x64xf32>
    %132 = arith.truncf %131 : vector<8x64xf32> to vector<8x64xbf16>
    %c96 = arith.constant 96 : index
    %c0_42 = arith.constant 0 : index
    %133 = vector.load %arg3[%c96, %c0_42] : memref<832x128xbf16, #tpu.memory_space<vmem>>, vector<64x32xbf16>
    %cst_43 = arith.constant dense<0.000000e+00> : vector<8x32xf32>
    %134 = tpu.matmul %132, %133, %cst_43 {dimension_numbers = #tpu.dot_dimension_numbers<[1], [0], [0], [1], [0, 0, 1, 1], [], []>} : vector<8x64xbf16>, vector<64x32xbf16>, vector<8x32xf32> -> vector<8x32xf32>
    %c3 = arith.constant 3 : index
    %c0_44 = arith.constant 0 : index
    %135 = vector.load %arg4[%c3, %c0_44] : memref<48x128xf32, #tpu.memory_space<vmem>>, vector<1x32xf32>
    %136 = vector.broadcast %135 : vector<1x32xf32> to vector<8x32xf32>
    %137 = arith.addf %134, %136 : vector<8x32xf32>
    %138 = arith.addf %123, %137 : vector<8x32xf32>
    %c6 = arith.constant 6 : index
    %c0_45 = arith.constant 0 : index
    %139 = vector.load %arg4[%c6, %c0_45] : memref<48x128xf32, #tpu.memory_space<vmem>>, vector<1x32xf32>
    %c7 = arith.constant 7 : index
    %c0_46 = arith.constant 0 : index
    %140 = vector.load %arg4[%c7, %c0_46] : memref<48x128xf32, #tpu.memory_space<vmem>>, vector<1x32xf32>
    %cst_47 = arith.constant dense<0.000000e+00> : vector<8xf32>
    %141 = vector.multi_reduction <add>, %138, %cst_47 [1] : vector<8x32xf32> to vector<8xf32>
    %142 = vector.shape_cast %141 : vector<8xf32> to vector<8x1xf32>
    %cst_48 = arith.constant 3.200000e+01 : f32
    %143 = vector.broadcast %cst_48 : f32 to vector<8x1xf32>
    %144 = arith.divf %142, %143 : vector<8x1xf32>
    %145 = vector.broadcast %144 : vector<8x1xf32> to vector<8x32xf32>
    %146 = arith.subf %138, %145 : vector<8x32xf32>
    %147 = arith.mulf %146, %146 : vector<8x32xf32>
    %cst_49 = arith.constant dense<0.000000e+00> : vector<8xf32>
    %148 = vector.multi_reduction <add>, %147, %cst_49 [1] : vector<8x32xf32> to vector<8xf32>
    %149 = vector.shape_cast %148 : vector<8xf32> to vector<8x1xf32>
    %cst_50 = arith.constant 3.200000e+01 : f32
    %150 = vector.broadcast %cst_50 : f32 to vector<8x1xf32>
    %151 = arith.divf %149, %150 : vector<8x1xf32>
    %152 = vector.broadcast %144 : vector<8x1xf32> to vector<8x32xf32>
    %153 = arith.subf %138, %152 : vector<8x32xf32>
    %cst_51 = arith.constant 9.99999974E-6 : f32
    %154 = vector.broadcast %cst_51 : f32 to vector<8x1xf32>
    %155 = arith.addf %151, %154 : vector<8x1xf32>
    %156 = math.rsqrt %155 : vector<8x1xf32>
    %157 = vector.broadcast %156 : vector<8x1xf32> to vector<8x32xf32>
    %158 = arith.mulf %153, %157 : vector<8x32xf32>
    %159 = vector.broadcast %139 : vector<1x32xf32> to vector<8x32xf32>
    %160 = arith.mulf %158, %159 : vector<8x32xf32>
    %161 = vector.broadcast %140 : vector<1x32xf32> to vector<8x32xf32>
    %162 = arith.addf %160, %161 : vector<8x32xf32>
    %163 = arith.truncf %162 : vector<8x32xf32> to vector<8x32xbf16>
    %c160 = arith.constant 160 : index
    %c0_52 = arith.constant 0 : index
    %164 = vector.load %arg3[%c160, %c0_52] : memref<832x128xbf16, #tpu.memory_space<vmem>>, vector<32x96xbf16>
    %cst_53 = arith.constant dense<0.000000e+00> : vector<8x96xf32>
    %165 = tpu.matmul %163, %164, %cst_53 {dimension_numbers = #tpu.dot_dimension_numbers<[1], [0], [0], [1], [0, 0, 1, 1], [], []>} : vector<8x32xbf16>, vector<32x96xbf16>, vector<8x96xf32> -> vector<8x96xf32>
    %c8 = arith.constant 8 : index
    %c0_54 = arith.constant 0 : index
    %166 = vector.load %arg4[%c8, %c0_54] : memref<48x128xf32, #tpu.memory_space<vmem>>, vector<1x96xf32>
    %167 = vector.broadcast %166 : vector<1x96xf32> to vector<8x96xf32>
    %168 = arith.addf %165, %167 : vector<8x96xf32>
    %169 = arith.truncf %168 : vector<8x96xf32> to vector<8x96xbf16>
    %170 = vector.extract_strided_slice %169 {offsets = [0, 0], sizes = [8, 32], strides = [1, 1]} : vector<8x96xbf16> to vector<8x32xbf16>
    %171 = vector.extract_strided_slice %169 {offsets = [0, 32], sizes = [8, 32], strides = [1, 1]} : vector<8x96xbf16> to vector<8x32xbf16>
    %172 = vector.extract_strided_slice %169 {offsets = [0, 64], sizes = [8, 32], strides = [1, 1]} : vector<8x96xbf16> to vector<8x32xbf16>
    %c192 = arith.constant 192 : index
    %c0_55 = arith.constant 0 : index
    %173 = vector.load %arg3[%c192, %c0_55] : memref<832x128xbf16, #tpu.memory_space<vmem>>, vector<32x32xbf16>
    %cst_56 = arith.constant 0.000000e+00 : f32
    %174 = vector.broadcast %cst_56 : f32 to vector<8x32xf32>
    %175 = vector.extract_strided_slice %170 {offsets = [0, 0], sizes = [8, 8], strides = [1, 1]} : vector<8x32xbf16> to vector<8x8xbf16>
    %176 = vector.extract_strided_slice %171 {offsets = [0, 0], sizes = [8, 8], strides = [1, 1]} : vector<8x32xbf16> to vector<8x8xbf16>
    "tpu.trace_start"() <{level = 10 : i32, message = "qd,kd->qk"}> : () -> ()
    %cst_57 = arith.constant dense<0.000000e+00> : vector<8x8xf32>
    %177 = tpu.matmul %175, %176, %cst_57 {dimension_numbers = #tpu.dot_dimension_numbers<[1], [1], [0], [0], [0, 0, 1, 0], [], []>} : vector<8x8xbf16>, vector<8x8xbf16>, vector<8x8xf32> -> vector<8x8xf32>
    "tpu.trace_stop"() : () -> ()
    %cst_58 = arith.constant dense<0xFF800000> : vector<8xf32>
    %178 = vector.multi_reduction <maximumf>, %177, %cst_58 [1] : vector<8x8xf32> to vector<8xf32>
    %179 = vector.shape_cast %178 : vector<8xf32> to vector<8x1xf32>
    %180 = vector.broadcast %179 : vector<8x1xf32> to vector<8x8xf32>
    %181 = arith.subf %177, %180 : vector<8x8xf32>
    %182 = math.exp %181 : vector<8x8xf32>
    %cst_59 = arith.constant dense<0.000000e+00> : vector<8xf32>
    %183 = vector.multi_reduction <add>, %182, %cst_59 [1] : vector<8x8xf32> to vector<8xf32>
    %184 = vector.shape_cast %183 : vector<8xf32> to vector<8x1xf32>
    %185 = tpu.reciprocal %184 {approx = true} : vector<8x1xf32> -> vector<8x1xf32>
    %186 = vector.broadcast %185 : vector<8x1xf32> to vector<8x8xf32>
    %187 = arith.mulf %182, %186 : vector<8x8xf32>
    %188 = arith.truncf %187 : vector<8x8xf32> to vector<8x8xbf16>
    %189 = vector.extract_strided_slice %172 {offsets = [0, 0], sizes = [8, 8], strides = [1, 1]} : vector<8x32xbf16> to vector<8x8xbf16>
    %cst_60 = arith.constant dense<0.000000e+00> : vector<8x8xf32>
    %190 = tpu.matmul %188, %189, %cst_60 {dimension_numbers = #tpu.dot_dimension_numbers<[1], [0], [0], [1], [0, 0, 1, 1], [], []>} : vector<8x8xbf16>, vector<8x8xbf16>, vector<8x8xf32> -> vector<8x8xf32>
    %191 = arith.truncf %190 : vector<8x8xf32> to vector<8x8xbf16>
    %192 = vector.extract_strided_slice %173 {offsets = [0, 0], sizes = [32, 8], strides = [1, 1]} : vector<32x32xbf16> to vector<32x8xbf16>
    "tpu.trace_start"() <{level = 10 : i32, message = "sd,od->so"}> : () -> ()
    %cst_61 = arith.constant dense<0.000000e+00> : vector<8x32xf32>
    %193 = tpu.matmul %191, %192, %cst_61 {dimension_numbers = #tpu.dot_dimension_numbers<[1], [1], [0], [0], [0, 0, 1, 0], [], []>} : vector<8x8xbf16>, vector<32x8xbf16>, vector<8x32xf32> -> vector<8x32xf32>
    "tpu.trace_stop"() : () -> ()
    %194 = arith.addf %174, %193 : vector<8x32xf32>
    %195 = vector.extract_strided_slice %170 {offsets = [0, 8], sizes = [8, 8], strides = [1, 1]} : vector<8x32xbf16> to vector<8x8xbf16>
    %196 = vector.extract_strided_slice %171 {offsets = [0, 8], sizes = [8, 8], strides = [1, 1]} : vector<8x32xbf16> to vector<8x8xbf16>
    "tpu.trace_start"() <{level = 10 : i32, message = "qd,kd->qk"}> : () -> ()
    %cst_62 = arith.constant dense<0.000000e+00> : vector<8x8xf32>
    %197 = tpu.matmul %195, %196, %cst_62 {dimension_numbers = #tpu.dot_dimension_numbers<[1], [1], [0], [0], [0, 0, 1, 0], [], []>} : vector<8x8xbf16>, vector<8x8xbf16>, vector<8x8xf32> -> vector<8x8xf32>
    "tpu.trace_stop"() : () -> ()
    %cst_63 = arith.constant dense<0xFF800000> : vector<8xf32>
    %198 = vector.multi_reduction <maximumf>, %197, %cst_63 [1] : vector<8x8xf32> to vector<8xf32>
    %199 = vector.shape_cast %198 : vector<8xf32> to vector<8x1xf32>
    %200 = vector.broadcast %199 : vector<8x1xf32> to vector<8x8xf32>
    %201 = arith.subf %197, %200 : vector<8x8xf32>
    %202 = math.exp %201 : vector<8x8xf32>
    %cst_64 = arith.constant dense<0.000000e+00> : vector<8xf32>
    %203 = vector.multi_reduction <add>, %202, %cst_64 [1] : vector<8x8xf32> to vector<8xf32>
    %204 = vector.shape_cast %203 : vector<8xf32> to vector<8x1xf32>
    %205 = tpu.reciprocal %204 {approx = true} : vector<8x1xf32> -> vector<8x1xf32>
    %206 = vector.broadcast %205 : vector<8x1xf32> to vector<8x8xf32>
    %207 = arith.mulf %202, %206 : vector<8x8xf32>
    %208 = arith.truncf %207 : vector<8x8xf32> to vector<8x8xbf16>
    %209 = vector.extract_strided_slice %172 {offsets = [0, 8], sizes = [8, 8], strides = [1, 1]} : vector<8x32xbf16> to vector<8x8xbf16>
    %cst_65 = arith.constant dense<0.000000e+00> : vector<8x8xf32>
    %210 = tpu.matmul %208, %209, %cst_65 {dimension_numbers = #tpu.dot_dimension_numbers<[1], [0], [0], [1], [0, 0, 1, 1], [], []>} : vector<8x8xbf16>, vector<8x8xbf16>, vector<8x8xf32> -> vector<8x8xf32>
    %211 = arith.truncf %210 : vector<8x8xf32> to vector<8x8xbf16>
    %212 = vector.extract_strided_slice %173 {offsets = [0, 8], sizes = [32, 8], strides = [1, 1]} : vector<32x32xbf16> to vector<32x8xbf16>
    "tpu.trace_start"() <{level = 10 : i32, message = "sd,od->so"}> : () -> ()
    %cst_66 = arith.constant dense<0.000000e+00> : vector<8x32xf32>
    %213 = tpu.matmul %211, %212, %cst_66 {dimension_numbers = #tpu.dot_dimension_numbers<[1], [1], [0], [0], [0, 0, 1, 0], [], []>} : vector<8x8xbf16>, vector<32x8xbf16>, vector<8x32xf32> -> vector<8x32xf32>
    "tpu.trace_stop"() : () -> ()
    %214 = arith.addf %194, %213 : vector<8x32xf32>
    %215 = vector.extract_strided_slice %170 {offsets = [0, 16], sizes = [8, 8], strides = [1, 1]} : vector<8x32xbf16> to vector<8x8xbf16>
    %216 = vector.extract_strided_slice %171 {offsets = [0, 16], sizes = [8, 8], strides = [1, 1]} : vector<8x32xbf16> to vector<8x8xbf16>
    "tpu.trace_start"() <{level = 10 : i32, message = "qd,kd->qk"}> : () -> ()
    %cst_67 = arith.constant dense<0.000000e+00> : vector<8x8xf32>
    %217 = tpu.matmul %215, %216, %cst_67 {dimension_numbers = #tpu.dot_dimension_numbers<[1], [1], [0], [0], [0, 0, 1, 0], [], []>} : vector<8x8xbf16>, vector<8x8xbf16>, vector<8x8xf32> -> vector<8x8xf32>
    "tpu.trace_stop"() : () -> ()
    %cst_68 = arith.constant dense<0xFF800000> : vector<8xf32>
    %218 = vector.multi_reduction <maximumf>, %217, %cst_68 [1] : vector<8x8xf32> to vector<8xf32>
    %219 = vector.shape_cast %218 : vector<8xf32> to vector<8x1xf32>
    %220 = vector.broadcast %219 : vector<8x1xf32> to vector<8x8xf32>
    %221 = arith.subf %217, %220 : vector<8x8xf32>
    %222 = math.exp %221 : vector<8x8xf32>
    %cst_69 = arith.constant dense<0.000000e+00> : vector<8xf32>
    %223 = vector.multi_reduction <add>, %222, %cst_69 [1] : vector<8x8xf32> to vector<8xf32>
    %224 = vector.shape_cast %223 : vector<8xf32> to vector<8x1xf32>
    %225 = tpu.reciprocal %224 {approx = true} : vector<8x1xf32> -> vector<8x1xf32>
    %226 = vector.broadcast %225 : vector<8x1xf32> to vector<8x8xf32>
    %227 = arith.mulf %222, %226 : vector<8x8xf32>
    %228 = arith.truncf %227 : vector<8x8xf32> to vector<8x8xbf16>
    %229 = vector.extract_strided_slice %172 {offsets = [0, 16], sizes = [8, 8], strides = [1, 1]} : vector<8x32xbf16> to vector<8x8xbf16>
    %cst_70 = arith.constant dense<0.000000e+00> : vector<8x8xf32>
    %230 = tpu.matmul %228, %229, %cst_70 {dimension_numbers = #tpu.dot_dimension_numbers<[1], [0], [0], [1], [0, 0, 1, 1], [], []>} : vector<8x8xbf16>, vector<8x8xbf16>, vector<8x8xf32> -> vector<8x8xf32>
    %231 = arith.truncf %230 : vector<8x8xf32> to vector<8x8xbf16>
    %232 = vector.extract_strided_slice %173 {offsets = [0, 16], sizes = [32, 8], strides = [1, 1]} : vector<32x32xbf16> to vector<32x8xbf16>
    "tpu.trace_start"() <{level = 10 : i32, message = "sd,od->so"}> : () -> ()
    %cst_71 = arith.constant dense<0.000000e+00> : vector<8x32xf32>
    %233 = tpu.matmul %231, %232, %cst_71 {dimension_numbers = #tpu.dot_dimension_numbers<[1], [1], [0], [0], [0, 0, 1, 0], [], []>} : vector<8x8xbf16>, vector<32x8xbf16>, vector<8x32xf32> -> vector<8x32xf32>
    "tpu.trace_stop"() : () -> ()
    %234 = arith.addf %214, %233 : vector<8x32xf32>
    %235 = vector.extract_strided_slice %170 {offsets = [0, 24], sizes = [8, 8], strides = [1, 1]} : vector<8x32xbf16> to vector<8x8xbf16>
    %236 = vector.extract_strided_slice %171 {offsets = [0, 24], sizes = [8, 8], strides = [1, 1]} : vector<8x32xbf16> to vector<8x8xbf16>
    "tpu.trace_start"() <{level = 10 : i32, message = "qd,kd->qk"}> : () -> ()
    %cst_72 = arith.constant dense<0.000000e+00> : vector<8x8xf32>
    %237 = tpu.matmul %235, %236, %cst_72 {dimension_numbers = #tpu.dot_dimension_numbers<[1], [1], [0], [0], [0, 0, 1, 0], [], []>} : vector<8x8xbf16>, vector<8x8xbf16>, vector<8x8xf32> -> vector<8x8xf32>
    "tpu.trace_stop"() : () -> ()
    %cst_73 = arith.constant dense<0xFF800000> : vector<8xf32>
    %238 = vector.multi_reduction <maximumf>, %237, %cst_73 [1] : vector<8x8xf32> to vector<8xf32>
    %239 = vector.shape_cast %238 : vector<8xf32> to vector<8x1xf32>
    %240 = vector.broadcast %239 : vector<8x1xf32> to vector<8x8xf32>
    %241 = arith.subf %237, %240 : vector<8x8xf32>
    %242 = math.exp %241 : vector<8x8xf32>
    %cst_74 = arith.constant dense<0.000000e+00> : vector<8xf32>
    %243 = vector.multi_reduction <add>, %242, %cst_74 [1] : vector<8x8xf32> to vector<8xf32>
    %244 = vector.shape_cast %243 : vector<8xf32> to vector<8x1xf32>
    %245 = tpu.reciprocal %244 {approx = true} : vector<8x1xf32> -> vector<8x1xf32>
    %246 = vector.broadcast %245 : vector<8x1xf32> to vector<8x8xf32>
    %247 = arith.mulf %242, %246 : vector<8x8xf32>
    %248 = arith.truncf %247 : vector<8x8xf32> to vector<8x8xbf16>
    %249 = vector.extract_strided_slice %172 {offsets = [0, 24], sizes = [8, 8], strides = [1, 1]} : vector<8x32xbf16> to vector<8x8xbf16>
    %cst_75 = arith.constant dense<0.000000e+00> : vector<8x8xf32>
    %250 = tpu.matmul %248, %249, %cst_75 {dimension_numbers = #tpu.dot_dimension_numbers<[1], [0], [0], [1], [0, 0, 1, 1], [], []>} : vector<8x8xbf16>, vector<8x8xbf16>, vector<8x8xf32> -> vector<8x8xf32>
    %251 = arith.truncf %250 : vector<8x8xf32> to vector<8x8xbf16>
    %252 = vector.extract_strided_slice %173 {offsets = [0, 24], sizes = [32, 8], strides = [1, 1]} : vector<32x32xbf16> to vector<32x8xbf16>
    "tpu.trace_start"() <{level = 10 : i32, message = "sd,od->so"}> : () -> ()
    %cst_76 = arith.constant dense<0.000000e+00> : vector<8x32xf32>
    %253 = tpu.matmul %251, %252, %cst_76 {dimension_numbers = #tpu.dot_dimension_numbers<[1], [1], [0], [0], [0, 0, 1, 0], [], []>} : vector<8x8xbf16>, vector<32x8xbf16>, vector<8x32xf32> -> vector<8x32xf32>
    "tpu.trace_stop"() : () -> ()
    %254 = arith.addf %234, %253 : vector<8x32xf32>
    %c9 = arith.constant 9 : index
    %c0_77 = arith.constant 0 : index
    %255 = vector.load %arg4[%c9, %c0_77] : memref<48x128xf32, #tpu.memory_space<vmem>>, vector<1x32xf32>
    %256 = vector.broadcast %255 : vector<1x32xf32> to vector<8x32xf32>
    %257 = arith.addf %254, %256 : vector<8x32xf32>
    %258 = arith.addf %162, %257 : vector<8x32xf32>
    %c12 = arith.constant 12 : index
    %c0_78 = arith.constant 0 : index
    %259 = vector.load %arg4[%c12, %c0_78] : memref<48x128xf32, #tpu.memory_space<vmem>>, vector<1x32xf32>
    %c13 = arith.constant 13 : index
    %c0_79 = arith.constant 0 : index
    %260 = vector.load %arg4[%c13, %c0_79] : memref<48x128xf32, #tpu.memory_space<vmem>>, vector<1x32xf32>
    %cst_80 = arith.constant dense<0.000000e+00> : vector<8xf32>
    %261 = vector.multi_reduction <add>, %258, %cst_80 [1] : vector<8x32xf32> to vector<8xf32>
    %262 = vector.shape_cast %261 : vector<8xf32> to vector<8x1xf32>
    %cst_81 = arith.constant 3.200000e+01 : f32
    %263 = vector.broadcast %cst_81 : f32 to vector<8x1xf32>
    %264 = arith.divf %262, %263 : vector<8x1xf32>
    %265 = vector.broadcast %264 : vector<8x1xf32> to vector<8x32xf32>
    %266 = arith.subf %258, %265 : vector<8x32xf32>
    %267 = arith.mulf %266, %266 : vector<8x32xf32>
    %cst_82 = arith.constant dense<0.000000e+00> : vector<8xf32>
    %268 = vector.multi_reduction <add>, %267, %cst_82 [1] : vector<8x32xf32> to vector<8xf32>
    %269 = vector.shape_cast %268 : vector<8xf32> to vector<8x1xf32>
    %cst_83 = arith.constant 3.200000e+01 : f32
    %270 = vector.broadcast %cst_83 : f32 to vector<8x1xf32>
    %271 = arith.divf %269, %270 : vector<8x1xf32>
    %272 = vector.broadcast %264 : vector<8x1xf32> to vector<8x32xf32>
    %273 = arith.subf %258, %272 : vector<8x32xf32>
    %cst_84 = arith.constant 9.99999974E-6 : f32
    %274 = vector.broadcast %cst_84 : f32 to vector<8x1xf32>
    %275 = arith.addf %271, %274 : vector<8x1xf32>
    %276 = math.rsqrt %275 : vector<8x1xf32>
    %277 = vector.broadcast %276 : vector<8x1xf32> to vector<8x32xf32>
    %278 = arith.mulf %273, %277 : vector<8x32xf32>
    %279 = vector.broadcast %259 : vector<1x32xf32> to vector<8x32xf32>
    %280 = arith.mulf %278, %279 : vector<8x32xf32>
    %281 = vector.broadcast %260 : vector<1x32xf32> to vector<8x32xf32>
    %282 = arith.addf %280, %281 : vector<8x32xf32>
    %283 = arith.truncf %282 : vector<8x32xf32> to vector<8x32xbf16>
    %c224 = arith.constant 224 : index
    %c0_85 = arith.constant 0 : index
    %284 = vector.load %arg3[%c224, %c0_85] : memref<832x128xbf16, #tpu.memory_space<vmem>>, vector<32x64xbf16>
    %cst_86 = arith.constant dense<0.000000e+00> : vector<8x64xf32>
    %285 = tpu.matmul %283, %284, %cst_86 {dimension_numbers = #tpu.dot_dimension_numbers<[1], [0], [0], [1], [0, 0, 1, 1], [], []>} : vector<8x32xbf16>, vector<32x64xbf16>, vector<8x64xf32> -> vector<8x64xf32>
    %c10 = arith.constant 10 : index
    %c0_87 = arith.constant 0 : index
    %286 = vector.load %arg4[%c10, %c0_87] : memref<48x128xf32, #tpu.memory_space<vmem>>, vector<1x64xf32>
    %287 = vector.broadcast %286 : vector<1x64xf32> to vector<8x64xf32>
    %288 = arith.addf %285, %287 : vector<8x64xf32>
    %cst_88 = arith.constant 0.000000e+00 : f32
    %289 = vector.broadcast %cst_88 : f32 to vector<8x64xf32>
    %290 = arith.maximumf %288, %289 : vector<8x64xf32>
    %291 = arith.truncf %290 : vector<8x64xf32> to vector<8x64xbf16>
    %c256 = arith.constant 256 : index
    %c0_89 = arith.constant 0 : index
    %292 = vector.load %arg3[%c256, %c0_89] : memref<832x128xbf16, #tpu.memory_space<vmem>>, vector<64x32xbf16>
    %cst_90 = arith.constant dense<0.000000e+00> : vector<8x32xf32>
    %293 = tpu.matmul %291, %292, %cst_90 {dimension_numbers = #tpu.dot_dimension_numbers<[1], [0], [0], [1], [0, 0, 1, 1], [], []>} : vector<8x64xbf16>, vector<64x32xbf16>, vector<8x32xf32> -> vector<8x32xf32>
    %c11 = arith.constant 11 : index
    %c0_91 = arith.constant 0 : index
    %294 = vector.load %arg4[%c11, %c0_91] : memref<48x128xf32, #tpu.memory_space<vmem>>, vector<1x32xf32>
    %295 = vector.broadcast %294 : vector<1x32xf32> to vector<8x32xf32>
    %296 = arith.addf %293, %295 : vector<8x32xf32>
    %297 = arith.addf %282, %296 : vector<8x32xf32>
    %c14 = arith.constant 14 : index
    %c0_92 = arith.constant 0 : index
    %298 = vector.load %arg4[%c14, %c0_92] : memref<48x128xf32, #tpu.memory_space<vmem>>, vector<1x32xf32>
    %c15 = arith.constant 15 : index
    %c0_93 = arith.constant 0 : index
    %299 = vector.load %arg4[%c15, %c0_93] : memref<48x128xf32, #tpu.memory_space<vmem>>, vector<1x32xf32>
    %cst_94 = arith.constant dense<0.000000e+00> : vector<8xf32>
    %300 = vector.multi_reduction <add>, %297, %cst_94 [1] : vector<8x32xf32> to vector<8xf32>
    %301 = vector.shape_cast %300 : vector<8xf32> to vector<8x1xf32>
    %cst_95 = arith.constant 3.200000e+01 : f32
    %302 = vector.broadcast %cst_95 : f32 to vector<8x1xf32>
    %303 = arith.divf %301, %302 : vector<8x1xf32>
    %304 = vector.broadcast %303 : vector<8x1xf32> to vector<8x32xf32>
    %305 = arith.subf %297, %304 : vector<8x32xf32>
    %306 = arith.mulf %305, %305 : vector<8x32xf32>
    %cst_96 = arith.constant dense<0.000000e+00> : vector<8xf32>
    %307 = vector.multi_reduction <add>, %306, %cst_96 [1] : vector<8x32xf32> to vector<8xf32>
    %308 = vector.shape_cast %307 : vector<8xf32> to vector<8x1xf32>
    %cst_97 = arith.constant 3.200000e+01 : f32
    %309 = vector.broadcast %cst_97 : f32 to vector<8x1xf32>
    %310 = arith.divf %308, %309 : vector<8x1xf32>
    %311 = vector.broadcast %303 : vector<8x1xf32> to vector<8x32xf32>
    %312 = arith.subf %297, %311 : vector<8x32xf32>
    %cst_98 = arith.constant 9.99999974E-6 : f32
    %313 = vector.broadcast %cst_98 : f32 to vector<8x1xf32>
    %314 = arith.addf %310, %313 : vector<8x1xf32>
    %315 = math.rsqrt %314 : vector<8x1xf32>
    %316 = vector.broadcast %315 : vector<8x1xf32> to vector<8x32xf32>
    %317 = arith.mulf %312, %316 : vector<8x32xf32>
    %318 = vector.broadcast %298 : vector<1x32xf32> to vector<8x32xf32>
    %319 = arith.mulf %317, %318 : vector<8x32xf32>
    %320 = vector.broadcast %299 : vector<1x32xf32> to vector<8x32xf32>
    %321 = arith.addf %319, %320 : vector<8x32xf32>
    %322 = arith.truncf %321 : vector<8x32xf32> to vector<8x32xbf16>
    %cst_99 = arith.constant 0.000000e+00 : f32
    %323 = vector.broadcast %cst_99 : f32 to vector<8x32xf32>
    %324 = arith.addf %323, %0 : vector<8x32xf32>
    %325 = arith.truncf %324 : vector<8x32xf32> to vector<8x32xbf16>
    %c320 = arith.constant 320 : index
    %c0_100 = arith.constant 0 : index
    %326 = vector.load %arg3[%c320, %c0_100] : memref<832x128xbf16, #tpu.memory_space<vmem>>, vector<32x96xbf16>
    %cst_101 = arith.constant dense<0.000000e+00> : vector<8x96xf32>
    %327 = tpu.matmul %325, %326, %cst_101 {dimension_numbers = #tpu.dot_dimension_numbers<[1], [0], [0], [1], [0, 0, 1, 1], [], []>} : vector<8x32xbf16>, vector<32x96xbf16>, vector<8x96xf32> -> vector<8x96xf32>
    %c16 = arith.constant 16 : index
    %c0_102 = arith.constant 0 : index
    %328 = vector.load %arg4[%c16, %c0_102] : memref<48x128xf32, #tpu.memory_space<vmem>>, vector<1x96xf32>
    %329 = vector.broadcast %328 : vector<1x96xf32> to vector<8x96xf32>
    %330 = arith.addf %327, %329 : vector<8x96xf32>
    %331 = arith.truncf %330 : vector<8x96xf32> to vector<8x96xbf16>
    %332 = vector.extract_strided_slice %331 {offsets = [0, 0], sizes = [8, 32], strides = [1, 1]} : vector<8x96xbf16> to vector<8x32xbf16>
    %333 = vector.extract_strided_slice %331 {offsets = [0, 32], sizes = [8, 32], strides = [1, 1]} : vector<8x96xbf16> to vector<8x32xbf16>
    %334 = vector.extract_strided_slice %331 {offsets = [0, 64], sizes = [8, 32], strides = [1, 1]} : vector<8x96xbf16> to vector<8x32xbf16>
    %c352 = arith.constant 352 : index
    %c0_103 = arith.constant 0 : index
    %335 = vector.load %arg3[%c352, %c0_103] : memref<832x128xbf16, #tpu.memory_space<vmem>>, vector<32x32xbf16>
    %cst_104 = arith.constant 0.000000e+00 : f32
    %336 = vector.broadcast %cst_104 : f32 to vector<8x32xf32>
    %337 = vector.extract_strided_slice %332 {offsets = [0, 0], sizes = [8, 8], strides = [1, 1]} : vector<8x32xbf16> to vector<8x8xbf16>
    %338 = vector.extract_strided_slice %333 {offsets = [0, 0], sizes = [8, 8], strides = [1, 1]} : vector<8x32xbf16> to vector<8x8xbf16>
    "tpu.trace_start"() <{level = 10 : i32, message = "qd,kd->qk"}> : () -> ()
    %cst_105 = arith.constant dense<0.000000e+00> : vector<8x8xf32>
    %339 = tpu.matmul %337, %338, %cst_105 {dimension_numbers = #tpu.dot_dimension_numbers<[1], [1], [0], [0], [0, 0, 1, 0], [], []>} : vector<8x8xbf16>, vector<8x8xbf16>, vector<8x8xf32> -> vector<8x8xf32>
    "tpu.trace_stop"() : () -> ()
    %cst_106 = arith.constant dense<0xFF800000> : vector<8xf32>
    %340 = vector.multi_reduction <maximumf>, %339, %cst_106 [1] : vector<8x8xf32> to vector<8xf32>
    %341 = vector.shape_cast %340 : vector<8xf32> to vector<8x1xf32>
    %342 = vector.broadcast %341 : vector<8x1xf32> to vector<8x8xf32>
    %343 = arith.subf %339, %342 : vector<8x8xf32>
    %344 = math.exp %343 : vector<8x8xf32>
    %cst_107 = arith.constant dense<0.000000e+00> : vector<8xf32>
    %345 = vector.multi_reduction <add>, %344, %cst_107 [1] : vector<8x8xf32> to vector<8xf32>
    %346 = vector.shape_cast %345 : vector<8xf32> to vector<8x1xf32>
    %347 = tpu.reciprocal %346 {approx = true} : vector<8x1xf32> -> vector<8x1xf32>
    %348 = vector.broadcast %347 : vector<8x1xf32> to vector<8x8xf32>
    %349 = arith.mulf %344, %348 : vector<8x8xf32>
    %350 = arith.truncf %349 : vector<8x8xf32> to vector<8x8xbf16>
    %351 = vector.extract_strided_slice %334 {offsets = [0, 0], sizes = [8, 8], strides = [1, 1]} : vector<8x32xbf16> to vector<8x8xbf16>
    %cst_108 = arith.constant dense<0.000000e+00> : vector<8x8xf32>
    %352 = tpu.matmul %350, %351, %cst_108 {dimension_numbers = #tpu.dot_dimension_numbers<[1], [0], [0], [1], [0, 0, 1, 1], [], []>} : vector<8x8xbf16>, vector<8x8xbf16>, vector<8x8xf32> -> vector<8x8xf32>
    %353 = arith.truncf %352 : vector<8x8xf32> to vector<8x8xbf16>
    %354 = vector.extract_strided_slice %335 {offsets = [0, 0], sizes = [32, 8], strides = [1, 1]} : vector<32x32xbf16> to vector<32x8xbf16>
    "tpu.trace_start"() <{level = 10 : i32, message = "sd,od->so"}> : () -> ()
    %cst_109 = arith.constant dense<0.000000e+00> : vector<8x32xf32>
    %355 = tpu.matmul %353, %354, %cst_109 {dimension_numbers = #tpu.dot_dimension_numbers<[1], [1], [0], [0], [0, 0, 1, 0], [], []>} : vector<8x8xbf16>, vector<32x8xbf16>, vector<8x32xf32> -> vector<8x32xf32>
    "tpu.trace_stop"() : () -> ()
    %356 = arith.addf %336, %355 : vector<8x32xf32>
    %357 = vector.extract_strided_slice %332 {offsets = [0, 8], sizes = [8, 8], strides = [1, 1]} : vector<8x32xbf16> to vector<8x8xbf16>
    %358 = vector.extract_strided_slice %333 {offsets = [0, 8], sizes = [8, 8], strides = [1, 1]} : vector<8x32xbf16> to vector<8x8xbf16>
    "tpu.trace_start"() <{level = 10 : i32, message = "qd,kd->qk"}> : () -> ()
    %cst_110 = arith.constant dense<0.000000e+00> : vector<8x8xf32>
    %359 = tpu.matmul %357, %358, %cst_110 {dimension_numbers = #tpu.dot_dimension_numbers<[1], [1], [0], [0], [0, 0, 1, 0], [], []>} : vector<8x8xbf16>, vector<8x8xbf16>, vector<8x8xf32> -> vector<8x8xf32>
    "tpu.trace_stop"() : () -> ()
    %cst_111 = arith.constant dense<0xFF800000> : vector<8xf32>
    %360 = vector.multi_reduction <maximumf>, %359, %cst_111 [1] : vector<8x8xf32> to vector<8xf32>
    %361 = vector.shape_cast %360 : vector<8xf32> to vector<8x1xf32>
    %362 = vector.broadcast %361 : vector<8x1xf32> to vector<8x8xf32>
    %363 = arith.subf %359, %362 : vector<8x8xf32>
    %364 = math.exp %363 : vector<8x8xf32>
    %cst_112 = arith.constant dense<0.000000e+00> : vector<8xf32>
    %365 = vector.multi_reduction <add>, %364, %cst_112 [1] : vector<8x8xf32> to vector<8xf32>
    %366 = vector.shape_cast %365 : vector<8xf32> to vector<8x1xf32>
    %367 = tpu.reciprocal %366 {approx = true} : vector<8x1xf32> -> vector<8x1xf32>
    %368 = vector.broadcast %367 : vector<8x1xf32> to vector<8x8xf32>
    %369 = arith.mulf %364, %368 : vector<8x8xf32>
    %370 = arith.truncf %369 : vector<8x8xf32> to vector<8x8xbf16>
    %371 = vector.extract_strided_slice %334 {offsets = [0, 8], sizes = [8, 8], strides = [1, 1]} : vector<8x32xbf16> to vector<8x8xbf16>
    %cst_113 = arith.constant dense<0.000000e+00> : vector<8x8xf32>
    %372 = tpu.matmul %370, %371, %cst_113 {dimension_numbers = #tpu.dot_dimension_numbers<[1], [0], [0], [1], [0, 0, 1, 1], [], []>} : vector<8x8xbf16>, vector<8x8xbf16>, vector<8x8xf32> -> vector<8x8xf32>
    %373 = arith.truncf %372 : vector<8x8xf32> to vector<8x8xbf16>
    %374 = vector.extract_strided_slice %335 {offsets = [0, 8], sizes = [32, 8], strides = [1, 1]} : vector<32x32xbf16> to vector<32x8xbf16>
    "tpu.trace_start"() <{level = 10 : i32, message = "sd,od->so"}> : () -> ()
    %cst_114 = arith.constant dense<0.000000e+00> : vector<8x32xf32>
    %375 = tpu.matmul %373, %374, %cst_114 {dimension_numbers = #tpu.dot_dimension_numbers<[1], [1], [0], [0], [0, 0, 1, 0], [], []>} : vector<8x8xbf16>, vector<32x8xbf16>, vector<8x32xf32> -> vector<8x32xf32>
    "tpu.trace_stop"() : () -> ()
    %376 = arith.addf %356, %375 : vector<8x32xf32>
    %377 = vector.extract_strided_slice %332 {offsets = [0, 16], sizes = [8, 8], strides = [1, 1]} : vector<8x32xbf16> to vector<8x8xbf16>
    %378 = vector.extract_strided_slice %333 {offsets = [0, 16], sizes = [8, 8], strides = [1, 1]} : vector<8x32xbf16> to vector<8x8xbf16>
    "tpu.trace_start"() <{level = 10 : i32, message = "qd,kd->qk"}> : () -> ()
    %cst_115 = arith.constant dense<0.000000e+00> : vector<8x8xf32>
    %379 = tpu.matmul %377, %378, %cst_115 {dimension_numbers = #tpu.dot_dimension_numbers<[1], [1], [0], [0], [0, 0, 1, 0], [], []>} : vector<8x8xbf16>, vector<8x8xbf16>, vector<8x8xf32> -> vector<8x8xf32>
    "tpu.trace_stop"() : () -> ()
    %cst_116 = arith.constant dense<0xFF800000> : vector<8xf32>
    %380 = vector.multi_reduction <maximumf>, %379, %cst_116 [1] : vector<8x8xf32> to vector<8xf32>
    %381 = vector.shape_cast %380 : vector<8xf32> to vector<8x1xf32>
    %382 = vector.broadcast %381 : vector<8x1xf32> to vector<8x8xf32>
    %383 = arith.subf %379, %382 : vector<8x8xf32>
    %384 = math.exp %383 : vector<8x8xf32>
    %cst_117 = arith.constant dense<0.000000e+00> : vector<8xf32>
    %385 = vector.multi_reduction <add>, %384, %cst_117 [1] : vector<8x8xf32> to vector<8xf32>
    %386 = vector.shape_cast %385 : vector<8xf32> to vector<8x1xf32>
    %387 = tpu.reciprocal %386 {approx = true} : vector<8x1xf32> -> vector<8x1xf32>
    %388 = vector.broadcast %387 : vector<8x1xf32> to vector<8x8xf32>
    %389 = arith.mulf %384, %388 : vector<8x8xf32>
    %390 = arith.truncf %389 : vector<8x8xf32> to vector<8x8xbf16>
    %391 = vector.extract_strided_slice %334 {offsets = [0, 16], sizes = [8, 8], strides = [1, 1]} : vector<8x32xbf16> to vector<8x8xbf16>
    %cst_118 = arith.constant dense<0.000000e+00> : vector<8x8xf32>
    %392 = tpu.matmul %390, %391, %cst_118 {dimension_numbers = #tpu.dot_dimension_numbers<[1], [0], [0], [1], [0, 0, 1, 1], [], []>} : vector<8x8xbf16>, vector<8x8xbf16>, vector<8x8xf32> -> vector<8x8xf32>
    %393 = arith.truncf %392 : vector<8x8xf32> to vector<8x8xbf16>
    %394 = vector.extract_strided_slice %335 {offsets = [0, 16], sizes = [32, 8], strides = [1, 1]} : vector<32x32xbf16> to vector<32x8xbf16>
    "tpu.trace_start"() <{level = 10 : i32, message = "sd,od->so"}> : () -> ()
    %cst_119 = arith.constant dense<0.000000e+00> : vector<8x32xf32>
    %395 = tpu.matmul %393, %394, %cst_119 {dimension_numbers = #tpu.dot_dimension_numbers<[1], [1], [0], [0], [0, 0, 1, 0], [], []>} : vector<8x8xbf16>, vector<32x8xbf16>, vector<8x32xf32> -> vector<8x32xf32>
    "tpu.trace_stop"() : () -> ()
    %396 = arith.addf %376, %395 : vector<8x32xf32>
    %397 = vector.extract_strided_slice %332 {offsets = [0, 24], sizes = [8, 8], strides = [1, 1]} : vector<8x32xbf16> to vector<8x8xbf16>
    %398 = vector.extract_strided_slice %333 {offsets = [0, 24], sizes = [8, 8], strides = [1, 1]} : vector<8x32xbf16> to vector<8x8xbf16>
    "tpu.trace_start"() <{level = 10 : i32, message = "qd,kd->qk"}> : () -> ()
    %cst_120 = arith.constant dense<0.000000e+00> : vector<8x8xf32>
    %399 = tpu.matmul %397, %398, %cst_120 {dimension_numbers = #tpu.dot_dimension_numbers<[1], [1], [0], [0], [0, 0, 1, 0], [], []>} : vector<8x8xbf16>, vector<8x8xbf16>, vector<8x8xf32> -> vector<8x8xf32>
    "tpu.trace_stop"() : () -> ()
    %cst_121 = arith.constant dense<0xFF800000> : vector<8xf32>
    %400 = vector.multi_reduction <maximumf>, %399, %cst_121 [1] : vector<8x8xf32> to vector<8xf32>
    %401 = vector.shape_cast %400 : vector<8xf32> to vector<8x1xf32>
    %402 = vector.broadcast %401 : vector<8x1xf32> to vector<8x8xf32>
    %403 = arith.subf %399, %402 : vector<8x8xf32>
    %404 = math.exp %403 : vector<8x8xf32>
    %cst_122 = arith.constant dense<0.000000e+00> : vector<8xf32>
    %405 = vector.multi_reduction <add>, %404, %cst_122 [1] : vector<8x8xf32> to vector<8xf32>
    %406 = vector.shape_cast %405 : vector<8xf32> to vector<8x1xf32>
    %407 = tpu.reciprocal %406 {approx = true} : vector<8x1xf32> -> vector<8x1xf32>
    %408 = vector.broadcast %407 : vector<8x1xf32> to vector<8x8xf32>
    %409 = arith.mulf %404, %408 : vector<8x8xf32>
    %410 = arith.truncf %409 : vector<8x8xf32> to vector<8x8xbf16>
    %411 = vector.extract_strided_slice %334 {offsets = [0, 24], sizes = [8, 8], strides = [1, 1]} : vector<8x32xbf16> to vector<8x8xbf16>
    %cst_123 = arith.constant dense<0.000000e+00> : vector<8x8xf32>
    %412 = tpu.matmul %410, %411, %cst_123 {dimension_numbers = #tpu.dot_dimension_numbers<[1], [0], [0], [1], [0, 0, 1, 1], [], []>} : vector<8x8xbf16>, vector<8x8xbf16>, vector<8x8xf32> -> vector<8x8xf32>
    %413 = arith.truncf %412 : vector<8x8xf32> to vector<8x8xbf16>
    %414 = vector.extract_strided_slice %335 {offsets = [0, 24], sizes = [32, 8], strides = [1, 1]} : vector<32x32xbf16> to vector<32x8xbf16>
    "tpu.trace_start"() <{level = 10 : i32, message = "sd,od->so"}> : () -> ()
    %cst_124 = arith.constant dense<0.000000e+00> : vector<8x32xf32>
    %415 = tpu.matmul %413, %414, %cst_124 {dimension_numbers = #tpu.dot_dimension_numbers<[1], [1], [0], [0], [0, 0, 1, 0], [], []>} : vector<8x8xbf16>, vector<32x8xbf16>, vector<8x32xf32> -> vector<8x32xf32>
    "tpu.trace_stop"() : () -> ()
    %416 = arith.addf %396, %415 : vector<8x32xf32>
    %c17 = arith.constant 17 : index
    %c0_125 = arith.constant 0 : index
    %417 = vector.load %arg4[%c17, %c0_125] : memref<48x128xf32, #tpu.memory_space<vmem>>, vector<1x32xf32>
    %418 = vector.broadcast %417 : vector<1x32xf32> to vector<8x32xf32>
    %419 = arith.addf %416, %418 : vector<8x32xf32>
    %420 = arith.addf %324, %419 : vector<8x32xf32>
    %c23 = arith.constant 23 : index
    %c0_126 = arith.constant 0 : index
    %421 = vector.load %arg4[%c23, %c0_126] : memref<48x128xf32, #tpu.memory_space<vmem>>, vector<1x32xf32>
    %c24 = arith.constant 24 : index
    %c0_127 = arith.constant 0 : index
    %422 = vector.load %arg4[%c24, %c0_127] : memref<48x128xf32, #tpu.memory_space<vmem>>, vector<1x32xf32>
    %cst_128 = arith.constant dense<0.000000e+00> : vector<8xf32>
    %423 = vector.multi_reduction <add>, %420, %cst_128 [1] : vector<8x32xf32> to vector<8xf32>
    %424 = vector.shape_cast %423 : vector<8xf32> to vector<8x1xf32>
    %cst_129 = arith.constant 3.200000e+01 : f32
    %425 = vector.broadcast %cst_129 : f32 to vector<8x1xf32>
    %426 = arith.divf %424, %425 : vector<8x1xf32>
    %427 = vector.broadcast %426 : vector<8x1xf32> to vector<8x32xf32>
    %428 = arith.subf %420, %427 : vector<8x32xf32>
    %429 = arith.mulf %428, %428 : vector<8x32xf32>
    %cst_130 = arith.constant dense<0.000000e+00> : vector<8xf32>
    %430 = vector.multi_reduction <add>, %429, %cst_130 [1] : vector<8x32xf32> to vector<8xf32>
    %431 = vector.shape_cast %430 : vector<8xf32> to vector<8x1xf32>
    %cst_131 = arith.constant 3.200000e+01 : f32
    %432 = vector.broadcast %cst_131 : f32 to vector<8x1xf32>
    %433 = arith.divf %431, %432 : vector<8x1xf32>
    %434 = vector.broadcast %426 : vector<8x1xf32> to vector<8x32xf32>
    %435 = arith.subf %420, %434 : vector<8x32xf32>
    %cst_132 = arith.constant 9.99999974E-6 : f32
    %436 = vector.broadcast %cst_132 : f32 to vector<8x1xf32>
    %437 = arith.addf %433, %436 : vector<8x1xf32>
    %438 = math.rsqrt %437 : vector<8x1xf32>
    %439 = vector.broadcast %438 : vector<8x1xf32> to vector<8x32xf32>
    %440 = arith.mulf %435, %439 : vector<8x32xf32>
    %441 = vector.broadcast %421 : vector<1x32xf32> to vector<8x32xf32>
    %442 = arith.mulf %440, %441 : vector<8x32xf32>
    %443 = vector.broadcast %422 : vector<1x32xf32> to vector<8x32xf32>
    %444 = arith.addf %442, %443 : vector<8x32xf32>
    %445 = arith.truncf %444 : vector<8x32xf32> to vector<8x32xbf16>
    %c384 = arith.constant 384 : index
    %c0_133 = arith.constant 0 : index
    %446 = vector.load %arg3[%c384, %c0_133] : memref<832x128xbf16, #tpu.memory_space<vmem>>, vector<32x32xbf16>
    %cst_134 = arith.constant dense<0.000000e+00> : vector<8x32xf32>
    %447 = tpu.matmul %445, %446, %cst_134 {dimension_numbers = #tpu.dot_dimension_numbers<[1], [0], [0], [1], [0, 0, 1, 1], [], []>} : vector<8x32xbf16>, vector<32x32xbf16>, vector<8x32xf32> -> vector<8x32xf32>
    %c18 = arith.constant 18 : index
    %c0_135 = arith.constant 0 : index
    %448 = vector.load %arg4[%c18, %c0_135] : memref<48x128xf32, #tpu.memory_space<vmem>>, vector<1x32xf32>
    %449 = vector.broadcast %448 : vector<1x32xf32> to vector<8x32xf32>
    %450 = arith.addf %447, %449 : vector<8x32xf32>
    %451 = arith.truncf %450 : vector<8x32xf32> to vector<8x32xbf16>
    %c416 = arith.constant 416 : index
    %c0_136 = arith.constant 0 : index
    %452 = vector.load %arg3[%c416, %c0_136] : memref<832x128xbf16, #tpu.memory_space<vmem>>, vector<32x64xbf16>
    %cst_137 = arith.constant dense<0.000000e+00> : vector<8x64xf32>
    %453 = tpu.matmul %322, %452, %cst_137 {dimension_numbers = #tpu.dot_dimension_numbers<[1], [0], [0], [1], [0, 0, 1, 1], [], []>} : vector<8x32xbf16>, vector<32x64xbf16>, vector<8x64xf32> -> vector<8x64xf32>
    %c19 = arith.constant 19 : index
    %c0_138 = arith.constant 0 : index
    %454 = vector.load %arg4[%c19, %c0_138] : memref<48x128xf32, #tpu.memory_space<vmem>>, vector<1x64xf32>
    %455 = vector.broadcast %454 : vector<1x64xf32> to vector<8x64xf32>
    %456 = arith.addf %453, %455 : vector<8x64xf32>
    %457 = arith.truncf %456 : vector<8x64xf32> to vector<8x64xbf16>
    %458 = vector.extract_strided_slice %457 {offsets = [0, 0], sizes = [8, 32], strides = [1, 1]} : vector<8x64xbf16> to vector<8x32xbf16>
    %459 = vector.extract_strided_slice %457 {offsets = [0, 32], sizes = [8, 32], strides = [1, 1]} : vector<8x64xbf16> to vector<8x32xbf16>
    %c448 = arith.constant 448 : index
    %c0_139 = arith.constant 0 : index
    %460 = vector.load %arg3[%c448, %c0_139] : memref<832x128xbf16, #tpu.memory_space<vmem>>, vector<32x32xbf16>
    %cst_140 = arith.constant 0.000000e+00 : f32
    %461 = vector.broadcast %cst_140 : f32 to vector<8x32xf32>
    %462 = vector.extract_strided_slice %451 {offsets = [0, 0], sizes = [8, 8], strides = [1, 1]} : vector<8x32xbf16> to vector<8x8xbf16>
    %463 = vector.extract_strided_slice %458 {offsets = [0, 0], sizes = [8, 8], strides = [1, 1]} : vector<8x32xbf16> to vector<8x8xbf16>
    "tpu.trace_start"() <{level = 10 : i32, message = "qd,kd->qk"}> : () -> ()
    %cst_141 = arith.constant dense<0.000000e+00> : vector<8x8xf32>
    %464 = tpu.matmul %462, %463, %cst_141 {dimension_numbers = #tpu.dot_dimension_numbers<[1], [1], [0], [0], [0, 0, 1, 0], [], []>} : vector<8x8xbf16>, vector<8x8xbf16>, vector<8x8xf32> -> vector<8x8xf32>
    "tpu.trace_stop"() : () -> ()
    %cst_142 = arith.constant dense<0xFF800000> : vector<8xf32>
    %465 = vector.multi_reduction <maximumf>, %464, %cst_142 [1] : vector<8x8xf32> to vector<8xf32>
    %466 = vector.shape_cast %465 : vector<8xf32> to vector<8x1xf32>
    %467 = vector.broadcast %466 : vector<8x1xf32> to vector<8x8xf32>
    %468 = arith.subf %464, %467 : vector<8x8xf32>
    %469 = math.exp %468 : vector<8x8xf32>
    %cst_143 = arith.constant dense<0.000000e+00> : vector<8xf32>
    %470 = vector.multi_reduction <add>, %469, %cst_143 [1] : vector<8x8xf32> to vector<8xf32>
    %471 = vector.shape_cast %470 : vector<8xf32> to vector<8x1xf32>
    %472 = tpu.reciprocal %471 {approx = true} : vector<8x1xf32> -> vector<8x1xf32>
    %473 = vector.broadcast %472 : vector<8x1xf32> to vector<8x8xf32>
    %474 = arith.mulf %469, %473 : vector<8x8xf32>
    %475 = arith.truncf %474 : vector<8x8xf32> to vector<8x8xbf16>
    %476 = vector.extract_strided_slice %459 {offsets = [0, 0], sizes = [8, 8], strides = [1, 1]} : vector<8x32xbf16> to vector<8x8xbf16>
    %cst_144 = arith.constant dense<0.000000e+00> : vector<8x8xf32>
    %477 = tpu.matmul %475, %476, %cst_144 {dimension_numbers = #tpu.dot_dimension_numbers<[1], [0], [0], [1], [0, 0, 1, 1], [], []>} : vector<8x8xbf16>, vector<8x8xbf16>, vector<8x8xf32> -> vector<8x8xf32>
    %478 = arith.truncf %477 : vector<8x8xf32> to vector<8x8xbf16>
    %479 = vector.extract_strided_slice %460 {offsets = [0, 0], sizes = [32, 8], strides = [1, 1]} : vector<32x32xbf16> to vector<32x8xbf16>
    "tpu.trace_start"() <{level = 10 : i32, message = "sd,od->so"}> : () -> ()
    %cst_145 = arith.constant dense<0.000000e+00> : vector<8x32xf32>
    %480 = tpu.matmul %478, %479, %cst_145 {dimension_numbers = #tpu.dot_dimension_numbers<[1], [1], [0], [0], [0, 0, 1, 0], [], []>} : vector<8x8xbf16>, vector<32x8xbf16>, vector<8x32xf32> -> vector<8x32xf32>
    "tpu.trace_stop"() : () -> ()
    %481 = arith.addf %461, %480 : vector<8x32xf32>
    %482 = vector.extract_strided_slice %451 {offsets = [0, 8], sizes = [8, 8], strides = [1, 1]} : vector<8x32xbf16> to vector<8x8xbf16>
    %483 = vector.extract_strided_slice %458 {offsets = [0, 8], sizes = [8, 8], strides = [1, 1]} : vector<8x32xbf16> to vector<8x8xbf16>
    "tpu.trace_start"() <{level = 10 : i32, message = "qd,kd->qk"}> : () -> ()
    %cst_146 = arith.constant dense<0.000000e+00> : vector<8x8xf32>
    %484 = tpu.matmul %482, %483, %cst_146 {dimension_numbers = #tpu.dot_dimension_numbers<[1], [1], [0], [0], [0, 0, 1, 0], [], []>} : vector<8x8xbf16>, vector<8x8xbf16>, vector<8x8xf32> -> vector<8x8xf32>
    "tpu.trace_stop"() : () -> ()
    %cst_147 = arith.constant dense<0xFF800000> : vector<8xf32>
    %485 = vector.multi_reduction <maximumf>, %484, %cst_147 [1] : vector<8x8xf32> to vector<8xf32>
    %486 = vector.shape_cast %485 : vector<8xf32> to vector<8x1xf32>
    %487 = vector.broadcast %486 : vector<8x1xf32> to vector<8x8xf32>
    %488 = arith.subf %484, %487 : vector<8x8xf32>
    %489 = math.exp %488 : vector<8x8xf32>
    %cst_148 = arith.constant dense<0.000000e+00> : vector<8xf32>
    %490 = vector.multi_reduction <add>, %489, %cst_148 [1] : vector<8x8xf32> to vector<8xf32>
    %491 = vector.shape_cast %490 : vector<8xf32> to vector<8x1xf32>
    %492 = tpu.reciprocal %491 {approx = true} : vector<8x1xf32> -> vector<8x1xf32>
    %493 = vector.broadcast %492 : vector<8x1xf32> to vector<8x8xf32>
    %494 = arith.mulf %489, %493 : vector<8x8xf32>
    %495 = arith.truncf %494 : vector<8x8xf32> to vector<8x8xbf16>
    %496 = vector.extract_strided_slice %459 {offsets = [0, 8], sizes = [8, 8], strides = [1, 1]} : vector<8x32xbf16> to vector<8x8xbf16>
    %cst_149 = arith.constant dense<0.000000e+00> : vector<8x8xf32>
    %497 = tpu.matmul %495, %496, %cst_149 {dimension_numbers = #tpu.dot_dimension_numbers<[1], [0], [0], [1], [0, 0, 1, 1], [], []>} : vector<8x8xbf16>, vector<8x8xbf16>, vector<8x8xf32> -> vector<8x8xf32>
    %498 = arith.truncf %497 : vector<8x8xf32> to vector<8x8xbf16>
    %499 = vector.extract_strided_slice %460 {offsets = [0, 8], sizes = [32, 8], strides = [1, 1]} : vector<32x32xbf16> to vector<32x8xbf16>
    "tpu.trace_start"() <{level = 10 : i32, message = "sd,od->so"}> : () -> ()
    %cst_150 = arith.constant dense<0.000000e+00> : vector<8x32xf32>
    %500 = tpu.matmul %498, %499, %cst_150 {dimension_numbers = #tpu.dot_dimension_numbers<[1], [1], [0], [0], [0, 0, 1, 0], [], []>} : vector<8x8xbf16>, vector<32x8xbf16>, vector<8x32xf32> -> vector<8x32xf32>
    "tpu.trace_stop"() : () -> ()
    %501 = arith.addf %481, %500 : vector<8x32xf32>
    %502 = vector.extract_strided_slice %451 {offsets = [0, 16], sizes = [8, 8], strides = [1, 1]} : vector<8x32xbf16> to vector<8x8xbf16>
    %503 = vector.extract_strided_slice %458 {offsets = [0, 16], sizes = [8, 8], strides = [1, 1]} : vector<8x32xbf16> to vector<8x8xbf16>
    "tpu.trace_start"() <{level = 10 : i32, message = "qd,kd->qk"}> : () -> ()
    %cst_151 = arith.constant dense<0.000000e+00> : vector<8x8xf32>
    %504 = tpu.matmul %502, %503, %cst_151 {dimension_numbers = #tpu.dot_dimension_numbers<[1], [1], [0], [0], [0, 0, 1, 0], [], []>} : vector<8x8xbf16>, vector<8x8xbf16>, vector<8x8xf32> -> vector<8x8xf32>
    "tpu.trace_stop"() : () -> ()
    %cst_152 = arith.constant dense<0xFF800000> : vector<8xf32>
    %505 = vector.multi_reduction <maximumf>, %504, %cst_152 [1] : vector<8x8xf32> to vector<8xf32>
    %506 = vector.shape_cast %505 : vector<8xf32> to vector<8x1xf32>
    %507 = vector.broadcast %506 : vector<8x1xf32> to vector<8x8xf32>
    %508 = arith.subf %504, %507 : vector<8x8xf32>
    %509 = math.exp %508 : vector<8x8xf32>
    %cst_153 = arith.constant dense<0.000000e+00> : vector<8xf32>
    %510 = vector.multi_reduction <add>, %509, %cst_153 [1] : vector<8x8xf32> to vector<8xf32>
    %511 = vector.shape_cast %510 : vector<8xf32> to vector<8x1xf32>
    %512 = tpu.reciprocal %511 {approx = true} : vector<8x1xf32> -> vector<8x1xf32>
    %513 = vector.broadcast %512 : vector<8x1xf32> to vector<8x8xf32>
    %514 = arith.mulf %509, %513 : vector<8x8xf32>
    %515 = arith.truncf %514 : vector<8x8xf32> to vector<8x8xbf16>
    %516 = vector.extract_strided_slice %459 {offsets = [0, 16], sizes = [8, 8], strides = [1, 1]} : vector<8x32xbf16> to vector<8x8xbf16>
    %cst_154 = arith.constant dense<0.000000e+00> : vector<8x8xf32>
    %517 = tpu.matmul %515, %516, %cst_154 {dimension_numbers = #tpu.dot_dimension_numbers<[1], [0], [0], [1], [0, 0, 1, 1], [], []>} : vector<8x8xbf16>, vector<8x8xbf16>, vector<8x8xf32> -> vector<8x8xf32>
    %518 = arith.truncf %517 : vector<8x8xf32> to vector<8x8xbf16>
    %519 = vector.extract_strided_slice %460 {offsets = [0, 16], sizes = [32, 8], strides = [1, 1]} : vector<32x32xbf16> to vector<32x8xbf16>
    "tpu.trace_start"() <{level = 10 : i32, message = "sd,od->so"}> : () -> ()
    %cst_155 = arith.constant dense<0.000000e+00> : vector<8x32xf32>
    %520 = tpu.matmul %518, %519, %cst_155 {dimension_numbers = #tpu.dot_dimension_numbers<[1], [1], [0], [0], [0, 0, 1, 0], [], []>} : vector<8x8xbf16>, vector<32x8xbf16>, vector<8x32xf32> -> vector<8x32xf32>
    "tpu.trace_stop"() : () -> ()
    %521 = arith.addf %501, %520 : vector<8x32xf32>
    %522 = vector.extract_strided_slice %451 {offsets = [0, 24], sizes = [8, 8], strides = [1, 1]} : vector<8x32xbf16> to vector<8x8xbf16>
    %523 = vector.extract_strided_slice %458 {offsets = [0, 24], sizes = [8, 8], strides = [1, 1]} : vector<8x32xbf16> to vector<8x8xbf16>
    "tpu.trace_start"() <{level = 10 : i32, message = "qd,kd->qk"}> : () -> ()
    %cst_156 = arith.constant dense<0.000000e+00> : vector<8x8xf32>
    %524 = tpu.matmul %522, %523, %cst_156 {dimension_numbers = #tpu.dot_dimension_numbers<[1], [1], [0], [0], [0, 0, 1, 0], [], []>} : vector<8x8xbf16>, vector<8x8xbf16>, vector<8x8xf32> -> vector<8x8xf32>
    "tpu.trace_stop"() : () -> ()
    %cst_157 = arith.constant dense<0xFF800000> : vector<8xf32>
    %525 = vector.multi_reduction <maximumf>, %524, %cst_157 [1] : vector<8x8xf32> to vector<8xf32>
    %526 = vector.shape_cast %525 : vector<8xf32> to vector<8x1xf32>
    %527 = vector.broadcast %526 : vector<8x1xf32> to vector<8x8xf32>
    %528 = arith.subf %524, %527 : vector<8x8xf32>
    %529 = math.exp %528 : vector<8x8xf32>
    %cst_158 = arith.constant dense<0.000000e+00> : vector<8xf32>
    %530 = vector.multi_reduction <add>, %529, %cst_158 [1] : vector<8x8xf32> to vector<8xf32>
    %531 = vector.shape_cast %530 : vector<8xf32> to vector<8x1xf32>
    %532 = tpu.reciprocal %531 {approx = true} : vector<8x1xf32> -> vector<8x1xf32>
    %533 = vector.broadcast %532 : vector<8x1xf32> to vector<8x8xf32>
    %534 = arith.mulf %529, %533 : vector<8x8xf32>
    %535 = arith.truncf %534 : vector<8x8xf32> to vector<8x8xbf16>
    %536 = vector.extract_strided_slice %459 {offsets = [0, 24], sizes = [8, 8], strides = [1, 1]} : vector<8x32xbf16> to vector<8x8xbf16>
    %cst_159 = arith.constant dense<0.000000e+00> : vector<8x8xf32>
    %537 = tpu.matmul %535, %536, %cst_159 {dimension_numbers = #tpu.dot_dimension_numbers<[1], [0], [0], [1], [0, 0, 1, 1], [], []>} : vector<8x8xbf16>, vector<8x8xbf16>, vector<8x8xf32> -> vector<8x8xf32>
    %538 = arith.truncf %537 : vector<8x8xf32> to vector<8x8xbf16>
    %539 = vector.extract_strided_slice %460 {offsets = [0, 24], sizes = [32, 8], strides = [1, 1]} : vector<32x32xbf16> to vector<32x8xbf16>
    "tpu.trace_start"() <{level = 10 : i32, message = "sd,od->so"}> : () -> ()
    %cst_160 = arith.constant dense<0.000000e+00> : vector<8x32xf32>
    %540 = tpu.matmul %538, %539, %cst_160 {dimension_numbers = #tpu.dot_dimension_numbers<[1], [1], [0], [0], [0, 0, 1, 0], [], []>} : vector<8x8xbf16>, vector<32x8xbf16>, vector<8x32xf32> -> vector<8x32xf32>
    "tpu.trace_stop"() : () -> ()
    %541 = arith.addf %521, %540 : vector<8x32xf32>
    %c20 = arith.constant 20 : index
    %c0_161 = arith.constant 0 : index
    %542 = vector.load %arg4[%c20, %c0_161] : memref<48x128xf32, #tpu.memory_space<vmem>>, vector<1x32xf32>
    %543 = vector.broadcast %542 : vector<1x32xf32> to vector<8x32xf32>
    %544 = arith.addf %541, %543 : vector<8x32xf32>
    %545 = arith.addf %444, %544 : vector<8x32xf32>
    %c25 = arith.constant 25 : index
    %c0_162 = arith.constant 0 : index
    %546 = vector.load %arg4[%c25, %c0_162] : memref<48x128xf32, #tpu.memory_space<vmem>>, vector<1x32xf32>
    %c26 = arith.constant 26 : index
    %c0_163 = arith.constant 0 : index
    %547 = vector.load %arg4[%c26, %c0_163] : memref<48x128xf32, #tpu.memory_space<vmem>>, vector<1x32xf32>
    %cst_164 = arith.constant dense<0.000000e+00> : vector<8xf32>
    %548 = vector.multi_reduction <add>, %545, %cst_164 [1] : vector<8x32xf32> to vector<8xf32>
    %549 = vector.shape_cast %548 : vector<8xf32> to vector<8x1xf32>
    %cst_165 = arith.constant 3.200000e+01 : f32
    %550 = vector.broadcast %cst_165 : f32 to vector<8x1xf32>
    %551 = arith.divf %549, %550 : vector<8x1xf32>
    %552 = vector.broadcast %551 : vector<8x1xf32> to vector<8x32xf32>
    %553 = arith.subf %545, %552 : vector<8x32xf32>
    %554 = arith.mulf %553, %553 : vector<8x32xf32>
    %cst_166 = arith.constant dense<0.000000e+00> : vector<8xf32>
    %555 = vector.multi_reduction <add>, %554, %cst_166 [1] : vector<8x32xf32> to vector<8xf32>
    %556 = vector.shape_cast %555 : vector<8xf32> to vector<8x1xf32>
    %cst_167 = arith.constant 3.200000e+01 : f32
    %557 = vector.broadcast %cst_167 : f32 to vector<8x1xf32>
    %558 = arith.divf %556, %557 : vector<8x1xf32>
    %559 = vector.broadcast %551 : vector<8x1xf32> to vector<8x32xf32>
    %560 = arith.subf %545, %559 : vector<8x32xf32>
    %cst_168 = arith.constant 9.99999974E-6 : f32
    %561 = vector.broadcast %cst_168 : f32 to vector<8x1xf32>
    %562 = arith.addf %558, %561 : vector<8x1xf32>
    %563 = math.rsqrt %562 : vector<8x1xf32>
    %564 = vector.broadcast %563 : vector<8x1xf32> to vector<8x32xf32>
    %565 = arith.mulf %560, %564 : vector<8x32xf32>
    %566 = vector.broadcast %546 : vector<1x32xf32> to vector<8x32xf32>
    %567 = arith.mulf %565, %566 : vector<8x32xf32>
    %568 = vector.broadcast %547 : vector<1x32xf32> to vector<8x32xf32>
    %569 = arith.addf %567, %568 : vector<8x32xf32>
    %570 = arith.truncf %569 : vector<8x32xf32> to vector<8x32xbf16>
    %c480 = arith.constant 480 : index
    %c0_169 = arith.constant 0 : index
    %571 = vector.load %arg3[%c480, %c0_169] : memref<832x128xbf16, #tpu.memory_space<vmem>>, vector<32x64xbf16>
    %cst_170 = arith.constant dense<0.000000e+00> : vector<8x64xf32>
    %572 = tpu.matmul %570, %571, %cst_170 {dimension_numbers = #tpu.dot_dimension_numbers<[1], [0], [0], [1], [0, 0, 1, 1], [], []>} : vector<8x32xbf16>, vector<32x64xbf16>, vector<8x64xf32> -> vector<8x64xf32>
    %c21 = arith.constant 21 : index
    %c0_171 = arith.constant 0 : index
    %573 = vector.load %arg4[%c21, %c0_171] : memref<48x128xf32, #tpu.memory_space<vmem>>, vector<1x64xf32>
    %574 = vector.broadcast %573 : vector<1x64xf32> to vector<8x64xf32>
    %575 = arith.addf %572, %574 : vector<8x64xf32>
    %cst_172 = arith.constant 0.000000e+00 : f32
    %576 = vector.broadcast %cst_172 : f32 to vector<8x64xf32>
    %577 = arith.maximumf %575, %576 : vector<8x64xf32>
    %578 = arith.truncf %577 : vector<8x64xf32> to vector<8x64xbf16>
    %c512 = arith.constant 512 : index
    %c0_173 = arith.constant 0 : index
    %579 = vector.load %arg3[%c512, %c0_173] : memref<832x128xbf16, #tpu.memory_space<vmem>>, vector<64x32xbf16>
    %cst_174 = arith.constant dense<0.000000e+00> : vector<8x32xf32>
    %580 = tpu.matmul %578, %579, %cst_174 {dimension_numbers = #tpu.dot_dimension_numbers<[1], [0], [0], [1], [0, 0, 1, 1], [], []>} : vector<8x64xbf16>, vector<64x32xbf16>, vector<8x32xf32> -> vector<8x32xf32>
    %c22 = arith.constant 22 : index
    %c0_175 = arith.constant 0 : index
    %581 = vector.load %arg4[%c22, %c0_175] : memref<48x128xf32, #tpu.memory_space<vmem>>, vector<1x32xf32>
    %582 = vector.broadcast %581 : vector<1x32xf32> to vector<8x32xf32>
    %583 = arith.addf %580, %582 : vector<8x32xf32>
    %584 = arith.addf %569, %583 : vector<8x32xf32>
    %c27 = arith.constant 27 : index
    %c0_176 = arith.constant 0 : index
    %585 = vector.load %arg4[%c27, %c0_176] : memref<48x128xf32, #tpu.memory_space<vmem>>, vector<1x32xf32>
    %c28 = arith.constant 28 : index
    %c0_177 = arith.constant 0 : index
    %586 = vector.load %arg4[%c28, %c0_177] : memref<48x128xf32, #tpu.memory_space<vmem>>, vector<1x32xf32>
    %cst_178 = arith.constant dense<0.000000e+00> : vector<8xf32>
    %587 = vector.multi_reduction <add>, %584, %cst_178 [1] : vector<8x32xf32> to vector<8xf32>
    %588 = vector.shape_cast %587 : vector<8xf32> to vector<8x1xf32>
    %cst_179 = arith.constant 3.200000e+01 : f32
    %589 = vector.broadcast %cst_179 : f32 to vector<8x1xf32>
    %590 = arith.divf %588, %589 : vector<8x1xf32>
    %591 = vector.broadcast %590 : vector<8x1xf32> to vector<8x32xf32>
    %592 = arith.subf %584, %591 : vector<8x32xf32>
    %593 = arith.mulf %592, %592 : vector<8x32xf32>
    %cst_180 = arith.constant dense<0.000000e+00> : vector<8xf32>
    %594 = vector.multi_reduction <add>, %593, %cst_180 [1] : vector<8x32xf32> to vector<8xf32>
    %595 = vector.shape_cast %594 : vector<8xf32> to vector<8x1xf32>
    %cst_181 = arith.constant 3.200000e+01 : f32
    %596 = vector.broadcast %cst_181 : f32 to vector<8x1xf32>
    %597 = arith.divf %595, %596 : vector<8x1xf32>
    %598 = vector.broadcast %590 : vector<8x1xf32> to vector<8x32xf32>
    %599 = arith.subf %584, %598 : vector<8x32xf32>
    %cst_182 = arith.constant 9.99999974E-6 : f32
    %600 = vector.broadcast %cst_182 : f32 to vector<8x1xf32>
    %601 = arith.addf %597, %600 : vector<8x1xf32>
    %602 = math.rsqrt %601 : vector<8x1xf32>
    %603 = vector.broadcast %602 : vector<8x1xf32> to vector<8x32xf32>
    %604 = arith.mulf %599, %603 : vector<8x32xf32>
    %605 = vector.broadcast %585 : vector<1x32xf32> to vector<8x32xf32>
    %606 = arith.mulf %604, %605 : vector<8x32xf32>
    %607 = vector.broadcast %586 : vector<1x32xf32> to vector<8x32xf32>
    %608 = arith.addf %606, %607 : vector<8x32xf32>
    %609 = arith.truncf %608 : vector<8x32xf32> to vector<8x32xbf16>
    %c576 = arith.constant 576 : index
    %c0_183 = arith.constant 0 : index
    %610 = vector.load %arg3[%c576, %c0_183] : memref<832x128xbf16, #tpu.memory_space<vmem>>, vector<32x96xbf16>
    %cst_184 = arith.constant dense<0.000000e+00> : vector<8x96xf32>
    %611 = tpu.matmul %609, %610, %cst_184 {dimension_numbers = #tpu.dot_dimension_numbers<[1], [0], [0], [1], [0, 0, 1, 1], [], []>} : vector<8x32xbf16>, vector<32x96xbf16>, vector<8x96xf32> -> vector<8x96xf32>
    %c29 = arith.constant 29 : index
    %c0_185 = arith.constant 0 : index
    %612 = vector.load %arg4[%c29, %c0_185] : memref<48x128xf32, #tpu.memory_space<vmem>>, vector<1x96xf32>
    %613 = vector.broadcast %612 : vector<1x96xf32> to vector<8x96xf32>
    %614 = arith.addf %611, %613 : vector<8x96xf32>
    %615 = arith.truncf %614 : vector<8x96xf32> to vector<8x96xbf16>
    %616 = vector.extract_strided_slice %615 {offsets = [0, 0], sizes = [8, 32], strides = [1, 1]} : vector<8x96xbf16> to vector<8x32xbf16>
    %617 = vector.extract_strided_slice %615 {offsets = [0, 32], sizes = [8, 32], strides = [1, 1]} : vector<8x96xbf16> to vector<8x32xbf16>
    %618 = vector.extract_strided_slice %615 {offsets = [0, 64], sizes = [8, 32], strides = [1, 1]} : vector<8x96xbf16> to vector<8x32xbf16>
    %c608 = arith.constant 608 : index
    %c0_186 = arith.constant 0 : index
    %619 = vector.load %arg3[%c608, %c0_186] : memref<832x128xbf16, #tpu.memory_space<vmem>>, vector<32x32xbf16>
    %cst_187 = arith.constant 0.000000e+00 : f32
    %620 = vector.broadcast %cst_187 : f32 to vector<8x32xf32>
    %621 = vector.extract_strided_slice %616 {offsets = [0, 0], sizes = [8, 8], strides = [1, 1]} : vector<8x32xbf16> to vector<8x8xbf16>
    %622 = vector.extract_strided_slice %617 {offsets = [0, 0], sizes = [8, 8], strides = [1, 1]} : vector<8x32xbf16> to vector<8x8xbf16>
    "tpu.trace_start"() <{level = 10 : i32, message = "qd,kd->qk"}> : () -> ()
    %cst_188 = arith.constant dense<0.000000e+00> : vector<8x8xf32>
    %623 = tpu.matmul %621, %622, %cst_188 {dimension_numbers = #tpu.dot_dimension_numbers<[1], [1], [0], [0], [0, 0, 1, 0], [], []>} : vector<8x8xbf16>, vector<8x8xbf16>, vector<8x8xf32> -> vector<8x8xf32>
    "tpu.trace_stop"() : () -> ()
    %cst_189 = arith.constant dense<0xFF800000> : vector<8xf32>
    %624 = vector.multi_reduction <maximumf>, %623, %cst_189 [1] : vector<8x8xf32> to vector<8xf32>
    %625 = vector.shape_cast %624 : vector<8xf32> to vector<8x1xf32>
    %626 = vector.broadcast %625 : vector<8x1xf32> to vector<8x8xf32>
    %627 = arith.subf %623, %626 : vector<8x8xf32>
    %628 = math.exp %627 : vector<8x8xf32>
    %cst_190 = arith.constant dense<0.000000e+00> : vector<8xf32>
    %629 = vector.multi_reduction <add>, %628, %cst_190 [1] : vector<8x8xf32> to vector<8xf32>
    %630 = vector.shape_cast %629 : vector<8xf32> to vector<8x1xf32>
    %631 = tpu.reciprocal %630 {approx = true} : vector<8x1xf32> -> vector<8x1xf32>
    %632 = vector.broadcast %631 : vector<8x1xf32> to vector<8x8xf32>
    %633 = arith.mulf %628, %632 : vector<8x8xf32>
    %634 = arith.truncf %633 : vector<8x8xf32> to vector<8x8xbf16>
    %635 = vector.extract_strided_slice %618 {offsets = [0, 0], sizes = [8, 8], strides = [1, 1]} : vector<8x32xbf16> to vector<8x8xbf16>
    %cst_191 = arith.constant dense<0.000000e+00> : vector<8x8xf32>
    %636 = tpu.matmul %634, %635, %cst_191 {dimension_numbers = #tpu.dot_dimension_numbers<[1], [0], [0], [1], [0, 0, 1, 1], [], []>} : vector<8x8xbf16>, vector<8x8xbf16>, vector<8x8xf32> -> vector<8x8xf32>
    %637 = arith.truncf %636 : vector<8x8xf32> to vector<8x8xbf16>
    %638 = vector.extract_strided_slice %619 {offsets = [0, 0], sizes = [32, 8], strides = [1, 1]} : vector<32x32xbf16> to vector<32x8xbf16>
    "tpu.trace_start"() <{level = 10 : i32, message = "sd,od->so"}> : () -> ()
    %cst_192 = arith.constant dense<0.000000e+00> : vector<8x32xf32>
    %639 = tpu.matmul %637, %638, %cst_192 {dimension_numbers = #tpu.dot_dimension_numbers<[1], [1], [0], [0], [0, 0, 1, 0], [], []>} : vector<8x8xbf16>, vector<32x8xbf16>, vector<8x32xf32> -> vector<8x32xf32>
    "tpu.trace_stop"() : () -> ()
    %640 = arith.addf %620, %639 : vector<8x32xf32>
    %641 = vector.extract_strided_slice %616 {offsets = [0, 8], sizes = [8, 8], strides = [1, 1]} : vector<8x32xbf16> to vector<8x8xbf16>
    %642 = vector.extract_strided_slice %617 {offsets = [0, 8], sizes = [8, 8], strides = [1, 1]} : vector<8x32xbf16> to vector<8x8xbf16>
    "tpu.trace_start"() <{level = 10 : i32, message = "qd,kd->qk"}> : () -> ()
    %cst_193 = arith.constant dense<0.000000e+00> : vector<8x8xf32>
    %643 = tpu.matmul %641, %642, %cst_193 {dimension_numbers = #tpu.dot_dimension_numbers<[1], [1], [0], [0], [0, 0, 1, 0], [], []>} : vector<8x8xbf16>, vector<8x8xbf16>, vector<8x8xf32> -> vector<8x8xf32>
    "tpu.trace_stop"() : () -> ()
    %cst_194 = arith.constant dense<0xFF800000> : vector<8xf32>
    %644 = vector.multi_reduction <maximumf>, %643, %cst_194 [1] : vector<8x8xf32> to vector<8xf32>
    %645 = vector.shape_cast %644 : vector<8xf32> to vector<8x1xf32>
    %646 = vector.broadcast %645 : vector<8x1xf32> to vector<8x8xf32>
    %647 = arith.subf %643, %646 : vector<8x8xf32>
    %648 = math.exp %647 : vector<8x8xf32>
    %cst_195 = arith.constant dense<0.000000e+00> : vector<8xf32>
    %649 = vector.multi_reduction <add>, %648, %cst_195 [1] : vector<8x8xf32> to vector<8xf32>
    %650 = vector.shape_cast %649 : vector<8xf32> to vector<8x1xf32>
    %651 = tpu.reciprocal %650 {approx = true} : vector<8x1xf32> -> vector<8x1xf32>
    %652 = vector.broadcast %651 : vector<8x1xf32> to vector<8x8xf32>
    %653 = arith.mulf %648, %652 : vector<8x8xf32>
    %654 = arith.truncf %653 : vector<8x8xf32> to vector<8x8xbf16>
    %655 = vector.extract_strided_slice %618 {offsets = [0, 8], sizes = [8, 8], strides = [1, 1]} : vector<8x32xbf16> to vector<8x8xbf16>
    %cst_196 = arith.constant dense<0.000000e+00> : vector<8x8xf32>
    %656 = tpu.matmul %654, %655, %cst_196 {dimension_numbers = #tpu.dot_dimension_numbers<[1], [0], [0], [1], [0, 0, 1, 1], [], []>} : vector<8x8xbf16>, vector<8x8xbf16>, vector<8x8xf32> -> vector<8x8xf32>
    %657 = arith.truncf %656 : vector<8x8xf32> to vector<8x8xbf16>
    %658 = vector.extract_strided_slice %619 {offsets = [0, 8], sizes = [32, 8], strides = [1, 1]} : vector<32x32xbf16> to vector<32x8xbf16>
    "tpu.trace_start"() <{level = 10 : i32, message = "sd,od->so"}> : () -> ()
    %cst_197 = arith.constant dense<0.000000e+00> : vector<8x32xf32>
    %659 = tpu.matmul %657, %658, %cst_197 {dimension_numbers = #tpu.dot_dimension_numbers<[1], [1], [0], [0], [0, 0, 1, 0], [], []>} : vector<8x8xbf16>, vector<32x8xbf16>, vector<8x32xf32> -> vector<8x32xf32>
    "tpu.trace_stop"() : () -> ()
    %660 = arith.addf %640, %659 : vector<8x32xf32>
    %661 = vector.extract_strided_slice %616 {offsets = [0, 16], sizes = [8, 8], strides = [1, 1]} : vector<8x32xbf16> to vector<8x8xbf16>
    %662 = vector.extract_strided_slice %617 {offsets = [0, 16], sizes = [8, 8], strides = [1, 1]} : vector<8x32xbf16> to vector<8x8xbf16>
    "tpu.trace_start"() <{level = 10 : i32, message = "qd,kd->qk"}> : () -> ()
    %cst_198 = arith.constant dense<0.000000e+00> : vector<8x8xf32>
    %663 = tpu.matmul %661, %662, %cst_198 {dimension_numbers = #tpu.dot_dimension_numbers<[1], [1], [0], [0], [0, 0, 1, 0], [], []>} : vector<8x8xbf16>, vector<8x8xbf16>, vector<8x8xf32> -> vector<8x8xf32>
    "tpu.trace_stop"() : () -> ()
    %cst_199 = arith.constant dense<0xFF800000> : vector<8xf32>
    %664 = vector.multi_reduction <maximumf>, %663, %cst_199 [1] : vector<8x8xf32> to vector<8xf32>
    %665 = vector.shape_cast %664 : vector<8xf32> to vector<8x1xf32>
    %666 = vector.broadcast %665 : vector<8x1xf32> to vector<8x8xf32>
    %667 = arith.subf %663, %666 : vector<8x8xf32>
    %668 = math.exp %667 : vector<8x8xf32>
    %cst_200 = arith.constant dense<0.000000e+00> : vector<8xf32>
    %669 = vector.multi_reduction <add>, %668, %cst_200 [1] : vector<8x8xf32> to vector<8xf32>
    %670 = vector.shape_cast %669 : vector<8xf32> to vector<8x1xf32>
    %671 = tpu.reciprocal %670 {approx = true} : vector<8x1xf32> -> vector<8x1xf32>
    %672 = vector.broadcast %671 : vector<8x1xf32> to vector<8x8xf32>
    %673 = arith.mulf %668, %672 : vector<8x8xf32>
    %674 = arith.truncf %673 : vector<8x8xf32> to vector<8x8xbf16>
    %675 = vector.extract_strided_slice %618 {offsets = [0, 16], sizes = [8, 8], strides = [1, 1]} : vector<8x32xbf16> to vector<8x8xbf16>
    %cst_201 = arith.constant dense<0.000000e+00> : vector<8x8xf32>
    %676 = tpu.matmul %674, %675, %cst_201 {dimension_numbers = #tpu.dot_dimension_numbers<[1], [0], [0], [1], [0, 0, 1, 1], [], []>} : vector<8x8xbf16>, vector<8x8xbf16>, vector<8x8xf32> -> vector<8x8xf32>
    %677 = arith.truncf %676 : vector<8x8xf32> to vector<8x8xbf16>
    %678 = vector.extract_strided_slice %619 {offsets = [0, 16], sizes = [32, 8], strides = [1, 1]} : vector<32x32xbf16> to vector<32x8xbf16>
    "tpu.trace_start"() <{level = 10 : i32, message = "sd,od->so"}> : () -> ()
    %cst_202 = arith.constant dense<0.000000e+00> : vector<8x32xf32>
    %679 = tpu.matmul %677, %678, %cst_202 {dimension_numbers = #tpu.dot_dimension_numbers<[1], [1], [0], [0], [0, 0, 1, 0], [], []>} : vector<8x8xbf16>, vector<32x8xbf16>, vector<8x32xf32> -> vector<8x32xf32>
    "tpu.trace_stop"() : () -> ()
    %680 = arith.addf %660, %679 : vector<8x32xf32>
    %681 = vector.extract_strided_slice %616 {offsets = [0, 24], sizes = [8, 8], strides = [1, 1]} : vector<8x32xbf16> to vector<8x8xbf16>
    %682 = vector.extract_strided_slice %617 {offsets = [0, 24], sizes = [8, 8], strides = [1, 1]} : vector<8x32xbf16> to vector<8x8xbf16>
    "tpu.trace_start"() <{level = 10 : i32, message = "qd,kd->qk"}> : () -> ()
    %cst_203 = arith.constant dense<0.000000e+00> : vector<8x8xf32>
    %683 = tpu.matmul %681, %682, %cst_203 {dimension_numbers = #tpu.dot_dimension_numbers<[1], [1], [0], [0], [0, 0, 1, 0], [], []>} : vector<8x8xbf16>, vector<8x8xbf16>, vector<8x8xf32> -> vector<8x8xf32>
    "tpu.trace_stop"() : () -> ()
    %cst_204 = arith.constant dense<0xFF800000> : vector<8xf32>
    %684 = vector.multi_reduction <maximumf>, %683, %cst_204 [1] : vector<8x8xf32> to vector<8xf32>
    %685 = vector.shape_cast %684 : vector<8xf32> to vector<8x1xf32>
    %686 = vector.broadcast %685 : vector<8x1xf32> to vector<8x8xf32>
    %687 = arith.subf %683, %686 : vector<8x8xf32>
    %688 = math.exp %687 : vector<8x8xf32>
    %cst_205 = arith.constant dense<0.000000e+00> : vector<8xf32>
    %689 = vector.multi_reduction <add>, %688, %cst_205 [1] : vector<8x8xf32> to vector<8xf32>
    %690 = vector.shape_cast %689 : vector<8xf32> to vector<8x1xf32>
    %691 = tpu.reciprocal %690 {approx = true} : vector<8x1xf32> -> vector<8x1xf32>
    %692 = vector.broadcast %691 : vector<8x1xf32> to vector<8x8xf32>
    %693 = arith.mulf %688, %692 : vector<8x8xf32>
    %694 = arith.truncf %693 : vector<8x8xf32> to vector<8x8xbf16>
    %695 = vector.extract_strided_slice %618 {offsets = [0, 24], sizes = [8, 8], strides = [1, 1]} : vector<8x32xbf16> to vector<8x8xbf16>
    %cst_206 = arith.constant dense<0.000000e+00> : vector<8x8xf32>
    %696 = tpu.matmul %694, %695, %cst_206 {dimension_numbers = #tpu.dot_dimension_numbers<[1], [0], [0], [1], [0, 0, 1, 1], [], []>} : vector<8x8xbf16>, vector<8x8xbf16>, vector<8x8xf32> -> vector<8x8xf32>
    %697 = arith.truncf %696 : vector<8x8xf32> to vector<8x8xbf16>
    %698 = vector.extract_strided_slice %619 {offsets = [0, 24], sizes = [32, 8], strides = [1, 1]} : vector<32x32xbf16> to vector<32x8xbf16>
    "tpu.trace_start"() <{level = 10 : i32, message = "sd,od->so"}> : () -> ()
    %cst_207 = arith.constant dense<0.000000e+00> : vector<8x32xf32>
    %699 = tpu.matmul %697, %698, %cst_207 {dimension_numbers = #tpu.dot_dimension_numbers<[1], [1], [0], [0], [0, 0, 1, 0], [], []>} : vector<8x8xbf16>, vector<32x8xbf16>, vector<8x32xf32> -> vector<8x32xf32>
    "tpu.trace_stop"() : () -> ()
    %700 = arith.addf %680, %699 : vector<8x32xf32>
    %c30 = arith.constant 30 : index
    %c0_208 = arith.constant 0 : index
    %701 = vector.load %arg4[%c30, %c0_208] : memref<48x128xf32, #tpu.memory_space<vmem>>, vector<1x32xf32>
    %702 = vector.broadcast %701 : vector<1x32xf32> to vector<8x32xf32>
    %703 = arith.addf %700, %702 : vector<8x32xf32>
    %704 = arith.addf %608, %703 : vector<8x32xf32>
    %c36 = arith.constant 36 : index
    %c0_209 = arith.constant 0 : index
    %705 = vector.load %arg4[%c36, %c0_209] : memref<48x128xf32, #tpu.memory_space<vmem>>, vector<1x32xf32>
    %c37 = arith.constant 37 : index
    %c0_210 = arith.constant 0 : index
    %706 = vector.load %arg4[%c37, %c0_210] : memref<48x128xf32, #tpu.memory_space<vmem>>, vector<1x32xf32>
    %cst_211 = arith.constant dense<0.000000e+00> : vector<8xf32>
    %707 = vector.multi_reduction <add>, %704, %cst_211 [1] : vector<8x32xf32> to vector<8xf32>
    %708 = vector.shape_cast %707 : vector<8xf32> to vector<8x1xf32>
    %cst_212 = arith.constant 3.200000e+01 : f32
    %709 = vector.broadcast %cst_212 : f32 to vector<8x1xf32>
    %710 = arith.divf %708, %709 : vector<8x1xf32>
    %711 = vector.broadcast %710 : vector<8x1xf32> to vector<8x32xf32>
    %712 = arith.subf %704, %711 : vector<8x32xf32>
    %713 = arith.mulf %712, %712 : vector<8x32xf32>
    %cst_213 = arith.constant dense<0.000000e+00> : vector<8xf32>
    %714 = vector.multi_reduction <add>, %713, %cst_213 [1] : vector<8x32xf32> to vector<8xf32>
    %715 = vector.shape_cast %714 : vector<8xf32> to vector<8x1xf32>
    %cst_214 = arith.constant 3.200000e+01 : f32
    %716 = vector.broadcast %cst_214 : f32 to vector<8x1xf32>
    %717 = arith.divf %715, %716 : vector<8x1xf32>
    %718 = vector.broadcast %710 : vector<8x1xf32> to vector<8x32xf32>
    %719 = arith.subf %704, %718 : vector<8x32xf32>
    %cst_215 = arith.constant 9.99999974E-6 : f32
    %720 = vector.broadcast %cst_215 : f32 to vector<8x1xf32>
    %721 = arith.addf %717, %720 : vector<8x1xf32>
    %722 = math.rsqrt %721 : vector<8x1xf32>
    %723 = vector.broadcast %722 : vector<8x1xf32> to vector<8x32xf32>
    %724 = arith.mulf %719, %723 : vector<8x32xf32>
    %725 = vector.broadcast %705 : vector<1x32xf32> to vector<8x32xf32>
    %726 = arith.mulf %724, %725 : vector<8x32xf32>
    %727 = vector.broadcast %706 : vector<1x32xf32> to vector<8x32xf32>
    %728 = arith.addf %726, %727 : vector<8x32xf32>
    %729 = arith.truncf %728 : vector<8x32xf32> to vector<8x32xbf16>
    %c640 = arith.constant 640 : index
    %c0_216 = arith.constant 0 : index
    %730 = vector.load %arg3[%c640, %c0_216] : memref<832x128xbf16, #tpu.memory_space<vmem>>, vector<32x32xbf16>
    %cst_217 = arith.constant dense<0.000000e+00> : vector<8x32xf32>
    %731 = tpu.matmul %729, %730, %cst_217 {dimension_numbers = #tpu.dot_dimension_numbers<[1], [0], [0], [1], [0, 0, 1, 1], [], []>} : vector<8x32xbf16>, vector<32x32xbf16>, vector<8x32xf32> -> vector<8x32xf32>
    %c31 = arith.constant 31 : index
    %c0_218 = arith.constant 0 : index
    %732 = vector.load %arg4[%c31, %c0_218] : memref<48x128xf32, #tpu.memory_space<vmem>>, vector<1x32xf32>
    %733 = vector.broadcast %732 : vector<1x32xf32> to vector<8x32xf32>
    %734 = arith.addf %731, %733 : vector<8x32xf32>
    %735 = arith.truncf %734 : vector<8x32xf32> to vector<8x32xbf16>
    %c672 = arith.constant 672 : index
    %c0_219 = arith.constant 0 : index
    %736 = vector.load %arg3[%c672, %c0_219] : memref<832x128xbf16, #tpu.memory_space<vmem>>, vector<32x64xbf16>
    %cst_220 = arith.constant dense<0.000000e+00> : vector<8x64xf32>
    %737 = tpu.matmul %322, %736, %cst_220 {dimension_numbers = #tpu.dot_dimension_numbers<[1], [0], [0], [1], [0, 0, 1, 1], [], []>} : vector<8x32xbf16>, vector<32x64xbf16>, vector<8x64xf32> -> vector<8x64xf32>
    %c32_221 = arith.constant 32 : index
    %c0_222 = arith.constant 0 : index
    %738 = vector.load %arg4[%c32_221, %c0_222] : memref<48x128xf32, #tpu.memory_space<vmem>>, vector<1x64xf32>
    %739 = vector.broadcast %738 : vector<1x64xf32> to vector<8x64xf32>
    %740 = arith.addf %737, %739 : vector<8x64xf32>
    %741 = arith.truncf %740 : vector<8x64xf32> to vector<8x64xbf16>
    %742 = vector.extract_strided_slice %741 {offsets = [0, 0], sizes = [8, 32], strides = [1, 1]} : vector<8x64xbf16> to vector<8x32xbf16>
    %743 = vector.extract_strided_slice %741 {offsets = [0, 32], sizes = [8, 32], strides = [1, 1]} : vector<8x64xbf16> to vector<8x32xbf16>
    %c704 = arith.constant 704 : index
    %c0_223 = arith.constant 0 : index
    %744 = vector.load %arg3[%c704, %c0_223] : memref<832x128xbf16, #tpu.memory_space<vmem>>, vector<32x32xbf16>
    %cst_224 = arith.constant 0.000000e+00 : f32
    %745 = vector.broadcast %cst_224 : f32 to vector<8x32xf32>
    %746 = vector.extract_strided_slice %735 {offsets = [0, 0], sizes = [8, 8], strides = [1, 1]} : vector<8x32xbf16> to vector<8x8xbf16>
    %747 = vector.extract_strided_slice %742 {offsets = [0, 0], sizes = [8, 8], strides = [1, 1]} : vector<8x32xbf16> to vector<8x8xbf16>
    "tpu.trace_start"() <{level = 10 : i32, message = "qd,kd->qk"}> : () -> ()
    %cst_225 = arith.constant dense<0.000000e+00> : vector<8x8xf32>
    %748 = tpu.matmul %746, %747, %cst_225 {dimension_numbers = #tpu.dot_dimension_numbers<[1], [1], [0], [0], [0, 0, 1, 0], [], []>} : vector<8x8xbf16>, vector<8x8xbf16>, vector<8x8xf32> -> vector<8x8xf32>
    "tpu.trace_stop"() : () -> ()
    %cst_226 = arith.constant dense<0xFF800000> : vector<8xf32>
    %749 = vector.multi_reduction <maximumf>, %748, %cst_226 [1] : vector<8x8xf32> to vector<8xf32>
    %750 = vector.shape_cast %749 : vector<8xf32> to vector<8x1xf32>
    %751 = vector.broadcast %750 : vector<8x1xf32> to vector<8x8xf32>
    %752 = arith.subf %748, %751 : vector<8x8xf32>
    %753 = math.exp %752 : vector<8x8xf32>
    %cst_227 = arith.constant dense<0.000000e+00> : vector<8xf32>
    %754 = vector.multi_reduction <add>, %753, %cst_227 [1] : vector<8x8xf32> to vector<8xf32>
    %755 = vector.shape_cast %754 : vector<8xf32> to vector<8x1xf32>
    %756 = tpu.reciprocal %755 {approx = true} : vector<8x1xf32> -> vector<8x1xf32>
    %757 = vector.broadcast %756 : vector<8x1xf32> to vector<8x8xf32>
    %758 = arith.mulf %753, %757 : vector<8x8xf32>
    %759 = arith.truncf %758 : vector<8x8xf32> to vector<8x8xbf16>
    %760 = vector.extract_strided_slice %743 {offsets = [0, 0], sizes = [8, 8], strides = [1, 1]} : vector<8x32xbf16> to vector<8x8xbf16>
    %cst_228 = arith.constant dense<0.000000e+00> : vector<8x8xf32>
    %761 = tpu.matmul %759, %760, %cst_228 {dimension_numbers = #tpu.dot_dimension_numbers<[1], [0], [0], [1], [0, 0, 1, 1], [], []>} : vector<8x8xbf16>, vector<8x8xbf16>, vector<8x8xf32> -> vector<8x8xf32>
    %762 = arith.truncf %761 : vector<8x8xf32> to vector<8x8xbf16>
    %763 = vector.extract_strided_slice %744 {offsets = [0, 0], sizes = [32, 8], strides = [1, 1]} : vector<32x32xbf16> to vector<32x8xbf16>
    "tpu.trace_start"() <{level = 10 : i32, message = "sd,od->so"}> : () -> ()
    %cst_229 = arith.constant dense<0.000000e+00> : vector<8x32xf32>
    %764 = tpu.matmul %762, %763, %cst_229 {dimension_numbers = #tpu.dot_dimension_numbers<[1], [1], [0], [0], [0, 0, 1, 0], [], []>} : vector<8x8xbf16>, vector<32x8xbf16>, vector<8x32xf32> -> vector<8x32xf32>
    "tpu.trace_stop"() : () -> ()
    %765 = arith.addf %745, %764 : vector<8x32xf32>
    %766 = vector.extract_strided_slice %735 {offsets = [0, 8], sizes = [8, 8], strides = [1, 1]} : vector<8x32xbf16> to vector<8x8xbf16>
    %767 = vector.extract_strided_slice %742 {offsets = [0, 8], sizes = [8, 8], strides = [1, 1]} : vector<8x32xbf16> to vector<8x8xbf16>
    "tpu.trace_start"() <{level = 10 : i32, message = "qd,kd->qk"}> : () -> ()
    %cst_230 = arith.constant dense<0.000000e+00> : vector<8x8xf32>
    %768 = tpu.matmul %766, %767, %cst_230 {dimension_numbers = #tpu.dot_dimension_numbers<[1], [1], [0], [0], [0, 0, 1, 0], [], []>} : vector<8x8xbf16>, vector<8x8xbf16>, vector<8x8xf32> -> vector<8x8xf32>
    "tpu.trace_stop"() : () -> ()
    %cst_231 = arith.constant dense<0xFF800000> : vector<8xf32>
    %769 = vector.multi_reduction <maximumf>, %768, %cst_231 [1] : vector<8x8xf32> to vector<8xf32>
    %770 = vector.shape_cast %769 : vector<8xf32> to vector<8x1xf32>
    %771 = vector.broadcast %770 : vector<8x1xf32> to vector<8x8xf32>
    %772 = arith.subf %768, %771 : vector<8x8xf32>
    %773 = math.exp %772 : vector<8x8xf32>
    %cst_232 = arith.constant dense<0.000000e+00> : vector<8xf32>
    %774 = vector.multi_reduction <add>, %773, %cst_232 [1] : vector<8x8xf32> to vector<8xf32>
    %775 = vector.shape_cast %774 : vector<8xf32> to vector<8x1xf32>
    %776 = tpu.reciprocal %775 {approx = true} : vector<8x1xf32> -> vector<8x1xf32>
    %777 = vector.broadcast %776 : vector<8x1xf32> to vector<8x8xf32>
    %778 = arith.mulf %773, %777 : vector<8x8xf32>
    %779 = arith.truncf %778 : vector<8x8xf32> to vector<8x8xbf16>
    %780 = vector.extract_strided_slice %743 {offsets = [0, 8], sizes = [8, 8], strides = [1, 1]} : vector<8x32xbf16> to vector<8x8xbf16>
    %cst_233 = arith.constant dense<0.000000e+00> : vector<8x8xf32>
    %781 = tpu.matmul %779, %780, %cst_233 {dimension_numbers = #tpu.dot_dimension_numbers<[1], [0], [0], [1], [0, 0, 1, 1], [], []>} : vector<8x8xbf16>, vector<8x8xbf16>, vector<8x8xf32> -> vector<8x8xf32>
    %782 = arith.truncf %781 : vector<8x8xf32> to vector<8x8xbf16>
    %783 = vector.extract_strided_slice %744 {offsets = [0, 8], sizes = [32, 8], strides = [1, 1]} : vector<32x32xbf16> to vector<32x8xbf16>
    "tpu.trace_start"() <{level = 10 : i32, message = "sd,od->so"}> : () -> ()
    %cst_234 = arith.constant dense<0.000000e+00> : vector<8x32xf32>
    %784 = tpu.matmul %782, %783, %cst_234 {dimension_numbers = #tpu.dot_dimension_numbers<[1], [1], [0], [0], [0, 0, 1, 0], [], []>} : vector<8x8xbf16>, vector<32x8xbf16>, vector<8x32xf32> -> vector<8x32xf32>
    "tpu.trace_stop"() : () -> ()
    %785 = arith.addf %765, %784 : vector<8x32xf32>
    %786 = vector.extract_strided_slice %735 {offsets = [0, 16], sizes = [8, 8], strides = [1, 1]} : vector<8x32xbf16> to vector<8x8xbf16>
    %787 = vector.extract_strided_slice %742 {offsets = [0, 16], sizes = [8, 8], strides = [1, 1]} : vector<8x32xbf16> to vector<8x8xbf16>
    "tpu.trace_start"() <{level = 10 : i32, message = "qd,kd->qk"}> : () -> ()
    %cst_235 = arith.constant dense<0.000000e+00> : vector<8x8xf32>
    %788 = tpu.matmul %786, %787, %cst_235 {dimension_numbers = #tpu.dot_dimension_numbers<[1], [1], [0], [0], [0, 0, 1, 0], [], []>} : vector<8x8xbf16>, vector<8x8xbf16>, vector<8x8xf32> -> vector<8x8xf32>
    "tpu.trace_stop"() : () -> ()
    %cst_236 = arith.constant dense<0xFF800000> : vector<8xf32>
    %789 = vector.multi_reduction <maximumf>, %788, %cst_236 [1] : vector<8x8xf32> to vector<8xf32>
    %790 = vector.shape_cast %789 : vector<8xf32> to vector<8x1xf32>
    %791 = vector.broadcast %790 : vector<8x1xf32> to vector<8x8xf32>
    %792 = arith.subf %788, %791 : vector<8x8xf32>
    %793 = math.exp %792 : vector<8x8xf32>
    %cst_237 = arith.constant dense<0.000000e+00> : vector<8xf32>
    %794 = vector.multi_reduction <add>, %793, %cst_237 [1] : vector<8x8xf32> to vector<8xf32>
    %795 = vector.shape_cast %794 : vector<8xf32> to vector<8x1xf32>
    %796 = tpu.reciprocal %795 {approx = true} : vector<8x1xf32> -> vector<8x1xf32>
    %797 = vector.broadcast %796 : vector<8x1xf32> to vector<8x8xf32>
    %798 = arith.mulf %793, %797 : vector<8x8xf32>
    %799 = arith.truncf %798 : vector<8x8xf32> to vector<8x8xbf16>
    %800 = vector.extract_strided_slice %743 {offsets = [0, 16], sizes = [8, 8], strides = [1, 1]} : vector<8x32xbf16> to vector<8x8xbf16>
    %cst_238 = arith.constant dense<0.000000e+00> : vector<8x8xf32>
    %801 = tpu.matmul %799, %800, %cst_238 {dimension_numbers = #tpu.dot_dimension_numbers<[1], [0], [0], [1], [0, 0, 1, 1], [], []>} : vector<8x8xbf16>, vector<8x8xbf16>, vector<8x8xf32> -> vector<8x8xf32>
    %802 = arith.truncf %801 : vector<8x8xf32> to vector<8x8xbf16>
    %803 = vector.extract_strided_slice %744 {offsets = [0, 16], sizes = [32, 8], strides = [1, 1]} : vector<32x32xbf16> to vector<32x8xbf16>
    "tpu.trace_start"() <{level = 10 : i32, message = "sd,od->so"}> : () -> ()
    %cst_239 = arith.constant dense<0.000000e+00> : vector<8x32xf32>
    %804 = tpu.matmul %802, %803, %cst_239 {dimension_numbers = #tpu.dot_dimension_numbers<[1], [1], [0], [0], [0, 0, 1, 0], [], []>} : vector<8x8xbf16>, vector<32x8xbf16>, vector<8x32xf32> -> vector<8x32xf32>
    "tpu.trace_stop"() : () -> ()
    %805 = arith.addf %785, %804 : vector<8x32xf32>
    %806 = vector.extract_strided_slice %735 {offsets = [0, 24], sizes = [8, 8], strides = [1, 1]} : vector<8x32xbf16> to vector<8x8xbf16>
    %807 = vector.extract_strided_slice %742 {offsets = [0, 24], sizes = [8, 8], strides = [1, 1]} : vector<8x32xbf16> to vector<8x8xbf16>
    "tpu.trace_start"() <{level = 10 : i32, message = "qd,kd->qk"}> : () -> ()
    %cst_240 = arith.constant dense<0.000000e+00> : vector<8x8xf32>
    %808 = tpu.matmul %806, %807, %cst_240 {dimension_numbers = #tpu.dot_dimension_numbers<[1], [1], [0], [0], [0, 0, 1, 0], [], []>} : vector<8x8xbf16>, vector<8x8xbf16>, vector<8x8xf32> -> vector<8x8xf32>
    "tpu.trace_stop"() : () -> ()
    %cst_241 = arith.constant dense<0xFF800000> : vector<8xf32>
    %809 = vector.multi_reduction <maximumf>, %808, %cst_241 [1] : vector<8x8xf32> to vector<8xf32>
    %810 = vector.shape_cast %809 : vector<8xf32> to vector<8x1xf32>
    %811 = vector.broadcast %810 : vector<8x1xf32> to vector<8x8xf32>
    %812 = arith.subf %808, %811 : vector<8x8xf32>
    %813 = math.exp %812 : vector<8x8xf32>
    %cst_242 = arith.constant dense<0.000000e+00> : vector<8xf32>
    %814 = vector.multi_reduction <add>, %813, %cst_242 [1] : vector<8x8xf32> to vector<8xf32>
    %815 = vector.shape_cast %814 : vector<8xf32> to vector<8x1xf32>
    %816 = tpu.reciprocal %815 {approx = true} : vector<8x1xf32> -> vector<8x1xf32>
    %817 = vector.broadcast %816 : vector<8x1xf32> to vector<8x8xf32>
    %818 = arith.mulf %813, %817 : vector<8x8xf32>
    %819 = arith.truncf %818 : vector<8x8xf32> to vector<8x8xbf16>
    %820 = vector.extract_strided_slice %743 {offsets = [0, 24], sizes = [8, 8], strides = [1, 1]} : vector<8x32xbf16> to vector<8x8xbf16>
    %cst_243 = arith.constant dense<0.000000e+00> : vector<8x8xf32>
    %821 = tpu.matmul %819, %820, %cst_243 {dimension_numbers = #tpu.dot_dimension_numbers<[1], [0], [0], [1], [0, 0, 1, 1], [], []>} : vector<8x8xbf16>, vector<8x8xbf16>, vector<8x8xf32> -> vector<8x8xf32>
    %822 = arith.truncf %821 : vector<8x8xf32> to vector<8x8xbf16>
    %823 = vector.extract_strided_slice %744 {offsets = [0, 24], sizes = [32, 8], strides = [1, 1]} : vector<32x32xbf16> to vector<32x8xbf16>
    "tpu.trace_start"() <{level = 10 : i32, message = "sd,od->so"}> : () -> ()
    %cst_244 = arith.constant dense<0.000000e+00> : vector<8x32xf32>
    %824 = tpu.matmul %822, %823, %cst_244 {dimension_numbers = #tpu.dot_dimension_numbers<[1], [1], [0], [0], [0, 0, 1, 0], [], []>} : vector<8x8xbf16>, vector<32x8xbf16>, vector<8x32xf32> -> vector<8x32xf32>
    "tpu.trace_stop"() : () -> ()
    %825 = arith.addf %805, %824 : vector<8x32xf32>
    %c33 = arith.constant 33 : index
    %c0_245 = arith.constant 0 : index
    %826 = vector.load %arg4[%c33, %c0_245] : memref<48x128xf32, #tpu.memory_space<vmem>>, vector<1x32xf32>
    %827 = vector.broadcast %826 : vector<1x32xf32> to vector<8x32xf32>
    %828 = arith.addf %825, %827 : vector<8x32xf32>
    %829 = arith.addf %728, %828 : vector<8x32xf32>
    %c38 = arith.constant 38 : index
    %c0_246 = arith.constant 0 : index
    %830 = vector.load %arg4[%c38, %c0_246] : memref<48x128xf32, #tpu.memory_space<vmem>>, vector<1x32xf32>
    %c39 = arith.constant 39 : index
    %c0_247 = arith.constant 0 : index
    %831 = vector.load %arg4[%c39, %c0_247] : memref<48x128xf32, #tpu.memory_space<vmem>>, vector<1x32xf32>
    %cst_248 = arith.constant dense<0.000000e+00> : vector<8xf32>
    %832 = vector.multi_reduction <add>, %829, %cst_248 [1] : vector<8x32xf32> to vector<8xf32>
    %833 = vector.shape_cast %832 : vector<8xf32> to vector<8x1xf32>
    %cst_249 = arith.constant 3.200000e+01 : f32
    %834 = vector.broadcast %cst_249 : f32 to vector<8x1xf32>
    %835 = arith.divf %833, %834 : vector<8x1xf32>
    %836 = vector.broadcast %835 : vector<8x1xf32> to vector<8x32xf32>
    %837 = arith.subf %829, %836 : vector<8x32xf32>
    %838 = arith.mulf %837, %837 : vector<8x32xf32>
    %cst_250 = arith.constant dense<0.000000e+00> : vector<8xf32>
    %839 = vector.multi_reduction <add>, %838, %cst_250 [1] : vector<8x32xf32> to vector<8xf32>
    %840 = vector.shape_cast %839 : vector<8xf32> to vector<8x1xf32>
    %cst_251 = arith.constant 3.200000e+01 : f32
    %841 = vector.broadcast %cst_251 : f32 to vector<8x1xf32>
    %842 = arith.divf %840, %841 : vector<8x1xf32>
    %843 = vector.broadcast %835 : vector<8x1xf32> to vector<8x32xf32>
    %844 = arith.subf %829, %843 : vector<8x32xf32>
    %cst_252 = arith.constant 9.99999974E-6 : f32
    %845 = vector.broadcast %cst_252 : f32 to vector<8x1xf32>
    %846 = arith.addf %842, %845 : vector<8x1xf32>
    %847 = math.rsqrt %846 : vector<8x1xf32>
    %848 = vector.broadcast %847 : vector<8x1xf32> to vector<8x32xf32>
    %849 = arith.mulf %844, %848 : vector<8x32xf32>
    %850 = vector.broadcast %830 : vector<1x32xf32> to vector<8x32xf32>
    %851 = arith.mulf %849, %850 : vector<8x32xf32>
    %852 = vector.broadcast %831 : vector<1x32xf32> to vector<8x32xf32>
    %853 = arith.addf %851, %852 : vector<8x32xf32>
    %854 = arith.truncf %853 : vector<8x32xf32> to vector<8x32xbf16>
    %c736 = arith.constant 736 : index
    %c0_253 = arith.constant 0 : index
    %855 = vector.load %arg3[%c736, %c0_253] : memref<832x128xbf16, #tpu.memory_space<vmem>>, vector<32x64xbf16>
    %cst_254 = arith.constant dense<0.000000e+00> : vector<8x64xf32>
    %856 = tpu.matmul %854, %855, %cst_254 {dimension_numbers = #tpu.dot_dimension_numbers<[1], [0], [0], [1], [0, 0, 1, 1], [], []>} : vector<8x32xbf16>, vector<32x64xbf16>, vector<8x64xf32> -> vector<8x64xf32>
    %c34 = arith.constant 34 : index
    %c0_255 = arith.constant 0 : index
    %857 = vector.load %arg4[%c34, %c0_255] : memref<48x128xf32, #tpu.memory_space<vmem>>, vector<1x64xf32>
    %858 = vector.broadcast %857 : vector<1x64xf32> to vector<8x64xf32>
    %859 = arith.addf %856, %858 : vector<8x64xf32>
    %cst_256 = arith.constant 0.000000e+00 : f32
    %860 = vector.broadcast %cst_256 : f32 to vector<8x64xf32>
    %861 = arith.maximumf %859, %860 : vector<8x64xf32>
    %862 = arith.truncf %861 : vector<8x64xf32> to vector<8x64xbf16>
    %c768 = arith.constant 768 : index
    %c0_257 = arith.constant 0 : index
    %863 = vector.load %arg3[%c768, %c0_257] : memref<832x128xbf16, #tpu.memory_space<vmem>>, vector<64x32xbf16>
    %cst_258 = arith.constant dense<0.000000e+00> : vector<8x32xf32>
    %864 = tpu.matmul %862, %863, %cst_258 {dimension_numbers = #tpu.dot_dimension_numbers<[1], [0], [0], [1], [0, 0, 1, 1], [], []>} : vector<8x64xbf16>, vector<64x32xbf16>, vector<8x32xf32> -> vector<8x32xf32>
    %c35 = arith.constant 35 : index
    %c0_259 = arith.constant 0 : index
    %865 = vector.load %arg4[%c35, %c0_259] : memref<48x128xf32, #tpu.memory_space<vmem>>, vector<1x32xf32>
    %866 = vector.broadcast %865 : vector<1x32xf32> to vector<8x32xf32>
    %867 = arith.addf %864, %866 : vector<8x32xf32>
    %868 = arith.addf %853, %867 : vector<8x32xf32>
    %c40 = arith.constant 40 : index
    %c0_260 = arith.constant 0 : index
    %869 = vector.load %arg4[%c40, %c0_260] : memref<48x128xf32, #tpu.memory_space<vmem>>, vector<1x32xf32>
    %c41 = arith.constant 41 : index
    %c0_261 = arith.constant 0 : index
    %870 = vector.load %arg4[%c41, %c0_261] : memref<48x128xf32, #tpu.memory_space<vmem>>, vector<1x32xf32>
    %cst_262 = arith.constant dense<0.000000e+00> : vector<8xf32>
    %871 = vector.multi_reduction <add>, %868, %cst_262 [1] : vector<8x32xf32> to vector<8xf32>
    %872 = vector.shape_cast %871 : vector<8xf32> to vector<8x1xf32>
    %cst_263 = arith.constant 3.200000e+01 : f32
    %873 = vector.broadcast %cst_263 : f32 to vector<8x1xf32>
    %874 = arith.divf %872, %873 : vector<8x1xf32>
    %875 = vector.broadcast %874 : vector<8x1xf32> to vector<8x32xf32>
    %876 = arith.subf %868, %875 : vector<8x32xf32>
    %877 = arith.mulf %876, %876 : vector<8x32xf32>
    %cst_264 = arith.constant dense<0.000000e+00> : vector<8xf32>
    %878 = vector.multi_reduction <add>, %877, %cst_264 [1] : vector<8x32xf32> to vector<8xf32>
    %879 = vector.shape_cast %878 : vector<8xf32> to vector<8x1xf32>
    %cst_265 = arith.constant 3.200000e+01 : f32
    %880 = vector.broadcast %cst_265 : f32 to vector<8x1xf32>
    %881 = arith.divf %879, %880 : vector<8x1xf32>
    %882 = vector.broadcast %874 : vector<8x1xf32> to vector<8x32xf32>
    %883 = arith.subf %868, %882 : vector<8x32xf32>
    %cst_266 = arith.constant 9.99999974E-6 : f32
    %884 = vector.broadcast %cst_266 : f32 to vector<8x1xf32>
    %885 = arith.addf %881, %884 : vector<8x1xf32>
    %886 = math.rsqrt %885 : vector<8x1xf32>
    %887 = vector.broadcast %886 : vector<8x1xf32> to vector<8x32xf32>
    %888 = arith.mulf %883, %887 : vector<8x32xf32>
    %889 = vector.broadcast %869 : vector<1x32xf32> to vector<8x32xf32>
    %890 = arith.mulf %888, %889 : vector<8x32xf32>
    %891 = vector.broadcast %870 : vector<1x32xf32> to vector<8x32xf32>
    %892 = arith.addf %890, %891 : vector<8x32xf32>
    %c42 = arith.constant 42 : index
    %c0_267 = arith.constant 0 : index
    %893 = vector.load %arg4[%c42, %c0_267] : memref<48x128xf32, #tpu.memory_space<vmem>>, vector<1x32xf32>
    "tpu.trace_start"() <{level = 10 : i32, message = "od,sd->os"}> : () -> ()
    %cst_268 = arith.constant dense<0.000000e+00> : vector<1x8xf32>
    %894 = tpu.matmul %893, %892, %cst_268 {dimension_numbers = #tpu.dot_dimension_numbers<[1], [1], [0], [0], [0, 0, 1, 0], [], []>} : vector<1x32xf32>, vector<8x32xf32>, vector<1x8xf32> -> vector<1x8xf32>
    "tpu.trace_stop"() : () -> ()
    %cst_269 = arith.constant dense<0xFF800000> : vector<1xf32>
    %895 = vector.multi_reduction <maximumf>, %894, %cst_269 [1] : vector<1x8xf32> to vector<1xf32>
    %896 = vector.shape_cast %895 : vector<1xf32> to vector<1x1xf32>
    %897 = vector.broadcast %896 : vector<1x1xf32> to vector<1x8xf32>
    %898 = arith.subf %894, %897 : vector<1x8xf32>
    %899 = math.exp %898 : vector<1x8xf32>
    %cst_270 = arith.constant dense<0.000000e+00> : vector<1xf32>
    %900 = vector.multi_reduction <add>, %899, %cst_270 [1] : vector<1x8xf32> to vector<1xf32>
    %901 = vector.shape_cast %900 : vector<1xf32> to vector<1x1xf32>
    %902 = tpu.reciprocal %901 {approx = true} : vector<1x1xf32> -> vector<1x1xf32>
    %903 = vector.broadcast %902 : vector<1x1xf32> to vector<1x8xf32>
    %904 = arith.mulf %899, %903 : vector<1x8xf32>
    %cst_271 = arith.constant dense<0.000000e+00> : vector<1x32xf32>
    %905 = tpu.matmul %904, %892, %cst_271 {dimension_numbers = #tpu.dot_dimension_numbers<[1], [0], [0], [1], [0, 0, 1, 1], [], []>} : vector<1x8xf32>, vector<8x32xf32>, vector<1x32xf32> -> vector<1x32xf32>
    %c0_272 = arith.constant 0 : index
    %c0_273 = arith.constant 0 : index
    %c0_274 = arith.constant 0 : index
    %906 = vector.load %arg5[%c0_272, %c0_273, %c0_274] : memref<1x1x32xf32, #tpu.memory_space<vmem>>, vector<1x1x32xf32>
    %907 = vector.shape_cast %906 : vector<1x1x32xf32> to vector<1x32xf32>
    %908 = vector.shape_cast %905 : vector<1x32xf32> to vector<1x1x32xf32>
    tpu.vector_store %arg5[%c0_272, %c0_273, %c0_274], %908 {strides = array<i32>} : memref<1x1x32xf32, #tpu.memory_space<vmem>>, vector<1x1x32xf32>,
    return
  }
  func.func @transform_0(%arg0: i32) -> (i32, i32, i32) {
    %c0_i32 = arith.constant 0 : i32
    %c0_i32_0 = arith.constant 0 : i32
    %c0_i32_1 = arith.constant 0 : i32
    return %arg0, %c0_i32, %c0_i32_0 : i32, i32, i32
  }
  func.func @transform_1(%arg0: i32) -> (i32, i32) {
    %c0_i32 = arith.constant 0 : i32
    %c0_i32_0 = arith.constant 0 : i32
    %c0_i32_1 = arith.constant 0 : i32
    return %c0_i32, %c0_i32_0 : i32, i32
  }
  func.func @transform_2(%arg0: i32) -> (i32, i32) {
    %c0_i32 = arith.constant 0 : i32
    %c0_i32_0 = arith.constant 0 : i32
    %c0_i32_1 = arith.constant 0 : i32
    return %c0_i32, %c0_i32_0 : i32, i32
  }
  func.func @transform_3(%arg0: i32) -> (i32, i32) {
    %c0_i32 = arith.constant 0 : i32
    %c0_i32_0 = arith.constant 0 : i32
    %c0_i32_1 = arith.constant 0 : i32
    return %c0_i32, %c0_i32_0 : i32, i32
  }
  func.func @transform_4(%arg0: i32) -> (i32, i32, i32) {
    %c0_i32 = arith.constant 0 : i32
    %c0_i32_0 = arith.constant 0 : i32
    %c0_i32_1 = arith.constant 0 : i32
    return %arg0, %c0_i32, %c0_i32_0 : i32, i32, i32
  }
}

</mosaic_0001>

<llo_original>
// kernel: my_transformer_forward.1
$region0: #{my_transformer_forward.1}
  #allocation0 [shape = 'u32[]', space=smem, size = 0x4, offset = 0x4, fixed_abs, tag = 'smem constant byte address 0x4 - core index']
  #allocation1 [shape = 'u32[144,128]{1,0:T(1,128)}', space=vmem, size = 0x12000, scoped, tag = 'internal scratch']
  %s0 = inlined_call_operand.vmem [shape: f32[2,8,32], index: 0, kind: input, shape index: {}]
  %s1 = inlined_call_operand.vmem [shape: f32[8,32], index: 1, kind: input, shape index: {}]
  %s2 = inlined_call_operand.hbm [shape: bf16[832,128], index: 2, kind: input, shape index: {}]
  %s3 = inlined_call_operand.vmem [shape: f32[48,128], index: 3, kind: input, shape index: {}]
  %s4 = inlined_call_operand.hbm [shape: f32[2,1,32], index: 4, kind: output, shape index: {}]
  %s5 = sld [smem:[#allocation0]]
  $region53: #{my_transformer_forward.1} parent=0
    _
  %s7 = ssub.s32 1, %s5
  %s8 = scalar_select 0, %s7, %s5
  $region1: #{my_transformer_forward.1} parent=0
    #allocation2 [shape = 'u8[212992]{0}', space=vmem, size = 0x34000, scoped, tag = 'input window, operand 2, single buffered']
    #allocation3 [shape = 's32[2]{0}', space=sflag, size = 0x8, scoped, tag = 'scoped memory for my_transformer_forward.1']
    #allocation4 [shape = 's32[2]{0}', space=sflag, size = 0x8, scoped, tag = 'scoped memory for my_transformer_forward.1']
    #allocation5 [shape = 'u8[1024]{0}', space=vmem, size = 0x400, scoped, tag = 'output window, operand 0']
    %9 = vsyncpa [#allocation3], 0
    %10 = vsyncpa [#allocation4], 0
    %s11 = scalar_lea.sflag [#allocation4], 1
    %12 = vsyncpa %s11, 0
    loop: start=0, step=1, limit=4
    $region2: #{my_transformer_forward.1} parent=1 // loop_pre_header
      _
    $region3: #{my_transformer_forward.1} parent=1 // loop_header
      %s14 = sphi 0, %s18
      %p15 = scmp.ge.s32.totalorder %s14, 4
      %s24 = sphi 0, %s26
      %s27 = sphi 0, %s24
      %s28 = sphi 0, %s27
      %s44 = sphi 0, %s28
      %s48 = sphi 0, %s48
      %s50 = sphi 0, %s48
      %s51 = sphi 0, %s50
      %s65 = sphi 0, %s51
      %s69 = sphi 0, %s69
      %s71 = sphi 0, %s69
      %s72 = sphi 0, %s71
      %s86 = sphi 0, %s72
      %s90 = sphi 0, %s90
      %s92 = sphi 0, %s90
      %s93 = sphi 0, %s92
      %s107 = sphi 0, %s93
      %s113 = sphi 0, %s115
      %s116 = sphi 0, %s113
      %s117 = sphi 0, %s116
      %s133 = sphi 0, %s117
    $region4: #{my_transformer_forward.1} parent=1 // loop_header_branch
      %17 = sbr.rel (%p15) target = $region8
    $region5: #{my_transformer_forward.1} parent=1 // loop_body
      %s19 = ssub.s32 %s14, 1
      %s20 = ssub.s32 %s14, 2
      %s21 = sadd.s32 %s14, 1
      %s22 = ssub.s32 %s14, %s21
      %p23 = scmp.eq.s32.totalorder %s22, 0
      %s25 = sadd.s32 %s24, 1
      %s26 = scalar_select %p23, %s24, %s25
      %p29 = pneg %p23
      %p30 = scmp.eq.s32.totalorder %s14, 1
      %p31 = por %p29, %p30
      %p32 = scmp.ne.s32.totalorder %s24, %s27
      %p33 = scmp.eq.s32.totalorder %s14, 0
      %p34 = por %p32, %p33
      %p35 = scmp.ne.s32.totalorder %s24, %s27
      %p36 = scmp.eq.s32.totalorder %s19, 1
      %p37 = por %p35, %p36
      %p38 = scmp.ne.s32.totalorder %s27, %s28
      %p39 = scmp.eq.s32.totalorder %s19, 0
      %p40 = por %p38, %p39
      %p41 = scmp.ne.s32.totalorder %s27, %s28
      %p42 = scmp.eq.s32.totalorder %s20, 1
      %p43 = por %p41, %p42
      %p45 = scmp.ne.s32.totalorder %s28, %s44
      %p46 = scmp.eq.s32.totalorder %s20, 0
      %p47 = por %p45, %p46
      %s49 = sadd.s32 %s48, 1
      %p52 = scmp.eq.s32.totalorder %s14, 1
      %p53 = scmp.ne.s32.totalorder %s48, %s50
      %p54 = scmp.eq.s32.totalorder %s14, 0
      %p55 = por %p53, %p54
      %p56 = scmp.ne.s32.totalorder %s48, %s50
      %p57 = scmp.eq.s32.totalorder %s19, 1
      %p58 = por %p56, %p57
      %p59 = scmp.ne.s32.totalorder %s50, %s51
      %p60 = scmp.eq.s32.totalorder %s19, 0
      %p61 = por %p59, %p60
      %p62 = scmp.ne.s32.totalorder %s50, %s51
      %p63 = scmp.eq.s32.totalorder %s20, 1
      %p64 = por %p62, %p63
      %p66 = scmp.ne.s32.totalorder %s51, %s65
      %p67 = scmp.eq.s32.totalorder %s20, 0
      %p68 = por %p66, %p67
      %s70 = sadd.s32 %s69, 1
      %p73 = scmp.eq.s32.totalorder %s14, 1
      %p74 = scmp.ne.s32.totalorder %s69, %s71
      %p75 = scmp.eq.s32.totalorder %s14, 0
      %p76 = por %p74, %p75
      %p77 = scmp.ne.s32.totalorder %s69, %s71
      %p78 = scmp.eq.s32.totalorder %s19, 1
      %p79 = por %p77, %p78
      %p80 = scmp.ne.s32.totalorder %s71, %s72
      %p81 = scmp.eq.s32.totalorder %s19, 0
      %p82 = por %p80, %p81
      %p83 = scmp.ne.s32.totalorder %s71, %s72
      %p84 = scmp.eq.s32.totalorder %s20, 1
      %p85 = por %p83, %p84
      %p87 = scmp.ne.s32.totalorder %s72, %s86
      %p88 = scmp.eq.s32.totalorder %s20, 0
      %p89 = por %p87, %p88
      %s91 = sadd.s32 %s90, 1
      %p94 = scmp.eq.s32.totalorder %s14, 1
      %p95 = scmp.ne.s32.totalorder %s90, %s92
      %p96 = scmp.eq.s32.totalorder %s14, 0
      %p97 = por %p95, %p96
      %p98 = scmp.ne.s32.totalorder %s90, %s92
      %p99 = scmp.eq.s32.totalorder %s19, 1
      %p100 = por %p98, %p99
      %p101 = scmp.ne.s32.totalorder %s92, %s93
      %p102 = scmp.eq.s32.totalorder %s19, 0
      %p103 = por %p101, %p102
      %p104 = scmp.ne.s32.totalorder %s92, %s93
      %p105 = scmp.eq.s32.totalorder %s20, 1
      %p106 = por %p104, %p105
      %p108 = scmp.ne.s32.totalorder %s93, %s107
      %p109 = scmp.eq.s32.totalorder %s20, 0
      %p110 = por %p108, %p109
      %s111 = ssub.s32 %s14, %s21
      %p112 = scmp.eq.s32.totalorder %s111, 0
      %s114 = sadd.s32 %s113, 1
      %s115 = scalar_select %p112, %s113, %s114
      %p118 = pneg %p112
      %p119 = scmp.eq.s32.totalorder %s14, 1
      %p120 = por %p118, %p119
      %p121 = scmp.ne.s32.totalorder %s113, %s116
      %p122 = scmp.eq.s32.totalorder %s14, 0
      %p123 = por %p121, %p122
      %p124 = scmp.ne.s32.totalorder %s113, %s116
      %p125 = scmp.eq.s32.totalorder %s19, 1
      %p126 = por %p124, %p125
      %p127 = scmp.ne.s32.totalorder %s116, %s117
      %p128 = scmp.eq.s32.totalorder %s19, 0
      %p129 = por %p127, %p128
      %p130 = scmp.ne.s32.totalorder %s116, %s117
      %p131 = scmp.eq.s32.totalorder %s20, 1
      %p132 = por %p130, %p131
      %p134 = scmp.ne.s32.totalorder %s117, %s133
      %p135 = scmp.eq.s32.totalorder %s20, 0
      %p136 = por %p134, %p135
      %p137 = scmp.le.s32.totalorder 1, %s14
      %p138 = scmp.lt.s32.totalorder %s14, 3
      %p139 = pnand %p137, %p138
      %p140 = pneg %p139
      // Predicated region
      $region9: #{my_transformer_forward.1} parent=5 // pred_check
        _
      $region10: #{my_transformer_forward.1} parent=5 // pred_check_branch
        %142 = sbr.rel (%p139) target = $region12
      $region11: #{my_transformer_forward.1} parent=5 // pred_region
        %s143 = ssub.s32 %s14, 1
        // Predicated region
        $region13: #{my_transformer_forward.1} parent=11 // pred_check
          %p144 = pneg %p61
        $region14: #{my_transformer_forward.1} parent=11 // pred_check_branch
          %146 = sbr.rel (%p144) target = $region16
        $region15: #{my_transformer_forward.1} parent=11 // pred_region
          _
        $region16: #{my_transformer_forward.1} parent=11 // pred_fallthru
          _
        // Predicated region
        $region17: #{my_transformer_forward.1} parent=11 // pred_check
          %p147 = pneg %p82
        $region18: #{my_transformer_forward.1} parent=11 // pred_check_branch
          %149 = sbr.rel (%p147) target = $region20
        $region19: #{my_transformer_forward.1} parent=11 // pred_region
          %s151 = ssub.s32 6656, 6656
          %152 = vsyncadd [#allocation3], %s151
          %s153 = sshll.u32 [#allocation2], 4
          %s154 = int_to_ptr.vmem [resolvable:$true] %s153
          %159 = dma.hbm_to_vmem [thread:$0]  %s2, 6656, %s154, [#allocation3], 64, 64, 4
        $region20: #{my_transformer_forward.1} parent=11 // pred_fallthru
          _
        // Predicated region
        $region21: #{my_transformer_forward.1} parent=11 // pred_check
          %p160 = pneg %p103
        $region22: #{my_transformer_forward.1} parent=11 // pred_check_branch
          %162 = sbr.rel (%p160) target = $region24
        $region23: #{my_transformer_forward.1} parent=11 // pred_region
          _
        $region24: #{my_transformer_forward.1} parent=11 // pred_fallthru
          _
      $region12: #{my_transformer_forward.1} parent=5 // pred_fallthru
        _
      %p163 = scmp.lt.s32.totalorder %s14, 2
      // Predicated region
      $region25: #{my_transformer_forward.1} parent=5 // pred_check
        %p164 = pneg %p163
      $region26: #{my_transformer_forward.1} parent=5 // pred_check_branch
        %166 = sbr.rel (%p164) target = $region28
      $region27: #{my_transformer_forward.1} parent=5 // pred_region
        // Predicated region
        $region29: #{my_transformer_forward.1} parent=27 // pred_check
          %p167 = pneg %p34
        $region30: #{my_transformer_forward.1} parent=27 // pred_check_branch
          %169 = sbr.rel (%p167) target = $region32
        $region31: #{my_transformer_forward.1} parent=27 // pred_region
          %p170 = scmp.lt.s32.totalorder %s14, 1
          %s171 = scalar_select %p170, %s14, 1
          %s172 = smul.addr %s171, 8
          %s173 = scalar_lea.vmem %s0, %s172
        $region32: #{my_transformer_forward.1} parent=27 // pred_fallthru
          _
      $region28: #{my_transformer_forward.1} parent=5 // pred_fallthru
        _
      %p174 = scmp.le.s32.totalorder 1, %s14
      %p175 = scmp.lt.s32.totalorder %s14, 3
      %p176 = pnand %p174, %p175
      %p177 = pneg %p176
      // Predicated region
      $region33: #{my_transformer_forward.1} parent=5 // pred_check
        _
      $region34: #{my_transformer_forward.1} parent=5 // pred_check_branch
        %179 = sbr.rel (%p176) target = $region36
      $region35: #{my_transformer_forward.1} parent=5 // pred_region
        %s180 = ssub.s32 %s14, 1
        // Predicated region
        $region37: #{my_transformer_forward.1} parent=35 // pred_check
          %p181 = pneg %p82
        $region38: #{my_transformer_forward.1} parent=35 // pred_check_branch
          %183 = sbr.rel (%p181) target = $region40
        $region39: #{my_transformer_forward.1} parent=35 // pred_region
          %184 = dma.done [#allocation3], 6656
        $region40: #{my_transformer_forward.1} parent=35 // pred_fallthru
          _
        %p185 = scmp.lt.s32.totalorder %s19, 1
        %s186 = scalar_select %p185, %s19, 1
        %s187 = smul.addr %s186, 8
        %s188 = scalar_lea.vmem %s0, %s187
        %p189 = pneg %p40
        %p190 = pneg %p37
        %p191 = pneg %p61
        %p192 = pneg %p58
        %p193 = pneg %p82
        %p194 = pneg %p79
        %p195 = pneg %p103
        %p196 = pneg %p100
        %p197 = pneg %p129
        %p198 = pneg %p126
        %s199 = sand.u32 %s116, 1
        %s200 = scalar_lea.sflag [#allocation4], %s199
        %s201 = sand.u32 %s116, 1
        %s202 = scalar_lea.vmem [#allocation5], %s201
        %p203 = scmp.lt.s32.totalorder %s19, 1
        %s204 = scalar_select %p203, %s19, 1
        %s205 = smul.addr %s204, 8
        %s206 = scalar_lea.vmem %s0, %s205
        %v208 = vld [vmem:[%s1] sm:$0xff]
        %v209 = vld [vmem:[%s206] sm:$0xff]
        %v210 = vadd.f32 %v209, %v208
        %v211 = vpack.c.bf16 %v210, %v210
        %v212 = vld [vmem:[#allocation2] sm:$0xf]
        %v213 = vld [vmem:[#allocation2 + $0x4] sm:$0xf]
        %v214 = vld [vmem:[#allocation2 + $0x8] sm:$0xf]
        %v215 = vld [vmem:[#allocation2 + $0xc] sm:$0xf]
        %v216 = vld [vmem:[%s3] sm:$0x1]
        %v217 = vlaneseq
        %v218 = vshrl.u32 %v217, 7
        %v219 = vsub.s32 0, %v218
        %v220 = vrot.slane %v216, %v219
        %v225 = vunpack.c.l.b16 %v212
        %v226 = vunpack.c.l.b16 %v213
        %v227 = vunpack.c.l.b16 %v214
        %v228 = vunpack.c.l.b16 %v215
        %v229 = vpack.c.b16 %v226, %v225
        %v230 = vpack.c.b16 %v228, %v227
        %vm233 = vcmask 261120
        %v235 = vsel %vm233, %v211, 0
        %237 = vmatprep.subr.bf16.mxu0 0
        %238 = vmatpush1.bf16.msra.mxu0 0
        %239 = vmatprep.subr.bf16.mxu0 0
        %240 = vmatpush1.bf16.msra.mxu0 0
        %241 = vmatprep.subr.bf16.mxu0 0
        %242 = vmatpush1.bf16.msra.mxu0 0
        %243 = vmatprep.subr.bf16.mxu0 0
        %244 = vmatpush1.bf16.msra.mxu0 0
        %245 = vmatprep.subr.bf16.mxu0 0
        %246 = vmatpush1.bf16.msra.mxu0 0
        %247 = vmatprep.subr.bf16.mxu0 0
        %248 = vmatpush1.bf16.msra.mxu0 0
        %249 = vmatprep.subr.bf16.mxu0 0
        %250 = vmatpush1.bf16.msra.mxu0 %v230
        %251 = vmatprep.subr.bf16.mxu0 0
        %252 = vmatpush1.bf16.msra.mxu0 %v229
        %253 = vmatprep.subr.bf16.mxu0 0
        %254 = vmatpush2.bf16.msra.mxu0 0
        %255 = vmatprep.subr.bf16.mxu0 0
        %256 = vmatpush2.bf16.msra.mxu0 0
        %257 = vmatprep.subr.bf16.mxu0 0
        %258 = vmatpush2.bf16.msra.mxu0 0
        %259 = vmatprep.subr.bf16.mxu0 0
        %260 = vmatpush2.bf16.msra.mxu0 0
        %261 = vmatprep.subr.bf16.mxu0 0
        %262 = vmatpush2.bf16.msra.mxu0 0
        %263 = vmatprep.subr.bf16.mxu0 0
        %264 = vmatpush2.bf16.msra.mxu0 0
        %265 = vmatprep.subr.bf16.mxu0 0
        %266 = vmatpush2.bf16.msra.mxu0 0
        %267 = vmatprep.subr.bf16.mxu0 0
        %268 = vmatpush2.bf16.msra.mxu0 0
        %269 = vmatprep.mubr.bf16.mxu0 0
        %270 = vmatmul.mubr.bf16.gmra.mxu0 %v235
        %v271 = vpop.f32.mrf.mxu0
        %v272 = vadd.f32 %v220, %v271
        %v273 = vpop.f32.mrf.mxu0
        %v274 = vpop.f32.mrf.mxu0
        %v275 = vpop.f32.mrf.mxu0
        %276 = vdwg.mxu0
        %v277 = vpack.c.bf16 %v272, %v272
        %v278 = vld [vmem:[#allocation2 + $0x10] sm:$0xf]
        %v279 = vld [vmem:[#allocation2 + $0x14] sm:$0xf]
        %v280 = vld [vmem:[#allocation2 + $0x18] sm:$0xf]
        %v281 = vld [vmem:[#allocation2 + $0x1c] sm:$0xf]
        %283 = vrot.lane.b32.xlu0 %v277, 96
        %v284 = vpop.permute.xlu0 %283
        %vm285 = vcmask 64512
        %v287 = vsel %vm285, %v277, 0
        %v290 = vsel %vm285, %v284, 0
        %292 = vmatprep.subr.bf16.mxu0 0
        %293 = vmatpush1.bf16.xpose.msra.mxu0 0
        %294 = vmatprep.subr.bf16.mxu0 0
        %295 = vmatpush1.bf16.xpose.msra.mxu0 0
        %296 = vmatprep.subr.bf16.mxu0 0
        %297 = vmatpush1.bf16.xpose.msra.mxu0 0
        %298 = vmatprep.subr.bf16.mxu0 0
        %299 = vmatpush1.bf16.xpose.msra.mxu0 0
        %300 = vmatprep.subr.bf16.mxu0 0
        %301 = vmatpush1.bf16.xpose.msra.mxu0 0
        %302 = vmatprep.subr.bf16.mxu0 0
        %303 = vmatpush1.bf16.xpose.msra.mxu0 0
        %304 = vmatprep.subr.bf16.mxu0 0
        %305 = vmatpush1.bf16.xpose.msra.mxu0 0
        %306 = vmatprep.subr.bf16.mxu0 0
        %307 = vmatpush1.bf16.xpose.msra.mxu0 %v290
        %308 = vmatprep.subr.bf16.mxu0 0
        %309 = vmatpush2.bf16.xpose.msra.mxu0 0
        %310 = vmatprep.subr.bf16.mxu0 0
        %311 = vmatpush2.bf16.xpose.msra.mxu0 0
        %312 = vmatprep.subr.bf16.mxu0 0
        %313 = vmatpush2.bf16.xpose.msra.mxu0 0
        %314 = vmatprep.subr.bf16.mxu0 0
        %315 = vmatpush2.bf16.xpose.msra.mxu0 0
        %316 = vmatprep.subr.bf16.mxu0 0
        %317 = vmatpush2.bf16.xpose.msra.mxu0 0
        %318 = vmatprep.subr.bf16.mxu0 0
        %319 = vmatpush2.bf16.xpose.msra.mxu0 0
        %320 = vmatprep.subr.bf16.mxu0 0
        %321 = vmatpush2.bf16.xpose.msra.mxu0 0
        %322 = vmatprep.subr.bf16.mxu0 0
        %323 = vmatpush2.bf16.xpose.msra.mxu0 0
        %324 = vmatprep.mubr.bf16.mxu0 0
        %325 = vmatmul.mubr.bf16.gmra.mxu0 %v287
        %v326 = vpop.f32.mrf.mxu0
        %v327 = vadd.f32 0.0, %v326
        %v328 = vpop.f32.mrf.mxu0
        %v329 = vpop.f32.mrf.mxu0
        %v330 = vpop.f32.mrf.mxu0
        %331 = vdwg.mxu0
        %v332 = vsel %vm285, %v327, -inf
        %333 = vmax.xlane.f32.xlu0 %v332
        %v334 = vpop.xlane.xlu0 %333
        %v335 = vsub.f32 %v327, %v334
        %v336 = vmul.f32 %v335, 1.442695
        %v337 = vpow.pop %v336
        %v338 = vsel %vm285, %v337, 0.0
        %339 = vadd.xlane.f32.xlu0 %v338
        %v340 = vpop.xlane.xlu0 %339
        %v341 = vrcp.pop %v340
        %v342 = vmul.f32 %v337, %v341
        %v343 = vpack.c.bf16 %v342, %v342
        %344 = vrot.lane.b32.xlu0 %v277, 64
        %v345 = vpop.permute.xlu0 %344
        %v347 = vsel %vm285, %v343, 0
        %vm349 = vcmask 1043456
        %v351 = vsel %vm349, %v345, 0
        %353 = vmatprep.subr.bf16.mxu0 0
        %354 = vmatpush1.bf16.msra.mxu0 0
        %355 = vmatprep.subr.bf16.mxu0 0
        %356 = vmatpush1.bf16.msra.mxu0 0
        %357 = vmatprep.subr.bf16.mxu0 0
        %358 = vmatpush1.bf16.msra.mxu0 0
        %359 = vmatprep.subr.bf16.mxu0 0
        %360 = vmatpush1.bf16.msra.mxu0 0
        %361 = vmatprep.subr.bf16.mxu0 0
        %362 = vmatpush1.bf16.msra.mxu0 0
        %363 = vmatprep.subr.bf16.mxu0 0
        %364 = vmatpush1.bf16.msra.mxu0 0
        %365 = vmatprep.subr.bf16.mxu0 0
        %366 = vmatpush1.bf16.msra.mxu0 0
        %367 = vmatprep.subr.bf16.mxu0 0
        %368 = vmatpush1.bf16.msra.mxu0 %v351
        %369 = vmatprep.subr.bf16.mxu0 0
        %370 = vmatpush2.bf16.msra.mxu0 0
        %371 = vmatprep.subr.bf16.mxu0 0
        %372 = vmatpush2.bf16.msra.mxu0 0
        %373 = vmatprep.subr.bf16.mxu0 0
        %374 = vmatpush2.bf16.msra.mxu0 0
        %375 = vmatprep.subr.bf16.mxu0 0
        %376 = vmatpush2.bf16.msra.mxu0 0
        %377 = vmatprep.subr.bf16.mxu0 0
        %378 = vmatpush2.bf16.msra.mxu0 0
        %379 = vmatprep.subr.bf16.mxu0 0
        %380 = vmatpush2.bf16.msra.mxu0 0
        %381 = vmatprep.subr.bf16.mxu0 0
        %382 = vmatpush2.bf16.msra.mxu0 0
        %383 = vmatprep.subr.bf16.mxu0 0
        %384 = vmatpush2.bf16.msra.mxu0 0
        %385 = vmatprep.mubr.bf16.mxu0 0
        %386 = vmatmul.mubr.bf16.gmra.mxu0 %v347
        %v387 = vpop.f32.mrf.mxu0
        %v388 = vadd.f32 0.0, %v387
        %v389 = vpop.f32.mrf.mxu0
        %v390 = vpop.f32.mrf.mxu0
        %v391 = vpop.f32.mrf.mxu0
        %392 = vdwg.mxu0
        %v393 = vpack.c.bf16 %v388, %v388
        %394 = vrot.lane.b32.xlu0 %v277, 120
        %v395 = vpop.permute.xlu0 %394
        %396 = vrot.lane.b32.xlu0 %v277, 88
        %v397 = vpop.permute.xlu0 %396
        %v399 = vsel %vm285, %v395, 0
        %v402 = vsel %vm285, %v397, 0
        %404 = vmatprep.subr.bf16.mxu0 0
        %405 = vmatpush1.bf16.xpose.msra.mxu0 0
        %406 = vmatprep.subr.bf16.mxu0 0
        %407 = vmatpush1.bf16.xpose.msra.mxu0 0
        %408 = vmatprep.subr.bf16.mxu0 0
        %409 = vmatpush1.bf16.xpose.msra.mxu0 0
        %410 = vmatprep.subr.bf16.mxu0 0
        %411 = vmatpush1.bf16.xpose.msra.mxu0 0
        %412 = vmatprep.subr.bf16.mxu0 0
        %413 = vmatpush1.bf16.xpose.msra.mxu0 0
        %414 = vmatprep.subr.bf16.mxu0 0
        %415 = vmatpush1.bf16.xpose.msra.mxu0 0
        %416 = vmatprep.subr.bf16.mxu0 0
        %417 = vmatpush1.bf16.xpose.msra.mxu0 0
        %418 = vmatprep.subr.bf16.mxu0 0
        %419 = vmatpush1.bf16.xpose.msra.mxu0 %v402
        %420 = vmatprep.subr.bf16.mxu0 0
        %421 = vmatpush2.bf16.xpose.msra.mxu0 0
        %422 = vmatprep.subr.bf16.mxu0 0
        %423 = vmatpush2.bf16.xpose.msra.mxu0 0
        %424 = vmatprep.subr.bf16.mxu0 0
        %425 = vmatpush2.bf16.xpose.msra.mxu0 0
        %426 = vmatprep.subr.bf16.mxu0 0
        %427 = vmatpush2.bf16.xpose.msra.mxu0 0
        %428 = vmatprep.subr.bf16.mxu0 0
        %429 = vmatpush2.bf16.xpose.msra.mxu0 0
        %430 = vmatprep.subr.bf16.mxu0 0
        %431 = vmatpush2.bf16.xpose.msra.mxu0 0
        %432 = vmatprep.subr.bf16.mxu0 0
        %433 = vmatpush2.bf16.xpose.msra.mxu0 0
        %434 = vmatprep.subr.bf16.mxu0 0
        %435 = vmatpush2.bf16.xpose.msra.mxu0 0
        %436 = vmatprep.mubr.bf16.mxu0 0
        %437 = vmatmul.mubr.bf16.gmra.mxu0 %v399
        %v438 = vpop.f32.mrf.mxu0
        %v439 = vadd.f32 0.0, %v438
        %v440 = vpop.f32.mrf.mxu0
        %v441 = vpop.f32.mrf.mxu0
        %v442 = vpop.f32.mrf.mxu0
        %443 = vdwg.mxu0
        %v444 = vsel %vm285, %v439, -inf
        %445 = vmax.xlane.f32.xlu0 %v444
        %v446 = vpop.xlane.xlu0 %445
        %v447 = vsub.f32 %v439, %v446
        %v448 = vmul.f32 %v447, 1.442695
        %v449 = vpow.pop %v448
        %v450 = vsel %vm285, %v449, 0.0
        %451 = vadd.xlane.f32.xlu0 %v450
        %v452 = vpop.xlane.xlu0 %451
        %v453 = vrcp.pop %v452
        %v454 = vmul.f32 %v449, %v453
        %v455 = vpack.c.bf16 %v454, %v454
        %456 = vrot.lane.b32.xlu0 %v277, 56
        %v457 = vpop.permute.xlu0 %456
        %v459 = vsel %vm285, %v455, 0
        %v462 = vsel %vm349, %v457, 0
        %464 = vmatprep.subr.bf16.mxu0 0
        %465 = vmatpush1.bf16.msra.mxu0 0
        %466 = vmatprep.subr.bf16.mxu0 0
        %467 = vmatpush1.bf16.msra.mxu0 0
        %468 = vmatprep.subr.bf16.mxu0 0
        %469 = vmatpush1.bf16.msra.mxu0 0
        %470 = vmatprep.subr.bf16.mxu0 0
        %471 = vmatpush1.bf16.msra.mxu0 0
        %472 = vmatprep.subr.bf16.mxu0 0
        %473 = vmatpush1.bf16.msra.mxu0 0
        %474 = vmatprep.subr.bf16.mxu0 0
        %475 = vmatpush1.bf16.msra.mxu0 0
        %476 = vmatprep.subr.bf16.mxu0 0
        %477 = vmatpush1.bf16.msra.mxu0 0
        %478 = vmatprep.subr.bf16.mxu0 0
        %479 = vmatpush1.bf16.msra.mxu0 %v462
        %480 = vmatprep.subr.bf16.mxu0 0
        %481 = vmatpush2.bf16.msra.mxu0 0
        %482 = vmatprep.subr.bf16.mxu0 0
        %483 = vmatpush2.bf16.msra.mxu0 0
        %484 = vmatprep.subr.bf16.mxu0 0
        %485 = vmatpush2.bf16.msra.mxu0 0
        %486 = vmatprep.subr.bf16.mxu0 0
        %487 = vmatpush2.bf16.msra.mxu0 0
        %488 = vmatprep.subr.bf16.mxu0 0
        %489 = vmatpush2.bf16.msra.mxu0 0
        %490 = vmatprep.subr.bf16.mxu0 0
        %491 = vmatpush2.bf16.msra.mxu0 0
        %492 = vmatprep.subr.bf16.mxu0 0
        %493 = vmatpush2.bf16.msra.mxu0 0
        %494 = vmatprep.subr.bf16.mxu0 0
        %495 = vmatpush2.bf16.msra.mxu0 0
        %496 = vmatprep.mubr.bf16.mxu0 0
        %497 = vmatmul.mubr.bf16.gmra.mxu0 %v459
        %v498 = vpop.f32.mrf.mxu0
        %v499 = vadd.f32 0.0, %v498
        %v500 = vpop.f32.mrf.mxu0
        %v501 = vpop.f32.mrf.mxu0
        %v502 = vpop.f32.mrf.mxu0
        %503 = vdwg.mxu0
        %v504 = vpack.c.bf16 %v499, %v499
        %v509 = vunpack.c.l.b16 %v278
        %v510 = vunpack.c.l.b16 %v279
        %v511 = vunpack.c.l.b16 %v280
        %v512 = vunpack.c.l.b16 %v281
        %v513 = vpack.c.b16 %v510, %v509
        %v514 = vpack.c.b16 %v512, %v511
        %515 = vrot.lane.b32.xlu0 %v513, 120
        %v516 = vpop.permute.xlu0 %515
        %517 = vrot.lane.b32.xlu0 %v514, 120
        %v518 = vpop.permute.xlu0 %517
        %v520 = vsel %vm285, %v504, 0
        %v523 = vsel %vm285, %v516, 0
        %v526 = vsel %vm285, %v518, 0
        %528 = vmatprep.subr.bf16.mxu0 0
        %529 = vmatpush1.bf16.xpose.msra.mxu0 0
        %530 = vmatprep.subr.bf16.mxu0 0
        %531 = vmatpush1.bf16.xpose.msra.mxu0 0
        %532 = vmatprep.subr.bf16.mxu0 0
        %533 = vmatpush1.bf16.xpose.msra.mxu0 0
        %534 = vmatprep.subr.bf16.mxu0 0
        %535 = vmatpush1.bf16.xpose.msra.mxu0 0
        %536 = vmatprep.subr.bf16.mxu0 0
        %537 = vmatpush1.bf16.xpose.msra.mxu0 0
        %538 = vmatprep.subr.bf16.mxu0 0
        %539 = vmatpush1.bf16.xpose.msra.mxu0 0
        %540 = vmatprep.subr.bf16.mxu0 0
        %541 = vmatpush1.bf16.xpose.msra.mxu0 %v526
        %542 = vmatprep.subr.bf16.mxu0 0
        %543 = vmatpush1.bf16.xpose.msra.mxu0 %v523
        %544 = vmatprep.subr.bf16.mxu0 0
        %545 = vmatpush2.bf16.xpose.msra.mxu0 0
        %546 = vmatprep.subr.bf16.mxu0 0
        %547 = vmatpush2.bf16.xpose.msra.mxu0 0
        %548 = vmatprep.subr.bf16.mxu0 0
        %549 = vmatpush2.bf16.xpose.msra.mxu0 0
        %550 = vmatprep.subr.bf16.mxu0 0
        %551 = vmatpush2.bf16.xpose.msra.mxu0 0
        %552 = vmatprep.subr.bf16.mxu0 0
        %553 = vmatpush2.bf16.xpose.msra.mxu0 0
        %554 = vmatprep.subr.bf16.mxu0 0
        %555 = vmatpush2.bf16.xpose.msra.mxu0 0
        %556 = vmatprep.subr.bf16.mxu0 0
        %557 = vmatpush2.bf16.xpose.msra.mxu0 0
        %558 = vmatprep.subr.bf16.mxu0 0
        %559 = vmatpush2.bf16.xpose.msra.mxu0 0
        %560 = vmatprep.mubr.bf16.mxu0 0
        %561 = vmatmul.mubr.bf16.gmra.mxu0 %v520
        %v562 = vpop.f32.mrf.mxu0
        %v563 = vadd.f32 0.0, %v562
        %v564 = vpop.f32.mrf.mxu0
        %v565 = vpop.f32.mrf.mxu0
        %v566 = vpop.f32.mrf.mxu0
        %567 = vdwg.mxu0
        %v569 = vsel %vm285, %v393, 0
        %v572 = vsel %vm285, %v513, 0
        %v575 = vsel %vm285, %v514, 0
        %577 = vmatprep.subr.bf16.mxu0 0
        %578 = vmatpush1.bf16.xpose.msra.mxu0 0
        %579 = vmatprep.subr.bf16.mxu0 0
        %580 = vmatpush1.bf16.xpose.msra.mxu0 0
        %581 = vmatprep.subr.bf16.mxu0 0
        %582 = vmatpush1.bf16.xpose.msra.mxu0 0
        %583 = vmatprep.subr.bf16.mxu0 0
        %584 = vmatpush1.bf16.xpose.msra.mxu0 0
        %585 = vmatprep.subr.bf16.mxu0 0
        %586 = vmatpush1.bf16.xpose.msra.mxu0 0
        %587 = vmatprep.subr.bf16.mxu0 0
        %588 = vmatpush1.bf16.xpose.msra.mxu0 0
        %589 = vmatprep.subr.bf16.mxu0 0
        %590 = vmatpush1.bf16.xpose.msra.mxu0 %v575
        %591 = vmatprep.subr.bf16.mxu0 0
        %592 = vmatpush1.bf16.xpose.msra.mxu0 %v572
        %593 = vmatprep.subr.bf16.mxu0 0
        %594 = vmatpush2.bf16.xpose.msra.mxu0 0
        %595 = vmatprep.subr.bf16.mxu0 0
        %596 = vmatpush2.bf16.xpose.msra.mxu0 0
        %597 = vmatprep.subr.bf16.mxu0 0
        %598 = vmatpush2.bf16.xpose.msra.mxu0 0
        %599 = vmatprep.subr.bf16.mxu0 0
        %600 = vmatpush2.bf16.xpose.msra.mxu0 0
        %601 = vmatprep.subr.bf16.mxu0 0
        %602 = vmatpush2.bf16.xpose.msra.mxu0 0
        %603 = vmatprep.subr.bf16.mxu0 0
        %604 = vmatpush2.bf16.xpose.msra.mxu0 0
        %605 = vmatprep.subr.bf16.mxu0 0
        %606 = vmatpush2.bf16.xpose.msra.mxu0 0
        %607 = vmatprep.subr.bf16.mxu0 0
        %608 = vmatpush2.bf16.xpose.msra.mxu0 0
        %609 = vmatprep.mubr.bf16.mxu0 0
        %610 = vmatmul.mubr.bf16.gmra.mxu0 %v569
        %v611 = vpop.f32.mrf.mxu0
        %v612 = vadd.f32 %v563, %v611
        %v613 = vpop.f32.mrf.mxu0
        %v614 = vpop.f32.mrf.mxu0
        %v615 = vpop.f32.mrf.mxu0
        %616 = vdwg.mxu0
        %617 = vrot.lane.b32.xlu0 %v277, 112
        %v618 = vpop.permute.xlu0 %617
        %619 = vrot.lane.b32.xlu0 %v277, 80
        %v620 = vpop.permute.xlu0 %619
        %v622 = vsel %vm285, %v618, 0
        %v625 = vsel %vm285, %v620, 0
        %627 = vmatprep.subr.bf16.mxu0 0
        %628 = vmatpush1.bf16.xpose.msra.mxu0 0
        %629 = vmatprep.subr.bf16.mxu0 0
        %630 = vmatpush1.bf16.xpose.msra.mxu0 0
        %631 = vmatprep.subr.bf16.mxu0 0
        %632 = vmatpush1.bf16.xpose.msra.mxu0 0
        %633 = vmatprep.subr.bf16.mxu0 0
        %634 = vmatpush1.bf16.xpose.msra.mxu0 0
        %635 = vmatprep.subr.bf16.mxu0 0
        %636 = vmatpush1.bf16.xpose.msra.mxu0 0
        %637 = vmatprep.subr.bf16.mxu0 0
        %638 = vmatpush1.bf16.xpose.msra.mxu0 0
        %639 = vmatprep.subr.bf16.mxu0 0
        %640 = vmatpush1.bf16.xpose.msra.mxu0 0
        %641 = vmatprep.subr.bf16.mxu0 0
        %642 = vmatpush1.bf16.xpose.msra.mxu0 %v625
        %643 = vmatprep.subr.bf16.mxu0 0
        %644 = vmatpush2.bf16.xpose.msra.mxu0 0
        %645 = vmatprep.subr.bf16.mxu0 0
        %646 = vmatpush2.bf16.xpose.msra.mxu0 0
        %647 = vmatprep.subr.bf16.mxu0 0
        %648 = vmatpush2.bf16.xpose.msra.mxu0 0
        %649 = vmatprep.subr.bf16.mxu0 0
        %650 = vmatpush2.bf16.xpose.msra.mxu0 0
        %651 = vmatprep.subr.bf16.mxu0 0
        %652 = vmatpush2.bf16.xpose.msra.mxu0 0
        %653 = vmatprep.subr.bf16.mxu0 0
        %654 = vmatpush2.bf16.xpose.msra.mxu0 0
        %655 = vmatprep.subr.bf16.mxu0 0
        %656 = vmatpush2.bf16.xpose.msra.mxu0 0
        %657 = vmatprep.subr.bf16.mxu0 0
        %658 = vmatpush2.bf16.xpose.msra.mxu0 0
        %659 = vmatprep.mubr.bf16.mxu0 0
        %660 = vmatmul.mubr.bf16.gmra.mxu0 %v622
        %v661 = vpop.f32.mrf.mxu0
        %v662 = vadd.f32 0.0, %v661
        %v663 = vpop.f32.mrf.mxu0
        %v664 = vpop.f32.mrf.mxu0
        %v665 = vpop.f32.mrf.mxu0
        %666 = vdwg.mxu0
        %v667 = vsel %vm285, %v662, -inf
        %668 = vmax.xlane.f32.xlu0 %v667
        %v669 = vpop.xlane.xlu0 %668
        %v670 = vsub.f32 %v662, %v669
        %v671 = vmul.f32 %v670, 1.442695
        %v672 = vpow.pop %v671
        %v673 = vsel %vm285, %v672, 0.0
        %674 = vadd.xlane.f32.xlu0 %v673
        %v675 = vpop.xlane.xlu0 %674
        %v676 = vrcp.pop %v675
        %v677 = vmul.f32 %v672, %v676
        %v678 = vpack.c.bf16 %v677, %v677
        %679 = vrot.lane.b32.xlu0 %v277, 48
        %v680 = vpop.permute.xlu0 %679
        %v682 = vsel %vm285, %v678, 0
        %v685 = vsel %vm349, %v680, 0
        %687 = vmatprep.subr.bf16.mxu0 0
        %688 = vmatpush1.bf16.msra.mxu0 0
        %689 = vmatprep.subr.bf16.mxu0 0
        %690 = vmatpush1.bf16.msra.mxu0 0
        %691 = vmatprep.subr.bf16.mxu0 0
        %692 = vmatpush1.bf16.msra.mxu0 0
        %693 = vmatprep.subr.bf16.mxu0 0
        %694 = vmatpush1.bf16.msra.mxu0 0
        %695 = vmatprep.subr.bf16.mxu0 0
        %696 = vmatpush1.bf16.msra.mxu0 0
        %697 = vmatprep.subr.bf16.mxu0 0
        %698 = vmatpush1.bf16.msra.mxu0 0
        %699 = vmatprep.subr.bf16.mxu0 0
        %700 = vmatpush1.bf16.msra.mxu0 0
        %701 = vmatprep.subr.bf16.mxu0 0
        %702 = vmatpush1.bf16.msra.mxu0 %v685
        %703 = vmatprep.subr.bf16.mxu0 0
        %704 = vmatpush2.bf16.msra.mxu0 0
        %705 = vmatprep.subr.bf16.mxu0 0
        %706 = vmatpush2.bf16.msra.mxu0 0
        %707 = vmatprep.subr.bf16.mxu0 0
        %708 = vmatpush2.bf16.msra.mxu0 0
        %709 = vmatprep.subr.bf16.mxu0 0
        %710 = vmatpush2.bf16.msra.mxu0 0
        %711 = vmatprep.subr.bf16.mxu0 0
        %712 = vmatpush2.bf16.msra.mxu0 0
        %713 = vmatprep.subr.bf16.mxu0 0
        %714 = vmatpush2.bf16.msra.mxu0 0
        %715 = vmatprep.subr.bf16.mxu0 0
        %716 = vmatpush2.bf16.msra.mxu0 0
        %717 = vmatprep.subr.bf16.mxu0 0
        %718 = vmatpush2.bf16.msra.mxu0 0
        %719 = vmatprep.mubr.bf16.mxu0 0
        %720 = vmatmul.mubr.bf16.gmra.mxu0 %v682
        %v721 = vpop.f32.mrf.mxu0
        %v722 = vadd.f32 0.0, %v721
        %v723 = vpop.f32.mrf.mxu0
        %v724 = vpop.f32.mrf.mxu0
        %v725 = vpop.f32.mrf.mxu0
        %726 = vdwg.mxu0
        %v727 = vpack.c.bf16 %v722, %v722
        %728 = vrot.lane.b32.xlu0 %v513, 112
        %v729 = vpop.permute.xlu0 %728
        %730 = vrot.lane.b32.xlu0 %v514, 112
        %v731 = vpop.permute.xlu0 %730
        %v733 = vsel %vm285, %v727, 0
        %v736 = vsel %vm285, %v729, 0
        %v739 = vsel %vm285, %v731, 0
        %741 = vmatprep.subr.bf16.mxu0 0
        %742 = vmatpush1.bf16.xpose.msra.mxu0 0
        %743 = vmatprep.subr.bf16.mxu0 0
        %744 = vmatpush1.bf16.xpose.msra.mxu0 0
        %745 = vmatprep.subr.bf16.mxu0 0
        %746 = vmatpush1.bf16.xpose.msra.mxu0 0
        %747 = vmatprep.subr.bf16.mxu0 0
        %748 = vmatpush1.bf16.xpose.msra.mxu0 0
        %749 = vmatprep.subr.bf16.mxu0 0
        %750 = vmatpush1.bf16.xpose.msra.mxu0 0
        %751 = vmatprep.subr.bf16.mxu0 0
        %752 = vmatpush1.bf16.xpose.msra.mxu0 0
        %753 = vmatprep.subr.bf16.mxu0 0
        %754 = vmatpush1.bf16.xpose.msra.mxu0 %v739
        %755 = vmatprep.subr.bf16.mxu0 0
        %756 = vmatpush1.bf16.xpose.msra.mxu0 %v736
        %757 = vmatprep.subr.bf16.mxu0 0
        %758 = vmatpush2.bf16.xpose.msra.mxu0 0
        %759 = vmatprep.subr.bf16.mxu0 0
        %760 = vmatpush2.bf16.xpose.msra.mxu0 0
        %761 = vmatprep.subr.bf16.mxu0 0
        %762 = vmatpush2.bf16.xpose.msra.mxu0 0
        %763 = vmatprep.subr.bf16.mxu0 0
        %764 = vmatpush2.bf16.xpose.msra.mxu0 0
        %765 = vmatprep.subr.bf16.mxu0 0
        %766 = vmatpush2.bf16.xpose.msra.mxu0 0
        %767 = vmatprep.subr.bf16.mxu0 0
        %768 = vmatpush2.bf16.xpose.msra.mxu0 0
        %769 = vmatprep.subr.bf16.mxu0 0
        %770 = vmatpush2.bf16.xpose.msra.mxu0 0
        %771 = vmatprep.subr.bf16.mxu0 0
        %772 = vmatpush2.bf16.xpose.msra.mxu0 0
        %773 = vmatprep.mubr.bf16.mxu0 0
        %774 = vmatmul.mubr.bf16.gmra.mxu0 %v733
        %v775 = vpop.f32.mrf.mxu0
        %v776 = vadd.f32 0.0, %v775
        %v777 = vpop.f32.mrf.mxu0
        %v778 = vpop.f32.mrf.mxu0
        %v779 = vpop.f32.mrf.mxu0
        %780 = vdwg.mxu0
        %v781 = vadd.f32 %v612, %v776
        %782 = vrot.lane.b32.xlu0 %v277, 104
        %v783 = vpop.permute.xlu0 %782
        %784 = vrot.lane.b32.xlu0 %v277, 72
        %v785 = vpop.permute.xlu0 %784
        %v787 = vsel %vm285, %v783, 0
        %v790 = vsel %vm285, %v785, 0
        %792 = vmatprep.subr.bf16.mxu0 0
        %793 = vmatpush1.bf16.xpose.msra.mxu0 0
        %794 = vmatprep.subr.bf16.mxu0 0
        %795 = vmatpush1.bf16.xpose.msra.mxu0 0
        %796 = vmatprep.subr.bf16.mxu0 0
        %797 = vmatpush1.bf16.xpose.msra.mxu0 0
        %798 = vmatprep.subr.bf16.mxu0 0
        %799 = vmatpush1.bf16.xpose.msra.mxu0 0
        %800 = vmatprep.subr.bf16.mxu0 0
        %801 = vmatpush1.bf16.xpose.msra.mxu0 0
        %802 = vmatprep.subr.bf16.mxu0 0
        %803 = vmatpush1.bf16.xpose.msra.mxu0 0
        %804 = vmatprep.subr.bf16.mxu0 0
        %805 = vmatpush1.bf16.xpose.msra.mxu0 0
        %806 = vmatprep.subr.bf16.mxu0 0
        %807 = vmatpush1.bf16.xpose.msra.mxu0 %v790
        %808 = vmatprep.subr.bf16.mxu0 0
        %809 = vmatpush2.bf16.xpose.msra.mxu0 0
        %810 = vmatprep.subr.bf16.mxu0 0
        %811 = vmatpush2.bf16.xpose.msra.mxu0 0
        %812 = vmatprep.subr.bf16.mxu0 0
        %813 = vmatpush2.bf16.xpose.msra.mxu0 0
        %814 = vmatprep.subr.bf16.mxu0 0
        %815 = vmatpush2.bf16.xpose.msra.mxu0 0
        %816 = vmatprep.subr.bf16.mxu0 0
        %817 = vmatpush2.bf16.xpose.msra.mxu0 0
        %818 = vmatprep.subr.bf16.mxu0 0
        %819 = vmatpush2.bf16.xpose.msra.mxu0 0
        %820 = vmatprep.subr.bf16.mxu0 0
        %821 = vmatpush2.bf16.xpose.msra.mxu0 0
        %822 = vmatprep.subr.bf16.mxu0 0
        %823 = vmatpush2.bf16.xpose.msra.mxu0 0
        %824 = vmatprep.mubr.bf16.mxu0 0
        %825 = vmatmul.mubr.bf16.gmra.mxu0 %v787
        %v826 = vpop.f32.mrf.mxu0
        %v827 = vadd.f32 0.0, %v826
        %v828 = vpop.f32.mrf.mxu0
        %v829 = vpop.f32.mrf.mxu0
        %v830 = vpop.f32.mrf.mxu0
        %831 = vdwg.mxu0
        %v832 = vsel %vm285, %v827, -inf
        %833 = vmax.xlane.f32.xlu0 %v832
        %v834 = vpop.xlane.xlu0 %833
        %v835 = vsub.f32 %v827, %v834
        %v836 = vmul.f32 %v835, 1.442695
        %v837 = vpow.pop %v836
        %v838 = vsel %vm285, %v837, 0.0
        %839 = vadd.xlane.f32.xlu0 %v838
        %v840 = vpop.xlane.xlu0 %839
        %v841 = vrcp.pop %v840
        %v842 = vmul.f32 %v837, %v841
        %v843 = vpack.c.bf16 %v842, %v842
        %844 = vrot.lane.b32.xlu0 %v277, 40
        %v845 = vpop.permute.xlu0 %844
        %v847 = vsel %vm285, %v843, 0
        %v850 = vsel %vm349, %v845, 0
        %852 = vmatprep.subr.bf16.mxu0 0
        %853 = vmatpush1.bf16.msra.mxu0 0
        %854 = vmatprep.subr.bf16.mxu0 0
        %855 = vmatpush1.bf16.msra.mxu0 0
        %856 = vmatprep.subr.bf16.mxu0 0
        %857 = vmatpush1.bf16.msra.mxu0 0
        %858 = vmatprep.subr.bf16.mxu0 0
        %859 = vmatpush1.bf16.msra.mxu0 0
        %860 = vmatprep.subr.bf16.mxu0 0
        %861 = vmatpush1.bf16.msra.mxu0 0
        %862 = vmatprep.subr.bf16.mxu0 0
        %863 = vmatpush1.bf16.msra.mxu0 0
        %864 = vmatprep.subr.bf16.mxu0 0
        %865 = vmatpush1.bf16.msra.mxu0 0
        %866 = vmatprep.subr.bf16.mxu0 0
        %867 = vmatpush1.bf16.msra.mxu0 %v850
        %868 = vmatprep.subr.bf16.mxu0 0
        %869 = vmatpush2.bf16.msra.mxu0 0
        %870 = vmatprep.subr.bf16.mxu0 0
        %871 = vmatpush2.bf16.msra.mxu0 0
        %872 = vmatprep.subr.bf16.mxu0 0
        %873 = vmatpush2.bf16.msra.mxu0 0
        %874 = vmatprep.subr.bf16.mxu0 0
        %875 = vmatpush2.bf16.msra.mxu0 0
        %876 = vmatprep.subr.bf16.mxu0 0
        %877 = vmatpush2.bf16.msra.mxu0 0
        %878 = vmatprep.subr.bf16.mxu0 0
        %879 = vmatpush2.bf16.msra.mxu0 0
        %880 = vmatprep.subr.bf16.mxu0 0
        %881 = vmatpush2.bf16.msra.mxu0 0
        %882 = vmatprep.subr.bf16.mxu0 0
        %883 = vmatpush2.bf16.msra.mxu0 0
        %884 = vmatprep.mubr.bf16.mxu0 0
        %885 = vmatmul.mubr.bf16.gmra.mxu0 %v847
        %v886 = vpop.f32.mrf.mxu0
        %v887 = vadd.f32 0.0, %v886
        %v888 = vpop.f32.mrf.mxu0
        %v889 = vpop.f32.mrf.mxu0
        %v890 = vpop.f32.mrf.mxu0
        %891 = vdwg.mxu0
        %v892 = vpack.c.bf16 %v887, %v887
        %893 = vrot.lane.b32.xlu0 %v513, 104
        %v894 = vpop.permute.xlu0 %893
        %895 = vrot.lane.b32.xlu0 %v514, 104
        %v896 = vpop.permute.xlu0 %895
        %v898 = vsel %vm285, %v892, 0
        %v901 = vsel %vm285, %v894, 0
        %v904 = vsel %vm285, %v896, 0
        %906 = vmatprep.subr.bf16.mxu0 0
        %907 = vmatpush1.bf16.xpose.msra.mxu0 0
        %908 = vmatprep.subr.bf16.mxu0 0
        %909 = vmatpush1.bf16.xpose.msra.mxu0 0
        %910 = vmatprep.subr.bf16.mxu0 0
        %911 = vmatpush1.bf16.xpose.msra.mxu0 0
        %912 = vmatprep.subr.bf16.mxu0 0
        %913 = vmatpush1.bf16.xpose.msra.mxu0 0
        %914 = vmatprep.subr.bf16.mxu0 0
        %915 = vmatpush1.bf16.xpose.msra.mxu0 0
        %916 = vmatprep.subr.bf16.mxu0 0
        %917 = vmatpush1.bf16.xpose.msra.mxu0 0
        %918 = vmatprep.subr.bf16.mxu0 0
        %919 = vmatpush1.bf16.xpose.msra.mxu0 %v904
        %920 = vmatprep.subr.bf16.mxu0 0
        %921 = vmatpush1.bf16.xpose.msra.mxu0 %v901
        %922 = vmatprep.subr.bf16.mxu0 0
        %923 = vmatpush2.bf16.xpose.msra.mxu0 0
        %924 = vmatprep.subr.bf16.mxu0 0
        %925 = vmatpush2.bf16.xpose.msra.mxu0 0
        %926 = vmatprep.subr.bf16.mxu0 0
        %927 = vmatpush2.bf16.xpose.msra.mxu0 0
        %928 = vmatprep.subr.bf16.mxu0 0
        %929 = vmatpush2.bf16.xpose.msra.mxu0 0
        %930 = vmatprep.subr.bf16.mxu0 0
        %931 = vmatpush2.bf16.xpose.msra.mxu0 0
        %932 = vmatprep.subr.bf16.mxu0 0
        %933 = vmatpush2.bf16.xpose.msra.mxu0 0
        %934 = vmatprep.subr.bf16.mxu0 0
        %935 = vmatpush2.bf16.xpose.msra.mxu0 0
        %936 = vmatprep.subr.bf16.mxu0 0
        %937 = vmatpush2.bf16.xpose.msra.mxu0 0
        %938 = vmatprep.mubr.bf16.mxu0 0
        %939 = vmatmul.mubr.bf16.gmra.mxu0 %v898
        %v940 = vpop.f32.mrf.mxu0
        %v941 = vadd.f32 0.0, %v940
        %v942 = vpop.f32.mrf.mxu0
        %v943 = vpop.f32.mrf.mxu0
        %v944 = vpop.f32.mrf.mxu0
        %945 = vdwg.mxu0
        %v946 = vadd.f32 %v781, %v941
        %v947 = vld [vmem:[%s3 + $0x1] sm:$0x1]
        %v948 = vlaneseq
        %v949 = vshrl.u32 %v948, 7
        %v950 = vsub.s32 0, %v949
        %v951 = vrot.slane %v947, %v950
        %v952 = vadd.f32 %v946, %v951
        %v953 = vadd.f32 %v210, %v952
        %v954 = vld [vmem:[%s3 + $0x4] sm:$0x1]
        %v955 = vld [vmem:[%s3 + $0x5] sm:$0x1]
        %v956 = vsel %vm233, %v953, 0.0
        %957 = vadd.xlane.f32.xlu0 %v956
        %v958 = vpop.xlane.xlu0 %957
        %v959 = vrcp.pop 32.0
        %v960 = vmul.f32 %v958, %v959
        %v961 = vsub.f32 %v953, %v960
        %v962 = vmul.f32 %v961, %v961
        %v963 = vsel %vm233, %v962, 0.0
        %964 = vadd.xlane.f32.xlu0 %v963
        %v965 = vpop.xlane.xlu0 %964
        %v966 = vmul.f32 %v965, %v959
        %v967 = vadd.f32 %v966, 1e-05
        %v968 = vrsqrt.pop %v967
        %v969 = vmul.f32 %v961, %v968
        %v970 = vlaneseq
        %v971 = vshrl.u32 %v970, 7
        %v972 = vsub.s32 0, %v971
        %v973 = vrot.slane %v954, %v972
        %v974 = vmul.f32 %v969, %v973
        %v975 = vlaneseq
        %v976 = vshrl.u32 %v975, 7
        %v977 = vsub.s32 0, %v976
        %v978 = vrot.slane %v955, %v977
        %v979 = vadd.f32 %v974, %v978
        %v980 = vpack.c.bf16 %v979, %v979
        %v981 = vld [vmem:[#allocation2 + $0x20] sm:$0xf]
        %v982 = vld [vmem:[#allocation2 + $0x24] sm:$0xf]
        %v983 = vld [vmem:[#allocation2 + $0x28] sm:$0xf]
        %v984 = vld [vmem:[#allocation2 + $0x2c] sm:$0xf]
        %v985 = vld [vmem:[%s3 + $0x2] sm:$0x1]
        %v986 = vlaneseq
        %v987 = vshrl.u32 %v986, 7
        %v988 = vsub.s32 0, %v987
        %v989 = vrot.slane %v985, %v988
        %v994 = vunpack.c.l.b16 %v981
        %v995 = vunpack.c.l.b16 %v982
        %v996 = vunpack.c.l.b16 %v983
        %v997 = vunpack.c.l.b16 %v984
        %v998 = vpack.c.b16 %v995, %v994
        %v999 = vpack.c.b16 %v997, %v996
        %v1003 = vsel %vm233, %v980, 0
        %1005 = vmatprep.subr.bf16.mxu0 0
        %1006 = vmatpush1.bf16.msra.mxu0 0
        %1007 = vmatprep.subr.bf16.mxu0 0
        %1008 = vmatpush1.bf16.msra.mxu0 0
        %1009 = vmatprep.subr.bf16.mxu0 0
        %1010 = vmatpush1.bf16.msra.mxu0 0
        %1011 = vmatprep.subr.bf16.mxu0 0
        %1012 = vmatpush1.bf16.msra.mxu0 0
        %1013 = vmatprep.subr.bf16.mxu0 0
        %1014 = vmatpush1.bf16.msra.mxu0 0
        %1015 = vmatprep.subr.bf16.mxu0 0
        %1016 = vmatpush1.bf16.msra.mxu0 0
        %1017 = vmatprep.subr.bf16.mxu0 0
        %1018 = vmatpush1.bf16.msra.mxu0 %v999
        %1019 = vmatprep.subr.bf16.mxu0 0
        %1020 = vmatpush1.bf16.msra.mxu0 %v998
        %1021 = vmatprep.subr.bf16.mxu0 0
        %1022 = vmatpush2.bf16.msra.mxu0 0
        %1023 = vmatprep.subr.bf16.mxu0 0
        %1024 = vmatpush2.bf16.msra.mxu0 0
        %1025 = vmatprep.subr.bf16.mxu0 0
        %1026 = vmatpush2.bf16.msra.mxu0 0
        %1027 = vmatprep.subr.bf16.mxu0 0
        %1028 = vmatpush2.bf16.msra.mxu0 0
        %1029 = vmatprep.subr.bf16.mxu0 0
        %1030 = vmatpush2.bf16.msra.mxu0 0
        %1031 = vmatprep.subr.bf16.mxu0 0
        %1032 = vmatpush2.bf16.msra.mxu0 0
        %1033 = vmatprep.subr.bf16.mxu0 0
        %1034 = vmatpush2.bf16.msra.mxu0 0
        %1035 = vmatprep.subr.bf16.mxu0 0
        %1036 = vmatpush2.bf16.msra.mxu0 0
        %1037 = vmatprep.mubr.bf16.mxu0 0
        %1038 = vmatmul.mubr.bf16.gmra.mxu0 %v1003
        %v1039 = vpop.f32.mrf.mxu0
        %v1040 = vadd.f32 %v989, %v1039
        %v1041 = vpop.f32.mrf.mxu0
        %v1042 = vpop.f32.mrf.mxu0
        %v1043 = vpop.f32.mrf.mxu0
        %1044 = vdwg.mxu0
        %v1045 = vmax.f32 %v1040, 0.0
        %v1046 = vpack.c.bf16 %v1045, %v1045
        %v1047 = vld [vmem:[#allocation2 + $0x30] sm:$0xf]
        %v1048 = vld [vmem:[#allocation2 + $0x34] sm:$0xf]
        %v1049 = vld [vmem:[#allocation2 + $0x38] sm:$0xf]
        %v1050 = vld [vmem:[#allocation2 + $0x3c] sm:$0xf]
        %v1051 = vld [vmem:[#allocation2 + $0x40] sm:$0xf]
        %v1052 = vld [vmem:[#allocation2 + $0x44] sm:$0xf]
        %v1053 = vld [vmem:[#allocation2 + $0x48] sm:$0xf]
        %v1054 = vld [vmem:[#allocation2 + $0x4c] sm:$0xf]
        %v1055 = vld [vmem:[%s3 + $0x3] sm:$0x1]
        %v1056 = vlaneseq
        %v1057 = vshrl.u32 %v1056, 7
        %v1058 = vsub.s32 0, %v1057
        %v1059 = vrot.slane %v1055, %v1058
        %v1068 = vunpack.c.l.b16 %v1047
        %v1069 = vunpack.c.l.b16 %v1048
        %v1070 = vunpack.c.l.b16 %v1049
        %v1071 = vunpack.c.l.b16 %v1050
        %v1072 = vunpack.c.l.b16 %v1051
        %v1073 = vunpack.c.l.b16 %v1052
        %v1074 = vunpack.c.l.b16 %v1053
        %v1075 = vunpack.c.l.b16 %v1054
        %v1076 = vpack.c.b16 %v1069, %v1068
        %v1077 = vpack.c.b16 %v1071, %v1070
        %v1078 = vpack.c.b16 %v1073, %v1072
        %v1079 = vpack.c.b16 %v1075, %v1074
        %vm1084 = vcmask 523264
        %v1086 = vsel %vm1084, %v1046, 0
        %1088 = vmatprep.subr.bf16.mxu0 0
        %1089 = vmatpush1.bf16.msra.mxu0 0
        %1090 = vmatprep.subr.bf16.mxu0 0
        %1091 = vmatpush1.bf16.msra.mxu0 0
        %1092 = vmatprep.subr.bf16.mxu0 0
        %1093 = vmatpush1.bf16.msra.mxu0 0
        %1094 = vmatprep.subr.bf16.mxu0 0
        %1095 = vmatpush1.bf16.msra.mxu0 0
        %1096 = vmatprep.subr.bf16.mxu0 0
        %1097 = vmatpush1.bf16.msra.mxu0 %v1079
        %1098 = vmatprep.subr.bf16.mxu0 0
        %1099 = vmatpush1.bf16.msra.mxu0 %v1078
        %1100 = vmatprep.subr.bf16.mxu0 0
        %1101 = vmatpush1.bf16.msra.mxu0 %v1077
        %1102 = vmatprep.subr.bf16.mxu0 0
        %1103 = vmatpush1.bf16.msra.mxu0 %v1076
        %1104 = vmatprep.subr.bf16.mxu0 0
        %1105 = vmatpush2.bf16.msra.mxu0 0
        %1106 = vmatprep.subr.bf16.mxu0 0
        %1107 = vmatpush2.bf16.msra.mxu0 0
        %1108 = vmatprep.subr.bf16.mxu0 0
        %1109 = vmatpush2.bf16.msra.mxu0 0
        %1110 = vmatprep.subr.bf16.mxu0 0
        %1111 = vmatpush2.bf16.msra.mxu0 0
        %1112 = vmatprep.subr.bf16.mxu0 0
        %1113 = vmatpush2.bf16.msra.mxu0 0
        %1114 = vmatprep.subr.bf16.mxu0 0
        %1115 = vmatpush2.bf16.msra.mxu0 0
        %1116 = vmatprep.subr.bf16.mxu0 0
        %1117 = vmatpush2.bf16.msra.mxu0 0
        %1118 = vmatprep.subr.bf16.mxu0 0
        %1119 = vmatpush2.bf16.msra.mxu0 0
        %1120 = vmatprep.mubr.bf16.mxu0 0
        %1121 = vmatmul.mubr.bf16.gmra.mxu0 %v1086
        %v1122 = vpop.f32.mrf.mxu0
        %v1123 = vadd.f32 %v1059, %v1122
        %v1124 = vpop.f32.mrf.mxu0
        %v1125 = vpop.f32.mrf.mxu0
        %v1126 = vpop.f32.mrf.mxu0
        %1127 = vdwg.mxu0
        %v1128 = vadd.f32 %v979, %v1123
        %v1129 = vld [vmem:[%s3 + $0x6] sm:$0x1]
        %v1130 = vld [vmem:[%s3 + $0x7] sm:$0x1]
        %v1131 = vsel %vm233, %v1128, 0.0
        %1132 = vadd.xlane.f32.xlu0 %v1131
        %v1133 = vpop.xlane.xlu0 %1132
        %v1134 = vmul.f32 %v1133, %v959
        %v1135 = vsub.f32 %v1128, %v1134
        %v1136 = vmul.f32 %v1135, %v1135
        %v1137 = vsel %vm233, %v1136, 0.0
        %1138 = vadd.xlane.f32.xlu0 %v1137
        %v1139 = vpop.xlane.xlu0 %1138
        %v1140 = vmul.f32 %v1139, %v959
        %v1141 = vadd.f32 %v1140, 1e-05
        %v1142 = vrsqrt.pop %v1141
        %v1143 = vmul.f32 %v1135, %v1142
        %v1144 = vlaneseq
        %v1145 = vshrl.u32 %v1144, 7
        %v1146 = vsub.s32 0, %v1145
        %v1147 = vrot.slane %v1129, %v1146
        %v1148 = vmul.f32 %v1143, %v1147
        %v1149 = vlaneseq
        %v1150 = vshrl.u32 %v1149, 7
        %v1151 = vsub.s32 0, %v1150
        %v1152 = vrot.slane %v1130, %v1151
        %v1153 = vadd.f32 %v1148, %v1152
        %v1154 = vpack.c.bf16 %v1153, %v1153
        %v1155 = vld [vmem:[#allocation2 + $0x50] sm:$0xf]
        %v1156 = vld [vmem:[#allocation2 + $0x54] sm:$0xf]
        %v1157 = vld [vmem:[#allocation2 + $0x58] sm:$0xf]
        %v1158 = vld [vmem:[#allocation2 + $0x5c] sm:$0xf]
        %v1159 = vld [vmem:[%s3 + $0x8] sm:$0x1]
        %v1160 = vlaneseq
        %v1161 = vshrl.u32 %v1160, 7
        %v1162 = vsub.s32 0, %v1161
        %v1163 = vrot.slane %v1159, %v1162
        %v1168 = vunpack.c.l.b16 %v1155
        %v1169 = vunpack.c.l.b16 %v1156
        %v1170 = vunpack.c.l.b16 %v1157
        %v1171 = vunpack.c.l.b16 %v1158
        %v1172 = vpack.c.b16 %v1169, %v1168
        %v1173 = vpack.c.b16 %v1171, %v1170
        %v1177 = vsel %vm233, %v1154, 0
        %1179 = vmatprep.subr.bf16.mxu0 0
        %1180 = vmatpush1.bf16.msra.mxu0 0
        %1181 = vmatprep.subr.bf16.mxu0 0
        %1182 = vmatpush1.bf16.msra.mxu0 0
        %1183 = vmatprep.subr.bf16.mxu0 0
        %1184 = vmatpush1.bf16.msra.mxu0 0
        %1185 = vmatprep.subr.bf16.mxu0 0
        %1186 = vmatpush1.bf16.msra.mxu0 0
        %1187 = vmatprep.subr.bf16.mxu0 0
        %1188 = vmatpush1.bf16.msra.mxu0 0
        %1189 = vmatprep.subr.bf16.mxu0 0
        %1190 = vmatpush1.bf16.msra.mxu0 0
        %1191 = vmatprep.subr.bf16.mxu0 0
        %1192 = vmatpush1.bf16.msra.mxu0 %v1173
        %1193 = vmatprep.subr.bf16.mxu0 0
        %1194 = vmatpush1.bf16.msra.mxu0 %v1172
        %1195 = vmatprep.subr.bf16.mxu0 0
        %1196 = vmatpush2.bf16.msra.mxu0 0
        %1197 = vmatprep.subr.bf16.mxu0 0
        %1198 = vmatpush2.bf16.msra.mxu0 0
        %1199 = vmatprep.subr.bf16.mxu0 0
        %1200 = vmatpush2.bf16.msra.mxu0 0
        %1201 = vmatprep.subr.bf16.mxu0 0
        %1202 = vmatpush2.bf16.msra.mxu0 0
        %1203 = vmatprep.subr.bf16.mxu0 0
        %1204 = vmatpush2.bf16.msra.mxu0 0
        %1205 = vmatprep.subr.bf16.mxu0 0
        %1206 = vmatpush2.bf16.msra.mxu0 0
        %1207 = vmatprep.subr.bf16.mxu0 0
        %1208 = vmatpush2.bf16.msra.mxu0 0
        %1209 = vmatprep.subr.bf16.mxu0 0
        %1210 = vmatpush2.bf16.msra.mxu0 0
        %1211 = vmatprep.mubr.bf16.mxu0 0
        %1212 = vmatmul.mubr.bf16.gmra.mxu0 %v1177
        %v1213 = vpop.f32.mrf.mxu0
        %v1214 = vadd.f32 %v1163, %v1213
        %v1215 = vpop.f32.mrf.mxu0
        %v1216 = vpop.f32.mrf.mxu0
        %v1217 = vpop.f32.mrf.mxu0
        %1218 = vdwg.mxu0
        %v1219 = vpack.c.bf16 %v1214, %v1214
        %v1220 = vld [vmem:[#allocation2 + $0x60] sm:$0xf]
        %v1221 = vld [vmem:[#allocation2 + $0x64] sm:$0xf]
        %v1222 = vld [vmem:[#allocation2 + $0x68] sm:$0xf]
        %v1223 = vld [vmem:[#allocation2 + $0x6c] sm:$0xf]
        %1225 = vrot.lane.b32.xlu0 %v1219, 96
        %v1226 = vpop.permute.xlu0 %1225
        %v1228 = vsel %vm285, %v1219, 0
        %v1231 = vsel %vm285, %v1226, 0
        %1233 = vmatprep.subr.bf16.mxu0 0
        %1234 = vmatpush1.bf16.xpose.msra.mxu0 0
        %1235 = vmatprep.subr.bf16.mxu0 0
        %1236 = vmatpush1.bf16.xpose.msra.mxu0 0
        %1237 = vmatprep.subr.bf16.mxu0 0
        %1238 = vmatpush1.bf16.xpose.msra.mxu0 0
        %1239 = vmatprep.subr.bf16.mxu0 0
        %1240 = vmatpush1.bf16.xpose.msra.mxu0 0
        %1241 = vmatprep.subr.bf16.mxu0 0
        %1242 = vmatpush1.bf16.xpose.msra.mxu0 0
        %1243 = vmatprep.subr.bf16.mxu0 0
        %1244 = vmatpush1.bf16.xpose.msra.mxu0 0
        %1245 = vmatprep.subr.bf16.mxu0 0
        %1246 = vmatpush1.bf16.xpose.msra.mxu0 0
        %1247 = vmatprep.subr.bf16.mxu0 0
        %1248 = vmatpush1.bf16.xpose.msra.mxu0 %v1231
        %1249 = vmatprep.subr.bf16.mxu0 0
        %1250 = vmatpush2.bf16.xpose.msra.mxu0 0
        %1251 = vmatprep.subr.bf16.mxu0 0
        %1252 = vmatpush2.bf16.xpose.msra.mxu0 0
        %1253 = vmatprep.subr.bf16.mxu0 0
        %1254 = vmatpush2.bf16.xpose.msra.mxu0 0
        %1255 = vmatprep.subr.bf16.mxu0 0
        %1256 = vmatpush2.bf16.xpose.msra.mxu0 0
        %1257 = vmatprep.subr.bf16.mxu0 0
        %1258 = vmatpush2.bf16.xpose.msra.mxu0 0
        %1259 = vmatprep.subr.bf16.mxu0 0
        %1260 = vmatpush2.bf16.xpose.msra.mxu0 0
        %1261 = vmatprep.subr.bf16.mxu0 0
        %1262 = vmatpush2.bf16.xpose.msra.mxu0 0
        %1263 = vmatprep.subr.bf16.mxu0 0
        %1264 = vmatpush2.bf16.xpose.msra.mxu0 0
        %1265 = vmatprep.mubr.bf16.mxu0 0
        %1266 = vmatmul.mubr.bf16.gmra.mxu0 %v1228
        %v1267 = vpop.f32.mrf.mxu0
        %v1268 = vadd.f32 0.0, %v1267
        %v1269 = vpop.f32.mrf.mxu0
        %v1270 = vpop.f32.mrf.mxu0
        %v1271 = vpop.f32.mrf.mxu0
        %1272 = vdwg.mxu0
        %v1273 = vsel %vm285, %v1268, -inf
        %1274 = vmax.xlane.f32.xlu0 %v1273
        %v1275 = vpop.xlane.xlu0 %1274
        %v1276 = vsub.f32 %v1268, %v1275
        %v1277 = vmul.f32 %v1276, 1.442695
        %v1278 = vpow.pop %v1277
        %v1279 = vsel %vm285, %v1278, 0.0
        %1280 = vadd.xlane.f32.xlu0 %v1279
        %v1281 = vpop.xlane.xlu0 %1280
        %v1282 = vrcp.pop %v1281
        %v1283 = vmul.f32 %v1278, %v1282
        %v1284 = vpack.c.bf16 %v1283, %v1283
        %1285 = vrot.lane.b32.xlu0 %v1219, 64
        %v1286 = vpop.permute.xlu0 %1285
        %v1288 = vsel %vm285, %v1284, 0
        %v1291 = vsel %vm349, %v1286, 0
        %1293 = vmatprep.subr.bf16.mxu0 0
        %1294 = vmatpush1.bf16.msra.mxu0 0
        %1295 = vmatprep.subr.bf16.mxu0 0
        %1296 = vmatpush1.bf16.msra.mxu0 0
        %1297 = vmatprep.subr.bf16.mxu0 0
        %1298 = vmatpush1.bf16.msra.mxu0 0
        %1299 = vmatprep.subr.bf16.mxu0 0
        %1300 = vmatpush1.bf16.msra.mxu0 0
        %1301 = vmatprep.subr.bf16.mxu0 0
        %1302 = vmatpush1.bf16.msra.mxu0 0
        %1303 = vmatprep.subr.bf16.mxu0 0
        %1304 = vmatpush1.bf16.msra.mxu0 0
        %1305 = vmatprep.subr.bf16.mxu0 0
        %1306 = vmatpush1.bf16.msra.mxu0 0
        %1307 = vmatprep.subr.bf16.mxu0 0
        %1308 = vmatpush1.bf16.msra.mxu0 %v1291
        %1309 = vmatprep.subr.bf16.mxu0 0
        %1310 = vmatpush2.bf16.msra.mxu0 0
        %1311 = vmatprep.subr.bf16.mxu0 0
        %1312 = vmatpush2.bf16.msra.mxu0 0
        %1313 = vmatprep.subr.bf16.mxu0 0
        %1314 = vmatpush2.bf16.msra.mxu0 0
        %1315 = vmatprep.subr.bf16.mxu0 0
        %1316 = vmatpush2.bf16.msra.mxu0 0
        %1317 = vmatprep.subr.bf16.mxu0 0
        %1318 = vmatpush2.bf16.msra.mxu0 0
        %1319 = vmatprep.subr.bf16.mxu0 0
        %1320 = vmatpush2.bf16.msra.mxu0 0
        %1321 = vmatprep.subr.bf16.mxu0 0
        %1322 = vmatpush2.bf16.msra.mxu0 0
        %1323 = vmatprep.subr.bf16.mxu0 0
        %1324 = vmatpush2.bf16.msra.mxu0 0
        %1325 = vmatprep.mubr.bf16.mxu0 0
        %1326 = vmatmul.mubr.bf16.gmra.mxu0 %v1288
        %v1327 = vpop.f32.mrf.mxu0
        %v1328 = vadd.f32 0.0, %v1327
        %v1329 = vpop.f32.mrf.mxu0
        %v1330 = vpop.f32.mrf.mxu0
        %v1331 = vpop.f32.mrf.mxu0
        %1332 = vdwg.mxu0
        %v1333 = vpack.c.bf16 %v1328, %v1328
        %1334 = vrot.lane.b32.xlu0 %v1219, 120
        %v1335 = vpop.permute.xlu0 %1334
        %1336 = vrot.lane.b32.xlu0 %v1219, 88
        %v1337 = vpop.permute.xlu0 %1336
        %v1339 = vsel %vm285, %v1335, 0
        %v1342 = vsel %vm285, %v1337, 0
        %1344 = vmatprep.subr.bf16.mxu0 0
        %1345 = vmatpush1.bf16.xpose.msra.mxu0 0
        %1346 = vmatprep.subr.bf16.mxu0 0
        %1347 = vmatpush1.bf16.xpose.msra.mxu0 0
        %1348 = vmatprep.subr.bf16.mxu0 0
        %1349 = vmatpush1.bf16.xpose.msra.mxu0 0
        %1350 = vmatprep.subr.bf16.mxu0 0
        %1351 = vmatpush1.bf16.xpose.msra.mxu0 0
        %1352 = vmatprep.subr.bf16.mxu0 0
        %1353 = vmatpush1.bf16.xpose.msra.mxu0 0
        %1354 = vmatprep.subr.bf16.mxu0 0
        %1355 = vmatpush1.bf16.xpose.msra.mxu0 0
        %1356 = vmatprep.subr.bf16.mxu0 0
        %1357 = vmatpush1.bf16.xpose.msra.mxu0 0
        %1358 = vmatprep.subr.bf16.mxu0 0
        %1359 = vmatpush1.bf16.xpose.msra.mxu0 %v1342
        %1360 = vmatprep.subr.bf16.mxu0 0
        %1361 = vmatpush2.bf16.xpose.msra.mxu0 0
        %1362 = vmatprep.subr.bf16.mxu0 0
        %1363 = vmatpush2.bf16.xpose.msra.mxu0 0
        %1364 = vmatprep.subr.bf16.mxu0 0
        %1365 = vmatpush2.bf16.xpose.msra.mxu0 0
        %1366 = vmatprep.subr.bf16.mxu0 0
        %1367 = vmatpush2.bf16.xpose.msra.mxu0 0
        %1368 = vmatprep.subr.bf16.mxu0 0
        %1369 = vmatpush2.bf16.xpose.msra.mxu0 0
        %1370 = vmatprep.subr.bf16.mxu0 0
        %1371 = vmatpush2.bf16.xpose.msra.mxu0 0
        %1372 = vmatprep.subr.bf16.mxu0 0
        %1373 = vmatpush2.bf16.xpose.msra.mxu0 0
        %1374 = vmatprep.subr.bf16.mxu0 0
        %1375 = vmatpush2.bf16.xpose.msra.mxu0 0
        %1376 = vmatprep.mubr.bf16.mxu0 0
        %1377 = vmatmul.mubr.bf16.gmra.mxu0 %v1339
        %v1378 = vpop.f32.mrf.mxu0
        %v1379 = vadd.f32 0.0, %v1378
        %v1380 = vpop.f32.mrf.mxu0
        %v1381 = vpop.f32.mrf.mxu0
        %v1382 = vpop.f32.mrf.mxu0
        %1383 = vdwg.mxu0
        %v1384 = vsel %vm285, %v1379, -inf
        %1385 = vmax.xlane.f32.xlu0 %v1384
        %v1386 = vpop.xlane.xlu0 %1385
        %v1387 = vsub.f32 %v1379, %v1386
        %v1388 = vmul.f32 %v1387, 1.442695
        %v1389 = vpow.pop %v1388
        %v1390 = vsel %vm285, %v1389, 0.0
        %1391 = vadd.xlane.f32.xlu0 %v1390
        %v1392 = vpop.xlane.xlu0 %1391
        %v1393 = vrcp.pop %v1392
        %v1394 = vmul.f32 %v1389, %v1393
        %v1395 = vpack.c.bf16 %v1394, %v1394
        %1396 = vrot.lane.b32.xlu0 %v1219, 56
        %v1397 = vpop.permute.xlu0 %1396
        %v1399 = vsel %vm285, %v1395, 0
        %v1402 = vsel %vm349, %v1397, 0
        %1404 = vmatprep.subr.bf16.mxu0 0
        %1405 = vmatpush1.bf16.msra.mxu0 0
        %1406 = vmatprep.subr.bf16.mxu0 0
        %1407 = vmatpush1.bf16.msra.mxu0 0
        %1408 = vmatprep.subr.bf16.mxu0 0
        %1409 = vmatpush1.bf16.msra.mxu0 0
        %1410 = vmatprep.subr.bf16.mxu0 0
        %1411 = vmatpush1.bf16.msra.mxu0 0
        %1412 = vmatprep.subr.bf16.mxu0 0
        %1413 = vmatpush1.bf16.msra.mxu0 0
        %1414 = vmatprep.subr.bf16.mxu0 0
        %1415 = vmatpush1.bf16.msra.mxu0 0
        %1416 = vmatprep.subr.bf16.mxu0 0
        %1417 = vmatpush1.bf16.msra.mxu0 0
        %1418 = vmatprep.subr.bf16.mxu0 0
        %1419 = vmatpush1.bf16.msra.mxu0 %v1402
        %1420 = vmatprep.subr.bf16.mxu0 0
        %1421 = vmatpush2.bf16.msra.mxu0 0
        %1422 = vmatprep.subr.bf16.mxu0 0
        %1423 = vmatpush2.bf16.msra.mxu0 0
        %1424 = vmatprep.subr.bf16.mxu0 0
        %1425 = vmatpush2.bf16.msra.mxu0 0
        %1426 = vmatprep.subr.bf16.mxu0 0
        %1427 = vmatpush2.bf16.msra.mxu0 0
        %1428 = vmatprep.subr.bf16.mxu0 0
        %1429 = vmatpush2.bf16.msra.mxu0 0
        %1430 = vmatprep.subr.bf16.mxu0 0
        %1431 = vmatpush2.bf16.msra.mxu0 0
        %1432 = vmatprep.subr.bf16.mxu0 0
        %1433 = vmatpush2.bf16.msra.mxu0 0
        %1434 = vmatprep.subr.bf16.mxu0 0
        %1435 = vmatpush2.bf16.msra.mxu0 0
        %1436 = vmatprep.mubr.bf16.mxu0 0
        %1437 = vmatmul.mubr.bf16.gmra.mxu0 %v1399
        %v1438 = vpop.f32.mrf.mxu0
        %v1439 = vadd.f32 0.0, %v1438
        %v1440 = vpop.f32.mrf.mxu0
        %v1441 = vpop.f32.mrf.mxu0
        %v1442 = vpop.f32.mrf.mxu0
        %1443 = vdwg.mxu0
        %v1444 = vpack.c.bf16 %v1439, %v1439
        %v1449 = vunpack.c.l.b16 %v1220
        %v1450 = vunpack.c.l.b16 %v1221
        %v1451 = vunpack.c.l.b16 %v1222
        %v1452 = vunpack.c.l.b16 %v1223
        %v1453 = vpack.c.b16 %v1450, %v1449
        %v1454 = vpack.c.b16 %v1452, %v1451
        %1455 = vrot.lane.b32.xlu0 %v1453, 120
        %v1456 = vpop.permute.xlu0 %1455
        %1457 = vrot.lane.b32.xlu0 %v1454, 120
        %v1458 = vpop.permute.xlu0 %1457
        %v1460 = vsel %vm285, %v1444, 0
        %v1463 = vsel %vm285, %v1456, 0
        %v1466 = vsel %vm285, %v1458, 0
        %1468 = vmatprep.subr.bf16.mxu0 0
        %1469 = vmatpush1.bf16.xpose.msra.mxu0 0
        %1470 = vmatprep.subr.bf16.mxu0 0
        %1471 = vmatpush1.bf16.xpose.msra.mxu0 0
        %1472 = vmatprep.subr.bf16.mxu0 0
        %1473 = vmatpush1.bf16.xpose.msra.mxu0 0
        %1474 = vmatprep.subr.bf16.mxu0 0
        %1475 = vmatpush1.bf16.xpose.msra.mxu0 0
        %1476 = vmatprep.subr.bf16.mxu0 0
        %1477 = vmatpush1.bf16.xpose.msra.mxu0 0
        %1478 = vmatprep.subr.bf16.mxu0 0
        %1479 = vmatpush1.bf16.xpose.msra.mxu0 0
        %1480 = vmatprep.subr.bf16.mxu0 0
        %1481 = vmatpush1.bf16.xpose.msra.mxu0 %v1466
        %1482 = vmatprep.subr.bf16.mxu0 0
        %1483 = vmatpush1.bf16.xpose.msra.mxu0 %v1463
        %1484 = vmatprep.subr.bf16.mxu0 0
        %1485 = vmatpush2.bf16.xpose.msra.mxu0 0
        %1486 = vmatprep.subr.bf16.mxu0 0
        %1487 = vmatpush2.bf16.xpose.msra.mxu0 0
        %1488 = vmatprep.subr.bf16.mxu0 0
        %1489 = vmatpush2.bf16.xpose.msra.mxu0 0
        %1490 = vmatprep.subr.bf16.mxu0 0
        %1491 = vmatpush2.bf16.xpose.msra.mxu0 0
        %1492 = vmatprep.subr.bf16.mxu0 0
        %1493 = vmatpush2.bf16.xpose.msra.mxu0 0
        %1494 = vmatprep.subr.bf16.mxu0 0
        %1495 = vmatpush2.bf16.xpose.msra.mxu0 0
        %1496 = vmatprep.subr.bf16.mxu0 0
        %1497 = vmatpush2.bf16.xpose.msra.mxu0 0
        %1498 = vmatprep.subr.bf16.mxu0 0
        %1499 = vmatpush2.bf16.xpose.msra.mxu0 0
        %1500 = vmatprep.mubr.bf16.mxu0 0
        %1501 = vmatmul.mubr.bf16.gmra.mxu0 %v1460
        %v1502 = vpop.f32.mrf.mxu0
        %v1503 = vadd.f32 0.0, %v1502
        %v1504 = vpop.f32.mrf.mxu0
        %v1505 = vpop.f32.mrf.mxu0
        %v1506 = vpop.f32.mrf.mxu0
        %1507 = vdwg.mxu0
        %v1509 = vsel %vm285, %v1333, 0
        %v1512 = vsel %vm285, %v1453, 0
        %v1515 = vsel %vm285, %v1454, 0
        %1517 = vmatprep.subr.bf16.mxu0 0
        %1518 = vmatpush1.bf16.xpose.msra.mxu0 0
        %1519 = vmatprep.subr.bf16.mxu0 0
        %1520 = vmatpush1.bf16.xpose.msra.mxu0 0
        %1521 = vmatprep.subr.bf16.mxu0 0
        %1522 = vmatpush1.bf16.xpose.msra.mxu0 0
        %1523 = vmatprep.subr.bf16.mxu0 0
        %1524 = vmatpush1.bf16.xpose.msra.mxu0 0
        %1525 = vmatprep.subr.bf16.mxu0 0
        %1526 = vmatpush1.bf16.xpose.msra.mxu0 0
        %1527 = vmatprep.subr.bf16.mxu0 0
        %1528 = vmatpush1.bf16.xpose.msra.mxu0 0
        %1529 = vmatprep.subr.bf16.mxu0 0
        %1530 = vmatpush1.bf16.xpose.msra.mxu0 %v1515
        %1531 = vmatprep.subr.bf16.mxu0 0
        %1532 = vmatpush1.bf16.xpose.msra.mxu0 %v1512
        %1533 = vmatprep.subr.bf16.mxu0 0
        %1534 = vmatpush2.bf16.xpose.msra.mxu0 0
        %1535 = vmatprep.subr.bf16.mxu0 0
        %1536 = vmatpush2.bf16.xpose.msra.mxu0 0
        %1537 = vmatprep.subr.bf16.mxu0 0
        %1538 = vmatpush2.bf16.xpose.msra.mxu0 0
        %1539 = vmatprep.subr.bf16.mxu0 0
        %1540 = vmatpush2.bf16.xpose.msra.mxu0 0
        %1541 = vmatprep.subr.bf16.mxu0 0
        %1542 = vmatpush2.bf16.xpose.msra.mxu0 0
        %1543 = vmatprep.subr.bf16.mxu0 0
        %1544 = vmatpush2.bf16.xpose.msra.mxu0 0
        %1545 = vmatprep.subr.bf16.mxu0 0
        %1546 = vmatpush2.bf16.xpose.msra.mxu0 0
        %1547 = vmatprep.subr.bf16.mxu0 0
        %1548 = vmatpush2.bf16.xpose.msra.mxu0 0
        %1549 = vmatprep.mubr.bf16.mxu0 0
        %1550 = vmatmul.mubr.bf16.gmra.mxu0 %v1509
        %v1551 = vpop.f32.mrf.mxu0
        %v1552 = vadd.f32 %v1503, %v1551
        %v1553 = vpop.f32.mrf.mxu0
        %v1554 = vpop.f32.mrf.mxu0
        %v1555 = vpop.f32.mrf.mxu0
        %1556 = vdwg.mxu0
        %1557 = vrot.lane.b32.xlu0 %v1219, 112
        %v1558 = vpop.permute.xlu0 %1557
        %1559 = vrot.lane.b32.xlu0 %v1219, 80
        %v1560 = vpop.permute.xlu0 %1559
        %v1562 = vsel %vm285, %v1558, 0
        %v1565 = vsel %vm285, %v1560, 0
        %1567 = vmatprep.subr.bf16.mxu0 0
        %1568 = vmatpush1.bf16.xpose.msra.mxu0 0
        %1569 = vmatprep.subr.bf16.mxu0 0
        %1570 = vmatpush1.bf16.xpose.msra.mxu0 0
        %1571 = vmatprep.subr.bf16.mxu0 0
        %1572 = vmatpush1.bf16.xpose.msra.mxu0 0
        %1573 = vmatprep.subr.bf16.mxu0 0
        %1574 = vmatpush1.bf16.xpose.msra.mxu0 0
        %1575 = vmatprep.subr.bf16.mxu0 0
        %1576 = vmatpush1.bf16.xpose.msra.mxu0 0
        %1577 = vmatprep.subr.bf16.mxu0 0
        %1578 = vmatpush1.bf16.xpose.msra.mxu0 0
        %1579 = vmatprep.subr.bf16.mxu0 0
        %1580 = vmatpush1.bf16.xpose.msra.mxu0 0
        %1581 = vmatprep.subr.bf16.mxu0 0
        %1582 = vmatpush1.bf16.xpose.msra.mxu0 %v1565
        %1583 = vmatprep.subr.bf16.mxu0 0
        %1584 = vmatpush2.bf16.xpose.msra.mxu0 0
        %1585 = vmatprep.subr.bf16.mxu0 0
        %1586 = vmatpush2.bf16.xpose.msra.mxu0 0
        %1587 = vmatprep.subr.bf16.mxu0 0
        %1588 = vmatpush2.bf16.xpose.msra.mxu0 0
        %1589 = vmatprep.subr.bf16.mxu0 0
        %1590 = vmatpush2.bf16.xpose.msra.mxu0 0
        %1591 = vmatprep.subr.bf16.mxu0 0
        %1592 = vmatpush2.bf16.xpose.msra.mxu0 0
        %1593 = vmatprep.subr.bf16.mxu0 0
        %1594 = vmatpush2.bf16.xpose.msra.mxu0 0
        %1595 = vmatprep.subr.bf16.mxu0 0
        %1596 = vmatpush2.bf16.xpose.msra.mxu0 0
        %1597 = vmatprep.subr.bf16.mxu0 0
        %1598 = vmatpush2.bf16.xpose.msra.mxu0 0
        %1599 = vmatprep.mubr.bf16.mxu0 0
        %1600 = vmatmul.mubr.bf16.gmra.mxu0 %v1562
        %v1601 = vpop.f32.mrf.mxu0
        %v1602 = vadd.f32 0.0, %v1601
        %v1603 = vpop.f32.mrf.mxu0
        %v1604 = vpop.f32.mrf.mxu0
        %v1605 = vpop.f32.mrf.mxu0
        %1606 = vdwg.mxu0
        %v1607 = vsel %vm285, %v1602, -inf
        %1608 = vmax.xlane.f32.xlu0 %v1607
        %v1609 = vpop.xlane.xlu0 %1608
        %v1610 = vsub.f32 %v1602, %v1609
        %v1611 = vmul.f32 %v1610, 1.442695
        %v1612 = vpow.pop %v1611
        %v1613 = vsel %vm285, %v1612, 0.0
        %1614 = vadd.xlane.f32.xlu0 %v1613
        %v1615 = vpop.xlane.xlu0 %1614
        %v1616 = vrcp.pop %v1615
        %v1617 = vmul.f32 %v1612, %v1616
        %v1618 = vpack.c.bf16 %v1617, %v1617
        %1619 = vrot.lane.b32.xlu0 %v1219, 48
        %v1620 = vpop.permute.xlu0 %1619
        %v1622 = vsel %vm285, %v1618, 0
        %v1625 = vsel %vm349, %v1620, 0
        %1627 = vmatprep.subr.bf16.mxu0 0
        %1628 = vmatpush1.bf16.msra.mxu0 0
        %1629 = vmatprep.subr.bf16.mxu0 0
        %1630 = vmatpush1.bf16.msra.mxu0 0
        %1631 = vmatprep.subr.bf16.mxu0 0
        %1632 = vmatpush1.bf16.msra.mxu0 0
        %1633 = vmatprep.subr.bf16.mxu0 0
        %1634 = vmatpush1.bf16.msra.mxu0 0
        %1635 = vmatprep.subr.bf16.mxu0 0
        %1636 = vmatpush1.bf16.msra.mxu0 0
        %1637 = vmatprep.subr.bf16.mxu0 0
        %1638 = vmatpush1.bf16.msra.mxu0 0
        %1639 = vmatprep.subr.bf16.mxu0 0
        %1640 = vmatpush1.bf16.msra.mxu0 0
        %1641 = vmatprep.subr.bf16.mxu0 0
        %1642 = vmatpush1.bf16.msra.mxu0 %v1625
        %1643 = vmatprep.subr.bf16.mxu0 0
        %1644 = vmatpush2.bf16.msra.mxu0 0
        %1645 = vmatprep.subr.bf16.mxu0 0
        %1646 = vmatpush2.bf16.msra.mxu0 0
        %1647 = vmatprep.subr.bf16.mxu0 0
        %1648 = vmatpush2.bf16.msra.mxu0 0
        %1649 = vmatprep.subr.bf16.mxu0 0
        %1650 = vmatpush2.bf16.msra.mxu0 0
        %1651 = vmatprep.subr.bf16.mxu0 0
        %1652 = vmatpush2.bf16.msra.mxu0 0
        %1653 = vmatprep.subr.bf16.mxu0 0
        %1654 = vmatpush2.bf16.msra.mxu0 0
        %1655 = vmatprep.subr.bf16.mxu0 0
        %1656 = vmatpush2.bf16.msra.mxu0 0
        %1657 = vmatprep.subr.bf16.mxu0 0
        %1658 = vmatpush2.bf16.msra.mxu0 0
        %1659 = vmatprep.mubr.bf16.mxu0 0
        %1660 = vmatmul.mubr.bf16.gmra.mxu0 %v1622
        %v1661 = vpop.f32.mrf.mxu0
        %v1662 = vadd.f32 0.0, %v1661
        %v1663 = vpop.f32.mrf.mxu0
        %v1664 = vpop.f32.mrf.mxu0
        %v1665 = vpop.f32.mrf.mxu0
        %1666 = vdwg.mxu0
        %v1667 = vpack.c.bf16 %v1662, %v1662
        %1668 = vrot.lane.b32.xlu0 %v1453, 112
        %v1669 = vpop.permute.xlu0 %1668
        %1670 = vrot.lane.b32.xlu0 %v1454, 112
        %v1671 = vpop.permute.xlu0 %1670
        %v1673 = vsel %vm285, %v1667, 0
        %v1676 = vsel %vm285, %v1669, 0
        %v1679 = vsel %vm285, %v1671, 0
        %1681 = vmatprep.subr.bf16.mxu0 0
        %1682 = vmatpush1.bf16.xpose.msra.mxu0 0
        %1683 = vmatprep.subr.bf16.mxu0 0
        %1684 = vmatpush1.bf16.xpose.msra.mxu0 0
        %1685 = vmatprep.subr.bf16.mxu0 0
        %1686 = vmatpush1.bf16.xpose.msra.mxu0 0
        %1687 = vmatprep.subr.bf16.mxu0 0
        %1688 = vmatpush1.bf16.xpose.msra.mxu0 0
        %1689 = vmatprep.subr.bf16.mxu0 0
        %1690 = vmatpush1.bf16.xpose.msra.mxu0 0
        %1691 = vmatprep.subr.bf16.mxu0 0
        %1692 = vmatpush1.bf16.xpose.msra.mxu0 0
        %1693 = vmatprep.subr.bf16.mxu0 0
        %1694 = vmatpush1.bf16.xpose.msra.mxu0 %v1679
        %1695 = vmatprep.subr.bf16.mxu0 0
        %1696 = vmatpush1.bf16.xpose.msra.mxu0 %v1676
        %1697 = vmatprep.subr.bf16.mxu0 0
        %1698 = vmatpush2.bf16.xpose.msra.mxu0 0
        %1699 = vmatprep.subr.bf16.mxu0 0
        %1700 = vmatpush2.bf16.xpose.msra.mxu0 0
        %1701 = vmatprep.subr.bf16.mxu0 0
        %1702 = vmatpush2.bf16.xpose.msra.mxu0 0
        %1703 = vmatprep.subr.bf16.mxu0 0
        %1704 = vmatpush2.bf16.xpose.msra.mxu0 0
        %1705 = vmatprep.subr.bf16.mxu0 0
        %1706 = vmatpush2.bf16.xpose.msra.mxu0 0
        %1707 = vmatprep.subr.bf16.mxu0 0
        %1708 = vmatpush2.bf16.xpose.msra.mxu0 0
        %1709 = vmatprep.subr.bf16.mxu0 0
        %1710 = vmatpush2.bf16.xpose.msra.mxu0 0
        %1711 = vmatprep.subr.bf16.mxu0 0
        %1712 = vmatpush2.bf16.xpose.msra.mxu0 0
        %1713 = vmatprep.mubr.bf16.mxu0 0
        %1714 = vmatmul.mubr.bf16.gmra.mxu0 %v1673
        %v1715 = vpop.f32.mrf.mxu0
        %v1716 = vadd.f32 0.0, %v1715
        %v1717 = vpop.f32.mrf.mxu0
        %v1718 = vpop.f32.mrf.mxu0
        %v1719 = vpop.f32.mrf.mxu0
        %1720 = vdwg.mxu0
        %v1721 = vadd.f32 %v1552, %v1716
        %1722 = vrot.lane.b32.xlu0 %v1219, 104
        %v1723 = vpop.permute.xlu0 %1722
        %1724 = vrot.lane.b32.xlu0 %v1219, 72
        %v1725 = vpop.permute.xlu0 %1724
        %v1727 = vsel %vm285, %v1723, 0
        %v1730 = vsel %vm285, %v1725, 0
        %1732 = vmatprep.subr.bf16.mxu0 0
        %1733 = vmatpush1.bf16.xpose.msra.mxu0 0
        %1734 = vmatprep.subr.bf16.mxu0 0
        %1735 = vmatpush1.bf16.xpose.msra.mxu0 0
        %1736 = vmatprep.subr.bf16.mxu0 0
        %1737 = vmatpush1.bf16.xpose.msra.mxu0 0
        %1738 = vmatprep.subr.bf16.mxu0 0
        %1739 = vmatpush1.bf16.xpose.msra.mxu0 0
        %1740 = vmatprep.subr.bf16.mxu0 0
        %1741 = vmatpush1.bf16.xpose.msra.mxu0 0
        %1742 = vmatprep.subr.bf16.mxu0 0
        %1743 = vmatpush1.bf16.xpose.msra.mxu0 0
        %1744 = vmatprep.subr.bf16.mxu0 0
        %1745 = vmatpush1.bf16.xpose.msra.mxu0 0
        %1746 = vmatprep.subr.bf16.mxu0 0
        %1747 = vmatpush1.bf16.xpose.msra.mxu0 %v1730
        %1748 = vmatprep.subr.bf16.mxu0 0
        %1749 = vmatpush2.bf16.xpose.msra.mxu0 0
        %1750 = vmatprep.subr.bf16.mxu0 0
        %1751 = vmatpush2.bf16.xpose.msra.mxu0 0
        %1752 = vmatprep.subr.bf16.mxu0 0
        %1753 = vmatpush2.bf16.xpose.msra.mxu0 0
        %1754 = vmatprep.subr.bf16.mxu0 0
        %1755 = vmatpush2.bf16.xpose.msra.mxu0 0
        %1756 = vmatprep.subr.bf16.mxu0 0
        %1757 = vmatpush2.bf16.xpose.msra.mxu0 0
        %1758 = vmatprep.subr.bf16.mxu0 0
        %1759 = vmatpush2.bf16.xpose.msra.mxu0 0
        %1760 = vmatprep.subr.bf16.mxu0 0
        %1761 = vmatpush2.bf16.xpose.msra.mxu0 0
        %1762 = vmatprep.subr.bf16.mxu0 0
        %1763 = vmatpush2.bf16.xpose.msra.mxu0 0
        %1764 = vmatprep.mubr.bf16.mxu0 0
        %1765 = vmatmul.mubr.bf16.gmra.mxu0 %v1727
        %v1766 = vpop.f32.mrf.mxu0
        %v1767 = vadd.f32 0.0, %v1766
        %v1768 = vpop.f32.mrf.mxu0
        %v1769 = vpop.f32.mrf.mxu0
        %v1770 = vpop.f32.mrf.mxu0
        %1771 = vdwg.mxu0
        %v1772 = vsel %vm285, %v1767, -inf
        %1773 = vmax.xlane.f32.xlu0 %v1772
        %v1774 = vpop.xlane.xlu0 %1773
        %v1775 = vsub.f32 %v1767, %v1774
        %v1776 = vmul.f32 %v1775, 1.442695
        %v1777 = vpow.pop %v1776
        %v1778 = vsel %vm285, %v1777, 0.0
        %1779 = vadd.xlane.f32.xlu0 %v1778
        %v1780 = vpop.xlane.xlu0 %1779
        %v1781 = vrcp.pop %v1780
        %v1782 = vmul.f32 %v1777, %v1781
        %v1783 = vpack.c.bf16 %v1782, %v1782
        %1784 = vrot.lane.b32.xlu0 %v1219, 40
        %v1785 = vpop.permute.xlu0 %1784
        %v1787 = vsel %vm285, %v1783, 0
        %v1790 = vsel %vm349, %v1785, 0
        %1792 = vmatprep.subr.bf16.mxu0 0
        %1793 = vmatpush1.bf16.msra.mxu0 0
        %1794 = vmatprep.subr.bf16.mxu0 0
        %1795 = vmatpush1.bf16.msra.mxu0 0
        %1796 = vmatprep.subr.bf16.mxu0 0
        %1797 = vmatpush1.bf16.msra.mxu0 0
        %1798 = vmatprep.subr.bf16.mxu0 0
        %1799 = vmatpush1.bf16.msra.mxu0 0
        %1800 = vmatprep.subr.bf16.mxu0 0
        %1801 = vmatpush1.bf16.msra.mxu0 0
        %1802 = vmatprep.subr.bf16.mxu0 0
        %1803 = vmatpush1.bf16.msra.mxu0 0
        %1804 = vmatprep.subr.bf16.mxu0 0
        %1805 = vmatpush1.bf16.msra.mxu0 0
        %1806 = vmatprep.subr.bf16.mxu0 0
        %1807 = vmatpush1.bf16.msra.mxu0 %v1790
        %1808 = vmatprep.subr.bf16.mxu0 0
        %1809 = vmatpush2.bf16.msra.mxu0 0
        %1810 = vmatprep.subr.bf16.mxu0 0
        %1811 = vmatpush2.bf16.msra.mxu0 0
        %1812 = vmatprep.subr.bf16.mxu0 0
        %1813 = vmatpush2.bf16.msra.mxu0 0
        %1814 = vmatprep.subr.bf16.mxu0 0
        %1815 = vmatpush2.bf16.msra.mxu0 0
        %1816 = vmatprep.subr.bf16.mxu0 0
        %1817 = vmatpush2.bf16.msra.mxu0 0
        %1818 = vmatprep.subr.bf16.mxu0 0
        %1819 = vmatpush2.bf16.msra.mxu0 0
        %1820 = vmatprep.subr.bf16.mxu0 0
        %1821 = vmatpush2.bf16.msra.mxu0 0
        %1822 = vmatprep.subr.bf16.mxu0 0
        %1823 = vmatpush2.bf16.msra.mxu0 0
        %1824 = vmatprep.mubr.bf16.mxu0 0
        %1825 = vmatmul.mubr.bf16.gmra.mxu0 %v1787
        %v1826 = vpop.f32.mrf.mxu0
        %v1827 = vadd.f32 0.0, %v1826
        %v1828 = vpop.f32.mrf.mxu0
        %v1829 = vpop.f32.mrf.mxu0
        %v1830 = vpop.f32.mrf.mxu0
        %1831 = vdwg.mxu0
        %v1832 = vpack.c.bf16 %v1827, %v1827
        %1833 = vrot.lane.b32.xlu0 %v1453, 104
        %v1834 = vpop.permute.xlu0 %1833
        %1835 = vrot.lane.b32.xlu0 %v1454, 104
        %v1836 = vpop.permute.xlu0 %1835
        %v1838 = vsel %vm285, %v1832, 0
        %v1841 = vsel %vm285, %v1834, 0
        %v1844 = vsel %vm285, %v1836, 0
        %1846 = vmatprep.subr.bf16.mxu0 0
        %1847 = vmatpush1.bf16.xpose.msra.mxu0 0
        %1848 = vmatprep.subr.bf16.mxu0 0
        %1849 = vmatpush1.bf16.xpose.msra.mxu0 0
        %1850 = vmatprep.subr.bf16.mxu0 0
        %1851 = vmatpush1.bf16.xpose.msra.mxu0 0
        %1852 = vmatprep.subr.bf16.mxu0 0
        %1853 = vmatpush1.bf16.xpose.msra.mxu0 0
        %1854 = vmatprep.subr.bf16.mxu0 0
        %1855 = vmatpush1.bf16.xpose.msra.mxu0 0
        %1856 = vmatprep.subr.bf16.mxu0 0
        %1857 = vmatpush1.bf16.xpose.msra.mxu0 0
        %1858 = vmatprep.subr.bf16.mxu0 0
        %1859 = vmatpush1.bf16.xpose.msra.mxu0 %v1844
        %1860 = vmatprep.subr.bf16.mxu0 0
        %1861 = vmatpush1.bf16.xpose.msra.mxu0 %v1841
        %1862 = vmatprep.subr.bf16.mxu0 0
        %1863 = vmatpush2.bf16.xpose.msra.mxu0 0
        %1864 = vmatprep.subr.bf16.mxu0 0
        %1865 = vmatpush2.bf16.xpose.msra.mxu0 0
        %1866 = vmatprep.subr.bf16.mxu0 0
        %1867 = vmatpush2.bf16.xpose.msra.mxu0 0
        %1868 = vmatprep.subr.bf16.mxu0 0
        %1869 = vmatpush2.bf16.xpose.msra.mxu0 0
        %1870 = vmatprep.subr.bf16.mxu0 0
        %1871 = vmatpush2.bf16.xpose.msra.mxu0 0
        %1872 = vmatprep.subr.bf16.mxu0 0
        %1873 = vmatpush2.bf16.xpose.msra.mxu0 0
        %1874 = vmatprep.subr.bf16.mxu0 0
        %1875 = vmatpush2.bf16.xpose.msra.mxu0 0
        %1876 = vmatprep.subr.bf16.mxu0 0
        %1877 = vmatpush2.bf16.xpose.msra.mxu0 0
        %1878 = vmatprep.mubr.bf16.mxu0 0
        %1879 = vmatmul.mubr.bf16.gmra.mxu0 %v1838
        %v1880 = vpop.f32.mrf.mxu0
        %v1881 = vadd.f32 0.0, %v1880
        %v1882 = vpop.f32.mrf.mxu0
        %v1883 = vpop.f32.mrf.mxu0
        %v1884 = vpop.f32.mrf.mxu0
        %1885 = vdwg.mxu0
        %v1886 = vadd.f32 %v1721, %v1881
        %v1887 = vld [vmem:[%s3 + $0x9] sm:$0x1]
        %v1888 = vlaneseq
        %v1889 = vshrl.u32 %v1888, 7
        %v1890 = vsub.s32 0, %v1889
        %v1891 = vrot.slane %v1887, %v1890
        %v1892 = vadd.f32 %v1886, %v1891
        %v1893 = vadd.f32 %v1153, %v1892
        %v1894 = vld [vmem:[%s3 + $0xc] sm:$0x1]
        %v1895 = vld [vmem:[%s3 + $0xd] sm:$0x1]
        %v1896 = vsel %vm233, %v1893, 0.0
        %1897 = vadd.xlane.f32.xlu0 %v1896
        %v1898 = vpop.xlane.xlu0 %1897
        %v1899 = vmul.f32 %v1898, %v959
        %v1900 = vsub.f32 %v1893, %v1899
        %v1901 = vmul.f32 %v1900, %v1900
        %v1902 = vsel %vm233, %v1901, 0.0
        %1903 = vadd.xlane.f32.xlu0 %v1902
        %v1904 = vpop.xlane.xlu0 %1903
        %v1905 = vmul.f32 %v1904, %v959
        %v1906 = vadd.f32 %v1905, 1e-05
        %v1907 = vrsqrt.pop %v1906
        %v1908 = vmul.f32 %v1900, %v1907
        %v1909 = vlaneseq
        %v1910 = vshrl.u32 %v1909, 7
        %v1911 = vsub.s32 0, %v1910
        %v1912 = vrot.slane %v1894, %v1911
        %v1913 = vmul.f32 %v1908, %v1912
        %v1914 = vlaneseq
        %v1915 = vshrl.u32 %v1914, 7
        %v1916 = vsub.s32 0, %v1915
        %v1917 = vrot.slane %v1895, %v1916
        %v1918 = vadd.f32 %v1913, %v1917
        %v1919 = vpack.c.bf16 %v1918, %v1918
        %v1920 = vld [vmem:[#allocation2 + $0x70] sm:$0xf]
        %v1921 = vld [vmem:[#allocation2 + $0x74] sm:$0xf]
        %v1922 = vld [vmem:[#allocation2 + $0x78] sm:$0xf]
        %v1923 = vld [vmem:[#allocation2 + $0x7c] sm:$0xf]
        %v1924 = vld [vmem:[%s3 + $0xa] sm:$0x1]
        %v1925 = vlaneseq
        %v1926 = vshrl.u32 %v1925, 7
        %v1927 = vsub.s32 0, %v1926
        %v1928 = vrot.slane %v1924, %v1927
        %v1933 = vunpack.c.l.b16 %v1920
        %v1934 = vunpack.c.l.b16 %v1921
        %v1935 = vunpack.c.l.b16 %v1922
        %v1936 = vunpack.c.l.b16 %v1923
        %v1937 = vpack.c.b16 %v1934, %v1933
        %v1938 = vpack.c.b16 %v1936, %v1935
        %v1942 = vsel %vm233, %v1919, 0
        %1944 = vmatprep.subr.bf16.mxu0 0
        %1945 = vmatpush1.bf16.msra.mxu0 0
        %1946 = vmatprep.subr.bf16.mxu0 0
        %1947 = vmatpush1.bf16.msra.mxu0 0
        %1948 = vmatprep.subr.bf16.mxu0 0
        %1949 = vmatpush1.bf16.msra.mxu0 0
        %1950 = vmatprep.subr.bf16.mxu0 0
        %1951 = vmatpush1.bf16.msra.mxu0 0
        %1952 = vmatprep.subr.bf16.mxu0 0
        %1953 = vmatpush1.bf16.msra.mxu0 0
        %1954 = vmatprep.subr.bf16.mxu0 0
        %1955 = vmatpush1.bf16.msra.mxu0 0
        %1956 = vmatprep.subr.bf16.mxu0 0
        %1957 = vmatpush1.bf16.msra.mxu0 %v1938
        %1958 = vmatprep.subr.bf16.mxu0 0
        %1959 = vmatpush1.bf16.msra.mxu0 %v1937
        %1960 = vmatprep.subr.bf16.mxu0 0
        %1961 = vmatpush2.bf16.msra.mxu0 0
        %1962 = vmatprep.subr.bf16.mxu0 0
        %1963 = vmatpush2.bf16.msra.mxu0 0
        %1964 = vmatprep.subr.bf16.mxu0 0
        %1965 = vmatpush2.bf16.msra.mxu0 0
        %1966 = vmatprep.subr.bf16.mxu0 0
        %1967 = vmatpush2.bf16.msra.mxu0 0
        %1968 = vmatprep.subr.bf16.mxu0 0
        %1969 = vmatpush2.bf16.msra.mxu0 0
        %1970 = vmatprep.subr.bf16.mxu0 0
        %1971 = vmatpush2.bf16.msra.mxu0 0
        %1972 = vmatprep.subr.bf16.mxu0 0
        %1973 = vmatpush2.bf16.msra.mxu0 0
        %1974 = vmatprep.subr.bf16.mxu0 0
        %1975 = vmatpush2.bf16.msra.mxu0 0
        %1976 = vmatprep.mubr.bf16.mxu0 0
        %1977 = vmatmul.mubr.bf16.gmra.mxu0 %v1942
        %v1978 = vpop.f32.mrf.mxu0
        %v1979 = vadd.f32 %v1928, %v1978
        %v1980 = vpop.f32.mrf.mxu0
        %v1981 = vpop.f32.mrf.mxu0
        %v1982 = vpop.f32.mrf.mxu0
        %1983 = vdwg.mxu0
        %v1984 = vmax.f32 %v1979, 0.0
        %v1985 = vpack.c.bf16 %v1984, %v1984
        %v1986 = vld [vmem:[#allocation2 + $0x80] sm:$0xf]
        %v1987 = vld [vmem:[#allocation2 + $0x84] sm:$0xf]
        %v1988 = vld [vmem:[#allocation2 + $0x88] sm:$0xf]
        %v1989 = vld [vmem:[#allocation2 + $0x8c] sm:$0xf]
        %v1990 = vld [vmem:[#allocation2 + $0x90] sm:$0xf]
        %v1991 = vld [vmem:[#allocation2 + $0x94] sm:$0xf]
        %v1992 = vld [vmem:[#allocation2 + $0x98] sm:$0xf]
        %v1993 = vld [vmem:[#allocation2 + $0x9c] sm:$0xf]
        %v1994 = vld [vmem:[%s3 + $0xb] sm:$0x1]
        %v1995 = vlaneseq
        %v1996 = vshrl.u32 %v1995, 7
        %v1997 = vsub.s32 0, %v1996
        %v1998 = vrot.slane %v1994, %v1997
        %v2007 = vunpack.c.l.b16 %v1986
        %v2008 = vunpack.c.l.b16 %v1987
        %v2009 = vunpack.c.l.b16 %v1988
        %v2010 = vunpack.c.l.b16 %v1989
        %v2011 = vunpack.c.l.b16 %v1990
        %v2012 = vunpack.c.l.b16 %v1991
        %v2013 = vunpack.c.l.b16 %v1992
        %v2014 = vunpack.c.l.b16 %v1993
        %v2015 = vpack.c.b16 %v2008, %v2007
        %v2016 = vpack.c.b16 %v2010, %v2009
        %v2017 = vpack.c.b16 %v2012, %v2011
        %v2018 = vpack.c.b16 %v2014, %v2013
        %v2024 = vsel %vm1084, %v1985, 0
        %2026 = vmatprep.subr.bf16.mxu0 0
        %2027 = vmatpush1.bf16.msra.mxu0 0
        %2028 = vmatprep.subr.bf16.mxu0 0
        %2029 = vmatpush1.bf16.msra.mxu0 0
        %2030 = vmatprep.subr.bf16.mxu0 0
        %2031 = vmatpush1.bf16.msra.mxu0 0
        %2032 = vmatprep.subr.bf16.mxu0 0
        %2033 = vmatpush1.bf16.msra.mxu0 0
        %2034 = vmatprep.subr.bf16.mxu0 0
        %2035 = vmatpush1.bf16.msra.mxu0 %v2018
        %2036 = vmatprep.subr.bf16.mxu0 0
        %2037 = vmatpush1.bf16.msra.mxu0 %v2017
        %2038 = vmatprep.subr.bf16.mxu0 0
        %2039 = vmatpush1.bf16.msra.mxu0 %v2016
        %2040 = vmatprep.subr.bf16.mxu0 0
        %2041 = vmatpush1.bf16.msra.mxu0 %v2015
        %2042 = vmatprep.subr.bf16.mxu0 0
        %2043 = vmatpush2.bf16.msra.mxu0 0
        %2044 = vmatprep.subr.bf16.mxu0 0
        %2045 = vmatpush2.bf16.msra.mxu0 0
        %2046 = vmatprep.subr.bf16.mxu0 0
        %2047 = vmatpush2.bf16.msra.mxu0 0
        %2048 = vmatprep.subr.bf16.mxu0 0
        %2049 = vmatpush2.bf16.msra.mxu0 0
        %2050 = vmatprep.subr.bf16.mxu0 0
        %2051 = vmatpush2.bf16.msra.mxu0 0
        %2052 = vmatprep.subr.bf16.mxu0 0
        %2053 = vmatpush2.bf16.msra.mxu0 0
        %2054 = vmatprep.subr.bf16.mxu0 0
        %2055 = vmatpush2.bf16.msra.mxu0 0
        %2056 = vmatprep.subr.bf16.mxu0 0
        %2057 = vmatpush2.bf16.msra.mxu0 0
        %2058 = vmatprep.mubr.bf16.mxu0 0
        %2059 = vmatmul.mubr.bf16.gmra.mxu0 %v2024
        %v2060 = vpop.f32.mrf.mxu0
        %v2061 = vadd.f32 %v1998, %v2060
        %v2062 = vpop.f32.mrf.mxu0
        %v2063 = vpop.f32.mrf.mxu0
        %v2064 = vpop.f32.mrf.mxu0
        %2065 = vdwg.mxu0
        %v2066 = vadd.f32 %v1918, %v2061
        %v2067 = vld [vmem:[%s3 + $0xe] sm:$0x1]
        %v2068 = vld [vmem:[%s3 + $0xf] sm:$0x1]
        %v2069 = vsel %vm233, %v2066, 0.0
        %2070 = vadd.xlane.f32.xlu0 %v2069
        %v2071 = vpop.xlane.xlu0 %2070
        %v2072 = vmul.f32 %v2071, %v959
        %v2073 = vsub.f32 %v2066, %v2072
        %v2074 = vmul.f32 %v2073, %v2073
        %v2075 = vsel %vm233, %v2074, 0.0
        %2076 = vadd.xlane.f32.xlu0 %v2075
        %v2077 = vpop.xlane.xlu0 %2076
        %v2078 = vmul.f32 %v2077, %v959
        %v2079 = vadd.f32 %v2078, 1e-05
        %v2080 = vrsqrt.pop %v2079
        %v2081 = vmul.f32 %v2073, %v2080
        %v2082 = vlaneseq
        %v2083 = vshrl.u32 %v2082, 7
        %v2084 = vsub.s32 0, %v2083
        %v2085 = vrot.slane %v2067, %v2084
        %v2086 = vmul.f32 %v2081, %v2085
        %v2087 = vlaneseq
        %v2088 = vshrl.u32 %v2087, 7
        %v2089 = vsub.s32 0, %v2088
        %v2090 = vrot.slane %v2068, %v2089
        %v2091 = vadd.f32 %v2086, %v2090
        %v2092 = vpack.c.bf16 %v2091, %v2091
        %v2093 = vadd.f32 %v208, 0.0
        %v2094 = vpack.c.bf16 %v2093, %v2093
        %v2095 = vld [vmem:[#allocation2 + $0xa0] sm:$0xf]
        %v2096 = vld [vmem:[#allocation2 + $0xa4] sm:$0xf]
        %v2097 = vld [vmem:[#allocation2 + $0xa8] sm:$0xf]
        %v2098 = vld [vmem:[#allocation2 + $0xac] sm:$0xf]
        %v2099 = vld [vmem:[%s3 + $0x10] sm:$0x1]
        %v2100 = vlaneseq
        %v2101 = vshrl.u32 %v2100, 7
        %v2102 = vsub.s32 0, %v2101
        %v2103 = vrot.slane %v2099, %v2102
        %v2108 = vunpack.c.l.b16 %v2095
        %v2109 = vunpack.c.l.b16 %v2096
        %v2110 = vunpack.c.l.b16 %v2097
        %v2111 = vunpack.c.l.b16 %v2098
        %v2112 = vpack.c.b16 %v2109, %v2108
        %v2113 = vpack.c.b16 %v2111, %v2110
        %v2117 = vsel %vm233, %v2094, 0
        %2119 = vmatprep.subr.bf16.mxu0 0
        %2120 = vmatpush1.bf16.msra.mxu0 0
        %2121 = vmatprep.subr.bf16.mxu0 0
        %2122 = vmatpush1.bf16.msra.mxu0 0
        %2123 = vmatprep.subr.bf16.mxu0 0
        %2124 = vmatpush1.bf16.msra.mxu0 0
        %2125 = vmatprep.subr.bf16.mxu0 0
        %2126 = vmatpush1.bf16.msra.mxu0 0
        %2127 = vmatprep.subr.bf16.mxu0 0
        %2128 = vmatpush1.bf16.msra.mxu0 0
        %2129 = vmatprep.subr.bf16.mxu0 0
        %2130 = vmatpush1.bf16.msra.mxu0 0
        %2131 = vmatprep.subr.bf16.mxu0 0
        %2132 = vmatpush1.bf16.msra.mxu0 %v2113
        %2133 = vmatprep.subr.bf16.mxu0 0
        %2134 = vmatpush1.bf16.msra.mxu0 %v2112
        %2135 = vmatprep.subr.bf16.mxu0 0
        %2136 = vmatpush2.bf16.msra.mxu0 0
        %2137 = vmatprep.subr.bf16.mxu0 0
        %2138 = vmatpush2.bf16.msra.mxu0 0
        %2139 = vmatprep.subr.bf16.mxu0 0
        %2140 = vmatpush2.bf16.msra.mxu0 0
        %2141 = vmatprep.subr.bf16.mxu0 0
        %2142 = vmatpush2.bf16.msra.mxu0 0
        %2143 = vmatprep.subr.bf16.mxu0 0
        %2144 = vmatpush2.bf16.msra.mxu0 0
        %2145 = vmatprep.subr.bf16.mxu0 0
        %2146 = vmatpush2.bf16.msra.mxu0 0
        %2147 = vmatprep.subr.bf16.mxu0 0
        %2148 = vmatpush2.bf16.msra.mxu0 0
        %2149 = vmatprep.subr.bf16.mxu0 0
        %2150 = vmatpush2.bf16.msra.mxu0 0
        %2151 = vmatprep.mubr.bf16.mxu0 0
        %2152 = vmatmul.mubr.bf16.gmra.mxu0 %v2117
        %v2153 = vpop.f32.mrf.mxu0
        %v2154 = vadd.f32 %v2103, %v2153
        %v2155 = vpop.f32.mrf.mxu0
        %v2156 = vpop.f32.mrf.mxu0
        %v2157 = vpop.f32.mrf.mxu0
        %2158 = vdwg.mxu0
        %v2159 = vpack.c.bf16 %v2154, %v2154
        %v2160 = vld [vmem:[#allocation2 + $0xb0] sm:$0xf]
        %v2161 = vld [vmem:[#allocation2 + $0xb4] sm:$0xf]
        %v2162 = vld [vmem:[#allocation2 + $0xb8] sm:$0xf]
        %v2163 = vld [vmem:[#allocation2 + $0xbc] sm:$0xf]
        %2165 = vrot.lane.b32.xlu0 %v2159, 96
        %v2166 = vpop.permute.xlu0 %2165
        %v2168 = vsel %vm285, %v2159, 0
        %v2171 = vsel %vm285, %v2166, 0
        %2173 = vmatprep.subr.bf16.mxu0 0
        %2174 = vmatpush1.bf16.xpose.msra.mxu0 0
        %2175 = vmatprep.subr.bf16.mxu0 0
        %2176 = vmatpush1.bf16.xpose.msra.mxu0 0
        %2177 = vmatprep.subr.bf16.mxu0 0
        %2178 = vmatpush1.bf16.xpose.msra.mxu0 0
        %2179 = vmatprep.subr.bf16.mxu0 0
        %2180 = vmatpush1.bf16.xpose.msra.mxu0 0
        %2181 = vmatprep.subr.bf16.mxu0 0
        %2182 = vmatpush1.bf16.xpose.msra.mxu0 0
        %2183 = vmatprep.subr.bf16.mxu0 0
        %2184 = vmatpush1.bf16.xpose.msra.mxu0 0
        %2185 = vmatprep.subr.bf16.mxu0 0
        %2186 = vmatpush1.bf16.xpose.msra.mxu0 0
        %2187 = vmatprep.subr.bf16.mxu0 0
        %2188 = vmatpush1.bf16.xpose.msra.mxu0 %v2171
        %2189 = vmatprep.subr.bf16.mxu0 0
        %2190 = vmatpush2.bf16.xpose.msra.mxu0 0
        %2191 = vmatprep.subr.bf16.mxu0 0
        %2192 = vmatpush2.bf16.xpose.msra.mxu0 0
        %2193 = vmatprep.subr.bf16.mxu0 0
        %2194 = vmatpush2.bf16.xpose.msra.mxu0 0
        %2195 = vmatprep.subr.bf16.mxu0 0
        %2196 = vmatpush2.bf16.xpose.msra.mxu0 0
        %2197 = vmatprep.subr.bf16.mxu0 0
        %2198 = vmatpush2.bf16.xpose.msra.mxu0 0
        %2199 = vmatprep.subr.bf16.mxu0 0
        %2200 = vmatpush2.bf16.xpose.msra.mxu0 0
        %2201 = vmatprep.subr.bf16.mxu0 0
        %2202 = vmatpush2.bf16.xpose.msra.mxu0 0
        %2203 = vmatprep.subr.bf16.mxu0 0
        %2204 = vmatpush2.bf16.xpose.msra.mxu0 0
        %2205 = vmatprep.mubr.bf16.mxu0 0
        %2206 = vmatmul.mubr.bf16.gmra.mxu0 %v2168
        %v2207 = vpop.f32.mrf.mxu0
        %v2208 = vadd.f32 0.0, %v2207
        %v2209 = vpop.f32.mrf.mxu0
        %v2210 = vpop.f32.mrf.mxu0
        %v2211 = vpop.f32.mrf.mxu0
        %2212 = vdwg.mxu0
        %v2213 = vsel %vm285, %v2208, -inf
        %2214 = vmax.xlane.f32.xlu0 %v2213
        %v2215 = vpop.xlane.xlu0 %2214
        %v2216 = vsub.f32 %v2208, %v2215
        %v2217 = vmul.f32 %v2216, 1.442695
        %v2218 = vpow.pop %v2217
        %v2219 = vsel %vm285, %v2218, 0.0
        %2220 = vadd.xlane.f32.xlu0 %v2219
        %v2221 = vpop.xlane.xlu0 %2220
        %v2222 = vrcp.pop %v2221
        %v2223 = vmul.f32 %v2218, %v2222
        %v2224 = vpack.c.bf16 %v2223, %v2223
        %2225 = vrot.lane.b32.xlu0 %v2159, 64
        %v2226 = vpop.permute.xlu0 %2225
        %v2228 = vsel %vm285, %v2224, 0
        %v2231 = vsel %vm349, %v2226, 0
        %2233 = vmatprep.subr.bf16.mxu0 0
        %2234 = vmatpush1.bf16.msra.mxu0 0
        %2235 = vmatprep.subr.bf16.mxu0 0
        %2236 = vmatpush1.bf16.msra.mxu0 0
        %2237 = vmatprep.subr.bf16.mxu0 0
        %2238 = vmatpush1.bf16.msra.mxu0 0
        %2239 = vmatprep.subr.bf16.mxu0 0
        %2240 = vmatpush1.bf16.msra.mxu0 0
        %2241 = vmatprep.subr.bf16.mxu0 0
        %2242 = vmatpush1.bf16.msra.mxu0 0
        %2243 = vmatprep.subr.bf16.mxu0 0
        %2244 = vmatpush1.bf16.msra.mxu0 0
        %2245 = vmatprep.subr.bf16.mxu0 0
        %2246 = vmatpush1.bf16.msra.mxu0 0
        %2247 = vmatprep.subr.bf16.mxu0 0
        %2248 = vmatpush1.bf16.msra.mxu0 %v2231
        %2249 = vmatprep.subr.bf16.mxu0 0
        %2250 = vmatpush2.bf16.msra.mxu0 0
        %2251 = vmatprep.subr.bf16.mxu0 0
        %2252 = vmatpush2.bf16.msra.mxu0 0
        %2253 = vmatprep.subr.bf16.mxu0 0
        %2254 = vmatpush2.bf16.msra.mxu0 0
        %2255 = vmatprep.subr.bf16.mxu0 0
        %2256 = vmatpush2.bf16.msra.mxu0 0
        %2257 = vmatprep.subr.bf16.mxu0 0
        %2258 = vmatpush2.bf16.msra.mxu0 0
        %2259 = vmatprep.subr.bf16.mxu0 0
        %2260 = vmatpush2.bf16.msra.mxu0 0
        %2261 = vmatprep.subr.bf16.mxu0 0
        %2262 = vmatpush2.bf16.msra.mxu0 0
        %2263 = vmatprep.subr.bf16.mxu0 0
        %2264 = vmatpush2.bf16.msra.mxu0 0
        %2265 = vmatprep.mubr.bf16.mxu0 0
        %2266 = vmatmul.mubr.bf16.gmra.mxu0 %v2228
        %v2267 = vpop.f32.mrf.mxu0
        %v2268 = vadd.f32 0.0, %v2267
        %v2269 = vpop.f32.mrf.mxu0
        %v2270 = vpop.f32.mrf.mxu0
        %v2271 = vpop.f32.mrf.mxu0
        %2272 = vdwg.mxu0
        %v2273 = vpack.c.bf16 %v2268, %v2268
        %2274 = vrot.lane.b32.xlu0 %v2159, 120
        %v2275 = vpop.permute.xlu0 %2274
        %2276 = vrot.lane.b32.xlu0 %v2159, 88
        %v2277 = vpop.permute.xlu0 %2276
        %v2279 = vsel %vm285, %v2275, 0
        %v2282 = vsel %vm285, %v2277, 0
        %2284 = vmatprep.subr.bf16.mxu0 0
        %2285 = vmatpush1.bf16.xpose.msra.mxu0 0
        %2286 = vmatprep.subr.bf16.mxu0 0
        %2287 = vmatpush1.bf16.xpose.msra.mxu0 0
        %2288 = vmatprep.subr.bf16.mxu0 0
        %2289 = vmatpush1.bf16.xpose.msra.mxu0 0
        %2290 = vmatprep.subr.bf16.mxu0 0
        %2291 = vmatpush1.bf16.xpose.msra.mxu0 0
        %2292 = vmatprep.subr.bf16.mxu0 0
        %2293 = vmatpush1.bf16.xpose.msra.mxu0 0
        %2294 = vmatprep.subr.bf16.mxu0 0
        %2295 = vmatpush1.bf16.xpose.msra.mxu0 0
        %2296 = vmatprep.subr.bf16.mxu0 0
        %2297 = vmatpush1.bf16.xpose.msra.mxu0 0
        %2298 = vmatprep.subr.bf16.mxu0 0
        %2299 = vmatpush1.bf16.xpose.msra.mxu0 %v2282
        %2300 = vmatprep.subr.bf16.mxu0 0
        %2301 = vmatpush2.bf16.xpose.msra.mxu0 0
        %2302 = vmatprep.subr.bf16.mxu0 0
        %2303 = vmatpush2.bf16.xpose.msra.mxu0 0
        %2304 = vmatprep.subr.bf16.mxu0 0
        %2305 = vmatpush2.bf16.xpose.msra.mxu0 0
        %2306 = vmatprep.subr.bf16.mxu0 0
        %2307 = vmatpush2.bf16.xpose.msra.mxu0 0
        %2308 = vmatprep.subr.bf16.mxu0 0
        %2309 = vmatpush2.bf16.xpose.msra.mxu0 0
        %2310 = vmatprep.subr.bf16.mxu0 0
        %2311 = vmatpush2.bf16.xpose.msra.mxu0 0
        %2312 = vmatprep.subr.bf16.mxu0 0
        %2313 = vmatpush2.bf16.xpose.msra.mxu0 0
        %2314 = vmatprep.subr.bf16.mxu0 0
        %2315 = vmatpush2.bf16.xpose.msra.mxu0 0
        %2316 = vmatprep.mubr.bf16.mxu0 0
        %2317 = vmatmul.mubr.bf16.gmra.mxu0 %v2279
        %v2318 = vpop.f32.mrf.mxu0
        %v2319 = vadd.f32 0.0, %v2318
        %v2320 = vpop.f32.mrf.mxu0
        %v2321 = vpop.f32.mrf.mxu0
        %v2322 = vpop.f32.mrf.mxu0
        %2323 = vdwg.mxu0
        %v2324 = vsel %vm285, %v2319, -inf
        %2325 = vmax.xlane.f32.xlu0 %v2324
        %v2326 = vpop.xlane.xlu0 %2325
        %v2327 = vsub.f32 %v2319, %v2326
        %v2328 = vmul.f32 %v2327, 1.442695
        %v2329 = vpow.pop %v2328
        %v2330 = vsel %vm285, %v2329, 0.0
        %2331 = vadd.xlane.f32.xlu0 %v2330
        %v2332 = vpop.xlane.xlu0 %2331
        %v2333 = vrcp.pop %v2332
        %v2334 = vmul.f32 %v2329, %v2333
        %v2335 = vpack.c.bf16 %v2334, %v2334
        %2336 = vrot.lane.b32.xlu0 %v2159, 56
        %v2337 = vpop.permute.xlu0 %2336
        %v2339 = vsel %vm285, %v2335, 0
        %v2342 = vsel %vm349, %v2337, 0
        %2344 = vmatprep.subr.bf16.mxu0 0
        %2345 = vmatpush1.bf16.msra.mxu0 0
        %2346 = vmatprep.subr.bf16.mxu0 0
        %2347 = vmatpush1.bf16.msra.mxu0 0
        %2348 = vmatprep.subr.bf16.mxu0 0
        %2349 = vmatpush1.bf16.msra.mxu0 0
        %2350 = vmatprep.subr.bf16.mxu0 0
        %2351 = vmatpush1.bf16.msra.mxu0 0
        %2352 = vmatprep.subr.bf16.mxu0 0
        %2353 = vmatpush1.bf16.msra.mxu0 0
        %2354 = vmatprep.subr.bf16.mxu0 0
        %2355 = vmatpush1.bf16.msra.mxu0 0
        %2356 = vmatprep.subr.bf16.mxu0 0
        %2357 = vmatpush1.bf16.msra.mxu0 0
        %2358 = vmatprep.subr.bf16.mxu0 0
        %2359 = vmatpush1.bf16.msra.mxu0 %v2342
        %2360 = vmatprep.subr.bf16.mxu0 0
        %2361 = vmatpush2.bf16.msra.mxu0 0
        %2362 = vmatprep.subr.bf16.mxu0 0
        %2363 = vmatpush2.bf16.msra.mxu0 0
        %2364 = vmatprep.subr.bf16.mxu0 0
        %2365 = vmatpush2.bf16.msra.mxu0 0
        %2366 = vmatprep.subr.bf16.mxu0 0
        %2367 = vmatpush2.bf16.msra.mxu0 0
        %2368 = vmatprep.subr.bf16.mxu0 0
        %2369 = vmatpush2.bf16.msra.mxu0 0
        %2370 = vmatprep.subr.bf16.mxu0 0
        %2371 = vmatpush2.bf16.msra.mxu0 0
        %2372 = vmatprep.subr.bf16.mxu0 0
        %2373 = vmatpush2.bf16.msra.mxu0 0
        %2374 = vmatprep.subr.bf16.mxu0 0
        %2375 = vmatpush2.bf16.msra.mxu0 0
        %2376 = vmatprep.mubr.bf16.mxu0 0
        %2377 = vmatmul.mubr.bf16.gmra.mxu0 %v2339
        %v2378 = vpop.f32.mrf.mxu0
        %v2379 = vadd.f32 0.0, %v2378
        %v2380 = vpop.f32.mrf.mxu0
        %v2381 = vpop.f32.mrf.mxu0
        %v2382 = vpop.f32.mrf.mxu0
        %2383 = vdwg.mxu0
        %v2384 = vpack.c.bf16 %v2379, %v2379
        %v2389 = vunpack.c.l.b16 %v2160
        %v2390 = vunpack.c.l.b16 %v2161
        %v2391 = vunpack.c.l.b16 %v2162
        %v2392 = vunpack.c.l.b16 %v2163
        %v2393 = vpack.c.b16 %v2390, %v2389
        %v2394 = vpack.c.b16 %v2392, %v2391
        %2395 = vrot.lane.b32.xlu0 %v2393, 120
        %v2396 = vpop.permute.xlu0 %2395
        %2397 = vrot.lane.b32.xlu0 %v2394, 120
        %v2398 = vpop.permute.xlu0 %2397
        %v2400 = vsel %vm285, %v2384, 0
        %v2403 = vsel %vm285, %v2396, 0
        %v2406 = vsel %vm285, %v2398, 0
        %2408 = vmatprep.subr.bf16.mxu0 0
        %2409 = vmatpush1.bf16.xpose.msra.mxu0 0
        %2410 = vmatprep.subr.bf16.mxu0 0
        %2411 = vmatpush1.bf16.xpose.msra.mxu0 0
        %2412 = vmatprep.subr.bf16.mxu0 0
        %2413 = vmatpush1.bf16.xpose.msra.mxu0 0
        %2414 = vmatprep.subr.bf16.mxu0 0
        %2415 = vmatpush1.bf16.xpose.msra.mxu0 0
        %2416 = vmatprep.subr.bf16.mxu0 0
        %2417 = vmatpush1.bf16.xpose.msra.mxu0 0
        %2418 = vmatprep.subr.bf16.mxu0 0
        %2419 = vmatpush1.bf16.xpose.msra.mxu0 0
        %2420 = vmatprep.subr.bf16.mxu0 0
        %2421 = vmatpush1.bf16.xpose.msra.mxu0 %v2406
        %2422 = vmatprep.subr.bf16.mxu0 0
        %2423 = vmatpush1.bf16.xpose.msra.mxu0 %v2403
        %2424 = vmatprep.subr.bf16.mxu0 0
        %2425 = vmatpush2.bf16.xpose.msra.mxu0 0
        %2426 = vmatprep.subr.bf16.mxu0 0
        %2427 = vmatpush2.bf16.xpose.msra.mxu0 0
        %2428 = vmatprep.subr.bf16.mxu0 0
        %2429 = vmatpush2.bf16.xpose.msra.mxu0 0
        %2430 = vmatprep.subr.bf16.mxu0 0
        %2431 = vmatpush2.bf16.xpose.msra.mxu0 0
        %2432 = vmatprep.subr.bf16.mxu0 0
        %2433 = vmatpush2.bf16.xpose.msra.mxu0 0
        %2434 = vmatprep.subr.bf16.mxu0 0
        %2435 = vmatpush2.bf16.xpose.msra.mxu0 0
        %2436 = vmatprep.subr.bf16.mxu0 0
        %2437 = vmatpush2.bf16.xpose.msra.mxu0 0
        %2438 = vmatprep.subr.bf16.mxu0 0
        %2439 = vmatpush2.bf16.xpose.msra.mxu0 0
        %2440 = vmatprep.mubr.bf16.mxu0 0
        %2441 = vmatmul.mubr.bf16.gmra.mxu0 %v2400
        %v2442 = vpop.f32.mrf.mxu0
        %v2443 = vadd.f32 0.0, %v2442
        %v2444 = vpop.f32.mrf.mxu0
        %v2445 = vpop.f32.mrf.mxu0
        %v2446 = vpop.f32.mrf.mxu0
        %2447 = vdwg.mxu0
        %v2449 = vsel %vm285, %v2273, 0
        %v2452 = vsel %vm285, %v2393, 0
        %v2455 = vsel %vm285, %v2394, 0
        %2457 = vmatprep.subr.bf16.mxu0 0
        %2458 = vmatpush1.bf16.xpose.msra.mxu0 0
        %2459 = vmatprep.subr.bf16.mxu0 0
        %2460 = vmatpush1.bf16.xpose.msra.mxu0 0
        %2461 = vmatprep.subr.bf16.mxu0 0
        %2462 = vmatpush1.bf16.xpose.msra.mxu0 0
        %2463 = vmatprep.subr.bf16.mxu0 0
        %2464 = vmatpush1.bf16.xpose.msra.mxu0 0
        %2465 = vmatprep.subr.bf16.mxu0 0
        %2466 = vmatpush1.bf16.xpose.msra.mxu0 0
        %2467 = vmatprep.subr.bf16.mxu0 0
        %2468 = vmatpush1.bf16.xpose.msra.mxu0 0
        %2469 = vmatprep.subr.bf16.mxu0 0
        %2470 = vmatpush1.bf16.xpose.msra.mxu0 %v2455
        %2471 = vmatprep.subr.bf16.mxu0 0
        %2472 = vmatpush1.bf16.xpose.msra.mxu0 %v2452
        %2473 = vmatprep.subr.bf16.mxu0 0
        %2474 = vmatpush2.bf16.xpose.msra.mxu0 0
        %2475 = vmatprep.subr.bf16.mxu0 0
        %2476 = vmatpush2.bf16.xpose.msra.mxu0 0
        %2477 = vmatprep.subr.bf16.mxu0 0
        %2478 = vmatpush2.bf16.xpose.msra.mxu0 0
        %2479 = vmatprep.subr.bf16.mxu0 0
        %2480 = vmatpush2.bf16.xpose.msra.mxu0 0
        %2481 = vmatprep.subr.bf16.mxu0 0
        %2482 = vmatpush2.bf16.xpose.msra.mxu0 0
        %2483 = vmatprep.subr.bf16.mxu0 0
        %2484 = vmatpush2.bf16.xpose.msra.mxu0 0
        %2485 = vmatprep.subr.bf16.mxu0 0
        %2486 = vmatpush2.bf16.xpose.msra.mxu0 0
        %2487 = vmatprep.subr.bf16.mxu0 0
        %2488 = vmatpush2.bf16.xpose.msra.mxu0 0
        %2489 = vmatprep.mubr.bf16.mxu0 0
        %2490 = vmatmul.mubr.bf16.gmra.mxu0 %v2449
        %v2491 = vpop.f32.mrf.mxu0
        %v2492 = vadd.f32 %v2443, %v2491
        %v2493 = vpop.f32.mrf.mxu0
        %v2494 = vpop.f32.mrf.mxu0
        %v2495 = vpop.f32.mrf.mxu0
        %2496 = vdwg.mxu0
        %2497 = vrot.lane.b32.xlu0 %v2159, 112
        %v2498 = vpop.permute.xlu0 %2497
        %2499 = vrot.lane.b32.xlu0 %v2159, 80
        %v2500 = vpop.permute.xlu0 %2499
        %v2502 = vsel %vm285, %v2498, 0
        %v2505 = vsel %vm285, %v2500, 0
        %2507 = vmatprep.subr.bf16.mxu0 0
        %2508 = vmatpush1.bf16.xpose.msra.mxu0 0
        %2509 = vmatprep.subr.bf16.mxu0 0
        %2510 = vmatpush1.bf16.xpose.msra.mxu0 0
        %2511 = vmatprep.subr.bf16.mxu0 0
        %2512 = vmatpush1.bf16.xpose.msra.mxu0 0
        %2513 = vmatprep.subr.bf16.mxu0 0
        %2514 = vmatpush1.bf16.xpose.msra.mxu0 0
        %2515 = vmatprep.subr.bf16.mxu0 0
        %2516 = vmatpush1.bf16.xpose.msra.mxu0 0
        %2517 = vmatprep.subr.bf16.mxu0 0
        %2518 = vmatpush1.bf16.xpose.msra.mxu0 0
        %2519 = vmatprep.subr.bf16.mxu0 0
        %2520 = vmatpush1.bf16.xpose.msra.mxu0 0
        %2521 = vmatprep.subr.bf16.mxu0 0
        %2522 = vmatpush1.bf16.xpose.msra.mxu0 %v2505
        %2523 = vmatprep.subr.bf16.mxu0 0
        %2524 = vmatpush2.bf16.xpose.msra.mxu0 0
        %2525 = vmatprep.subr.bf16.mxu0 0
        %2526 = vmatpush2.bf16.xpose.msra.mxu0 0
        %2527 = vmatprep.subr.bf16.mxu0 0
        %2528 = vmatpush2.bf16.xpose.msra.mxu0 0
        %2529 = vmatprep.subr.bf16.mxu0 0
        %2530 = vmatpush2.bf16.xpose.msra.mxu0 0
        %2531 = vmatprep.subr.bf16.mxu0 0
        %2532 = vmatpush2.bf16.xpose.msra.mxu0 0
        %2533 = vmatprep.subr.bf16.mxu0 0
        %2534 = vmatpush2.bf16.xpose.msra.mxu0 0
        %2535 = vmatprep.subr.bf16.mxu0 0
        %2536 = vmatpush2.bf16.xpose.msra.mxu0 0
        %2537 = vmatprep.subr.bf16.mxu0 0
        %2538 = vmatpush2.bf16.xpose.msra.mxu0 0
        %2539 = vmatprep.mubr.bf16.mxu0 0
        %2540 = vmatmul.mubr.bf16.gmra.mxu0 %v2502
        %v2541 = vpop.f32.mrf.mxu0
        %v2542 = vadd.f32 0.0, %v2541
        %v2543 = vpop.f32.mrf.mxu0
        %v2544 = vpop.f32.mrf.mxu0
        %v2545 = vpop.f32.mrf.mxu0
        %2546 = vdwg.mxu0
        %v2547 = vsel %vm285, %v2542, -inf
        %2548 = vmax.xlane.f32.xlu0 %v2547
        %v2549 = vpop.xlane.xlu0 %2548
        %v2550 = vsub.f32 %v2542, %v2549
        %v2551 = vmul.f32 %v2550, 1.442695
        %v2552 = vpow.pop %v2551
        %v2553 = vsel %vm285, %v2552, 0.0
        %2554 = vadd.xlane.f32.xlu0 %v2553
        %v2555 = vpop.xlane.xlu0 %2554
        %v2556 = vrcp.pop %v2555
        %v2557 = vmul.f32 %v2552, %v2556
        %v2558 = vpack.c.bf16 %v2557, %v2557
        %2559 = vrot.lane.b32.xlu0 %v2159, 48
        %v2560 = vpop.permute.xlu0 %2559
        %v2562 = vsel %vm285, %v2558, 0
        %v2565 = vsel %vm349, %v2560, 0
        %2567 = vmatprep.subr.bf16.mxu0 0
        %2568 = vmatpush1.bf16.msra.mxu0 0
        %2569 = vmatprep.subr.bf16.mxu0 0
        %2570 = vmatpush1.bf16.msra.mxu0 0
        %2571 = vmatprep.subr.bf16.mxu0 0
        %2572 = vmatpush1.bf16.msra.mxu0 0
        %2573 = vmatprep.subr.bf16.mxu0 0
        %2574 = vmatpush1.bf16.msra.mxu0 0
        %2575 = vmatprep.subr.bf16.mxu0 0
        %2576 = vmatpush1.bf16.msra.mxu0 0
        %2577 = vmatprep.subr.bf16.mxu0 0
        %2578 = vmatpush1.bf16.msra.mxu0 0
        %2579 = vmatprep.subr.bf16.mxu0 0
        %2580 = vmatpush1.bf16.msra.mxu0 0
        %2581 = vmatprep.subr.bf16.mxu0 0
        %2582 = vmatpush1.bf16.msra.mxu0 %v2565
        %2583 = vmatprep.subr.bf16.mxu0 0
        %2584 = vmatpush2.bf16.msra.mxu0 0
        %2585 = vmatprep.subr.bf16.mxu0 0
        %2586 = vmatpush2.bf16.msra.mxu0 0
        %2587 = vmatprep.subr.bf16.mxu0 0
        %2588 = vmatpush2.bf16.msra.mxu0 0
        %2589 = vmatprep.subr.bf16.mxu0 0
        %2590 = vmatpush2.bf16.msra.mxu0 0
        %2591 = vmatprep.subr.bf16.mxu0 0
        %2592 = vmatpush2.bf16.msra.mxu0 0
        %2593 = vmatprep.subr.bf16.mxu0 0
        %2594 = vmatpush2.bf16.msra.mxu0 0
        %2595 = vmatprep.subr.bf16.mxu0 0
        %2596 = vmatpush2.bf16.msra.mxu0 0
        %2597 = vmatprep.subr.bf16.mxu0 0
        %2598 = vmatpush2.bf16.msra.mxu0 0
        %2599 = vmatprep.mubr.bf16.mxu0 0
        %2600 = vmatmul.mubr.bf16.gmra.mxu0 %v2562
        %v2601 = vpop.f32.mrf.mxu0
        %v2602 = vadd.f32 0.0, %v2601
        %v2603 = vpop.f32.mrf.mxu0
        %v2604 = vpop.f32.mrf.mxu0
        %v2605 = vpop.f32.mrf.mxu0
        %2606 = vdwg.mxu0
        %v2607 = vpack.c.bf16 %v2602, %v2602
        %2608 = vrot.lane.b32.xlu0 %v2393, 112
        %v2609 = vpop.permute.xlu0 %2608
        %2610 = vrot.lane.b32.xlu0 %v2394, 112
        %v2611 = vpop.permute.xlu0 %2610
        %v2613 = vsel %vm285, %v2607, 0
        %v2616 = vsel %vm285, %v2609, 0
        %v2619 = vsel %vm285, %v2611, 0
        %2621 = vmatprep.subr.bf16.mxu0 0
        %2622 = vmatpush1.bf16.xpose.msra.mxu0 0
        %2623 = vmatprep.subr.bf16.mxu0 0
        %2624 = vmatpush1.bf16.xpose.msra.mxu0 0
        %2625 = vmatprep.subr.bf16.mxu0 0
        %2626 = vmatpush1.bf16.xpose.msra.mxu0 0
        %2627 = vmatprep.subr.bf16.mxu0 0
        %2628 = vmatpush1.bf16.xpose.msra.mxu0 0
        %2629 = vmatprep.subr.bf16.mxu0 0
        %2630 = vmatpush1.bf16.xpose.msra.mxu0 0
        %2631 = vmatprep.subr.bf16.mxu0 0
        %2632 = vmatpush1.bf16.xpose.msra.mxu0 0
        %2633 = vmatprep.subr.bf16.mxu0 0
        %2634 = vmatpush1.bf16.xpose.msra.mxu0 %v2619
        %2635 = vmatprep.subr.bf16.mxu0 0
        %2636 = vmatpush1.bf16.xpose.msra.mxu0 %v2616
        %2637 = vmatprep.subr.bf16.mxu0 0
        %2638 = vmatpush2.bf16.xpose.msra.mxu0 0
        %2639 = vmatprep.subr.bf16.mxu0 0
        %2640 = vmatpush2.bf16.xpose.msra.mxu0 0
        %2641 = vmatprep.subr.bf16.mxu0 0
        %2642 = vmatpush2.bf16.xpose.msra.mxu0 0
        %2643 = vmatprep.subr.bf16.mxu0 0
        %2644 = vmatpush2.bf16.xpose.msra.mxu0 0
        %2645 = vmatprep.subr.bf16.mxu0 0
        %2646 = vmatpush2.bf16.xpose.msra.mxu0 0
        %2647 = vmatprep.subr.bf16.mxu0 0
        %2648 = vmatpush2.bf16.xpose.msra.mxu0 0
        %2649 = vmatprep.subr.bf16.mxu0 0
        %2650 = vmatpush2.bf16.xpose.msra.mxu0 0
        %2651 = vmatprep.subr.bf16.mxu0 0
        %2652 = vmatpush2.bf16.xpose.msra.mxu0 0
        %2653 = vmatprep.mubr.bf16.mxu0 0
        %2654 = vmatmul.mubr.bf16.gmra.mxu0 %v2613
        %v2655 = vpop.f32.mrf.mxu0
        %v2656 = vadd.f32 0.0, %v2655
        %v2657 = vpop.f32.mrf.mxu0
        %v2658 = vpop.f32.mrf.mxu0
        %v2659 = vpop.f32.mrf.mxu0
        %2660 = vdwg.mxu0
        %v2661 = vadd.f32 %v2492, %v2656
        %2662 = vrot.lane.b32.xlu0 %v2159, 104
        %v2663 = vpop.permute.xlu0 %2662
        %2664 = vrot.lane.b32.xlu0 %v2159, 72
        %v2665 = vpop.permute.xlu0 %2664
        %v2667 = vsel %vm285, %v2663, 0
        %v2670 = vsel %vm285, %v2665, 0
        %2672 = vmatprep.subr.bf16.mxu0 0
        %2673 = vmatpush1.bf16.xpose.msra.mxu0 0
        %2674 = vmatprep.subr.bf16.mxu0 0
        %2675 = vmatpush1.bf16.xpose.msra.mxu0 0
        %2676 = vmatprep.subr.bf16.mxu0 0
        %2677 = vmatpush1.bf16.xpose.msra.mxu0 0
        %2678 = vmatprep.subr.bf16.mxu0 0
        %2679 = vmatpush1.bf16.xpose.msra.mxu0 0
        %2680 = vmatprep.subr.bf16.mxu0 0
        %2681 = vmatpush1.bf16.xpose.msra.mxu0 0
        %2682 = vmatprep.subr.bf16.mxu0 0
        %2683 = vmatpush1.bf16.xpose.msra.mxu0 0
        %2684 = vmatprep.subr.bf16.mxu0 0
        %2685 = vmatpush1.bf16.xpose.msra.mxu0 0
        %2686 = vmatprep.subr.bf16.mxu0 0
        %2687 = vmatpush1.bf16.xpose.msra.mxu0 %v2670
        %2688 = vmatprep.subr.bf16.mxu0 0
        %2689 = vmatpush2.bf16.xpose.msra.mxu0 0
        %2690 = vmatprep.subr.bf16.mxu0 0
        %2691 = vmatpush2.bf16.xpose.msra.mxu0 0
        %2692 = vmatprep.subr.bf16.mxu0 0
        %2693 = vmatpush2.bf16.xpose.msra.mxu0 0
        %2694 = vmatprep.subr.bf16.mxu0 0
        %2695 = vmatpush2.bf16.xpose.msra.mxu0 0
        %2696 = vmatprep.subr.bf16.mxu0 0
        %2697 = vmatpush2.bf16.xpose.msra.mxu0 0
        %2698 = vmatprep.subr.bf16.mxu0 0
        %2699 = vmatpush2.bf16.xpose.msra.mxu0 0
        %2700 = vmatprep.subr.bf16.mxu0 0
        %2701 = vmatpush2.bf16.xpose.msra.mxu0 0
        %2702 = vmatprep.subr.bf16.mxu0 0
        %2703 = vmatpush2.bf16.xpose.msra.mxu0 0
        %2704 = vmatprep.mubr.bf16.mxu0 0
        %2705 = vmatmul.mubr.bf16.gmra.mxu0 %v2667
        %v2706 = vpop.f32.mrf.mxu0
        %v2707 = vadd.f32 0.0, %v2706
        %v2708 = vpop.f32.mrf.mxu0
        %v2709 = vpop.f32.mrf.mxu0
        %v2710 = vpop.f32.mrf.mxu0
        %2711 = vdwg.mxu0
        %v2712 = vsel %vm285, %v2707, -inf
        %2713 = vmax.xlane.f32.xlu0 %v2712
        %v2714 = vpop.xlane.xlu0 %2713
        %v2715 = vsub.f32 %v2707, %v2714
        %v2716 = vmul.f32 %v2715, 1.442695
        %v2717 = vpow.pop %v2716
        %v2718 = vsel %vm285, %v2717, 0.0
        %2719 = vadd.xlane.f32.xlu0 %v2718
        %v2720 = vpop.xlane.xlu0 %2719
        %v2721 = vrcp.pop %v2720
        %v2722 = vmul.f32 %v2717, %v2721
        %v2723 = vpack.c.bf16 %v2722, %v2722
        %2724 = vrot.lane.b32.xlu0 %v2159, 40
        %v2725 = vpop.permute.xlu0 %2724
        %v2727 = vsel %vm285, %v2723, 0
        %v2730 = vsel %vm349, %v2725, 0
        %2732 = vmatprep.subr.bf16.mxu0 0
        %2733 = vmatpush1.bf16.msra.mxu0 0
        %2734 = vmatprep.subr.bf16.mxu0 0
        %2735 = vmatpush1.bf16.msra.mxu0 0
        %2736 = vmatprep.subr.bf16.mxu0 0
        %2737 = vmatpush1.bf16.msra.mxu0 0
        %2738 = vmatprep.subr.bf16.mxu0 0
        %2739 = vmatpush1.bf16.msra.mxu0 0
        %2740 = vmatprep.subr.bf16.mxu0 0
        %2741 = vmatpush1.bf16.msra.mxu0 0
        %2742 = vmatprep.subr.bf16.mxu0 0
        %2743 = vmatpush1.bf16.msra.mxu0 0
        %2744 = vmatprep.subr.bf16.mxu0 0
        %2745 = vmatpush1.bf16.msra.mxu0 0
        %2746 = vmatprep.subr.bf16.mxu0 0
        %2747 = vmatpush1.bf16.msra.mxu0 %v2730
        %2748 = vmatprep.subr.bf16.mxu0 0
        %2749 = vmatpush2.bf16.msra.mxu0 0
        %2750 = vmatprep.subr.bf16.mxu0 0
        %2751 = vmatpush2.bf16.msra.mxu0 0
        %2752 = vmatprep.subr.bf16.mxu0 0
        %2753 = vmatpush2.bf16.msra.mxu0 0
        %2754 = vmatprep.subr.bf16.mxu0 0
        %2755 = vmatpush2.bf16.msra.mxu0 0
        %2756 = vmatprep.subr.bf16.mxu0 0
        %2757 = vmatpush2.bf16.msra.mxu0 0
        %2758 = vmatprep.subr.bf16.mxu0 0
        %2759 = vmatpush2.bf16.msra.mxu0 0
        %2760 = vmatprep.subr.bf16.mxu0 0
        %2761 = vmatpush2.bf16.msra.mxu0 0
        %2762 = vmatprep.subr.bf16.mxu0 0
        %2763 = vmatpush2.bf16.msra.mxu0 0
        %2764 = vmatprep.mubr.bf16.mxu0 0
        %2765 = vmatmul.mubr.bf16.gmra.mxu0 %v2727
        %v2766 = vpop.f32.mrf.mxu0
        %v2767 = vadd.f32 0.0, %v2766
        %v2768 = vpop.f32.mrf.mxu0
        %v2769 = vpop.f32.mrf.mxu0
        %v2770 = vpop.f32.mrf.mxu0
        %2771 = vdwg.mxu0
        %v2772 = vpack.c.bf16 %v2767, %v2767
        %2773 = vrot.lane.b32.xlu0 %v2393, 104
        %v2774 = vpop.permute.xlu0 %2773
        %2775 = vrot.lane.b32.xlu0 %v2394, 104
        %v2776 = vpop.permute.xlu0 %2775
        %v2778 = vsel %vm285, %v2772, 0
        %v2781 = vsel %vm285, %v2774, 0
        %v2784 = vsel %vm285, %v2776, 0
        %2786 = vmatprep.subr.bf16.mxu0 0
        %2787 = vmatpush1.bf16.xpose.msra.mxu0 0
        %2788 = vmatprep.subr.bf16.mxu0 0
        %2789 = vmatpush1.bf16.xpose.msra.mxu0 0
        %2790 = vmatprep.subr.bf16.mxu0 0
        %2791 = vmatpush1.bf16.xpose.msra.mxu0 0
        %2792 = vmatprep.subr.bf16.mxu0 0
        %2793 = vmatpush1.bf16.xpose.msra.mxu0 0
        %2794 = vmatprep.subr.bf16.mxu0 0
        %2795 = vmatpush1.bf16.xpose.msra.mxu0 0
        %2796 = vmatprep.subr.bf16.mxu0 0
        %2797 = vmatpush1.bf16.xpose.msra.mxu0 0
        %2798 = vmatprep.subr.bf16.mxu0 0
        %2799 = vmatpush1.bf16.xpose.msra.mxu0 %v2784
        %2800 = vmatprep.subr.bf16.mxu0 0
        %2801 = vmatpush1.bf16.xpose.msra.mxu0 %v2781
        %2802 = vmatprep.subr.bf16.mxu0 0
        %2803 = vmatpush2.bf16.xpose.msra.mxu0 0
        %2804 = vmatprep.subr.bf16.mxu0 0
        %2805 = vmatpush2.bf16.xpose.msra.mxu0 0
        %2806 = vmatprep.subr.bf16.mxu0 0
        %2807 = vmatpush2.bf16.xpose.msra.mxu0 0
        %2808 = vmatprep.subr.bf16.mxu0 0
        %2809 = vmatpush2.bf16.xpose.msra.mxu0 0
        %2810 = vmatprep.subr.bf16.mxu0 0
        %2811 = vmatpush2.bf16.xpose.msra.mxu0 0
        %2812 = vmatprep.subr.bf16.mxu0 0
        %2813 = vmatpush2.bf16.xpose.msra.mxu0 0
        %2814 = vmatprep.subr.bf16.mxu0 0
        %2815 = vmatpush2.bf16.xpose.msra.mxu0 0
        %2816 = vmatprep.subr.bf16.mxu0 0
        %2817 = vmatpush2.bf16.xpose.msra.mxu0 0
        %2818 = vmatprep.mubr.bf16.mxu0 0
        %2819 = vmatmul.mubr.bf16.gmra.mxu0 %v2778
        %v2820 = vpop.f32.mrf.mxu0
        %v2821 = vadd.f32 0.0, %v2820
        %v2822 = vpop.f32.mrf.mxu0
        %v2823 = vpop.f32.mrf.mxu0
        %v2824 = vpop.f32.mrf.mxu0
        %2825 = vdwg.mxu0
        %v2826 = vadd.f32 %v2661, %v2821
        %v2827 = vld [vmem:[%s3 + $0x11] sm:$0x1]
        %v2828 = vlaneseq
        %v2829 = vshrl.u32 %v2828, 7
        %v2830 = vsub.s32 0, %v2829
        %v2831 = vrot.slane %v2827, %v2830
        %v2832 = vadd.f32 %v2826, %v2831
        %v2833 = vadd.f32 %v2093, %v2832
        %v2834 = vld [vmem:[%s3 + $0x17] sm:$0x1]
        %v2835 = vld [vmem:[%s3 + $0x18] sm:$0x1]
        %v2836 = vsel %vm233, %v2833, 0.0
        %2837 = vadd.xlane.f32.xlu0 %v2836
        %v2838 = vpop.xlane.xlu0 %2837
        %v2839 = vmul.f32 %v2838, %v959
        %v2840 = vsub.f32 %v2833, %v2839
        %v2841 = vmul.f32 %v2840, %v2840
        %v2842 = vsel %vm233, %v2841, 0.0
        %2843 = vadd.xlane.f32.xlu0 %v2842
        %v2844 = vpop.xlane.xlu0 %2843
        %v2845 = vmul.f32 %v2844, %v959
        %v2846 = vadd.f32 %v2845, 1e-05
        %v2847 = vrsqrt.pop %v2846
        %v2848 = vmul.f32 %v2840, %v2847
        %v2849 = vlaneseq
        %v2850 = vshrl.u32 %v2849, 7
        %v2851 = vsub.s32 0, %v2850
        %v2852 = vrot.slane %v2834, %v2851
        %v2853 = vmul.f32 %v2848, %v2852
        %v2854 = vlaneseq
        %v2855 = vshrl.u32 %v2854, 7
        %v2856 = vsub.s32 0, %v2855
        %v2857 = vrot.slane %v2835, %v2856
        %v2858 = vadd.f32 %v2853, %v2857
        %v2859 = vpack.c.bf16 %v2858, %v2858
        %v2860 = vld [vmem:[#allocation2 + $0xc0] sm:$0xf]
        %v2861 = vld [vmem:[#allocation2 + $0xc4] sm:$0xf]
        %v2862 = vld [vmem:[#allocation2 + $0xc8] sm:$0xf]
        %v2863 = vld [vmem:[#allocation2 + $0xcc] sm:$0xf]
        %v2864 = vld [vmem:[%s3 + $0x12] sm:$0x1]
        %v2865 = vlaneseq
        %v2866 = vshrl.u32 %v2865, 7
        %v2867 = vsub.s32 0, %v2866
        %v2868 = vrot.slane %v2864, %v2867
        %v2873 = vunpack.c.l.b16 %v2860
        %v2874 = vunpack.c.l.b16 %v2861
        %v2875 = vunpack.c.l.b16 %v2862
        %v2876 = vunpack.c.l.b16 %v2863
        %v2877 = vpack.c.b16 %v2874, %v2873
        %v2878 = vpack.c.b16 %v2876, %v2875
        %v2882 = vsel %vm233, %v2859, 0
        %2884 = vmatprep.subr.bf16.mxu0 0
        %2885 = vmatpush1.bf16.msra.mxu0 0
        %2886 = vmatprep.subr.bf16.mxu0 0
        %2887 = vmatpush1.bf16.msra.mxu0 0
        %2888 = vmatprep.subr.bf16.mxu0 0
        %2889 = vmatpush1.bf16.msra.mxu0 0
        %2890 = vmatprep.subr.bf16.mxu0 0
        %2891 = vmatpush1.bf16.msra.mxu0 0
        %2892 = vmatprep.subr.bf16.mxu0 0
        %2893 = vmatpush1.bf16.msra.mxu0 0
        %2894 = vmatprep.subr.bf16.mxu0 0
        %2895 = vmatpush1.bf16.msra.mxu0 0
        %2896 = vmatprep.subr.bf16.mxu0 0
        %2897 = vmatpush1.bf16.msra.mxu0 %v2878
        %2898 = vmatprep.subr.bf16.mxu0 0
        %2899 = vmatpush1.bf16.msra.mxu0 %v2877
        %2900 = vmatprep.subr.bf16.mxu0 0
        %2901 = vmatpush2.bf16.msra.mxu0 0
        %2902 = vmatprep.subr.bf16.mxu0 0
        %2903 = vmatpush2.bf16.msra.mxu0 0
        %2904 = vmatprep.subr.bf16.mxu0 0
        %2905 = vmatpush2.bf16.msra.mxu0 0
        %2906 = vmatprep.subr.bf16.mxu0 0
        %2907 = vmatpush2.bf16.msra.mxu0 0
        %2908 = vmatprep.subr.bf16.mxu0 0
        %2909 = vmatpush2.bf16.msra.mxu0 0
        %2910 = vmatprep.subr.bf16.mxu0 0
        %2911 = vmatpush2.bf16.msra.mxu0 0
        %2912 = vmatprep.subr.bf16.mxu0 0
        %2913 = vmatpush2.bf16.msra.mxu0 0
        %2914 = vmatprep.subr.bf16.mxu0 0
        %2915 = vmatpush2.bf16.msra.mxu0 0
        %2916 = vmatprep.mubr.bf16.mxu0 0
        %2917 = vmatmul.mubr.bf16.gmra.mxu0 %v2882
        %v2918 = vpop.f32.mrf.mxu0
        %v2919 = vadd.f32 %v2868, %v2918
        %v2920 = vpop.f32.mrf.mxu0
        %v2921 = vpop.f32.mrf.mxu0
        %v2922 = vpop.f32.mrf.mxu0
        %2923 = vdwg.mxu0
        %v2924 = vpack.c.bf16 %v2919, %v2919
        %v2925 = vld [vmem:[#allocation2 + $0xd0] sm:$0xf]
        %v2926 = vld [vmem:[#allocation2 + $0xd4] sm:$0xf]
        %v2927 = vld [vmem:[#allocation2 + $0xd8] sm:$0xf]
        %v2928 = vld [vmem:[#allocation2 + $0xdc] sm:$0xf]
        %v2929 = vld [vmem:[%s3 + $0x13] sm:$0x1]
        %v2930 = vlaneseq
        %v2931 = vshrl.u32 %v2930, 7
        %v2932 = vsub.s32 0, %v2931
        %v2933 = vrot.slane %v2929, %v2932
        %v2938 = vunpack.c.l.b16 %v2925
        %v2939 = vunpack.c.l.b16 %v2926
        %v2940 = vunpack.c.l.b16 %v2927
        %v2941 = vunpack.c.l.b16 %v2928
        %v2942 = vpack.c.b16 %v2939, %v2938
        %v2943 = vpack.c.b16 %v2941, %v2940
        %v2947 = vsel %vm233, %v2092, 0
        %2949 = vmatprep.subr.bf16.mxu0 0
        %2950 = vmatpush1.bf16.msra.mxu0 0
        %2951 = vmatprep.subr.bf16.mxu0 0
        %2952 = vmatpush1.bf16.msra.mxu0 0
        %2953 = vmatprep.subr.bf16.mxu0 0
        %2954 = vmatpush1.bf16.msra.mxu0 0
        %2955 = vmatprep.subr.bf16.mxu0 0
        %2956 = vmatpush1.bf16.msra.mxu0 0
        %2957 = vmatprep.subr.bf16.mxu0 0
        %2958 = vmatpush1.bf16.msra.mxu0 0
        %2959 = vmatprep.subr.bf16.mxu0 0
        %2960 = vmatpush1.bf16.msra.mxu0 0
        %2961 = vmatprep.subr.bf16.mxu0 0
        %2962 = vmatpush1.bf16.msra.mxu0 %v2943
        %2963 = vmatprep.subr.bf16.mxu0 0
        %2964 = vmatpush1.bf16.msra.mxu0 %v2942
        %2965 = vmatprep.subr.bf16.mxu0 0
        %2966 = vmatpush2.bf16.msra.mxu0 0
        %2967 = vmatprep.subr.bf16.mxu0 0
        %2968 = vmatpush2.bf16.msra.mxu0 0
        %2969 = vmatprep.subr.bf16.mxu0 0
        %2970 = vmatpush2.bf16.msra.mxu0 0
        %2971 = vmatprep.subr.bf16.mxu0 0
        %2972 = vmatpush2.bf16.msra.mxu0 0
        %2973 = vmatprep.subr.bf16.mxu0 0
        %2974 = vmatpush2.bf16.msra.mxu0 0
        %2975 = vmatprep.subr.bf16.mxu0 0
        %2976 = vmatpush2.bf16.msra.mxu0 0
        %2977 = vmatprep.subr.bf16.mxu0 0
        %2978 = vmatpush2.bf16.msra.mxu0 0
        %2979 = vmatprep.subr.bf16.mxu0 0
        %2980 = vmatpush2.bf16.msra.mxu0 0
        %2981 = vmatprep.mubr.bf16.mxu0 0
        %2982 = vmatmul.mubr.bf16.gmra.mxu0 %v2947
        %v2983 = vpop.f32.mrf.mxu0
        %v2984 = vadd.f32 %v2933, %v2983
        %v2985 = vpop.f32.mrf.mxu0
        %v2986 = vpop.f32.mrf.mxu0
        %v2987 = vpop.f32.mrf.mxu0
        %2988 = vdwg.mxu0
        %v2989 = vpack.c.bf16 %v2984, %v2984
        %v2990 = vld [vmem:[#allocation2 + $0xe0] sm:$0xf]
        %v2991 = vld [vmem:[#allocation2 + $0xe4] sm:$0xf]
        %v2992 = vld [vmem:[#allocation2 + $0xe8] sm:$0xf]
        %v2993 = vld [vmem:[#allocation2 + $0xec] sm:$0xf]
        %v2995 = vsel %vm285, %v2924, 0
        %v2998 = vsel %vm285, %v2989, 0
        %3000 = vmatprep.subr.bf16.mxu0 0
        %3001 = vmatpush1.bf16.xpose.msra.mxu0 0
        %3002 = vmatprep.subr.bf16.mxu0 0
        %3003 = vmatpush1.bf16.xpose.msra.mxu0 0
        %3004 = vmatprep.subr.bf16.mxu0 0
        %3005 = vmatpush1.bf16.xpose.msra.mxu0 0
        %3006 = vmatprep.subr.bf16.mxu0 0
        %3007 = vmatpush1.bf16.xpose.msra.mxu0 0
        %3008 = vmatprep.subr.bf16.mxu0 0
        %3009 = vmatpush1.bf16.xpose.msra.mxu0 0
        %3010 = vmatprep.subr.bf16.mxu0 0
        %3011 = vmatpush1.bf16.xpose.msra.mxu0 0
        %3012 = vmatprep.subr.bf16.mxu0 0
        %3013 = vmatpush1.bf16.xpose.msra.mxu0 0
        %3014 = vmatprep.subr.bf16.mxu0 0
        %3015 = vmatpush1.bf16.xpose.msra.mxu0 %v2998
        %3016 = vmatprep.subr.bf16.mxu0 0
        %3017 = vmatpush2.bf16.xpose.msra.mxu0 0
        %3018 = vmatprep.subr.bf16.mxu0 0
        %3019 = vmatpush2.bf16.xpose.msra.mxu0 0
        %3020 = vmatprep.subr.bf16.mxu0 0
        %3021 = vmatpush2.bf16.xpose.msra.mxu0 0
        %3022 = vmatprep.subr.bf16.mxu0 0
        %3023 = vmatpush2.bf16.xpose.msra.mxu0 0
        %3024 = vmatprep.subr.bf16.mxu0 0
        %3025 = vmatpush2.bf16.xpose.msra.mxu0 0
        %3026 = vmatprep.subr.bf16.mxu0 0
        %3027 = vmatpush2.bf16.xpose.msra.mxu0 0
        %3028 = vmatprep.subr.bf16.mxu0 0
        %3029 = vmatpush2.bf16.xpose.msra.mxu0 0
        %3030 = vmatprep.subr.bf16.mxu0 0
        %3031 = vmatpush2.bf16.xpose.msra.mxu0 0
        %3032 = vmatprep.mubr.bf16.mxu0 0
        %3033 = vmatmul.mubr.bf16.gmra.mxu0 %v2995
        %v3034 = vpop.f32.mrf.mxu0
        %v3035 = vadd.f32 0.0, %v3034
        %v3036 = vpop.f32.mrf.mxu0
        %v3037 = vpop.f32.mrf.mxu0
        %v3038 = vpop.f32.mrf.mxu0
        %3039 = vdwg.mxu0
        %v3040 = vsel %vm285, %v3035, -inf
        %3041 = vmax.xlane.f32.xlu0 %v3040
        %v3042 = vpop.xlane.xlu0 %3041
        %v3043 = vsub.f32 %v3035, %v3042
        %v3044 = vmul.f32 %v3043, 1.442695
        %v3045 = vpow.pop %v3044
        %v3046 = vsel %vm285, %v3045, 0.0
        %3047 = vadd.xlane.f32.xlu0 %v3046
        %v3048 = vpop.xlane.xlu0 %3047
        %v3049 = vrcp.pop %v3048
        %v3050 = vmul.f32 %v3045, %v3049
        %v3051 = vpack.c.bf16 %v3050, %v3050
        %3053 = vrot.lane.b32.xlu0 %v2989, 96
        %v3054 = vpop.permute.xlu0 %3053
        %v3056 = vsel %vm285, %v3051, 0
        %v3059 = vsel %vm349, %v3054, 0
        %3061 = vmatprep.subr.bf16.mxu0 0
        %3062 = vmatpush1.bf16.msra.mxu0 0
        %3063 = vmatprep.subr.bf16.mxu0 0
        %3064 = vmatpush1.bf16.msra.mxu0 0
        %3065 = vmatprep.subr.bf16.mxu0 0
        %3066 = vmatpush1.bf16.msra.mxu0 0
        %3067 = vmatprep.subr.bf16.mxu0 0
        %3068 = vmatpush1.bf16.msra.mxu0 0
        %3069 = vmatprep.subr.bf16.mxu0 0
        %3070 = vmatpush1.bf16.msra.mxu0 0
        %3071 = vmatprep.subr.bf16.mxu0 0
        %3072 = vmatpush1.bf16.msra.mxu0 0
        %3073 = vmatprep.subr.bf16.mxu0 0
        %3074 = vmatpush1.bf16.msra.mxu0 0
        %3075 = vmatprep.subr.bf16.mxu0 0
        %3076 = vmatpush1.bf16.msra.mxu0 %v3059
        %3077 = vmatprep.subr.bf16.mxu0 0
        %3078 = vmatpush2.bf16.msra.mxu0 0
        %3079 = vmatprep.subr.bf16.mxu0 0
        %3080 = vmatpush2.bf16.msra.mxu0 0
        %3081 = vmatprep.subr.bf16.mxu0 0
        %3082 = vmatpush2.bf16.msra.mxu0 0
        %3083 = vmatprep.subr.bf16.mxu0 0
        %3084 = vmatpush2.bf16.msra.mxu0 0
        %3085 = vmatprep.subr.bf16.mxu0 0
        %3086 = vmatpush2.bf16.msra.mxu0 0
        %3087 = vmatprep.subr.bf16.mxu0 0
        %3088 = vmatpush2.bf16.msra.mxu0 0
        %3089 = vmatprep.subr.bf16.mxu0 0
        %3090 = vmatpush2.bf16.msra.mxu0 0
        %3091 = vmatprep.subr.bf16.mxu0 0
        %3092 = vmatpush2.bf16.msra.mxu0 0
        %3093 = vmatprep.mubr.bf16.mxu0 0
        %3094 = vmatmul.mubr.bf16.gmra.mxu0 %v3056
        %v3095 = vpop.f32.mrf.mxu0
        %v3096 = vadd.f32 0.0, %v3095
        %v3097 = vpop.f32.mrf.mxu0
        %v3098 = vpop.f32.mrf.mxu0
        %v3099 = vpop.f32.mrf.mxu0
        %3100 = vdwg.mxu0
        %v3101 = vpack.c.bf16 %v3096, %v3096
        %3103 = vrot.lane.b32.xlu0 %v2924, 120
        %v3104 = vpop.permute.xlu0 %3103
        %3105 = vrot.lane.b32.xlu0 %v2989, 120
        %v3106 = vpop.permute.xlu0 %3105
        %v3108 = vsel %vm285, %v3104, 0
        %v3111 = vsel %vm285, %v3106, 0
        %3113 = vmatprep.subr.bf16.mxu0 0
        %3114 = vmatpush1.bf16.xpose.msra.mxu0 0
        %3115 = vmatprep.subr.bf16.mxu0 0
        %3116 = vmatpush1.bf16.xpose.msra.mxu0 0
        %3117 = vmatprep.subr.bf16.mxu0 0
        %3118 = vmatpush1.bf16.xpose.msra.mxu0 0
        %3119 = vmatprep.subr.bf16.mxu0 0
        %3120 = vmatpush1.bf16.xpose.msra.mxu0 0
        %3121 = vmatprep.subr.bf16.mxu0 0
        %3122 = vmatpush1.bf16.xpose.msra.mxu0 0
        %3123 = vmatprep.subr.bf16.mxu0 0
        %3124 = vmatpush1.bf16.xpose.msra.mxu0 0
        %3125 = vmatprep.subr.bf16.mxu0 0
        %3126 = vmatpush1.bf16.xpose.msra.mxu0 0
        %3127 = vmatprep.subr.bf16.mxu0 0
        %3128 = vmatpush1.bf16.xpose.msra.mxu0 %v3111
        %3129 = vmatprep.subr.bf16.mxu0 0
        %3130 = vmatpush2.bf16.xpose.msra.mxu0 0
        %3131 = vmatprep.subr.bf16.mxu0 0
        %3132 = vmatpush2.bf16.xpose.msra.mxu0 0
        %3133 = vmatprep.subr.bf16.mxu0 0
        %3134 = vmatpush2.bf16.xpose.msra.mxu0 0
        %3135 = vmatprep.subr.bf16.mxu0 0
        %3136 = vmatpush2.bf16.xpose.msra.mxu0 0
        %3137 = vmatprep.subr.bf16.mxu0 0
        %3138 = vmatpush2.bf16.xpose.msra.mxu0 0
        %3139 = vmatprep.subr.bf16.mxu0 0
        %3140 = vmatpush2.bf16.xpose.msra.mxu0 0
        %3141 = vmatprep.subr.bf16.mxu0 0
        %3142 = vmatpush2.bf16.xpose.msra.mxu0 0
        %3143 = vmatprep.subr.bf16.mxu0 0
        %3144 = vmatpush2.bf16.xpose.msra.mxu0 0
        %3145 = vmatprep.mubr.bf16.mxu0 0
        %3146 = vmatmul.mubr.bf16.gmra.mxu0 %v3108
        %v3147 = vpop.f32.mrf.mxu0
        %v3148 = vadd.f32 0.0, %v3147
        %v3149 = vpop.f32.mrf.mxu0
        %v3150 = vpop.f32.mrf.mxu0
        %v3151 = vpop.f32.mrf.mxu0
        %3152 = vdwg.mxu0
        %v3153 = vsel %vm285, %v3148, -inf
        %3154 = vmax.xlane.f32.xlu0 %v3153
        %v3155 = vpop.xlane.xlu0 %3154
        %v3156 = vsub.f32 %v3148, %v3155
        %v3157 = vmul.f32 %v3156, 1.442695
        %v3158 = vpow.pop %v3157
        %v3159 = vsel %vm285, %v3158, 0.0
        %3160 = vadd.xlane.f32.xlu0 %v3159
        %v3161 = vpop.xlane.xlu0 %3160
        %v3162 = vrcp.pop %v3161
        %v3163 = vmul.f32 %v3158, %v3162
        %v3164 = vpack.c.bf16 %v3163, %v3163
        %3165 = vrot.lane.b32.xlu0 %v2989, 88
        %v3166 = vpop.permute.xlu0 %3165
        %v3168 = vsel %vm285, %v3164, 0
        %v3171 = vsel %vm349, %v3166, 0
        %3173 = vmatprep.subr.bf16.mxu0 0
        %3174 = vmatpush1.bf16.msra.mxu0 0
        %3175 = vmatprep.subr.bf16.mxu0 0
        %3176 = vmatpush1.bf16.msra.mxu0 0
        %3177 = vmatprep.subr.bf16.mxu0 0
        %3178 = vmatpush1.bf16.msra.mxu0 0
        %3179 = vmatprep.subr.bf16.mxu0 0
        %3180 = vmatpush1.bf16.msra.mxu0 0
        %3181 = vmatprep.subr.bf16.mxu0 0
        %3182 = vmatpush1.bf16.msra.mxu0 0
        %3183 = vmatprep.subr.bf16.mxu0 0
        %3184 = vmatpush1.bf16.msra.mxu0 0
        %3185 = vmatprep.subr.bf16.mxu0 0
        %3186 = vmatpush1.bf16.msra.mxu0 0
        %3187 = vmatprep.subr.bf16.mxu0 0
        %3188 = vmatpush1.bf16.msra.mxu0 %v3171
        %3189 = vmatprep.subr.bf16.mxu0 0
        %3190 = vmatpush2.bf16.msra.mxu0 0
        %3191 = vmatprep.subr.bf16.mxu0 0
        %3192 = vmatpush2.bf16.msra.mxu0 0
        %3193 = vmatprep.subr.bf16.mxu0 0
        %3194 = vmatpush2.bf16.msra.mxu0 0
        %3195 = vmatprep.subr.bf16.mxu0 0
        %3196 = vmatpush2.bf16.msra.mxu0 0
        %3197 = vmatprep.subr.bf16.mxu0 0
        %3198 = vmatpush2.bf16.msra.mxu0 0
        %3199 = vmatprep.subr.bf16.mxu0 0
        %3200 = vmatpush2.bf16.msra.mxu0 0
        %3201 = vmatprep.subr.bf16.mxu0 0
        %3202 = vmatpush2.bf16.msra.mxu0 0
        %3203 = vmatprep.subr.bf16.mxu0 0
        %3204 = vmatpush2.bf16.msra.mxu0 0
        %3205 = vmatprep.mubr.bf16.mxu0 0
        %3206 = vmatmul.mubr.bf16.gmra.mxu0 %v3168
        %v3207 = vpop.f32.mrf.mxu0
        %v3208 = vadd.f32 0.0, %v3207
        %v3209 = vpop.f32.mrf.mxu0
        %v3210 = vpop.f32.mrf.mxu0
        %v3211 = vpop.f32.mrf.mxu0
        %3212 = vdwg.mxu0
        %v3213 = vpack.c.bf16 %v3208, %v3208
        %v3218 = vunpack.c.l.b16 %v2990
        %v3219 = vunpack.c.l.b16 %v2991
        %v3220 = vunpack.c.l.b16 %v2992
        %v3221 = vunpack.c.l.b16 %v2993
        %v3222 = vpack.c.b16 %v3219, %v3218
        %v3223 = vpack.c.b16 %v3221, %v3220
        %3224 = vrot.lane.b32.xlu0 %v3222, 120
        %v3225 = vpop.permute.xlu0 %3224
        %3226 = vrot.lane.b32.xlu0 %v3223, 120
        %v3227 = vpop.permute.xlu0 %3226
        %v3229 = vsel %vm285, %v3213, 0
        %v3232 = vsel %vm285, %v3225, 0
        %v3235 = vsel %vm285, %v3227, 0
        %3237 = vmatprep.subr.bf16.mxu0 0
        %3238 = vmatpush1.bf16.xpose.msra.mxu0 0
        %3239 = vmatprep.subr.bf16.mxu0 0
        %3240 = vmatpush1.bf16.xpose.msra.mxu0 0
        %3241 = vmatprep.subr.bf16.mxu0 0
        %3242 = vmatpush1.bf16.xpose.msra.mxu0 0
        %3243 = vmatprep.subr.bf16.mxu0 0
        %3244 = vmatpush1.bf16.xpose.msra.mxu0 0
        %3245 = vmatprep.subr.bf16.mxu0 0
        %3246 = vmatpush1.bf16.xpose.msra.mxu0 0
        %3247 = vmatprep.subr.bf16.mxu0 0
        %3248 = vmatpush1.bf16.xpose.msra.mxu0 0
        %3249 = vmatprep.subr.bf16.mxu0 0
        %3250 = vmatpush1.bf16.xpose.msra.mxu0 %v3235
        %3251 = vmatprep.subr.bf16.mxu0 0
        %3252 = vmatpush1.bf16.xpose.msra.mxu0 %v3232
        %3253 = vmatprep.subr.bf16.mxu0 0
        %3254 = vmatpush2.bf16.xpose.msra.mxu0 0
        %3255 = vmatprep.subr.bf16.mxu0 0
        %3256 = vmatpush2.bf16.xpose.msra.mxu0 0
        %3257 = vmatprep.subr.bf16.mxu0 0
        %3258 = vmatpush2.bf16.xpose.msra.mxu0 0
        %3259 = vmatprep.subr.bf16.mxu0 0
        %3260 = vmatpush2.bf16.xpose.msra.mxu0 0
        %3261 = vmatprep.subr.bf16.mxu0 0
        %3262 = vmatpush2.bf16.xpose.msra.mxu0 0
        %3263 = vmatprep.subr.bf16.mxu0 0
        %3264 = vmatpush2.bf16.xpose.msra.mxu0 0
        %3265 = vmatprep.subr.bf16.mxu0 0
        %3266 = vmatpush2.bf16.xpose.msra.mxu0 0
        %3267 = vmatprep.subr.bf16.mxu0 0
        %3268 = vmatpush2.bf16.xpose.msra.mxu0 0
        %3269 = vmatprep.mubr.bf16.mxu0 0
        %3270 = vmatmul.mubr.bf16.gmra.mxu0 %v3229
        %v3271 = vpop.f32.mrf.mxu0
        %v3272 = vadd.f32 0.0, %v3271
        %v3273 = vpop.f32.mrf.mxu0
        %v3274 = vpop.f32.mrf.mxu0
        %v3275 = vpop.f32.mrf.mxu0
        %3276 = vdwg.mxu0
        %v3278 = vsel %vm285, %v3101, 0
        %v3281 = vsel %vm285, %v3222, 0
        %v3284 = vsel %vm285, %v3223, 0
        %3286 = vmatprep.subr.bf16.mxu0 0
        %3287 = vmatpush1.bf16.xpose.msra.mxu0 0
        %3288 = vmatprep.subr.bf16.mxu0 0
        %3289 = vmatpush1.bf16.xpose.msra.mxu0 0
        %3290 = vmatprep.subr.bf16.mxu0 0
        %3291 = vmatpush1.bf16.xpose.msra.mxu0 0
        %3292 = vmatprep.subr.bf16.mxu0 0
        %3293 = vmatpush1.bf16.xpose.msra.mxu0 0
        %3294 = vmatprep.subr.bf16.mxu0 0
        %3295 = vmatpush1.bf16.xpose.msra.mxu0 0
        %3296 = vmatprep.subr.bf16.mxu0 0
        %3297 = vmatpush1.bf16.xpose.msra.mxu0 0
        %3298 = vmatprep.subr.bf16.mxu0 0
        %3299 = vmatpush1.bf16.xpose.msra.mxu0 %v3284
        %3300 = vmatprep.subr.bf16.mxu0 0
        %3301 = vmatpush1.bf16.xpose.msra.mxu0 %v3281
        %3302 = vmatprep.subr.bf16.mxu0 0
        %3303 = vmatpush2.bf16.xpose.msra.mxu0 0
        %3304 = vmatprep.subr.bf16.mxu0 0
        %3305 = vmatpush2.bf16.xpose.msra.mxu0 0
        %3306 = vmatprep.subr.bf16.mxu0 0
        %3307 = vmatpush2.bf16.xpose.msra.mxu0 0
        %3308 = vmatprep.subr.bf16.mxu0 0
        %3309 = vmatpush2.bf16.xpose.msra.mxu0 0
        %3310 = vmatprep.subr.bf16.mxu0 0
        %3311 = vmatpush2.bf16.xpose.msra.mxu0 0
        %3312 = vmatprep.subr.bf16.mxu0 0
        %3313 = vmatpush2.bf16.xpose.msra.mxu0 0
        %3314 = vmatprep.subr.bf16.mxu0 0
        %3315 = vmatpush2.bf16.xpose.msra.mxu0 0
        %3316 = vmatprep.subr.bf16.mxu0 0
        %3317 = vmatpush2.bf16.xpose.msra.mxu0 0
        %3318 = vmatprep.mubr.bf16.mxu0 0
        %3319 = vmatmul.mubr.bf16.gmra.mxu0 %v3278
        %v3320 = vpop.f32.mrf.mxu0
        %v3321 = vadd.f32 %v3272, %v3320
        %v3322 = vpop.f32.mrf.mxu0
        %v3323 = vpop.f32.mrf.mxu0
        %v3324 = vpop.f32.mrf.mxu0
        %3325 = vdwg.mxu0
        %3326 = vrot.lane.b32.xlu0 %v2924, 112
        %v3327 = vpop.permute.xlu0 %3326
        %3328 = vrot.lane.b32.xlu0 %v2989, 112
        %v3329 = vpop.permute.xlu0 %3328
        %v3331 = vsel %vm285, %v3327, 0
        %v3334 = vsel %vm285, %v3329, 0
        %3336 = vmatprep.subr.bf16.mxu0 0
        %3337 = vmatpush1.bf16.xpose.msra.mxu0 0
        %3338 = vmatprep.subr.bf16.mxu0 0
        %3339 = vmatpush1.bf16.xpose.msra.mxu0 0
        %3340 = vmatprep.subr.bf16.mxu0 0
        %3341 = vmatpush1.bf16.xpose.msra.mxu0 0
        %3342 = vmatprep.subr.bf16.mxu0 0
        %3343 = vmatpush1.bf16.xpose.msra.mxu0 0
        %3344 = vmatprep.subr.bf16.mxu0 0
        %3345 = vmatpush1.bf16.xpose.msra.mxu0 0
        %3346 = vmatprep.subr.bf16.mxu0 0
        %3347 = vmatpush1.bf16.xpose.msra.mxu0 0
        %3348 = vmatprep.subr.bf16.mxu0 0
        %3349 = vmatpush1.bf16.xpose.msra.mxu0 0
        %3350 = vmatprep.subr.bf16.mxu0 0
        %3351 = vmatpush1.bf16.xpose.msra.mxu0 %v3334
        %3352 = vmatprep.subr.bf16.mxu0 0
        %3353 = vmatpush2.bf16.xpose.msra.mxu0 0
        %3354 = vmatprep.subr.bf16.mxu0 0
        %3355 = vmatpush2.bf16.xpose.msra.mxu0 0
        %3356 = vmatprep.subr.bf16.mxu0 0
        %3357 = vmatpush2.bf16.xpose.msra.mxu0 0
        %3358 = vmatprep.subr.bf16.mxu0 0
        %3359 = vmatpush2.bf16.xpose.msra.mxu0 0
        %3360 = vmatprep.subr.bf16.mxu0 0
        %3361 = vmatpush2.bf16.xpose.msra.mxu0 0
        %3362 = vmatprep.subr.bf16.mxu0 0
        %3363 = vmatpush2.bf16.xpose.msra.mxu0 0
        %3364 = vmatprep.subr.bf16.mxu0 0
        %3365 = vmatpush2.bf16.xpose.msra.mxu0 0
        %3366 = vmatprep.subr.bf16.mxu0 0
        %3367 = vmatpush2.bf16.xpose.msra.mxu0 0
        %3368 = vmatprep.mubr.bf16.mxu0 0
        %3369 = vmatmul.mubr.bf16.gmra.mxu0 %v3331
        %v3370 = vpop.f32.mrf.mxu0
        %v3371 = vadd.f32 0.0, %v3370
        %v3372 = vpop.f32.mrf.mxu0
        %v3373 = vpop.f32.mrf.mxu0
        %v3374 = vpop.f32.mrf.mxu0
        %3375 = vdwg.mxu0
        %v3376 = vsel %vm285, %v3371, -inf
        %3377 = vmax.xlane.f32.xlu0 %v3376
        %v3378 = vpop.xlane.xlu0 %3377
        %v3379 = vsub.f32 %v3371, %v3378
        %v3380 = vmul.f32 %v3379, 1.442695
        %v3381 = vpow.pop %v3380
        %v3382 = vsel %vm285, %v3381, 0.0
        %3383 = vadd.xlane.f32.xlu0 %v3382
        %v3384 = vpop.xlane.xlu0 %3383
        %v3385 = vrcp.pop %v3384
        %v3386 = vmul.f32 %v3381, %v3385
        %v3387 = vpack.c.bf16 %v3386, %v3386
        %3388 = vrot.lane.b32.xlu0 %v2989, 80
        %v3389 = vpop.permute.xlu0 %3388
        %v3391 = vsel %vm285, %v3387, 0
        %v3394 = vsel %vm349, %v3389, 0
        %3396 = vmatprep.subr.bf16.mxu0 0
        %3397 = vmatpush1.bf16.msra.mxu0 0
        %3398 = vmatprep.subr.bf16.mxu0 0
        %3399 = vmatpush1.bf16.msra.mxu0 0
        %3400 = vmatprep.subr.bf16.mxu0 0
        %3401 = vmatpush1.bf16.msra.mxu0 0
        %3402 = vmatprep.subr.bf16.mxu0 0
        %3403 = vmatpush1.bf16.msra.mxu0 0
        %3404 = vmatprep.subr.bf16.mxu0 0
        %3405 = vmatpush1.bf16.msra.mxu0 0
        %3406 = vmatprep.subr.bf16.mxu0 0
        %3407 = vmatpush1.bf16.msra.mxu0 0
        %3408 = vmatprep.subr.bf16.mxu0 0
        %3409 = vmatpush1.bf16.msra.mxu0 0
        %3410 = vmatprep.subr.bf16.mxu0 0
        %3411 = vmatpush1.bf16.msra.mxu0 %v3394
        %3412 = vmatprep.subr.bf16.mxu0 0
        %3413 = vmatpush2.bf16.msra.mxu0 0
        %3414 = vmatprep.subr.bf16.mxu0 0
        %3415 = vmatpush2.bf16.msra.mxu0 0
        %3416 = vmatprep.subr.bf16.mxu0 0
        %3417 = vmatpush2.bf16.msra.mxu0 0
        %3418 = vmatprep.subr.bf16.mxu0 0
        %3419 = vmatpush2.bf16.msra.mxu0 0
        %3420 = vmatprep.subr.bf16.mxu0 0
        %3421 = vmatpush2.bf16.msra.mxu0 0
        %3422 = vmatprep.subr.bf16.mxu0 0
        %3423 = vmatpush2.bf16.msra.mxu0 0
        %3424 = vmatprep.subr.bf16.mxu0 0
        %3425 = vmatpush2.bf16.msra.mxu0 0
        %3426 = vmatprep.subr.bf16.mxu0 0
        %3427 = vmatpush2.bf16.msra.mxu0 0
        %3428 = vmatprep.mubr.bf16.mxu0 0
        %3429 = vmatmul.mubr.bf16.gmra.mxu0 %v3391
        %v3430 = vpop.f32.mrf.mxu0
        %v3431 = vadd.f32 0.0, %v3430
        %v3432 = vpop.f32.mrf.mxu0
        %v3433 = vpop.f32.mrf.mxu0
        %v3434 = vpop.f32.mrf.mxu0
        %3435 = vdwg.mxu0
        %v3436 = vpack.c.bf16 %v3431, %v3431
        %3437 = vrot.lane.b32.xlu0 %v3222, 112
        %v3438 = vpop.permute.xlu0 %3437
        %3439 = vrot.lane.b32.xlu0 %v3223, 112
        %v3440 = vpop.permute.xlu0 %3439
        %v3442 = vsel %vm285, %v3436, 0
        %v3445 = vsel %vm285, %v3438, 0
        %v3448 = vsel %vm285, %v3440, 0
        %3450 = vmatprep.subr.bf16.mxu0 0
        %3451 = vmatpush1.bf16.xpose.msra.mxu0 0
        %3452 = vmatprep.subr.bf16.mxu0 0
        %3453 = vmatpush1.bf16.xpose.msra.mxu0 0
        %3454 = vmatprep.subr.bf16.mxu0 0
        %3455 = vmatpush1.bf16.xpose.msra.mxu0 0
        %3456 = vmatprep.subr.bf16.mxu0 0
        %3457 = vmatpush1.bf16.xpose.msra.mxu0 0
        %3458 = vmatprep.subr.bf16.mxu0 0
        %3459 = vmatpush1.bf16.xpose.msra.mxu0 0
        %3460 = vmatprep.subr.bf16.mxu0 0
        %3461 = vmatpush1.bf16.xpose.msra.mxu0 0
        %3462 = vmatprep.subr.bf16.mxu0 0
        %3463 = vmatpush1.bf16.xpose.msra.mxu0 %v3448
        %3464 = vmatprep.subr.bf16.mxu0 0
        %3465 = vmatpush1.bf16.xpose.msra.mxu0 %v3445
        %3466 = vmatprep.subr.bf16.mxu0 0
        %3467 = vmatpush2.bf16.xpose.msra.mxu0 0
        %3468 = vmatprep.subr.bf16.mxu0 0
        %3469 = vmatpush2.bf16.xpose.msra.mxu0 0
        %3470 = vmatprep.subr.bf16.mxu0 0
        %3471 = vmatpush2.bf16.xpose.msra.mxu0 0
        %3472 = vmatprep.subr.bf16.mxu0 0
        %3473 = vmatpush2.bf16.xpose.msra.mxu0 0
        %3474 = vmatprep.subr.bf16.mxu0 0
        %3475 = vmatpush2.bf16.xpose.msra.mxu0 0
        %3476 = vmatprep.subr.bf16.mxu0 0
        %3477 = vmatpush2.bf16.xpose.msra.mxu0 0
        %3478 = vmatprep.subr.bf16.mxu0 0
        %3479 = vmatpush2.bf16.xpose.msra.mxu0 0
        %3480 = vmatprep.subr.bf16.mxu0 0
        %3481 = vmatpush2.bf16.xpose.msra.mxu0 0
        %3482 = vmatprep.mubr.bf16.mxu0 0
        %3483 = vmatmul.mubr.bf16.gmra.mxu0 %v3442
        %v3484 = vpop.f32.mrf.mxu0
        %v3485 = vadd.f32 0.0, %v3484
        %v3486 = vpop.f32.mrf.mxu0
        %v3487 = vpop.f32.mrf.mxu0
        %v3488 = vpop.f32.mrf.mxu0
        %3489 = vdwg.mxu0
        %v3490 = vadd.f32 %v3321, %v3485
        %3491 = vrot.lane.b32.xlu0 %v2924, 104
        %v3492 = vpop.permute.xlu0 %3491
        %3493 = vrot.lane.b32.xlu0 %v2989, 104
        %v3494 = vpop.permute.xlu0 %3493
        %v3496 = vsel %vm285, %v3492, 0
        %v3499 = vsel %vm285, %v3494, 0
        %3501 = vmatprep.subr.bf16.mxu0 0
        %3502 = vmatpush1.bf16.xpose.msra.mxu0 0
        %3503 = vmatprep.subr.bf16.mxu0 0
        %3504 = vmatpush1.bf16.xpose.msra.mxu0 0
        %3505 = vmatprep.subr.bf16.mxu0 0
        %3506 = vmatpush1.bf16.xpose.msra.mxu0 0
        %3507 = vmatprep.subr.bf16.mxu0 0
        %3508 = vmatpush1.bf16.xpose.msra.mxu0 0
        %3509 = vmatprep.subr.bf16.mxu0 0
        %3510 = vmatpush1.bf16.xpose.msra.mxu0 0
        %3511 = vmatprep.subr.bf16.mxu0 0
        %3512 = vmatpush1.bf16.xpose.msra.mxu0 0
        %3513 = vmatprep.subr.bf16.mxu0 0
        %3514 = vmatpush1.bf16.xpose.msra.mxu0 0
        %3515 = vmatprep.subr.bf16.mxu0 0
        %3516 = vmatpush1.bf16.xpose.msra.mxu0 %v3499
        %3517 = vmatprep.subr.bf16.mxu0 0
        %3518 = vmatpush2.bf16.xpose.msra.mxu0 0
        %3519 = vmatprep.subr.bf16.mxu0 0
        %3520 = vmatpush2.bf16.xpose.msra.mxu0 0
        %3521 = vmatprep.subr.bf16.mxu0 0
        %3522 = vmatpush2.bf16.xpose.msra.mxu0 0
        %3523 = vmatprep.subr.bf16.mxu0 0
        %3524 = vmatpush2.bf16.xpose.msra.mxu0 0
        %3525 = vmatprep.subr.bf16.mxu0 0
        %3526 = vmatpush2.bf16.xpose.msra.mxu0 0
        %3527 = vmatprep.subr.bf16.mxu0 0
        %3528 = vmatpush2.bf16.xpose.msra.mxu0 0
        %3529 = vmatprep.subr.bf16.mxu0 0
        %3530 = vmatpush2.bf16.xpose.msra.mxu0 0
        %3531 = vmatprep.subr.bf16.mxu0 0
        %3532 = vmatpush2.bf16.xpose.msra.mxu0 0
        %3533 = vmatprep.mubr.bf16.mxu0 0
        %3534 = vmatmul.mubr.bf16.gmra.mxu0 %v3496
        %v3535 = vpop.f32.mrf.mxu0
        %v3536 = vadd.f32 0.0, %v3535
        %v3537 = vpop.f32.mrf.mxu0
        %v3538 = vpop.f32.mrf.mxu0
        %v3539 = vpop.f32.mrf.mxu0
        %3540 = vdwg.mxu0
        %v3541 = vsel %vm285, %v3536, -inf
        %3542 = vmax.xlane.f32.xlu0 %v3541
        %v3543 = vpop.xlane.xlu0 %3542
        %v3544 = vsub.f32 %v3536, %v3543
        %v3545 = vmul.f32 %v3544, 1.442695
        %v3546 = vpow.pop %v3545
        %v3547 = vsel %vm285, %v3546, 0.0
        %3548 = vadd.xlane.f32.xlu0 %v3547
        %v3549 = vpop.xlane.xlu0 %3548
        %v3550 = vrcp.pop %v3549
        %v3551 = vmul.f32 %v3546, %v3550
        %v3552 = vpack.c.bf16 %v3551, %v3551
        %3553 = vrot.lane.b32.xlu0 %v2989, 72
        %v3554 = vpop.permute.xlu0 %3553
        %v3556 = vsel %vm285, %v3552, 0
        %v3559 = vsel %vm349, %v3554, 0
        %3561 = vmatprep.subr.bf16.mxu0 0
        %3562 = vmatpush1.bf16.msra.mxu0 0
        %3563 = vmatprep.subr.bf16.mxu0 0
        %3564 = vmatpush1.bf16.msra.mxu0 0
        %3565 = vmatprep.subr.bf16.mxu0 0
        %3566 = vmatpush1.bf16.msra.mxu0 0
        %3567 = vmatprep.subr.bf16.mxu0 0
        %3568 = vmatpush1.bf16.msra.mxu0 0
        %3569 = vmatprep.subr.bf16.mxu0 0
        %3570 = vmatpush1.bf16.msra.mxu0 0
        %3571 = vmatprep.subr.bf16.mxu0 0
        %3572 = vmatpush1.bf16.msra.mxu0 0
        %3573 = vmatprep.subr.bf16.mxu0 0
        %3574 = vmatpush1.bf16.msra.mxu0 0
        %3575 = vmatprep.subr.bf16.mxu0 0
        %3576 = vmatpush1.bf16.msra.mxu0 %v3559
        %3577 = vmatprep.subr.bf16.mxu0 0
        %3578 = vmatpush2.bf16.msra.mxu0 0
        %3579 = vmatprep.subr.bf16.mxu0 0
        %3580 = vmatpush2.bf16.msra.mxu0 0
        %3581 = vmatprep.subr.bf16.mxu0 0
        %3582 = vmatpush2.bf16.msra.mxu0 0
        %3583 = vmatprep.subr.bf16.mxu0 0
        %3584 = vmatpush2.bf16.msra.mxu0 0
        %3585 = vmatprep.subr.bf16.mxu0 0
        %3586 = vmatpush2.bf16.msra.mxu0 0
        %3587 = vmatprep.subr.bf16.mxu0 0
        %3588 = vmatpush2.bf16.msra.mxu0 0
        %3589 = vmatprep.subr.bf16.mxu0 0
        %3590 = vmatpush2.bf16.msra.mxu0 0
        %3591 = vmatprep.subr.bf16.mxu0 0
        %3592 = vmatpush2.bf16.msra.mxu0 0
        %3593 = vmatprep.mubr.bf16.mxu0 0
        %3594 = vmatmul.mubr.bf16.gmra.mxu0 %v3556
        %v3595 = vpop.f32.mrf.mxu0
        %v3596 = vadd.f32 0.0, %v3595
        %v3597 = vpop.f32.mrf.mxu0
        %v3598 = vpop.f32.mrf.mxu0
        %v3599 = vpop.f32.mrf.mxu0
        %3600 = vdwg.mxu0
        %v3601 = vpack.c.bf16 %v3596, %v3596
        %3602 = vrot.lane.b32.xlu0 %v3222, 104
        %v3603 = vpop.permute.xlu0 %3602
        %3604 = vrot.lane.b32.xlu0 %v3223, 104
        %v3605 = vpop.permute.xlu0 %3604
        %v3607 = vsel %vm285, %v3601, 0
        %v3610 = vsel %vm285, %v3603, 0
        %v3613 = vsel %vm285, %v3605, 0
        %3615 = vmatprep.subr.bf16.mxu0 0
        %3616 = vmatpush1.bf16.xpose.msra.mxu0 0
        %3617 = vmatprep.subr.bf16.mxu0 0
        %3618 = vmatpush1.bf16.xpose.msra.mxu0 0
        %3619 = vmatprep.subr.bf16.mxu0 0
        %3620 = vmatpush1.bf16.xpose.msra.mxu0 0
        %3621 = vmatprep.subr.bf16.mxu0 0
        %3622 = vmatpush1.bf16.xpose.msra.mxu0 0
        %3623 = vmatprep.subr.bf16.mxu0 0
        %3624 = vmatpush1.bf16.xpose.msra.mxu0 0
        %3625 = vmatprep.subr.bf16.mxu0 0
        %3626 = vmatpush1.bf16.xpose.msra.mxu0 0
        %3627 = vmatprep.subr.bf16.mxu0 0
        %3628 = vmatpush1.bf16.xpose.msra.mxu0 %v3613
        %3629 = vmatprep.subr.bf16.mxu0 0
        %3630 = vmatpush1.bf16.xpose.msra.mxu0 %v3610
        %3631 = vmatprep.subr.bf16.mxu0 0
        %3632 = vmatpush2.bf16.xpose.msra.mxu0 0
        %3633 = vmatprep.subr.bf16.mxu0 0
        %3634 = vmatpush2.bf16.xpose.msra.mxu0 0
        %3635 = vmatprep.subr.bf16.mxu0 0
        %3636 = vmatpush2.bf16.xpose.msra.mxu0 0
        %3637 = vmatprep.subr.bf16.mxu0 0
        %3638 = vmatpush2.bf16.xpose.msra.mxu0 0
        %3639 = vmatprep.subr.bf16.mxu0 0
        %3640 = vmatpush2.bf16.xpose.msra.mxu0 0
        %3641 = vmatprep.subr.bf16.mxu0 0
        %3642 = vmatpush2.bf16.xpose.msra.mxu0 0
        %3643 = vmatprep.subr.bf16.mxu0 0
        %3644 = vmatpush2.bf16.xpose.msra.mxu0 0
        %3645 = vmatprep.subr.bf16.mxu0 0
        %3646 = vmatpush2.bf16.xpose.msra.mxu0 0
        %3647 = vmatprep.mubr.bf16.mxu0 0
        %3648 = vmatmul.mubr.bf16.gmra.mxu0 %v3607
        %v3649 = vpop.f32.mrf.mxu0
        %v3650 = vadd.f32 0.0, %v3649
        %v3651 = vpop.f32.mrf.mxu0
        %v3652 = vpop.f32.mrf.mxu0
        %v3653 = vpop.f32.mrf.mxu0
        %3654 = vdwg.mxu0
        %v3655 = vadd.f32 %v3490, %v3650
        %v3656 = vld [vmem:[%s3 + $0x14] sm:$0x1]
        %v3657 = vlaneseq
        %v3658 = vshrl.u32 %v3657, 7
        %v3659 = vsub.s32 0, %v3658
        %v3660 = vrot.slane %v3656, %v3659
        %v3661 = vadd.f32 %v3655, %v3660
        %v3662 = vadd.f32 %v2858, %v3661
        %v3663 = vld [vmem:[%s3 + $0x19] sm:$0x1]
        %v3664 = vld [vmem:[%s3 + $0x1a] sm:$0x1]
        %v3665 = vsel %vm233, %v3662, 0.0
        %3666 = vadd.xlane.f32.xlu0 %v3665
        %v3667 = vpop.xlane.xlu0 %3666
        %v3668 = vmul.f32 %v3667, %v959
        %v3669 = vsub.f32 %v3662, %v3668
        %v3670 = vmul.f32 %v3669, %v3669
        %v3671 = vsel %vm233, %v3670, 0.0
        %3672 = vadd.xlane.f32.xlu0 %v3671
        %v3673 = vpop.xlane.xlu0 %3672
        %v3674 = vmul.f32 %v3673, %v959
        %v3675 = vadd.f32 %v3674, 1e-05
        %v3676 = vrsqrt.pop %v3675
        %v3677 = vmul.f32 %v3669, %v3676
        %v3678 = vlaneseq
        %v3679 = vshrl.u32 %v3678, 7
        %v3680 = vsub.s32 0, %v3679
        %v3681 = vrot.slane %v3663, %v3680
        %v3682 = vmul.f32 %v3677, %v3681
        %v3683 = vlaneseq
        %v3684 = vshrl.u32 %v3683, 7
        %v3685 = vsub.s32 0, %v3684
        %v3686 = vrot.slane %v3664, %v3685
        %v3687 = vadd.f32 %v3682, %v3686
        %v3688 = vpack.c.bf16 %v3687, %v3687
        %v3689 = vld [vmem:[#allocation2 + $0xf0] sm:$0xf]
        %v3690 = vld [vmem:[#allocation2 + $0xf4] sm:$0xf]
        %v3691 = vld [vmem:[#allocation2 + $0xf8] sm:$0xf]
        %v3692 = vld [vmem:[#allocation2 + $0xfc] sm:$0xf]
        %v3693 = vld [vmem:[%s3 + $0x15] sm:$0x1]
        %v3694 = vlaneseq
        %v3695 = vshrl.u32 %v3694, 7
        %v3696 = vsub.s32 0, %v3695
        %v3697 = vrot.slane %v3693, %v3696
        %v3702 = vunpack.c.l.b16 %v3689
        %v3703 = vunpack.c.l.b16 %v3690
        %v3704 = vunpack.c.l.b16 %v3691
        %v3705 = vunpack.c.l.b16 %v3692
        %v3706 = vpack.c.b16 %v3703, %v3702
        %v3707 = vpack.c.b16 %v3705, %v3704
        %v3711 = vsel %vm233, %v3688, 0
        %3713 = vmatprep.subr.bf16.mxu0 0
        %3714 = vmatpush1.bf16.msra.mxu0 0
        %3715 = vmatprep.subr.bf16.mxu0 0
        %3716 = vmatpush1.bf16.msra.mxu0 0
        %3717 = vmatprep.subr.bf16.mxu0 0
        %3718 = vmatpush1.bf16.msra.mxu0 0
        %3719 = vmatprep.subr.bf16.mxu0 0
        %3720 = vmatpush1.bf16.msra.mxu0 0
        %3721 = vmatprep.subr.bf16.mxu0 0
        %3722 = vmatpush1.bf16.msra.mxu0 0
        %3723 = vmatprep.subr.bf16.mxu0 0
        %3724 = vmatpush1.bf16.msra.mxu0 0
        %3725 = vmatprep.subr.bf16.mxu0 0
        %3726 = vmatpush1.bf16.msra.mxu0 %v3707
        %3727 = vmatprep.subr.bf16.mxu0 0
        %3728 = vmatpush1.bf16.msra.mxu0 %v3706
        %3729 = vmatprep.subr.bf16.mxu0 0
        %3730 = vmatpush2.bf16.msra.mxu0 0
        %3731 = vmatprep.subr.bf16.mxu0 0
        %3732 = vmatpush2.bf16.msra.mxu0 0
        %3733 = vmatprep.subr.bf16.mxu0 0
        %3734 = vmatpush2.bf16.msra.mxu0 0
        %3735 = vmatprep.subr.bf16.mxu0 0
        %3736 = vmatpush2.bf16.msra.mxu0 0
        %3737 = vmatprep.subr.bf16.mxu0 0
        %3738 = vmatpush2.bf16.msra.mxu0 0
        %3739 = vmatprep.subr.bf16.mxu0 0
        %3740 = vmatpush2.bf16.msra.mxu0 0
        %3741 = vmatprep.subr.bf16.mxu0 0
        %3742 = vmatpush2.bf16.msra.mxu0 0
        %3743 = vmatprep.subr.bf16.mxu0 0
        %3744 = vmatpush2.bf16.msra.mxu0 0
        %3745 = vmatprep.mubr.bf16.mxu0 0
        %3746 = vmatmul.mubr.bf16.gmra.mxu0 %v3711
        %v3747 = vpop.f32.mrf.mxu0
        %v3748 = vadd.f32 %v3697, %v3747
        %v3749 = vpop.f32.mrf.mxu0
        %v3750 = vpop.f32.mrf.mxu0
        %v3751 = vpop.f32.mrf.mxu0
        %3752 = vdwg.mxu0
        %v3753 = vmax.f32 %v3748, 0.0
        %v3754 = vpack.c.bf16 %v3753, %v3753
        %v3755 = vld [vmem:[#allocation2 + $0x100] sm:$0xf]
        %v3756 = vld [vmem:[#allocation2 + $0x104] sm:$0xf]
        %v3757 = vld [vmem:[#allocation2 + $0x108] sm:$0xf]
        %v3758 = vld [vmem:[#allocation2 + $0x10c] sm:$0xf]
        %v3759 = vld [vmem:[#allocation2 + $0x110] sm:$0xf]
        %v3760 = vld [vmem:[#allocation2 + $0x114] sm:$0xf]
        %v3761 = vld [vmem:[#allocation2 + $0x118] sm:$0xf]
        %v3762 = vld [vmem:[#allocation2 + $0x11c] sm:$0xf]
        %v3763 = vld [vmem:[%s3 + $0x16] sm:$0x1]
        %v3764 = vlaneseq
        %v3765 = vshrl.u32 %v3764, 7
        %v3766 = vsub.s32 0, %v3765
        %v3767 = vrot.slane %v3763, %v3766
        %v3776 = vunpack.c.l.b16 %v3755
        %v3777 = vunpack.c.l.b16 %v3756
        %v3778 = vunpack.c.l.b16 %v3757
        %v3779 = vunpack.c.l.b16 %v3758
        %v3780 = vunpack.c.l.b16 %v3759
        %v3781 = vunpack.c.l.b16 %v3760
        %v3782 = vunpack.c.l.b16 %v3761
        %v3783 = vunpack.c.l.b16 %v3762
        %v3784 = vpack.c.b16 %v3777, %v3776
        %v3785 = vpack.c.b16 %v3779, %v3778
        %v3786 = vpack.c.b16 %v3781, %v3780
        %v3787 = vpack.c.b16 %v3783, %v3782
        %v3793 = vsel %vm1084, %v3754, 0
        %3795 = vmatprep.subr.bf16.mxu0 0
        %3796 = vmatpush1.bf16.msra.mxu0 0
        %3797 = vmatprep.subr.bf16.mxu0 0
        %3798 = vmatpush1.bf16.msra.mxu0 0
        %3799 = vmatprep.subr.bf16.mxu0 0
        %3800 = vmatpush1.bf16.msra.mxu0 0
        %3801 = vmatprep.subr.bf16.mxu0 0
        %3802 = vmatpush1.bf16.msra.mxu0 0
        %3803 = vmatprep.subr.bf16.mxu0 0
        %3804 = vmatpush1.bf16.msra.mxu0 %v3787
        %3805 = vmatprep.subr.bf16.mxu0 0
        %3806 = vmatpush1.bf16.msra.mxu0 %v3786
        %3807 = vmatprep.subr.bf16.mxu0 0
        %3808 = vmatpush1.bf16.msra.mxu0 %v3785
        %3809 = vmatprep.subr.bf16.mxu0 0
        %3810 = vmatpush1.bf16.msra.mxu0 %v3784
        %3811 = vmatprep.subr.bf16.mxu0 0
        %3812 = vmatpush2.bf16.msra.mxu0 0
        %3813 = vmatprep.subr.bf16.mxu0 0
        %3814 = vmatpush2.bf16.msra.mxu0 0
        %3815 = vmatprep.subr.bf16.mxu0 0
        %3816 = vmatpush2.bf16.msra.mxu0 0
        %3817 = vmatprep.subr.bf16.mxu0 0
        %3818 = vmatpush2.bf16.msra.mxu0 0
        %3819 = vmatprep.subr.bf16.mxu0 0
        %3820 = vmatpush2.bf16.msra.mxu0 0
        %3821 = vmatprep.subr.bf16.mxu0 0
        %3822 = vmatpush2.bf16.msra.mxu0 0
        %3823 = vmatprep.subr.bf16.mxu0 0
        %3824 = vmatpush2.bf16.msra.mxu0 0
        %3825 = vmatprep.subr.bf16.mxu0 0
        %3826 = vmatpush2.bf16.msra.mxu0 0
        %3827 = vmatprep.mubr.bf16.mxu0 0
        %3828 = vmatmul.mubr.bf16.gmra.mxu0 %v3793
        %v3829 = vpop.f32.mrf.mxu0
        %v3830 = vadd.f32 %v3767, %v3829
        %v3831 = vpop.f32.mrf.mxu0
        %v3832 = vpop.f32.mrf.mxu0
        %v3833 = vpop.f32.mrf.mxu0
        %3834 = vdwg.mxu0
        %v3835 = vadd.f32 %v3687, %v3830
        %v3836 = vld [vmem:[%s3 + $0x1b] sm:$0x1]
        %v3837 = vld [vmem:[%s3 + $0x1c] sm:$0x1]
        %v3838 = vsel %vm233, %v3835, 0.0
        %3839 = vadd.xlane.f32.xlu0 %v3838
        %v3840 = vpop.xlane.xlu0 %3839
        %v3841 = vmul.f32 %v3840, %v959
        %v3842 = vsub.f32 %v3835, %v3841
        %v3843 = vmul.f32 %v3842, %v3842
        %v3844 = vsel %vm233, %v3843, 0.0
        %3845 = vadd.xlane.f32.xlu0 %v3844
        %v3846 = vpop.xlane.xlu0 %3845
        %v3847 = vmul.f32 %v3846, %v959
        %v3848 = vadd.f32 %v3847, 1e-05
        %v3849 = vrsqrt.pop %v3848
        %v3850 = vmul.f32 %v3842, %v3849
        %v3851 = vlaneseq
        %v3852 = vshrl.u32 %v3851, 7
        %v3853 = vsub.s32 0, %v3852
        %v3854 = vrot.slane %v3836, %v3853
        %v3855 = vmul.f32 %v3850, %v3854
        %v3856 = vlaneseq
        %v3857 = vshrl.u32 %v3856, 7
        %v3858 = vsub.s32 0, %v3857
        %v3859 = vrot.slane %v3837, %v3858
        %v3860 = vadd.f32 %v3855, %v3859
        %v3861 = vpack.c.bf16 %v3860, %v3860
        %v3862 = vld [vmem:[#allocation2 + $0x120] sm:$0xf]
        %v3863 = vld [vmem:[#allocation2 + $0x124] sm:$0xf]
        %v3864 = vld [vmem:[#allocation2 + $0x128] sm:$0xf]
        %v3865 = vld [vmem:[#allocation2 + $0x12c] sm:$0xf]
        %v3866 = vld [vmem:[%s3 + $0x1d] sm:$0x1]
        %v3867 = vlaneseq
        %v3868 = vshrl.u32 %v3867, 7
        %v3869 = vsub.s32 0, %v3868
        %v3870 = vrot.slane %v3866, %v3869
        %v3875 = vunpack.c.l.b16 %v3862
        %v3876 = vunpack.c.l.b16 %v3863
        %v3877 = vunpack.c.l.b16 %v3864
        %v3878 = vunpack.c.l.b16 %v3865
        %v3879 = vpack.c.b16 %v3876, %v3875
        %v3880 = vpack.c.b16 %v3878, %v3877
        %v3884 = vsel %vm233, %v3861, 0
        %3886 = vmatprep.subr.bf16.mxu0 0
        %3887 = vmatpush1.bf16.msra.mxu0 0
        %3888 = vmatprep.subr.bf16.mxu0 0
        %3889 = vmatpush1.bf16.msra.mxu0 0
        %3890 = vmatprep.subr.bf16.mxu0 0
        %3891 = vmatpush1.bf16.msra.mxu0 0
        %3892 = vmatprep.subr.bf16.mxu0 0
        %3893 = vmatpush1.bf16.msra.mxu0 0
        %3894 = vmatprep.subr.bf16.mxu0 0
        %3895 = vmatpush1.bf16.msra.mxu0 0
        %3896 = vmatprep.subr.bf16.mxu0 0
        %3897 = vmatpush1.bf16.msra.mxu0 0
        %3898 = vmatprep.subr.bf16.mxu0 0
        %3899 = vmatpush1.bf16.msra.mxu0 %v3880
        %3900 = vmatprep.subr.bf16.mxu0 0
        %3901 = vmatpush1.bf16.msra.mxu0 %v3879
        %3902 = vmatprep.subr.bf16.mxu0 0
        %3903 = vmatpush2.bf16.msra.mxu0 0
        %3904 = vmatprep.subr.bf16.mxu0 0
        %3905 = vmatpush2.bf16.msra.mxu0 0
        %3906 = vmatprep.subr.bf16.mxu0 0
        %3907 = vmatpush2.bf16.msra.mxu0 0
        %3908 = vmatprep.subr.bf16.mxu0 0
        %3909 = vmatpush2.bf16.msra.mxu0 0
        %3910 = vmatprep.subr.bf16.mxu0 0
        %3911 = vmatpush2.bf16.msra.mxu0 0
        %3912 = vmatprep.subr.bf16.mxu0 0
        %3913 = vmatpush2.bf16.msra.mxu0 0
        %3914 = vmatprep.subr.bf16.mxu0 0
        %3915 = vmatpush2.bf16.msra.mxu0 0
        %3916 = vmatprep.subr.bf16.mxu0 0
        %3917 = vmatpush2.bf16.msra.mxu0 0
        %3918 = vmatprep.mubr.bf16.mxu0 0
        %3919 = vmatmul.mubr.bf16.gmra.mxu0 %v3884
        %v3920 = vpop.f32.mrf.mxu0
        %v3921 = vadd.f32 %v3870, %v3920
        %v3922 = vpop.f32.mrf.mxu0
        %v3923 = vpop.f32.mrf.mxu0
        %v3924 = vpop.f32.mrf.mxu0
        %3925 = vdwg.mxu0
        %v3926 = vpack.c.bf16 %v3921, %v3921
        %v3927 = vld [vmem:[#allocation2 + $0x130] sm:$0xf]
        %v3928 = vld [vmem:[#allocation2 + $0x134] sm:$0xf]
        %v3929 = vld [vmem:[#allocation2 + $0x138] sm:$0xf]
        %v3930 = vld [vmem:[#allocation2 + $0x13c] sm:$0xf]
        %3932 = vrot.lane.b32.xlu0 %v3926, 96
        %v3933 = vpop.permute.xlu0 %3932
        %v3935 = vsel %vm285, %v3926, 0
        %v3938 = vsel %vm285, %v3933, 0
        %3940 = vmatprep.subr.bf16.mxu0 0
        %3941 = vmatpush1.bf16.xpose.msra.mxu0 0
        %3942 = vmatprep.subr.bf16.mxu0 0
        %3943 = vmatpush1.bf16.xpose.msra.mxu0 0
        %3944 = vmatprep.subr.bf16.mxu0 0
        %3945 = vmatpush1.bf16.xpose.msra.mxu0 0
        %3946 = vmatprep.subr.bf16.mxu0 0
        %3947 = vmatpush1.bf16.xpose.msra.mxu0 0
        %3948 = vmatprep.subr.bf16.mxu0 0
        %3949 = vmatpush1.bf16.xpose.msra.mxu0 0
        %3950 = vmatprep.subr.bf16.mxu0 0
        %3951 = vmatpush1.bf16.xpose.msra.mxu0 0
        %3952 = vmatprep.subr.bf16.mxu0 0
        %3953 = vmatpush1.bf16.xpose.msra.mxu0 0
        %3954 = vmatprep.subr.bf16.mxu0 0
        %3955 = vmatpush1.bf16.xpose.msra.mxu0 %v3938
        %3956 = vmatprep.subr.bf16.mxu0 0
        %3957 = vmatpush2.bf16.xpose.msra.mxu0 0
        %3958 = vmatprep.subr.bf16.mxu0 0
        %3959 = vmatpush2.bf16.xpose.msra.mxu0 0
        %3960 = vmatprep.subr.bf16.mxu0 0
        %3961 = vmatpush2.bf16.xpose.msra.mxu0 0
        %3962 = vmatprep.subr.bf16.mxu0 0
        %3963 = vmatpush2.bf16.xpose.msra.mxu0 0
        %3964 = vmatprep.subr.bf16.mxu0 0
        %3965 = vmatpush2.bf16.xpose.msra.mxu0 0
        %3966 = vmatprep.subr.bf16.mxu0 0
        %3967 = vmatpush2.bf16.xpose.msra.mxu0 0
        %3968 = vmatprep.subr.bf16.mxu0 0
        %3969 = vmatpush2.bf16.xpose.msra.mxu0 0
        %3970 = vmatprep.subr.bf16.mxu0 0
        %3971 = vmatpush2.bf16.xpose.msra.mxu0 0
        %3972 = vmatprep.mubr.bf16.mxu0 0
        %3973 = vmatmul.mubr.bf16.gmra.mxu0 %v3935
        %v3974 = vpop.f32.mrf.mxu0
        %v3975 = vadd.f32 0.0, %v3974
        %v3976 = vpop.f32.mrf.mxu0
        %v3977 = vpop.f32.mrf.mxu0
        %v3978 = vpop.f32.mrf.mxu0
        %3979 = vdwg.mxu0
        %v3980 = vsel %vm285, %v3975, -inf
        %3981 = vmax.xlane.f32.xlu0 %v3980
        %v3982 = vpop.xlane.xlu0 %3981
        %v3983 = vsub.f32 %v3975, %v3982
        %v3984 = vmul.f32 %v3983, 1.442695
        %v3985 = vpow.pop %v3984
        %v3986 = vsel %vm285, %v3985, 0.0
        %3987 = vadd.xlane.f32.xlu0 %v3986
        %v3988 = vpop.xlane.xlu0 %3987
        %v3989 = vrcp.pop %v3988
        %v3990 = vmul.f32 %v3985, %v3989
        %v3991 = vpack.c.bf16 %v3990, %v3990
        %3992 = vrot.lane.b32.xlu0 %v3926, 64
        %v3993 = vpop.permute.xlu0 %3992
        %v3995 = vsel %vm285, %v3991, 0
        %v3998 = vsel %vm349, %v3993, 0
        %4000 = vmatprep.subr.bf16.mxu0 0
        %4001 = vmatpush1.bf16.msra.mxu0 0
        %4002 = vmatprep.subr.bf16.mxu0 0
        %4003 = vmatpush1.bf16.msra.mxu0 0
        %4004 = vmatprep.subr.bf16.mxu0 0
        %4005 = vmatpush1.bf16.msra.mxu0 0
        %4006 = vmatprep.subr.bf16.mxu0 0
        %4007 = vmatpush1.bf16.msra.mxu0 0
        %4008 = vmatprep.subr.bf16.mxu0 0
        %4009 = vmatpush1.bf16.msra.mxu0 0
        %4010 = vmatprep.subr.bf16.mxu0 0
        %4011 = vmatpush1.bf16.msra.mxu0 0
        %4012 = vmatprep.subr.bf16.mxu0 0
        %4013 = vmatpush1.bf16.msra.mxu0 0
        %4014 = vmatprep.subr.bf16.mxu0 0
        %4015 = vmatpush1.bf16.msra.mxu0 %v3998
        %4016 = vmatprep.subr.bf16.mxu0 0
        %4017 = vmatpush2.bf16.msra.mxu0 0
        %4018 = vmatprep.subr.bf16.mxu0 0
        %4019 = vmatpush2.bf16.msra.mxu0 0
        %4020 = vmatprep.subr.bf16.mxu0 0
        %4021 = vmatpush2.bf16.msra.mxu0 0
        %4022 = vmatprep.subr.bf16.mxu0 0
        %4023 = vmatpush2.bf16.msra.mxu0 0
        %4024 = vmatprep.subr.bf16.mxu0 0
        %4025 = vmatpush2.bf16.msra.mxu0 0
        %4026 = vmatprep.subr.bf16.mxu0 0
        %4027 = vmatpush2.bf16.msra.mxu0 0
        %4028 = vmatprep.subr.bf16.mxu0 0
        %4029 = vmatpush2.bf16.msra.mxu0 0
        %4030 = vmatprep.subr.bf16.mxu0 0
        %4031 = vmatpush2.bf16.msra.mxu0 0
        %4032 = vmatprep.mubr.bf16.mxu0 0
        %4033 = vmatmul.mubr.bf16.gmra.mxu0 %v3995
        %v4034 = vpop.f32.mrf.mxu0
        %v4035 = vadd.f32 0.0, %v4034
        %v4036 = vpop.f32.mrf.mxu0
        %v4037 = vpop.f32.mrf.mxu0
        %v4038 = vpop.f32.mrf.mxu0
        %4039 = vdwg.mxu0
        %v4040 = vpack.c.bf16 %v4035, %v4035
        %4041 = vrot.lane.b32.xlu0 %v3926, 120
        %v4042 = vpop.permute.xlu0 %4041
        %4043 = vrot.lane.b32.xlu0 %v3926, 88
        %v4044 = vpop.permute.xlu0 %4043
        %v4046 = vsel %vm285, %v4042, 0
        %v4049 = vsel %vm285, %v4044, 0
        %4051 = vmatprep.subr.bf16.mxu0 0
        %4052 = vmatpush1.bf16.xpose.msra.mxu0 0
        %4053 = vmatprep.subr.bf16.mxu0 0
        %4054 = vmatpush1.bf16.xpose.msra.mxu0 0
        %4055 = vmatprep.subr.bf16.mxu0 0
        %4056 = vmatpush1.bf16.xpose.msra.mxu0 0
        %4057 = vmatprep.subr.bf16.mxu0 0
        %4058 = vmatpush1.bf16.xpose.msra.mxu0 0
        %4059 = vmatprep.subr.bf16.mxu0 0
        %4060 = vmatpush1.bf16.xpose.msra.mxu0 0
        %4061 = vmatprep.subr.bf16.mxu0 0
        %4062 = vmatpush1.bf16.xpose.msra.mxu0 0
        %4063 = vmatprep.subr.bf16.mxu0 0
        %4064 = vmatpush1.bf16.xpose.msra.mxu0 0
        %4065 = vmatprep.subr.bf16.mxu0 0
        %4066 = vmatpush1.bf16.xpose.msra.mxu0 %v4049
        %4067 = vmatprep.subr.bf16.mxu0 0
        %4068 = vmatpush2.bf16.xpose.msra.mxu0 0
        %4069 = vmatprep.subr.bf16.mxu0 0
        %4070 = vmatpush2.bf16.xpose.msra.mxu0 0
        %4071 = vmatprep.subr.bf16.mxu0 0
        %4072 = vmatpush2.bf16.xpose.msra.mxu0 0
        %4073 = vmatprep.subr.bf16.mxu0 0
        %4074 = vmatpush2.bf16.xpose.msra.mxu0 0
        %4075 = vmatprep.subr.bf16.mxu0 0
        %4076 = vmatpush2.bf16.xpose.msra.mxu0 0
        %4077 = vmatprep.subr.bf16.mxu0 0
        %4078 = vmatpush2.bf16.xpose.msra.mxu0 0
        %4079 = vmatprep.subr.bf16.mxu0 0
        %4080 = vmatpush2.bf16.xpose.msra.mxu0 0
        %4081 = vmatprep.subr.bf16.mxu0 0
        %4082 = vmatpush2.bf16.xpose.msra.mxu0 0
        %4083 = vmatprep.mubr.bf16.mxu0 0
        %4084 = vmatmul.mubr.bf16.gmra.mxu0 %v4046
        %v4085 = vpop.f32.mrf.mxu0
        %v4086 = vadd.f32 0.0, %v4085
        %v4087 = vpop.f32.mrf.mxu0
        %v4088 = vpop.f32.mrf.mxu0
        %v4089 = vpop.f32.mrf.mxu0
        %4090 = vdwg.mxu0
        %v4091 = vsel %vm285, %v4086, -inf
        %4092 = vmax.xlane.f32.xlu0 %v4091
        %v4093 = vpop.xlane.xlu0 %4092
        %v4094 = vsub.f32 %v4086, %v4093
        %v4095 = vmul.f32 %v4094, 1.442695
        %v4096 = vpow.pop %v4095
        %v4097 = vsel %vm285, %v4096, 0.0
        %4098 = vadd.xlane.f32.xlu0 %v4097
        %v4099 = vpop.xlane.xlu0 %4098
        %v4100 = vrcp.pop %v4099
        %v4101 = vmul.f32 %v4096, %v4100
        %v4102 = vpack.c.bf16 %v4101, %v4101
        %4103 = vrot.lane.b32.xlu0 %v3926, 56
        %v4104 = vpop.permute.xlu0 %4103
        %v4106 = vsel %vm285, %v4102, 0
        %v4109 = vsel %vm349, %v4104, 0
        %4111 = vmatprep.subr.bf16.mxu0 0
        %4112 = vmatpush1.bf16.msra.mxu0 0
        %4113 = vmatprep.subr.bf16.mxu0 0
        %4114 = vmatpush1.bf16.msra.mxu0 0
        %4115 = vmatprep.subr.bf16.mxu0 0
        %4116 = vmatpush1.bf16.msra.mxu0 0
        %4117 = vmatprep.subr.bf16.mxu0 0
        %4118 = vmatpush1.bf16.msra.mxu0 0
        %4119 = vmatprep.subr.bf16.mxu0 0
        %4120 = vmatpush1.bf16.msra.mxu0 0
        %4121 = vmatprep.subr.bf16.mxu0 0
        %4122 = vmatpush1.bf16.msra.mxu0 0
        %4123 = vmatprep.subr.bf16.mxu0 0
        %4124 = vmatpush1.bf16.msra.mxu0 0
        %4125 = vmatprep.subr.bf16.mxu0 0
        %4126 = vmatpush1.bf16.msra.mxu0 %v4109
        %4127 = vmatprep.subr.bf16.mxu0 0
        %4128 = vmatpush2.bf16.msra.mxu0 0
        %4129 = vmatprep.subr.bf16.mxu0 0
        %4130 = vmatpush2.bf16.msra.mxu0 0
        %4131 = vmatprep.subr.bf16.mxu0 0
        %4132 = vmatpush2.bf16.msra.mxu0 0
        %4133 = vmatprep.subr.bf16.mxu0 0
        %4134 = vmatpush2.bf16.msra.mxu0 0
        %4135 = vmatprep.subr.bf16.mxu0 0
        %4136 = vmatpush2.bf16.msra.mxu0 0
        %4137 = vmatprep.subr.bf16.mxu0 0
        %4138 = vmatpush2.bf16.msra.mxu0 0
        %4139 = vmatprep.subr.bf16.mxu0 0
        %4140 = vmatpush2.bf16.msra.mxu0 0
        %4141 = vmatprep.subr.bf16.mxu0 0
        %4142 = vmatpush2.bf16.msra.mxu0 0
        %4143 = vmatprep.mubr.bf16.mxu0 0
        %4144 = vmatmul.mubr.bf16.gmra.mxu0 %v4106
        %v4145 = vpop.f32.mrf.mxu0
        %v4146 = vadd.f32 0.0, %v4145
        %v4147 = vpop.f32.mrf.mxu0
        %v4148 = vpop.f32.mrf.mxu0
        %v4149 = vpop.f32.mrf.mxu0
        %4150 = vdwg.mxu0
        %v4151 = vpack.c.bf16 %v4146, %v4146
        %v4156 = vunpack.c.l.b16 %v3927
        %v4157 = vunpack.c.l.b16 %v3928
        %v4158 = vunpack.c.l.b16 %v3929
        %v4159 = vunpack.c.l.b16 %v3930
        %v4160 = vpack.c.b16 %v4157, %v4156
        %v4161 = vpack.c.b16 %v4159, %v4158
        %4162 = vrot.lane.b32.xlu0 %v4160, 120
        %v4163 = vpop.permute.xlu0 %4162
        %4164 = vrot.lane.b32.xlu0 %v4161, 120
        %v4165 = vpop.permute.xlu0 %4164
        %v4167 = vsel %vm285, %v4151, 0
        %v4170 = vsel %vm285, %v4163, 0
        %v4173 = vsel %vm285, %v4165, 0
        %4175 = vmatprep.subr.bf16.mxu0 0
        %4176 = vmatpush1.bf16.xpose.msra.mxu0 0
        %4177 = vmatprep.subr.bf16.mxu0 0
        %4178 = vmatpush1.bf16.xpose.msra.mxu0 0
        %4179 = vmatprep.subr.bf16.mxu0 0
        %4180 = vmatpush1.bf16.xpose.msra.mxu0 0
        %4181 = vmatprep.subr.bf16.mxu0 0
        %4182 = vmatpush1.bf16.xpose.msra.mxu0 0
        %4183 = vmatprep.subr.bf16.mxu0 0
        %4184 = vmatpush1.bf16.xpose.msra.mxu0 0
        %4185 = vmatprep.subr.bf16.mxu0 0
        %4186 = vmatpush1.bf16.xpose.msra.mxu0 0
        %4187 = vmatprep.subr.bf16.mxu0 0
        %4188 = vmatpush1.bf16.xpose.msra.mxu0 %v4173
        %4189 = vmatprep.subr.bf16.mxu0 0
        %4190 = vmatpush1.bf16.xpose.msra.mxu0 %v4170
        %4191 = vmatprep.subr.bf16.mxu0 0
        %4192 = vmatpush2.bf16.xpose.msra.mxu0 0
        %4193 = vmatprep.subr.bf16.mxu0 0
        %4194 = vmatpush2.bf16.xpose.msra.mxu0 0
        %4195 = vmatprep.subr.bf16.mxu0 0
        %4196 = vmatpush2.bf16.xpose.msra.mxu0 0
        %4197 = vmatprep.subr.bf16.mxu0 0
        %4198 = vmatpush2.bf16.xpose.msra.mxu0 0
        %4199 = vmatprep.subr.bf16.mxu0 0
        %4200 = vmatpush2.bf16.xpose.msra.mxu0 0
        %4201 = vmatprep.subr.bf16.mxu0 0
        %4202 = vmatpush2.bf16.xpose.msra.mxu0 0
        %4203 = vmatprep.subr.bf16.mxu0 0
        %4204 = vmatpush2.bf16.xpose.msra.mxu0 0
        %4205 = vmatprep.subr.bf16.mxu0 0
        %4206 = vmatpush2.bf16.xpose.msra.mxu0 0
        %4207 = vmatprep.mubr.bf16.mxu0 0
        %4208 = vmatmul.mubr.bf16.gmra.mxu0 %v4167
        %v4209 = vpop.f32.mrf.mxu0
        %v4210 = vadd.f32 0.0, %v4209
        %v4211 = vpop.f32.mrf.mxu0
        %v4212 = vpop.f32.mrf.mxu0
        %v4213 = vpop.f32.mrf.mxu0
        %4214 = vdwg.mxu0
        %v4216 = vsel %vm285, %v4040, 0
        %v4219 = vsel %vm285, %v4160, 0
        %v4222 = vsel %vm285, %v4161, 0
        %4224 = vmatprep.subr.bf16.mxu0 0
        %4225 = vmatpush1.bf16.xpose.msra.mxu0 0
        %4226 = vmatprep.subr.bf16.mxu0 0
        %4227 = vmatpush1.bf16.xpose.msra.mxu0 0
        %4228 = vmatprep.subr.bf16.mxu0 0
        %4229 = vmatpush1.bf16.xpose.msra.mxu0 0
        %4230 = vmatprep.subr.bf16.mxu0 0
        %4231 = vmatpush1.bf16.xpose.msra.mxu0 0
        %4232 = vmatprep.subr.bf16.mxu0 0
        %4233 = vmatpush1.bf16.xpose.msra.mxu0 0
        %4234 = vmatprep.subr.bf16.mxu0 0
        %4235 = vmatpush1.bf16.xpose.msra.mxu0 0
        %4236 = vmatprep.subr.bf16.mxu0 0
        %4237 = vmatpush1.bf16.xpose.msra.mxu0 %v4222
        %4238 = vmatprep.subr.bf16.mxu0 0
        %4239 = vmatpush1.bf16.xpose.msra.mxu0 %v4219
        %4240 = vmatprep.subr.bf16.mxu0 0
        %4241 = vmatpush2.bf16.xpose.msra.mxu0 0
        %4242 = vmatprep.subr.bf16.mxu0 0
        %4243 = vmatpush2.bf16.xpose.msra.mxu0 0
        %4244 = vmatprep.subr.bf16.mxu0 0
        %4245 = vmatpush2.bf16.xpose.msra.mxu0 0
        %4246 = vmatprep.subr.bf16.mxu0 0
        %4247 = vmatpush2.bf16.xpose.msra.mxu0 0
        %4248 = vmatprep.subr.bf16.mxu0 0
        %4249 = vmatpush2.bf16.xpose.msra.mxu0 0
        %4250 = vmatprep.subr.bf16.mxu0 0
        %4251 = vmatpush2.bf16.xpose.msra.mxu0 0
        %4252 = vmatprep.subr.bf16.mxu0 0
        %4253 = vmatpush2.bf16.xpose.msra.mxu0 0
        %4254 = vmatprep.subr.bf16.mxu0 0
        %4255 = vmatpush2.bf16.xpose.msra.mxu0 0
        %4256 = vmatprep.mubr.bf16.mxu0 0
        %4257 = vmatmul.mubr.bf16.gmra.mxu0 %v4216
        %v4258 = vpop.f32.mrf.mxu0
        %v4259 = vadd.f32 %v4210, %v4258
        %v4260 = vpop.f32.mrf.mxu0
        %v4261 = vpop.f32.mrf.mxu0
        %v4262 = vpop.f32.mrf.mxu0
        %4263 = vdwg.mxu0
        %4264 = vrot.lane.b32.xlu0 %v3926, 112
        %v4265 = vpop.permute.xlu0 %4264
        %4266 = vrot.lane.b32.xlu0 %v3926, 80
        %v4267 = vpop.permute.xlu0 %4266
        %v4269 = vsel %vm285, %v4265, 0
        %v4272 = vsel %vm285, %v4267, 0
        %4274 = vmatprep.subr.bf16.mxu0 0
        %4275 = vmatpush1.bf16.xpose.msra.mxu0 0
        %4276 = vmatprep.subr.bf16.mxu0 0
        %4277 = vmatpush1.bf16.xpose.msra.mxu0 0
        %4278 = vmatprep.subr.bf16.mxu0 0
        %4279 = vmatpush1.bf16.xpose.msra.mxu0 0
        %4280 = vmatprep.subr.bf16.mxu0 0
        %4281 = vmatpush1.bf16.xpose.msra.mxu0 0
        %4282 = vmatprep.subr.bf16.mxu0 0
        %4283 = vmatpush1.bf16.xpose.msra.mxu0 0
        %4284 = vmatprep.subr.bf16.mxu0 0
        %4285 = vmatpush1.bf16.xpose.msra.mxu0 0
        %4286 = vmatprep.subr.bf16.mxu0 0
        %4287 = vmatpush1.bf16.xpose.msra.mxu0 0
        %4288 = vmatprep.subr.bf16.mxu0 0
        %4289 = vmatpush1.bf16.xpose.msra.mxu0 %v4272
        %4290 = vmatprep.subr.bf16.mxu0 0
        %4291 = vmatpush2.bf16.xpose.msra.mxu0 0
        %4292 = vmatprep.subr.bf16.mxu0 0
        %4293 = vmatpush2.bf16.xpose.msra.mxu0 0
        %4294 = vmatprep.subr.bf16.mxu0 0
        %4295 = vmatpush2.bf16.xpose.msra.mxu0 0
        %4296 = vmatprep.subr.bf16.mxu0 0
        %4297 = vmatpush2.bf16.xpose.msra.mxu0 0
        %4298 = vmatprep.subr.bf16.mxu0 0
        %4299 = vmatpush2.bf16.xpose.msra.mxu0 0
        %4300 = vmatprep.subr.bf16.mxu0 0
        %4301 = vmatpush2.bf16.xpose.msra.mxu0 0
        %4302 = vmatprep.subr.bf16.mxu0 0
        %4303 = vmatpush2.bf16.xpose.msra.mxu0 0
        %4304 = vmatprep.subr.bf16.mxu0 0
        %4305 = vmatpush2.bf16.xpose.msra.mxu0 0
        %4306 = vmatprep.mubr.bf16.mxu0 0
        %4307 = vmatmul.mubr.bf16.gmra.mxu0 %v4269
        %v4308 = vpop.f32.mrf.mxu0
        %v4309 = vadd.f32 0.0, %v4308
        %v4310 = vpop.f32.mrf.mxu0
        %v4311 = vpop.f32.mrf.mxu0
        %v4312 = vpop.f32.mrf.mxu0
        %4313 = vdwg.mxu0
        %v4314 = vsel %vm285, %v4309, -inf
        %4315 = vmax.xlane.f32.xlu0 %v4314
        %v4316 = vpop.xlane.xlu0 %4315
        %v4317 = vsub.f32 %v4309, %v4316
        %v4318 = vmul.f32 %v4317, 1.442695
        %v4319 = vpow.pop %v4318
        %v4320 = vsel %vm285, %v4319, 0.0
        %4321 = vadd.xlane.f32.xlu0 %v4320
        %v4322 = vpop.xlane.xlu0 %4321
        %v4323 = vrcp.pop %v4322
        %v4324 = vmul.f32 %v4319, %v4323
        %v4325 = vpack.c.bf16 %v4324, %v4324
        %4326 = vrot.lane.b32.xlu0 %v3926, 48
        %v4327 = vpop.permute.xlu0 %4326
        %v4329 = vsel %vm285, %v4325, 0
        %v4332 = vsel %vm349, %v4327, 0
        %4334 = vmatprep.subr.bf16.mxu0 0
        %4335 = vmatpush1.bf16.msra.mxu0 0
        %4336 = vmatprep.subr.bf16.mxu0 0
        %4337 = vmatpush1.bf16.msra.mxu0 0
        %4338 = vmatprep.subr.bf16.mxu0 0
        %4339 = vmatpush1.bf16.msra.mxu0 0
        %4340 = vmatprep.subr.bf16.mxu0 0
        %4341 = vmatpush1.bf16.msra.mxu0 0
        %4342 = vmatprep.subr.bf16.mxu0 0
        %4343 = vmatpush1.bf16.msra.mxu0 0
        %4344 = vmatprep.subr.bf16.mxu0 0
        %4345 = vmatpush1.bf16.msra.mxu0 0
        %4346 = vmatprep.subr.bf16.mxu0 0
        %4347 = vmatpush1.bf16.msra.mxu0 0
        %4348 = vmatprep.subr.bf16.mxu0 0
        %4349 = vmatpush1.bf16.msra.mxu0 %v4332
        %4350 = vmatprep.subr.bf16.mxu0 0
        %4351 = vmatpush2.bf16.msra.mxu0 0
        %4352 = vmatprep.subr.bf16.mxu0 0
        %4353 = vmatpush2.bf16.msra.mxu0 0
        %4354 = vmatprep.subr.bf16.mxu0 0
        %4355 = vmatpush2.bf16.msra.mxu0 0
        %4356 = vmatprep.subr.bf16.mxu0 0
        %4357 = vmatpush2.bf16.msra.mxu0 0
        %4358 = vmatprep.subr.bf16.mxu0 0
        %4359 = vmatpush2.bf16.msra.mxu0 0
        %4360 = vmatprep.subr.bf16.mxu0 0
        %4361 = vmatpush2.bf16.msra.mxu0 0
        %4362 = vmatprep.subr.bf16.mxu0 0
        %4363 = vmatpush2.bf16.msra.mxu0 0
        %4364 = vmatprep.subr.bf16.mxu0 0
        %4365 = vmatpush2.bf16.msra.mxu0 0
        %4366 = vmatprep.mubr.bf16.mxu0 0
        %4367 = vmatmul.mubr.bf16.gmra.mxu0 %v4329
        %v4368 = vpop.f32.mrf.mxu0
        %v4369 = vadd.f32 0.0, %v4368
        %v4370 = vpop.f32.mrf.mxu0
        %v4371 = vpop.f32.mrf.mxu0
        %v4372 = vpop.f32.mrf.mxu0
        %4373 = vdwg.mxu0
        %v4374 = vpack.c.bf16 %v4369, %v4369
        %4375 = vrot.lane.b32.xlu0 %v4160, 112
        %v4376 = vpop.permute.xlu0 %4375
        %4377 = vrot.lane.b32.xlu0 %v4161, 112
        %v4378 = vpop.permute.xlu0 %4377
        %v4380 = vsel %vm285, %v4374, 0
        %v4383 = vsel %vm285, %v4376, 0
        %v4386 = vsel %vm285, %v4378, 0
        %4388 = vmatprep.subr.bf16.mxu0 0
        %4389 = vmatpush1.bf16.xpose.msra.mxu0 0
        %4390 = vmatprep.subr.bf16.mxu0 0
        %4391 = vmatpush1.bf16.xpose.msra.mxu0 0
        %4392 = vmatprep.subr.bf16.mxu0 0
        %4393 = vmatpush1.bf16.xpose.msra.mxu0 0
        %4394 = vmatprep.subr.bf16.mxu0 0
        %4395 = vmatpush1.bf16.xpose.msra.mxu0 0
        %4396 = vmatprep.subr.bf16.mxu0 0
        %4397 = vmatpush1.bf16.xpose.msra.mxu0 0
        %4398 = vmatprep.subr.bf16.mxu0 0
        %4399 = vmatpush1.bf16.xpose.msra.mxu0 0
        %4400 = vmatprep.subr.bf16.mxu0 0
        %4401 = vmatpush1.bf16.xpose.msra.mxu0 %v4386
        %4402 = vmatprep.subr.bf16.mxu0 0
        %4403 = vmatpush1.bf16.xpose.msra.mxu0 %v4383
        %4404 = vmatprep.subr.bf16.mxu0 0
        %4405 = vmatpush2.bf16.xpose.msra.mxu0 0
        %4406 = vmatprep.subr.bf16.mxu0 0
        %4407 = vmatpush2.bf16.xpose.msra.mxu0 0
        %4408 = vmatprep.subr.bf16.mxu0 0
        %4409 = vmatpush2.bf16.xpose.msra.mxu0 0
        %4410 = vmatprep.subr.bf16.mxu0 0
        %4411 = vmatpush2.bf16.xpose.msra.mxu0 0
        %4412 = vmatprep.subr.bf16.mxu0 0
        %4413 = vmatpush2.bf16.xpose.msra.mxu0 0
        %4414 = vmatprep.subr.bf16.mxu0 0
        %4415 = vmatpush2.bf16.xpose.msra.mxu0 0
        %4416 = vmatprep.subr.bf16.mxu0 0
        %4417 = vmatpush2.bf16.xpose.msra.mxu0 0
        %4418 = vmatprep.subr.bf16.mxu0 0
        %4419 = vmatpush2.bf16.xpose.msra.mxu0 0
        %4420 = vmatprep.mubr.bf16.mxu0 0
        %4421 = vmatmul.mubr.bf16.gmra.mxu0 %v4380
        %v4422 = vpop.f32.mrf.mxu0
        %v4423 = vadd.f32 0.0, %v4422
        %v4424 = vpop.f32.mrf.mxu0
        %v4425 = vpop.f32.mrf.mxu0
        %v4426 = vpop.f32.mrf.mxu0
        %4427 = vdwg.mxu0
        %v4428 = vadd.f32 %v4259, %v4423
        %4429 = vrot.lane.b32.xlu0 %v3926, 104
        %v4430 = vpop.permute.xlu0 %4429
        %4431 = vrot.lane.b32.xlu0 %v3926, 72
        %v4432 = vpop.permute.xlu0 %4431
        %v4434 = vsel %vm285, %v4430, 0
        %v4437 = vsel %vm285, %v4432, 0
        %4439 = vmatprep.subr.bf16.mxu0 0
        %4440 = vmatpush1.bf16.xpose.msra.mxu0 0
        %4441 = vmatprep.subr.bf16.mxu0 0
        %4442 = vmatpush1.bf16.xpose.msra.mxu0 0
        %4443 = vmatprep.subr.bf16.mxu0 0
        %4444 = vmatpush1.bf16.xpose.msra.mxu0 0
        %4445 = vmatprep.subr.bf16.mxu0 0
        %4446 = vmatpush1.bf16.xpose.msra.mxu0 0
        %4447 = vmatprep.subr.bf16.mxu0 0
        %4448 = vmatpush1.bf16.xpose.msra.mxu0 0
        %4449 = vmatprep.subr.bf16.mxu0 0
        %4450 = vmatpush1.bf16.xpose.msra.mxu0 0
        %4451 = vmatprep.subr.bf16.mxu0 0
        %4452 = vmatpush1.bf16.xpose.msra.mxu0 0
        %4453 = vmatprep.subr.bf16.mxu0 0
        %4454 = vmatpush1.bf16.xpose.msra.mxu0 %v4437
        %4455 = vmatprep.subr.bf16.mxu0 0
        %4456 = vmatpush2.bf16.xpose.msra.mxu0 0
        %4457 = vmatprep.subr.bf16.mxu0 0
        %4458 = vmatpush2.bf16.xpose.msra.mxu0 0
        %4459 = vmatprep.subr.bf16.mxu0 0
        %4460 = vmatpush2.bf16.xpose.msra.mxu0 0
        %4461 = vmatprep.subr.bf16.mxu0 0
        %4462 = vmatpush2.bf16.xpose.msra.mxu0 0
        %4463 = vmatprep.subr.bf16.mxu0 0
        %4464 = vmatpush2.bf16.xpose.msra.mxu0 0
        %4465 = vmatprep.subr.bf16.mxu0 0
        %4466 = vmatpush2.bf16.xpose.msra.mxu0 0
        %4467 = vmatprep.subr.bf16.mxu0 0
        %4468 = vmatpush2.bf16.xpose.msra.mxu0 0
        %4469 = vmatprep.subr.bf16.mxu0 0
        %4470 = vmatpush2.bf16.xpose.msra.mxu0 0
        %4471 = vmatprep.mubr.bf16.mxu0 0
        %4472 = vmatmul.mubr.bf16.gmra.mxu0 %v4434
        %v4473 = vpop.f32.mrf.mxu0
        %v4474 = vadd.f32 0.0, %v4473
        %v4475 = vpop.f32.mrf.mxu0
        %v4476 = vpop.f32.mrf.mxu0
        %v4477 = vpop.f32.mrf.mxu0
        %4478 = vdwg.mxu0
        %v4479 = vsel %vm285, %v4474, -inf
        %4480 = vmax.xlane.f32.xlu0 %v4479
        %v4481 = vpop.xlane.xlu0 %4480
        %v4482 = vsub.f32 %v4474, %v4481
        %v4483 = vmul.f32 %v4482, 1.442695
        %v4484 = vpow.pop %v4483
        %v4485 = vsel %vm285, %v4484, 0.0
        %4486 = vadd.xlane.f32.xlu0 %v4485
        %v4487 = vpop.xlane.xlu0 %4486
        %v4488 = vrcp.pop %v4487
        %v4489 = vmul.f32 %v4484, %v4488
        %v4490 = vpack.c.bf16 %v4489, %v4489
        %4491 = vrot.lane.b32.xlu0 %v3926, 40
        %v4492 = vpop.permute.xlu0 %4491
        %v4494 = vsel %vm285, %v4490, 0
        %v4497 = vsel %vm349, %v4492, 0
        %4499 = vmatprep.subr.bf16.mxu0 0
        %4500 = vmatpush1.bf16.msra.mxu0 0
        %4501 = vmatprep.subr.bf16.mxu0 0
        %4502 = vmatpush1.bf16.msra.mxu0 0
        %4503 = vmatprep.subr.bf16.mxu0 0
        %4504 = vmatpush1.bf16.msra.mxu0 0
        %4505 = vmatprep.subr.bf16.mxu0 0
        %4506 = vmatpush1.bf16.msra.mxu0 0
        %4507 = vmatprep.subr.bf16.mxu0 0
        %4508 = vmatpush1.bf16.msra.mxu0 0
        %4509 = vmatprep.subr.bf16.mxu0 0
        %4510 = vmatpush1.bf16.msra.mxu0 0
        %4511 = vmatprep.subr.bf16.mxu0 0
        %4512 = vmatpush1.bf16.msra.mxu0 0
        %4513 = vmatprep.subr.bf16.mxu0 0
        %4514 = vmatpush1.bf16.msra.mxu0 %v4497
        %4515 = vmatprep.subr.bf16.mxu0 0
        %4516 = vmatpush2.bf16.msra.mxu0 0
        %4517 = vmatprep.subr.bf16.mxu0 0
        %4518 = vmatpush2.bf16.msra.mxu0 0
        %4519 = vmatprep.subr.bf16.mxu0 0
        %4520 = vmatpush2.bf16.msra.mxu0 0
        %4521 = vmatprep.subr.bf16.mxu0 0
        %4522 = vmatpush2.bf16.msra.mxu0 0
        %4523 = vmatprep.subr.bf16.mxu0 0
        %4524 = vmatpush2.bf16.msra.mxu0 0
        %4525 = vmatprep.subr.bf16.mxu0 0
        %4526 = vmatpush2.bf16.msra.mxu0 0
        %4527 = vmatprep.subr.bf16.mxu0 0
        %4528 = vmatpush2.bf16.msra.mxu0 0
        %4529 = vmatprep.subr.bf16.mxu0 0
        %4530 = vmatpush2.bf16.msra.mxu0 0
        %4531 = vmatprep.mubr.bf16.mxu0 0
        %4532 = vmatmul.mubr.bf16.gmra.mxu0 %v4494
        %v4533 = vpop.f32.mrf.mxu0
        %v4534 = vadd.f32 0.0, %v4533
        %v4535 = vpop.f32.mrf.mxu0
        %v4536 = vpop.f32.mrf.mxu0
        %v4537 = vpop.f32.mrf.mxu0
        %4538 = vdwg.mxu0
        %v4539 = vpack.c.bf16 %v4534, %v4534
        %4540 = vrot.lane.b32.xlu0 %v4160, 104
        %v4541 = vpop.permute.xlu0 %4540
        %4542 = vrot.lane.b32.xlu0 %v4161, 104
        %v4543 = vpop.permute.xlu0 %4542
        %v4545 = vsel %vm285, %v4539, 0
        %v4548 = vsel %vm285, %v4541, 0
        %v4551 = vsel %vm285, %v4543, 0
        %4553 = vmatprep.subr.bf16.mxu0 0
        %4554 = vmatpush1.bf16.xpose.msra.mxu0 0
        %4555 = vmatprep.subr.bf16.mxu0 0
        %4556 = vmatpush1.bf16.xpose.msra.mxu0 0
        %4557 = vmatprep.subr.bf16.mxu0 0
        %4558 = vmatpush1.bf16.xpose.msra.mxu0 0
        %4559 = vmatprep.subr.bf16.mxu0 0
        %4560 = vmatpush1.bf16.xpose.msra.mxu0 0
        %4561 = vmatprep.subr.bf16.mxu0 0
        %4562 = vmatpush1.bf16.xpose.msra.mxu0 0
        %4563 = vmatprep.subr.bf16.mxu0 0
        %4564 = vmatpush1.bf16.xpose.msra.mxu0 0
        %4565 = vmatprep.subr.bf16.mxu0 0
        %4566 = vmatpush1.bf16.xpose.msra.mxu0 %v4551
        %4567 = vmatprep.subr.bf16.mxu0 0
        %4568 = vmatpush1.bf16.xpose.msra.mxu0 %v4548
        %4569 = vmatprep.subr.bf16.mxu0 0
        %4570 = vmatpush2.bf16.xpose.msra.mxu0 0
        %4571 = vmatprep.subr.bf16.mxu0 0
        %4572 = vmatpush2.bf16.xpose.msra.mxu0 0
        %4573 = vmatprep.subr.bf16.mxu0 0
        %4574 = vmatpush2.bf16.xpose.msra.mxu0 0
        %4575 = vmatprep.subr.bf16.mxu0 0
        %4576 = vmatpush2.bf16.xpose.msra.mxu0 0
        %4577 = vmatprep.subr.bf16.mxu0 0
        %4578 = vmatpush2.bf16.xpose.msra.mxu0 0
        %4579 = vmatprep.subr.bf16.mxu0 0
        %4580 = vmatpush2.bf16.xpose.msra.mxu0 0
        %4581 = vmatprep.subr.bf16.mxu0 0
        %4582 = vmatpush2.bf16.xpose.msra.mxu0 0
        %4583 = vmatprep.subr.bf16.mxu0 0
        %4584 = vmatpush2.bf16.xpose.msra.mxu0 0
        %4585 = vmatprep.mubr.bf16.mxu0 0
        %4586 = vmatmul.mubr.bf16.gmra.mxu0 %v4545
        %v4587 = vpop.f32.mrf.mxu0
        %v4588 = vadd.f32 0.0, %v4587
        %v4589 = vpop.f32.mrf.mxu0
        %v4590 = vpop.f32.mrf.mxu0
        %v4591 = vpop.f32.mrf.mxu0
        %4592 = vdwg.mxu0
        %v4593 = vadd.f32 %v4428, %v4588
        %v4594 = vld [vmem:[%s3 + $0x1e] sm:$0x1]
        %v4595 = vlaneseq
        %v4596 = vshrl.u32 %v4595, 7
        %v4597 = vsub.s32 0, %v4596
        %v4598 = vrot.slane %v4594, %v4597
        %v4599 = vadd.f32 %v4593, %v4598
        %v4600 = vadd.f32 %v3860, %v4599
        %v4601 = vld [vmem:[%s3 + $0x24] sm:$0x1]
        %v4602 = vld [vmem:[%s3 + $0x25] sm:$0x1]
        %v4603 = vsel %vm233, %v4600, 0.0
        %4604 = vadd.xlane.f32.xlu0 %v4603
        %v4605 = vpop.xlane.xlu0 %4604
        %v4606 = vmul.f32 %v4605, %v959
        %v4607 = vsub.f32 %v4600, %v4606
        %v4608 = vmul.f32 %v4607, %v4607
        %v4609 = vsel %vm233, %v4608, 0.0
        %4610 = vadd.xlane.f32.xlu0 %v4609
        %v4611 = vpop.xlane.xlu0 %4610
        %v4612 = vmul.f32 %v4611, %v959
        %v4613 = vadd.f32 %v4612, 1e-05
        %v4614 = vrsqrt.pop %v4613
        %v4615 = vmul.f32 %v4607, %v4614
        %v4616 = vlaneseq
        %v4617 = vshrl.u32 %v4616, 7
        %v4618 = vsub.s32 0, %v4617
        %v4619 = vrot.slane %v4601, %v4618
        %v4620 = vmul.f32 %v4615, %v4619
        %v4621 = vlaneseq
        %v4622 = vshrl.u32 %v4621, 7
        %v4623 = vsub.s32 0, %v4622
        %v4624 = vrot.slane %v4602, %v4623
        %v4625 = vadd.f32 %v4620, %v4624
        %v4626 = vpack.c.bf16 %v4625, %v4625
        %v4627 = vld [vmem:[#allocation2 + $0x140] sm:$0xf]
        %v4628 = vld [vmem:[#allocation2 + $0x144] sm:$0xf]
        %v4629 = vld [vmem:[#allocation2 + $0x148] sm:$0xf]
        %v4630 = vld [vmem:[#allocation2 + $0x14c] sm:$0xf]
        %v4631 = vld [vmem:[%s3 + $0x1f] sm:$0x1]
        %v4632 = vlaneseq
        %v4633 = vshrl.u32 %v4632, 7
        %v4634 = vsub.s32 0, %v4633
        %v4635 = vrot.slane %v4631, %v4634
        %v4640 = vunpack.c.l.b16 %v4627
        %v4641 = vunpack.c.l.b16 %v4628
        %v4642 = vunpack.c.l.b16 %v4629
        %v4643 = vunpack.c.l.b16 %v4630
        %v4644 = vpack.c.b16 %v4641, %v4640
        %v4645 = vpack.c.b16 %v4643, %v4642
        %v4649 = vsel %vm233, %v4626, 0
        %4651 = vmatprep.subr.bf16.mxu0 0
        %4652 = vmatpush1.bf16.msra.mxu0 0
        %4653 = vmatprep.subr.bf16.mxu0 0
        %4654 = vmatpush1.bf16.msra.mxu0 0
        %4655 = vmatprep.subr.bf16.mxu0 0
        %4656 = vmatpush1.bf16.msra.mxu0 0
        %4657 = vmatprep.subr.bf16.mxu0 0
        %4658 = vmatpush1.bf16.msra.mxu0 0
        %4659 = vmatprep.subr.bf16.mxu0 0
        %4660 = vmatpush1.bf16.msra.mxu0 0
        %4661 = vmatprep.subr.bf16.mxu0 0
        %4662 = vmatpush1.bf16.msra.mxu0 0
        %4663 = vmatprep.subr.bf16.mxu0 0
        %4664 = vmatpush1.bf16.msra.mxu0 %v4645
        %4665 = vmatprep.subr.bf16.mxu0 0
        %4666 = vmatpush1.bf16.msra.mxu0 %v4644
        %4667 = vmatprep.subr.bf16.mxu0 0
        %4668 = vmatpush2.bf16.msra.mxu0 0
        %4669 = vmatprep.subr.bf16.mxu0 0
        %4670 = vmatpush2.bf16.msra.mxu0 0
        %4671 = vmatprep.subr.bf16.mxu0 0
        %4672 = vmatpush2.bf16.msra.mxu0 0
        %4673 = vmatprep.subr.bf16.mxu0 0
        %4674 = vmatpush2.bf16.msra.mxu0 0
        %4675 = vmatprep.subr.bf16.mxu0 0
        %4676 = vmatpush2.bf16.msra.mxu0 0
        %4677 = vmatprep.subr.bf16.mxu0 0
        %4678 = vmatpush2.bf16.msra.mxu0 0
        %4679 = vmatprep.subr.bf16.mxu0 0
        %4680 = vmatpush2.bf16.msra.mxu0 0
        %4681 = vmatprep.subr.bf16.mxu0 0
        %4682 = vmatpush2.bf16.msra.mxu0 0
        %4683 = vmatprep.mubr.bf16.mxu0 0
        %4684 = vmatmul.mubr.bf16.gmra.mxu0 %v4649
        %v4685 = vpop.f32.mrf.mxu0
        %v4686 = vadd.f32 %v4635, %v4685
        %v4687 = vpop.f32.mrf.mxu0
        %v4688 = vpop.f32.mrf.mxu0
        %v4689 = vpop.f32.mrf.mxu0
        %4690 = vdwg.mxu0
        %v4691 = vpack.c.bf16 %v4686, %v4686
        %v4692 = vld [vmem:[#allocation2 + $0x150] sm:$0xf]
        %v4693 = vld [vmem:[#allocation2 + $0x154] sm:$0xf]
        %v4694 = vld [vmem:[#allocation2 + $0x158] sm:$0xf]
        %v4695 = vld [vmem:[#allocation2 + $0x15c] sm:$0xf]
        %v4696 = vld [vmem:[%s3 + $0x20] sm:$0x1]
        %v4697 = vlaneseq
        %v4698 = vshrl.u32 %v4697, 7
        %v4699 = vsub.s32 0, %v4698
        %v4700 = vrot.slane %v4696, %v4699
        %v4705 = vunpack.c.l.b16 %v4692
        %v4706 = vunpack.c.l.b16 %v4693
        %v4707 = vunpack.c.l.b16 %v4694
        %v4708 = vunpack.c.l.b16 %v4695
        %v4709 = vpack.c.b16 %v4706, %v4705
        %v4710 = vpack.c.b16 %v4708, %v4707
        %4713 = vmatprep.subr.bf16.mxu0 0
        %4714 = vmatpush1.bf16.msra.mxu0 0
        %4715 = vmatprep.subr.bf16.mxu0 0
        %4716 = vmatpush1.bf16.msra.mxu0 0
        %4717 = vmatprep.subr.bf16.mxu0 0
        %4718 = vmatpush1.bf16.msra.mxu0 0
        %4719 = vmatprep.subr.bf16.mxu0 0
        %4720 = vmatpush1.bf16.msra.mxu0 0
        %4721 = vmatprep.subr.bf16.mxu0 0
        %4722 = vmatpush1.bf16.msra.mxu0 0
        %4723 = vmatprep.subr.bf16.mxu0 0
        %4724 = vmatpush1.bf16.msra.mxu0 0
        %4725 = vmatprep.subr.bf16.mxu0 0
        %4726 = vmatpush1.bf16.msra.mxu0 %v4710
        %4727 = vmatprep.subr.bf16.mxu0 0
        %4728 = vmatpush1.bf16.msra.mxu0 %v4709
        %4729 = vmatprep.subr.bf16.mxu0 0
        %4730 = vmatpush2.bf16.msra.mxu0 0
        %4731 = vmatprep.subr.bf16.mxu0 0
        %4732 = vmatpush2.bf16.msra.mxu0 0
        %4733 = vmatprep.subr.bf16.mxu0 0
        %4734 = vmatpush2.bf16.msra.mxu0 0
        %4735 = vmatprep.subr.bf16.mxu0 0
        %4736 = vmatpush2.bf16.msra.mxu0 0
        %4737 = vmatprep.subr.bf16.mxu0 0
        %4738 = vmatpush2.bf16.msra.mxu0 0
        %4739 = vmatprep.subr.bf16.mxu0 0
        %4740 = vmatpush2.bf16.msra.mxu0 0
        %4741 = vmatprep.subr.bf16.mxu0 0
        %4742 = vmatpush2.bf16.msra.mxu0 0
        %4743 = vmatprep.subr.bf16.mxu0 0
        %4744 = vmatpush2.bf16.msra.mxu0 0
        %4745 = vmatprep.mubr.bf16.mxu0 0
        %4746 = vmatmul.mubr.bf16.gmra.mxu0 %v2947
        %v4747 = vpop.f32.mrf.mxu0
        %v4748 = vadd.f32 %v4700, %v4747
        %v4749 = vpop.f32.mrf.mxu0
        %v4750 = vpop.f32.mrf.mxu0
        %v4751 = vpop.f32.mrf.mxu0
        %4752 = vdwg.mxu0
        %v4753 = vpack.c.bf16 %v4748, %v4748
        %v4754 = vld [vmem:[#allocation2 + $0x160] sm:$0xf]
        %v4755 = vld [vmem:[#allocation2 + $0x164] sm:$0xf]
        %v4756 = vld [vmem:[#allocation2 + $0x168] sm:$0xf]
        %v4757 = vld [vmem:[#allocation2 + $0x16c] sm:$0xf]
        %v4759 = vsel %vm285, %v4691, 0
        %v4762 = vsel %vm285, %v4753, 0
        %4764 = vmatprep.subr.bf16.mxu0 0
        %4765 = vmatpush1.bf16.xpose.msra.mxu0 0
        %4766 = vmatprep.subr.bf16.mxu0 0
        %4767 = vmatpush1.bf16.xpose.msra.mxu0 0
        %4768 = vmatprep.subr.bf16.mxu0 0
        %4769 = vmatpush1.bf16.xpose.msra.mxu0 0
        %4770 = vmatprep.subr.bf16.mxu0 0
        %4771 = vmatpush1.bf16.xpose.msra.mxu0 0
        %4772 = vmatprep.subr.bf16.mxu0 0
        %4773 = vmatpush1.bf16.xpose.msra.mxu0 0
        %4774 = vmatprep.subr.bf16.mxu0 0
        %4775 = vmatpush1.bf16.xpose.msra.mxu0 0
        %4776 = vmatprep.subr.bf16.mxu0 0
        %4777 = vmatpush1.bf16.xpose.msra.mxu0 0
        %4778 = vmatprep.subr.bf16.mxu0 0
        %4779 = vmatpush1.bf16.xpose.msra.mxu0 %v4762
        %4780 = vmatprep.subr.bf16.mxu0 0
        %4781 = vmatpush2.bf16.xpose.msra.mxu0 0
        %4782 = vmatprep.subr.bf16.mxu0 0
        %4783 = vmatpush2.bf16.xpose.msra.mxu0 0
        %4784 = vmatprep.subr.bf16.mxu0 0
        %4785 = vmatpush2.bf16.xpose.msra.mxu0 0
        %4786 = vmatprep.subr.bf16.mxu0 0
        %4787 = vmatpush2.bf16.xpose.msra.mxu0 0
        %4788 = vmatprep.subr.bf16.mxu0 0
        %4789 = vmatpush2.bf16.xpose.msra.mxu0 0
        %4790 = vmatprep.subr.bf16.mxu0 0
        %4791 = vmatpush2.bf16.xpose.msra.mxu0 0
        %4792 = vmatprep.subr.bf16.mxu0 0
        %4793 = vmatpush2.bf16.xpose.msra.mxu0 0
        %4794 = vmatprep.subr.bf16.mxu0 0
        %4795 = vmatpush2.bf16.xpose.msra.mxu0 0
        %4796 = vmatprep.mubr.bf16.mxu0 0
        %4797 = vmatmul.mubr.bf16.gmra.mxu0 %v4759
        %v4798 = vpop.f32.mrf.mxu0
        %v4799 = vadd.f32 0.0, %v4798
        %v4800 = vpop.f32.mrf.mxu0
        %v4801 = vpop.f32.mrf.mxu0
        %v4802 = vpop.f32.mrf.mxu0
        %4803 = vdwg.mxu0
        %v4804 = vsel %vm285, %v4799, -inf
        %4805 = vmax.xlane.f32.xlu0 %v4804
        %v4806 = vpop.xlane.xlu0 %4805
        %v4807 = vsub.f32 %v4799, %v4806
        %v4808 = vmul.f32 %v4807, 1.442695
        %v4809 = vpow.pop %v4808
        %v4810 = vsel %vm285, %v4809, 0.0
        %4811 = vadd.xlane.f32.xlu0 %v4810
        %v4812 = vpop.xlane.xlu0 %4811
        %v4813 = vrcp.pop %v4812
        %v4814 = vmul.f32 %v4809, %v4813
        %v4815 = vpack.c.bf16 %v4814, %v4814
        %4817 = vrot.lane.b32.xlu0 %v4753, 96
        %v4818 = vpop.permute.xlu0 %4817
        %v4820 = vsel %vm285, %v4815, 0
        %v4823 = vsel %vm349, %v4818, 0
        %4825 = vmatprep.subr.bf16.mxu0 0
        %4826 = vmatpush1.bf16.msra.mxu0 0
        %4827 = vmatprep.subr.bf16.mxu0 0
        %4828 = vmatpush1.bf16.msra.mxu0 0
        %4829 = vmatprep.subr.bf16.mxu0 0
        %4830 = vmatpush1.bf16.msra.mxu0 0
        %4831 = vmatprep.subr.bf16.mxu0 0
        %4832 = vmatpush1.bf16.msra.mxu0 0
        %4833 = vmatprep.subr.bf16.mxu0 0
        %4834 = vmatpush1.bf16.msra.mxu0 0
        %4835 = vmatprep.subr.bf16.mxu0 0
        %4836 = vmatpush1.bf16.msra.mxu0 0
        %4837 = vmatprep.subr.bf16.mxu0 0
        %4838 = vmatpush1.bf16.msra.mxu0 0
        %4839 = vmatprep.subr.bf16.mxu0 0
        %4840 = vmatpush1.bf16.msra.mxu0 %v4823
        %4841 = vmatprep.subr.bf16.mxu0 0
        %4842 = vmatpush2.bf16.msra.mxu0 0
        %4843 = vmatprep.subr.bf16.mxu0 0
        %4844 = vmatpush2.bf16.msra.mxu0 0
        %4845 = vmatprep.subr.bf16.mxu0 0
        %4846 = vmatpush2.bf16.msra.mxu0 0
        %4847 = vmatprep.subr.bf16.mxu0 0
        %4848 = vmatpush2.bf16.msra.mxu0 0
        %4849 = vmatprep.subr.bf16.mxu0 0
        %4850 = vmatpush2.bf16.msra.mxu0 0
        %4851 = vmatprep.subr.bf16.mxu0 0
        %4852 = vmatpush2.bf16.msra.mxu0 0
        %4853 = vmatprep.subr.bf16.mxu0 0
        %4854 = vmatpush2.bf16.msra.mxu0 0
        %4855 = vmatprep.subr.bf16.mxu0 0
        %4856 = vmatpush2.bf16.msra.mxu0 0
        %4857 = vmatprep.mubr.bf16.mxu0 0
        %4858 = vmatmul.mubr.bf16.gmra.mxu0 %v4820
        %v4859 = vpop.f32.mrf.mxu0
        %v4860 = vadd.f32 0.0, %v4859
        %v4861 = vpop.f32.mrf.mxu0
        %v4862 = vpop.f32.mrf.mxu0
        %v4863 = vpop.f32.mrf.mxu0
        %4864 = vdwg.mxu0
        %v4865 = vpack.c.bf16 %v4860, %v4860
        %4867 = vrot.lane.b32.xlu0 %v4691, 120
        %v4868 = vpop.permute.xlu0 %4867
        %4869 = vrot.lane.b32.xlu0 %v4753, 120
        %v4870 = vpop.permute.xlu0 %4869
        %v4872 = vsel %vm285, %v4868, 0
        %v4875 = vsel %vm285, %v4870, 0
        %4877 = vmatprep.subr.bf16.mxu0 0
        %4878 = vmatpush1.bf16.xpose.msra.mxu0 0
        %4879 = vmatprep.subr.bf16.mxu0 0
        %4880 = vmatpush1.bf16.xpose.msra.mxu0 0
        %4881 = vmatprep.subr.bf16.mxu0 0
        %4882 = vmatpush1.bf16.xpose.msra.mxu0 0
        %4883 = vmatprep.subr.bf16.mxu0 0
        %4884 = vmatpush1.bf16.xpose.msra.mxu0 0
        %4885 = vmatprep.subr.bf16.mxu0 0
        %4886 = vmatpush1.bf16.xpose.msra.mxu0 0
        %4887 = vmatprep.subr.bf16.mxu0 0
        %4888 = vmatpush1.bf16.xpose.msra.mxu0 0
        %4889 = vmatprep.subr.bf16.mxu0 0
        %4890 = vmatpush1.bf16.xpose.msra.mxu0 0
        %4891 = vmatprep.subr.bf16.mxu0 0
        %4892 = vmatpush1.bf16.xpose.msra.mxu0 %v4875
        %4893 = vmatprep.subr.bf16.mxu0 0
        %4894 = vmatpush2.bf16.xpose.msra.mxu0 0
        %4895 = vmatprep.subr.bf16.mxu0 0
        %4896 = vmatpush2.bf16.xpose.msra.mxu0 0
        %4897 = vmatprep.subr.bf16.mxu0 0
        %4898 = vmatpush2.bf16.xpose.msra.mxu0 0
        %4899 = vmatprep.subr.bf16.mxu0 0
        %4900 = vmatpush2.bf16.xpose.msra.mxu0 0
        %4901 = vmatprep.subr.bf16.mxu0 0
        %4902 = vmatpush2.bf16.xpose.msra.mxu0 0
        %4903 = vmatprep.subr.bf16.mxu0 0
        %4904 = vmatpush2.bf16.xpose.msra.mxu0 0
        %4905 = vmatprep.subr.bf16.mxu0 0
        %4906 = vmatpush2.bf16.xpose.msra.mxu0 0
        %4907 = vmatprep.subr.bf16.mxu0 0
        %4908 = vmatpush2.bf16.xpose.msra.mxu0 0
        %4909 = vmatprep.mubr.bf16.mxu0 0
        %4910 = vmatmul.mubr.bf16.gmra.mxu0 %v4872
        %v4911 = vpop.f32.mrf.mxu0
        %v4912 = vadd.f32 0.0, %v4911
        %v4913 = vpop.f32.mrf.mxu0
        %v4914 = vpop.f32.mrf.mxu0
        %v4915 = vpop.f32.mrf.mxu0
        %4916 = vdwg.mxu0
        %v4917 = vsel %vm285, %v4912, -inf
        %4918 = vmax.xlane.f32.xlu0 %v4917
        %v4919 = vpop.xlane.xlu0 %4918
        %v4920 = vsub.f32 %v4912, %v4919
        %v4921 = vmul.f32 %v4920, 1.442695
        %v4922 = vpow.pop %v4921
        %v4923 = vsel %vm285, %v4922, 0.0
        %4924 = vadd.xlane.f32.xlu0 %v4923
        %v4925 = vpop.xlane.xlu0 %4924
        %v4926 = vrcp.pop %v4925
        %v4927 = vmul.f32 %v4922, %v4926
        %v4928 = vpack.c.bf16 %v4927, %v4927
        %4929 = vrot.lane.b32.xlu0 %v4753, 88
        %v4930 = vpop.permute.xlu0 %4929
        %v4932 = vsel %vm285, %v4928, 0
        %v4935 = vsel %vm349, %v4930, 0
        %4937 = vmatprep.subr.bf16.mxu0 0
        %4938 = vmatpush1.bf16.msra.mxu0 0
        %4939 = vmatprep.subr.bf16.mxu0 0
        %4940 = vmatpush1.bf16.msra.mxu0 0
        %4941 = vmatprep.subr.bf16.mxu0 0
        %4942 = vmatpush1.bf16.msra.mxu0 0
        %4943 = vmatprep.subr.bf16.mxu0 0
        %4944 = vmatpush1.bf16.msra.mxu0 0
        %4945 = vmatprep.subr.bf16.mxu0 0
        %4946 = vmatpush1.bf16.msra.mxu0 0
        %4947 = vmatprep.subr.bf16.mxu0 0
        %4948 = vmatpush1.bf16.msra.mxu0 0
        %4949 = vmatprep.subr.bf16.mxu0 0
        %4950 = vmatpush1.bf16.msra.mxu0 0
        %4951 = vmatprep.subr.bf16.mxu0 0
        %4952 = vmatpush1.bf16.msra.mxu0 %v4935
        %4953 = vmatprep.subr.bf16.mxu0 0
        %4954 = vmatpush2.bf16.msra.mxu0 0
        %4955 = vmatprep.subr.bf16.mxu0 0
        %4956 = vmatpush2.bf16.msra.mxu0 0
        %4957 = vmatprep.subr.bf16.mxu0 0
        %4958 = vmatpush2.bf16.msra.mxu0 0
        %4959 = vmatprep.subr.bf16.mxu0 0
        %4960 = vmatpush2.bf16.msra.mxu0 0
        %4961 = vmatprep.subr.bf16.mxu0 0
        %4962 = vmatpush2.bf16.msra.mxu0 0
        %4963 = vmatprep.subr.bf16.mxu0 0
        %4964 = vmatpush2.bf16.msra.mxu0 0
        %4965 = vmatprep.subr.bf16.mxu0 0
        %4966 = vmatpush2.bf16.msra.mxu0 0
        %4967 = vmatprep.subr.bf16.mxu0 0
        %4968 = vmatpush2.bf16.msra.mxu0 0
        %4969 = vmatprep.mubr.bf16.mxu0 0
        %4970 = vmatmul.mubr.bf16.gmra.mxu0 %v4932
        %v4971 = vpop.f32.mrf.mxu0
        %v4972 = vadd.f32 0.0, %v4971
        %v4973 = vpop.f32.mrf.mxu0
        %v4974 = vpop.f32.mrf.mxu0
        %v4975 = vpop.f32.mrf.mxu0
        %4976 = vdwg.mxu0
        %v4977 = vpack.c.bf16 %v4972, %v4972
        %v4982 = vunpack.c.l.b16 %v4754
        %v4983 = vunpack.c.l.b16 %v4755
        %v4984 = vunpack.c.l.b16 %v4756
        %v4985 = vunpack.c.l.b16 %v4757
        %v4986 = vpack.c.b16 %v4983, %v4982
        %v4987 = vpack.c.b16 %v4985, %v4984
        %4988 = vrot.lane.b32.xlu0 %v4986, 120
        %v4989 = vpop.permute.xlu0 %4988
        %4990 = vrot.lane.b32.xlu0 %v4987, 120
        %v4991 = vpop.permute.xlu0 %4990
        %v4993 = vsel %vm285, %v4977, 0
        %v4996 = vsel %vm285, %v4989, 0
        %v4999 = vsel %vm285, %v4991, 0
        %5001 = vmatprep.subr.bf16.mxu0 0
        %5002 = vmatpush1.bf16.xpose.msra.mxu0 0
        %5003 = vmatprep.subr.bf16.mxu0 0
        %5004 = vmatpush1.bf16.xpose.msra.mxu0 0
        %5005 = vmatprep.subr.bf16.mxu0 0
        %5006 = vmatpush1.bf16.xpose.msra.mxu0 0
        %5007 = vmatprep.subr.bf16.mxu0 0
        %5008 = vmatpush1.bf16.xpose.msra.mxu0 0
        %5009 = vmatprep.subr.bf16.mxu0 0
        %5010 = vmatpush1.bf16.xpose.msra.mxu0 0
        %5011 = vmatprep.subr.bf16.mxu0 0
        %5012 = vmatpush1.bf16.xpose.msra.mxu0 0
        %5013 = vmatprep.subr.bf16.mxu0 0
        %5014 = vmatpush1.bf16.xpose.msra.mxu0 %v4999
        %5015 = vmatprep.subr.bf16.mxu0 0
        %5016 = vmatpush1.bf16.xpose.msra.mxu0 %v4996
        %5017 = vmatprep.subr.bf16.mxu0 0
        %5018 = vmatpush2.bf16.xpose.msra.mxu0 0
        %5019 = vmatprep.subr.bf16.mxu0 0
        %5020 = vmatpush2.bf16.xpose.msra.mxu0 0
        %5021 = vmatprep.subr.bf16.mxu0 0
        %5022 = vmatpush2.bf16.xpose.msra.mxu0 0
        %5023 = vmatprep.subr.bf16.mxu0 0
        %5024 = vmatpush2.bf16.xpose.msra.mxu0 0
        %5025 = vmatprep.subr.bf16.mxu0 0
        %5026 = vmatpush2.bf16.xpose.msra.mxu0 0
        %5027 = vmatprep.subr.bf16.mxu0 0
        %5028 = vmatpush2.bf16.xpose.msra.mxu0 0
        %5029 = vmatprep.subr.bf16.mxu0 0
        %5030 = vmatpush2.bf16.xpose.msra.mxu0 0
        %5031 = vmatprep.subr.bf16.mxu0 0
        %5032 = vmatpush2.bf16.xpose.msra.mxu0 0
        %5033 = vmatprep.mubr.bf16.mxu0 0
        %5034 = vmatmul.mubr.bf16.gmra.mxu0 %v4993
        %v5035 = vpop.f32.mrf.mxu0
        %v5036 = vadd.f32 0.0, %v5035
        %v5037 = vpop.f32.mrf.mxu0
        %v5038 = vpop.f32.mrf.mxu0
        %v5039 = vpop.f32.mrf.mxu0
        %5040 = vdwg.mxu0
        %v5042 = vsel %vm285, %v4865, 0
        %v5045 = vsel %vm285, %v4986, 0
        %v5048 = vsel %vm285, %v4987, 0
        %5050 = vmatprep.subr.bf16.mxu0 0
        %5051 = vmatpush1.bf16.xpose.msra.mxu0 0
        %5052 = vmatprep.subr.bf16.mxu0 0
        %5053 = vmatpush1.bf16.xpose.msra.mxu0 0
        %5054 = vmatprep.subr.bf16.mxu0 0
        %5055 = vmatpush1.bf16.xpose.msra.mxu0 0
        %5056 = vmatprep.subr.bf16.mxu0 0
        %5057 = vmatpush1.bf16.xpose.msra.mxu0 0
        %5058 = vmatprep.subr.bf16.mxu0 0
        %5059 = vmatpush1.bf16.xpose.msra.mxu0 0
        %5060 = vmatprep.subr.bf16.mxu0 0
        %5061 = vmatpush1.bf16.xpose.msra.mxu0 0
        %5062 = vmatprep.subr.bf16.mxu0 0
        %5063 = vmatpush1.bf16.xpose.msra.mxu0 %v5048
        %5064 = vmatprep.subr.bf16.mxu0 0
        %5065 = vmatpush1.bf16.xpose.msra.mxu0 %v5045
        %5066 = vmatprep.subr.bf16.mxu0 0
        %5067 = vmatpush2.bf16.xpose.msra.mxu0 0
        %5068 = vmatprep.subr.bf16.mxu0 0
        %5069 = vmatpush2.bf16.xpose.msra.mxu0 0
        %5070 = vmatprep.subr.bf16.mxu0 0
        %5071 = vmatpush2.bf16.xpose.msra.mxu0 0
        %5072 = vmatprep.subr.bf16.mxu0 0
        %5073 = vmatpush2.bf16.xpose.msra.mxu0 0
        %5074 = vmatprep.subr.bf16.mxu0 0
        %5075 = vmatpush2.bf16.xpose.msra.mxu0 0
        %5076 = vmatprep.subr.bf16.mxu0 0
        %5077 = vmatpush2.bf16.xpose.msra.mxu0 0
        %5078 = vmatprep.subr.bf16.mxu0 0
        %5079 = vmatpush2.bf16.xpose.msra.mxu0 0
        %5080 = vmatprep.subr.bf16.mxu0 0
        %5081 = vmatpush2.bf16.xpose.msra.mxu0 0
        %5082 = vmatprep.mubr.bf16.mxu0 0
        %5083 = vmatmul.mubr.bf16.gmra.mxu0 %v5042
        %v5084 = vpop.f32.mrf.mxu0
        %v5085 = vadd.f32 %v5036, %v5084
        %v5086 = vpop.f32.mrf.mxu0
        %v5087 = vpop.f32.mrf.mxu0
        %v5088 = vpop.f32.mrf.mxu0
        %5089 = vdwg.mxu0
        %5090 = vrot.lane.b32.xlu0 %v4691, 112
        %v5091 = vpop.permute.xlu0 %5090
        %5092 = vrot.lane.b32.xlu0 %v4753, 112
        %v5093 = vpop.permute.xlu0 %5092
        %v5095 = vsel %vm285, %v5091, 0
        %v5098 = vsel %vm285, %v5093, 0
        %5100 = vmatprep.subr.bf16.mxu0 0
        %5101 = vmatpush1.bf16.xpose.msra.mxu0 0
        %5102 = vmatprep.subr.bf16.mxu0 0
        %5103 = vmatpush1.bf16.xpose.msra.mxu0 0
        %5104 = vmatprep.subr.bf16.mxu0 0
        %5105 = vmatpush1.bf16.xpose.msra.mxu0 0
        %5106 = vmatprep.subr.bf16.mxu0 0
        %5107 = vmatpush1.bf16.xpose.msra.mxu0 0
        %5108 = vmatprep.subr.bf16.mxu0 0
        %5109 = vmatpush1.bf16.xpose.msra.mxu0 0
        %5110 = vmatprep.subr.bf16.mxu0 0
        %5111 = vmatpush1.bf16.xpose.msra.mxu0 0
        %5112 = vmatprep.subr.bf16.mxu0 0
        %5113 = vmatpush1.bf16.xpose.msra.mxu0 0
        %5114 = vmatprep.subr.bf16.mxu0 0
        %5115 = vmatpush1.bf16.xpose.msra.mxu0 %v5098
        %5116 = vmatprep.subr.bf16.mxu0 0
        %5117 = vmatpush2.bf16.xpose.msra.mxu0 0
        %5118 = vmatprep.subr.bf16.mxu0 0
        %5119 = vmatpush2.bf16.xpose.msra.mxu0 0
        %5120 = vmatprep.subr.bf16.mxu0 0
        %5121 = vmatpush2.bf16.xpose.msra.mxu0 0
        %5122 = vmatprep.subr.bf16.mxu0 0
        %5123 = vmatpush2.bf16.xpose.msra.mxu0 0
        %5124 = vmatprep.subr.bf16.mxu0 0
        %5125 = vmatpush2.bf16.xpose.msra.mxu0 0
        %5126 = vmatprep.subr.bf16.mxu0 0
        %5127 = vmatpush2.bf16.xpose.msra.mxu0 0
        %5128 = vmatprep.subr.bf16.mxu0 0
        %5129 = vmatpush2.bf16.xpose.msra.mxu0 0
        %5130 = vmatprep.subr.bf16.mxu0 0
        %5131 = vmatpush2.bf16.xpose.msra.mxu0 0
        %5132 = vmatprep.mubr.bf16.mxu0 0
        %5133 = vmatmul.mubr.bf16.gmra.mxu0 %v5095
        %v5134 = vpop.f32.mrf.mxu0
        %v5135 = vadd.f32 0.0, %v5134
        %v5136 = vpop.f32.mrf.mxu0
        %v5137 = vpop.f32.mrf.mxu0
        %v5138 = vpop.f32.mrf.mxu0
        %5139 = vdwg.mxu0
        %v5140 = vsel %vm285, %v5135, -inf
        %5141 = vmax.xlane.f32.xlu0 %v5140
        %v5142 = vpop.xlane.xlu0 %5141
        %v5143 = vsub.f32 %v5135, %v5142
        %v5144 = vmul.f32 %v5143, 1.442695
        %v5145 = vpow.pop %v5144
        %v5146 = vsel %vm285, %v5145, 0.0
        %5147 = vadd.xlane.f32.xlu0 %v5146
        %v5148 = vpop.xlane.xlu0 %5147
        %v5149 = vrcp.pop %v5148
        %v5150 = vmul.f32 %v5145, %v5149
        %v5151 = vpack.c.bf16 %v5150, %v5150
        %5152 = vrot.lane.b32.xlu0 %v4753, 80
        %v5153 = vpop.permute.xlu0 %5152
        %v5155 = vsel %vm285, %v5151, 0
        %v5158 = vsel %vm349, %v5153, 0
        %5160 = vmatprep.subr.bf16.mxu0 0
        %5161 = vmatpush1.bf16.msra.mxu0 0
        %5162 = vmatprep.subr.bf16.mxu0 0
        %5163 = vmatpush1.bf16.msra.mxu0 0
        %5164 = vmatprep.subr.bf16.mxu0 0
        %5165 = vmatpush1.bf16.msra.mxu0 0
        %5166 = vmatprep.subr.bf16.mxu0 0
        %5167 = vmatpush1.bf16.msra.mxu0 0
        %5168 = vmatprep.subr.bf16.mxu0 0
        %5169 = vmatpush1.bf16.msra.mxu0 0
        %5170 = vmatprep.subr.bf16.mxu0 0
        %5171 = vmatpush1.bf16.msra.mxu0 0
        %5172 = vmatprep.subr.bf16.mxu0 0
        %5173 = vmatpush1.bf16.msra.mxu0 0
        %5174 = vmatprep.subr.bf16.mxu0 0
        %5175 = vmatpush1.bf16.msra.mxu0 %v5158
        %5176 = vmatprep.subr.bf16.mxu0 0
        %5177 = vmatpush2.bf16.msra.mxu0 0
        %5178 = vmatprep.subr.bf16.mxu0 0
        %5179 = vmatpush2.bf16.msra.mxu0 0
        %5180 = vmatprep.subr.bf16.mxu0 0
        %5181 = vmatpush2.bf16.msra.mxu0 0
        %5182 = vmatprep.subr.bf16.mxu0 0
        %5183 = vmatpush2.bf16.msra.mxu0 0
        %5184 = vmatprep.subr.bf16.mxu0 0
        %5185 = vmatpush2.bf16.msra.mxu0 0
        %5186 = vmatprep.subr.bf16.mxu0 0
        %5187 = vmatpush2.bf16.msra.mxu0 0
        %5188 = vmatprep.subr.bf16.mxu0 0
        %5189 = vmatpush2.bf16.msra.mxu0 0
        %5190 = vmatprep.subr.bf16.mxu0 0
        %5191 = vmatpush2.bf16.msra.mxu0 0
        %5192 = vmatprep.mubr.bf16.mxu0 0
        %5193 = vmatmul.mubr.bf16.gmra.mxu0 %v5155
        %v5194 = vpop.f32.mrf.mxu0
        %v5195 = vadd.f32 0.0, %v5194
        %v5196 = vpop.f32.mrf.mxu0
        %v5197 = vpop.f32.mrf.mxu0
        %v5198 = vpop.f32.mrf.mxu0
        %5199 = vdwg.mxu0
        %v5200 = vpack.c.bf16 %v5195, %v5195
        %5201 = vrot.lane.b32.xlu0 %v4986, 112
        %v5202 = vpop.permute.xlu0 %5201
        %5203 = vrot.lane.b32.xlu0 %v4987, 112
        %v5204 = vpop.permute.xlu0 %5203
        %v5206 = vsel %vm285, %v5200, 0
        %v5209 = vsel %vm285, %v5202, 0
        %v5212 = vsel %vm285, %v5204, 0
        %5214 = vmatprep.subr.bf16.mxu0 0
        %5215 = vmatpush1.bf16.xpose.msra.mxu0 0
        %5216 = vmatprep.subr.bf16.mxu0 0
        %5217 = vmatpush1.bf16.xpose.msra.mxu0 0
        %5218 = vmatprep.subr.bf16.mxu0 0
        %5219 = vmatpush1.bf16.xpose.msra.mxu0 0
        %5220 = vmatprep.subr.bf16.mxu0 0
        %5221 = vmatpush1.bf16.xpose.msra.mxu0 0
        %5222 = vmatprep.subr.bf16.mxu0 0
        %5223 = vmatpush1.bf16.xpose.msra.mxu0 0
        %5224 = vmatprep.subr.bf16.mxu0 0
        %5225 = vmatpush1.bf16.xpose.msra.mxu0 0
        %5226 = vmatprep.subr.bf16.mxu0 0
        %5227 = vmatpush1.bf16.xpose.msra.mxu0 %v5212
        %5228 = vmatprep.subr.bf16.mxu0 0
        %5229 = vmatpush1.bf16.xpose.msra.mxu0 %v5209
        %5230 = vmatprep.subr.bf16.mxu0 0
        %5231 = vmatpush2.bf16.xpose.msra.mxu0 0
        %5232 = vmatprep.subr.bf16.mxu0 0
        %5233 = vmatpush2.bf16.xpose.msra.mxu0 0
        %5234 = vmatprep.subr.bf16.mxu0 0
        %5235 = vmatpush2.bf16.xpose.msra.mxu0 0
        %5236 = vmatprep.subr.bf16.mxu0 0
        %5237 = vmatpush2.bf16.xpose.msra.mxu0 0
        %5238 = vmatprep.subr.bf16.mxu0 0
        %5239 = vmatpush2.bf16.xpose.msra.mxu0 0
        %5240 = vmatprep.subr.bf16.mxu0 0
        %5241 = vmatpush2.bf16.xpose.msra.mxu0 0
        %5242 = vmatprep.subr.bf16.mxu0 0
        %5243 = vmatpush2.bf16.xpose.msra.mxu0 0
        %5244 = vmatprep.subr.bf16.mxu0 0
        %5245 = vmatpush2.bf16.xpose.msra.mxu0 0
        %5246 = vmatprep.mubr.bf16.mxu0 0
        %5247 = vmatmul.mubr.bf16.gmra.mxu0 %v5206
        %v5248 = vpop.f32.mrf.mxu0
        %v5249 = vadd.f32 0.0, %v5248
        %v5250 = vpop.f32.mrf.mxu0
        %v5251 = vpop.f32.mrf.mxu0
        %v5252 = vpop.f32.mrf.mxu0
        %5253 = vdwg.mxu0
        %v5254 = vadd.f32 %v5085, %v5249
        %5255 = vrot.lane.b32.xlu0 %v4691, 104
        %v5256 = vpop.permute.xlu0 %5255
        %5257 = vrot.lane.b32.xlu0 %v4753, 104
        %v5258 = vpop.permute.xlu0 %5257
        %v5260 = vsel %vm285, %v5256, 0
        %v5263 = vsel %vm285, %v5258, 0
        %5265 = vmatprep.subr.bf16.mxu0 0
        %5266 = vmatpush1.bf16.xpose.msra.mxu0 0
        %5267 = vmatprep.subr.bf16.mxu0 0
        %5268 = vmatpush1.bf16.xpose.msra.mxu0 0
        %5269 = vmatprep.subr.bf16.mxu0 0
        %5270 = vmatpush1.bf16.xpose.msra.mxu0 0
        %5271 = vmatprep.subr.bf16.mxu0 0
        %5272 = vmatpush1.bf16.xpose.msra.mxu0 0
        %5273 = vmatprep.subr.bf16.mxu0 0
        %5274 = vmatpush1.bf16.xpose.msra.mxu0 0
        %5275 = vmatprep.subr.bf16.mxu0 0
        %5276 = vmatpush1.bf16.xpose.msra.mxu0 0
        %5277 = vmatprep.subr.bf16.mxu0 0
        %5278 = vmatpush1.bf16.xpose.msra.mxu0 0
        %5279 = vmatprep.subr.bf16.mxu0 0
        %5280 = vmatpush1.bf16.xpose.msra.mxu0 %v5263
        %5281 = vmatprep.subr.bf16.mxu0 0
        %5282 = vmatpush2.bf16.xpose.msra.mxu0 0
        %5283 = vmatprep.subr.bf16.mxu0 0
        %5284 = vmatpush2.bf16.xpose.msra.mxu0 0
        %5285 = vmatprep.subr.bf16.mxu0 0
        %5286 = vmatpush2.bf16.xpose.msra.mxu0 0
        %5287 = vmatprep.subr.bf16.mxu0 0
        %5288 = vmatpush2.bf16.xpose.msra.mxu0 0
        %5289 = vmatprep.subr.bf16.mxu0 0
        %5290 = vmatpush2.bf16.xpose.msra.mxu0 0
        %5291 = vmatprep.subr.bf16.mxu0 0
        %5292 = vmatpush2.bf16.xpose.msra.mxu0 0
        %5293 = vmatprep.subr.bf16.mxu0 0
        %5294 = vmatpush2.bf16.xpose.msra.mxu0 0
        %5295 = vmatprep.subr.bf16.mxu0 0
        %5296 = vmatpush2.bf16.xpose.msra.mxu0 0
        %5297 = vmatprep.mubr.bf16.mxu0 0
        %5298 = vmatmul.mubr.bf16.gmra.mxu0 %v5260
        %v5299 = vpop.f32.mrf.mxu0
        %v5300 = vadd.f32 0.0, %v5299
        %v5301 = vpop.f32.mrf.mxu0
        %v5302 = vpop.f32.mrf.mxu0
        %v5303 = vpop.f32.mrf.mxu0
        %5304 = vdwg.mxu0
        %v5305 = vsel %vm285, %v5300, -inf
        %5306 = vmax.xlane.f32.xlu0 %v5305
        %v5307 = vpop.xlane.xlu0 %5306
        %v5308 = vsub.f32 %v5300, %v5307
        %v5309 = vmul.f32 %v5308, 1.442695
        %v5310 = vpow.pop %v5309
        %v5311 = vsel %vm285, %v5310, 0.0
        %5312 = vadd.xlane.f32.xlu0 %v5311
        %v5313 = vpop.xlane.xlu0 %5312
        %v5314 = vrcp.pop %v5313
        %v5315 = vmul.f32 %v5310, %v5314
        %v5316 = vpack.c.bf16 %v5315, %v5315
        %5317 = vrot.lane.b32.xlu0 %v4753, 72
        %v5318 = vpop.permute.xlu0 %5317
        %v5320 = vsel %vm285, %v5316, 0
        %v5323 = vsel %vm349, %v5318, 0
        %5325 = vmatprep.subr.bf16.mxu0 0
        %5326 = vmatpush1.bf16.msra.mxu0 0
        %5327 = vmatprep.subr.bf16.mxu0 0
        %5328 = vmatpush1.bf16.msra.mxu0 0
        %5329 = vmatprep.subr.bf16.mxu0 0
        %5330 = vmatpush1.bf16.msra.mxu0 0
        %5331 = vmatprep.subr.bf16.mxu0 0
        %5332 = vmatpush1.bf16.msra.mxu0 0
        %5333 = vmatprep.subr.bf16.mxu0 0
        %5334 = vmatpush1.bf16.msra.mxu0 0
        %5335 = vmatprep.subr.bf16.mxu0 0
        %5336 = vmatpush1.bf16.msra.mxu0 0
        %5337 = vmatprep.subr.bf16.mxu0 0
        %5338 = vmatpush1.bf16.msra.mxu0 0
        %5339 = vmatprep.subr.bf16.mxu0 0
        %5340 = vmatpush1.bf16.msra.mxu0 %v5323
        %5341 = vmatprep.subr.bf16.mxu0 0
        %5342 = vmatpush2.bf16.msra.mxu0 0
        %5343 = vmatprep.subr.bf16.mxu0 0
        %5344 = vmatpush2.bf16.msra.mxu0 0
        %5345 = vmatprep.subr.bf16.mxu0 0
        %5346 = vmatpush2.bf16.msra.mxu0 0
        %5347 = vmatprep.subr.bf16.mxu0 0
        %5348 = vmatpush2.bf16.msra.mxu0 0
        %5349 = vmatprep.subr.bf16.mxu0 0
        %5350 = vmatpush2.bf16.msra.mxu0 0
        %5351 = vmatprep.subr.bf16.mxu0 0
        %5352 = vmatpush2.bf16.msra.mxu0 0
        %5353 = vmatprep.subr.bf16.mxu0 0
        %5354 = vmatpush2.bf16.msra.mxu0 0
        %5355 = vmatprep.subr.bf16.mxu0 0
        %5356 = vmatpush2.bf16.msra.mxu0 0
        %5357 = vmatprep.mubr.bf16.mxu0 0
        %5358 = vmatmul.mubr.bf16.gmra.mxu0 %v5320
        %v5359 = vpop.f32.mrf.mxu0
        %v5360 = vadd.f32 0.0, %v5359
        %v5361 = vpop.f32.mrf.mxu0
        %v5362 = vpop.f32.mrf.mxu0
        %v5363 = vpop.f32.mrf.mxu0
        %5364 = vdwg.mxu0
        %v5365 = vpack.c.bf16 %v5360, %v5360
        %5366 = vrot.lane.b32.xlu0 %v4986, 104
        %v5367 = vpop.permute.xlu0 %5366
        %5368 = vrot.lane.b32.xlu0 %v4987, 104
        %v5369 = vpop.permute.xlu0 %5368
        %v5371 = vsel %vm285, %v5365, 0
        %v5374 = vsel %vm285, %v5367, 0
        %v5377 = vsel %vm285, %v5369, 0
        %5379 = vmatprep.subr.bf16.mxu0 0
        %5380 = vmatpush1.bf16.xpose.msra.mxu0 0
        %5381 = vmatprep.subr.bf16.mxu0 0
        %5382 = vmatpush1.bf16.xpose.msra.mxu0 0
        %5383 = vmatprep.subr.bf16.mxu0 0
        %5384 = vmatpush1.bf16.xpose.msra.mxu0 0
        %5385 = vmatprep.subr.bf16.mxu0 0
        %5386 = vmatpush1.bf16.xpose.msra.mxu0 0
        %5387 = vmatprep.subr.bf16.mxu0 0
        %5388 = vmatpush1.bf16.xpose.msra.mxu0 0
        %5389 = vmatprep.subr.bf16.mxu0 0
        %5390 = vmatpush1.bf16.xpose.msra.mxu0 0
        %5391 = vmatprep.subr.bf16.mxu0 0
        %5392 = vmatpush1.bf16.xpose.msra.mxu0 %v5377
        %5393 = vmatprep.subr.bf16.mxu0 0
        %5394 = vmatpush1.bf16.xpose.msra.mxu0 %v5374
        %5395 = vmatprep.subr.bf16.mxu0 0
        %5396 = vmatpush2.bf16.xpose.msra.mxu0 0
        %5397 = vmatprep.subr.bf16.mxu0 0
        %5398 = vmatpush2.bf16.xpose.msra.mxu0 0
        %5399 = vmatprep.subr.bf16.mxu0 0
        %5400 = vmatpush2.bf16.xpose.msra.mxu0 0
        %5401 = vmatprep.subr.bf16.mxu0 0
        %5402 = vmatpush2.bf16.xpose.msra.mxu0 0
        %5403 = vmatprep.subr.bf16.mxu0 0
        %5404 = vmatpush2.bf16.xpose.msra.mxu0 0
        %5405 = vmatprep.subr.bf16.mxu0 0
        %5406 = vmatpush2.bf16.xpose.msra.mxu0 0
        %5407 = vmatprep.subr.bf16.mxu0 0
        %5408 = vmatpush2.bf16.xpose.msra.mxu0 0
        %5409 = vmatprep.subr.bf16.mxu0 0
        %5410 = vmatpush2.bf16.xpose.msra.mxu0 0
        %5411 = vmatprep.mubr.bf16.mxu0 0
        %5412 = vmatmul.mubr.bf16.gmra.mxu0 %v5371
        %v5413 = vpop.f32.mrf.mxu0
        %v5414 = vadd.f32 0.0, %v5413
        %v5415 = vpop.f32.mrf.mxu0
        %v5416 = vpop.f32.mrf.mxu0
        %v5417 = vpop.f32.mrf.mxu0
        %5418 = vdwg.mxu0
        %v5419 = vadd.f32 %v5254, %v5414
        %v5420 = vld [vmem:[%s3 + $0x21] sm:$0x1]
        %v5421 = vlaneseq
        %v5422 = vshrl.u32 %v5421, 7
        %v5423 = vsub.s32 0, %v5422
        %v5424 = vrot.slane %v5420, %v5423
        %v5425 = vadd.f32 %v5419, %v5424
        %v5426 = vadd.f32 %v4625, %v5425
        %v5427 = vld [vmem:[%s3 + $0x26] sm:$0x1]
        %v5428 = vld [vmem:[%s3 + $0x27] sm:$0x1]
        %v5429 = vsel %vm233, %v5426, 0.0
        %5430 = vadd.xlane.f32.xlu0 %v5429
        %v5431 = vpop.xlane.xlu0 %5430
        %v5432 = vmul.f32 %v5431, %v959
        %v5433 = vsub.f32 %v5426, %v5432
        %v5434 = vmul.f32 %v5433, %v5433
        %v5435 = vsel %vm233, %v5434, 0.0
        %5436 = vadd.xlane.f32.xlu0 %v5435
        %v5437 = vpop.xlane.xlu0 %5436
        %v5438 = vmul.f32 %v5437, %v959
        %v5439 = vadd.f32 %v5438, 1e-05
        %v5440 = vrsqrt.pop %v5439
        %v5441 = vmul.f32 %v5433, %v5440
        %v5442 = vlaneseq
        %v5443 = vshrl.u32 %v5442, 7
        %v5444 = vsub.s32 0, %v5443
        %v5445 = vrot.slane %v5427, %v5444
        %v5446 = vmul.f32 %v5441, %v5445
        %v5447 = vlaneseq
        %v5448 = vshrl.u32 %v5447, 7
        %v5449 = vsub.s32 0, %v5448
        %v5450 = vrot.slane %v5428, %v5449
        %v5451 = vadd.f32 %v5446, %v5450
        %v5452 = vpack.c.bf16 %v5451, %v5451
        %v5453 = vld [vmem:[#allocation2 + $0x170] sm:$0xf]
        %v5454 = vld [vmem:[#allocation2 + $0x174] sm:$0xf]
        %v5455 = vld [vmem:[#allocation2 + $0x178] sm:$0xf]
        %v5456 = vld [vmem:[#allocation2 + $0x17c] sm:$0xf]
        %v5457 = vld [vmem:[%s3 + $0x22] sm:$0x1]
        %v5458 = vlaneseq
        %v5459 = vshrl.u32 %v5458, 7
        %v5460 = vsub.s32 0, %v5459
        %v5461 = vrot.slane %v5457, %v5460
        %v5466 = vunpack.c.l.b16 %v5453
        %v5467 = vunpack.c.l.b16 %v5454
        %v5468 = vunpack.c.l.b16 %v5455
        %v5469 = vunpack.c.l.b16 %v5456
        %v5470 = vpack.c.b16 %v5467, %v5466
        %v5471 = vpack.c.b16 %v5469, %v5468
        %v5475 = vsel %vm233, %v5452, 0
        %5477 = vmatprep.subr.bf16.mxu0 0
        %5478 = vmatpush1.bf16.msra.mxu0 0
        %5479 = vmatprep.subr.bf16.mxu0 0
        %5480 = vmatpush1.bf16.msra.mxu0 0
        %5481 = vmatprep.subr.bf16.mxu0 0
        %5482 = vmatpush1.bf16.msra.mxu0 0
        %5483 = vmatprep.subr.bf16.mxu0 0
        %5484 = vmatpush1.bf16.msra.mxu0 0
        %5485 = vmatprep.subr.bf16.mxu0 0
        %5486 = vmatpush1.bf16.msra.mxu0 0
        %5487 = vmatprep.subr.bf16.mxu0 0
        %5488 = vmatpush1.bf16.msra.mxu0 0
        %5489 = vmatprep.subr.bf16.mxu0 0
        %5490 = vmatpush1.bf16.msra.mxu0 %v5471
        %5491 = vmatprep.subr.bf16.mxu0 0
        %5492 = vmatpush1.bf16.msra.mxu0 %v5470
        %5493 = vmatprep.subr.bf16.mxu0 0
        %5494 = vmatpush2.bf16.msra.mxu0 0
        %5495 = vmatprep.subr.bf16.mxu0 0
        %5496 = vmatpush2.bf16.msra.mxu0 0
        %5497 = vmatprep.subr.bf16.mxu0 0
        %5498 = vmatpush2.bf16.msra.mxu0 0
        %5499 = vmatprep.subr.bf16.mxu0 0
        %5500 = vmatpush2.bf16.msra.mxu0 0
        %5501 = vmatprep.subr.bf16.mxu0 0
        %5502 = vmatpush2.bf16.msra.mxu0 0
        %5503 = vmatprep.subr.bf16.mxu0 0
        %5504 = vmatpush2.bf16.msra.mxu0 0
        %5505 = vmatprep.subr.bf16.mxu0 0
        %5506 = vmatpush2.bf16.msra.mxu0 0
        %5507 = vmatprep.subr.bf16.mxu0 0
        %5508 = vmatpush2.bf16.msra.mxu0 0
        %5509 = vmatprep.mubr.bf16.mxu0 0
        %5510 = vmatmul.mubr.bf16.gmra.mxu0 %v5475
        %v5511 = vpop.f32.mrf.mxu0
        %v5512 = vadd.f32 %v5461, %v5511
        %v5513 = vpop.f32.mrf.mxu0
        %v5514 = vpop.f32.mrf.mxu0
        %v5515 = vpop.f32.mrf.mxu0
        %5516 = vdwg.mxu0
        %v5517 = vmax.f32 %v5512, 0.0
        %v5518 = vpack.c.bf16 %v5517, %v5517
        %v5519 = vld [vmem:[#allocation2 + $0x180] sm:$0xf]
        %v5520 = vld [vmem:[#allocation2 + $0x184] sm:$0xf]
        %v5521 = vld [vmem:[#allocation2 + $0x188] sm:$0xf]
        %v5522 = vld [vmem:[#allocation2 + $0x18c] sm:$0xf]
        %v5523 = vld [vmem:[#allocation2 + $0x190] sm:$0xf]
        %v5524 = vld [vmem:[#allocation2 + $0x194] sm:$0xf]
        %v5525 = vld [vmem:[#allocation2 + $0x198] sm:$0xf]
        %v5526 = vld [vmem:[#allocation2 + $0x19c] sm:$0xf]
        %v5527 = vld [vmem:[%s3 + $0x23] sm:$0x1]
        %v5528 = vlaneseq
        %v5529 = vshrl.u32 %v5528, 7
        %v5530 = vsub.s32 0, %v5529
        %v5531 = vrot.slane %v5527, %v5530
        %v5540 = vunpack.c.l.b16 %v5519
        %v5541 = vunpack.c.l.b16 %v5520
        %v5542 = vunpack.c.l.b16 %v5521
        %v5543 = vunpack.c.l.b16 %v5522
        %v5544 = vunpack.c.l.b16 %v5523
        %v5545 = vunpack.c.l.b16 %v5524
        %v5546 = vunpack.c.l.b16 %v5525
        %v5547 = vunpack.c.l.b16 %v5526
        %v5548 = vpack.c.b16 %v5541, %v5540
        %v5549 = vpack.c.b16 %v5543, %v5542
        %v5550 = vpack.c.b16 %v5545, %v5544
        %v5551 = vpack.c.b16 %v5547, %v5546
        %v5557 = vsel %vm1084, %v5518, 0
        %5559 = vmatprep.subr.bf16.mxu0 0
        %5560 = vmatpush1.bf16.msra.mxu0 0
        %5561 = vmatprep.subr.bf16.mxu0 0
        %5562 = vmatpush1.bf16.msra.mxu0 0
        %5563 = vmatprep.subr.bf16.mxu0 0
        %5564 = vmatpush1.bf16.msra.mxu0 0
        %5565 = vmatprep.subr.bf16.mxu0 0
        %5566 = vmatpush1.bf16.msra.mxu0 0
        %5567 = vmatprep.subr.bf16.mxu0 0
        %5568 = vmatpush1.bf16.msra.mxu0 %v5551
        %5569 = vmatprep.subr.bf16.mxu0 0
        %5570 = vmatpush1.bf16.msra.mxu0 %v5550
        %5571 = vmatprep.subr.bf16.mxu0 0
        %5572 = vmatpush1.bf16.msra.mxu0 %v5549
        %5573 = vmatprep.subr.bf16.mxu0 0
        %5574 = vmatpush1.bf16.msra.mxu0 %v5548
        %5575 = vmatprep.subr.bf16.mxu0 0
        %5576 = vmatpush2.bf16.msra.mxu0 0
        %5577 = vmatprep.subr.bf16.mxu0 0
        %5578 = vmatpush2.bf16.msra.mxu0 0
        %5579 = vmatprep.subr.bf16.mxu0 0
        %5580 = vmatpush2.bf16.msra.mxu0 0
        %5581 = vmatprep.subr.bf16.mxu0 0
        %5582 = vmatpush2.bf16.msra.mxu0 0
        %5583 = vmatprep.subr.bf16.mxu0 0
        %5584 = vmatpush2.bf16.msra.mxu0 0
        %5585 = vmatprep.subr.bf16.mxu0 0
        %5586 = vmatpush2.bf16.msra.mxu0 0
        %5587 = vmatprep.subr.bf16.mxu0 0
        %5588 = vmatpush2.bf16.msra.mxu0 0
        %5589 = vmatprep.subr.bf16.mxu0 0
        %5590 = vmatpush2.bf16.msra.mxu0 0
        %5591 = vmatprep.mubr.bf16.mxu0 0
        %5592 = vmatmul.mubr.bf16.gmra.mxu0 %v5557
        %v5593 = vpop.f32.mrf.mxu0
        %v5594 = vadd.f32 %v5531, %v5593
        %v5595 = vpop.f32.mrf.mxu0
        %v5596 = vpop.f32.mrf.mxu0
        %v5597 = vpop.f32.mrf.mxu0
        %5598 = vdwg.mxu0
        %v5599 = vadd.f32 %v5451, %v5594
        %v5600 = vld [vmem:[%s3 + $0x28] sm:$0x1]
        %v5601 = vld [vmem:[%s3 + $0x29] sm:$0x1]
        %v5602 = vsel %vm233, %v5599, 0.0
        %5603 = vadd.xlane.f32.xlu0 %v5602
        %v5604 = vpop.xlane.xlu0 %5603
        %v5605 = vmul.f32 %v5604, %v959
        %v5606 = vsub.f32 %v5599, %v5605
        %v5607 = vmul.f32 %v5606, %v5606
        %v5608 = vsel %vm233, %v5607, 0.0
        %5609 = vadd.xlane.f32.xlu0 %v5608
        %v5610 = vpop.xlane.xlu0 %5609
        %v5611 = vmul.f32 %v5610, %v959
        %v5612 = vadd.f32 %v5611, 1e-05
        %v5613 = vrsqrt.pop %v5612
        %v5614 = vmul.f32 %v5606, %v5613
        %v5615 = vlaneseq
        %v5616 = vshrl.u32 %v5615, 7
        %v5617 = vsub.s32 0, %v5616
        %v5618 = vrot.slane %v5600, %v5617
        %v5619 = vmul.f32 %v5614, %v5618
        %v5620 = vlaneseq
        %v5621 = vshrl.u32 %v5620, 7
        %v5622 = vsub.s32 0, %v5621
        %v5623 = vrot.slane %v5601, %v5622
        %v5624 = vadd.f32 %v5619, %v5623
        %v5625 = vld [vmem:[%s3 + $0x2a] sm:$0x1]
        %v5627 = vsel %vm233, %v5625, 0
        %v5630 = vsel %vm233, %v5624, 0
        %5632 = vmatprep.subr.mxu0 0.0
        %5633 = vmatpush1.xpose.msra.mxu0 0.0
        %5634 = vmatprep.subr.mxu0 0.0
        %5635 = vmatpush1.xpose.msra.mxu0 0.0
        %5636 = vmatprep.subr.mxu0 0.0
        %5637 = vmatpush1.xpose.msra.mxu0 0.0
        %5638 = vmatprep.subr.mxu0 0.0
        %5639 = vmatpush1.xpose.msra.mxu0 0.0
        %5640 = vmatprep.subr.mxu0 0.0
        %5641 = vmatpush1.xpose.msra.mxu0 0.0
        %5642 = vmatprep.subr.mxu0 0.0
        %5643 = vmatpush1.xpose.msra.mxu0 0.0
        %5644 = vmatprep.subr.mxu0 0.0
        %5645 = vmatpush1.xpose.msra.mxu0 0.0
        %5646 = vmatprep.subr.mxu0 0.0
        %5647 = vmatpush1.xpose.msra.mxu0 0.0
        %5648 = vmatprep.subr.mxu0 0.0
        %5649 = vmatpush1.xpose.msra.mxu0 0.0
        %5650 = vmatprep.subr.mxu0 0.0
        %5651 = vmatpush1.xpose.msra.mxu0 0.0
        %5652 = vmatprep.subr.mxu0 0.0
        %5653 = vmatpush1.xpose.msra.mxu0 0.0
        %5654 = vmatprep.subr.mxu0 0.0
        %5655 = vmatpush1.xpose.msra.mxu0 0.0
        %5656 = vmatprep.subr.mxu0 0.0
        %5657 = vmatpush1.xpose.msra.mxu0 0.0
        %5658 = vmatprep.subr.mxu0 0.0
        %5659 = vmatpush1.xpose.msra.mxu0 0.0
        %5660 = vmatprep.subr.mxu0 0.0
        %5661 = vmatpush1.xpose.msra.mxu0 0.0
        %5662 = vmatprep.subr.mxu0 0.0
        %5663 = vmatpush1.xpose.msra.mxu0 %v5630
        %5664 = vmatprep.subr.mxu0 0.0
        %5665 = vmatpush2.xpose.msra.mxu0 0.0
        %5666 = vmatprep.subr.mxu0 0.0
        %5667 = vmatpush2.xpose.msra.mxu0 0.0
        %5668 = vmatprep.subr.mxu0 0.0
        %5669 = vmatpush2.xpose.msra.mxu0 0.0
        %5670 = vmatprep.subr.mxu0 0.0
        %5671 = vmatpush2.xpose.msra.mxu0 0.0
        %5672 = vmatprep.subr.mxu0 0.0
        %5673 = vmatpush2.xpose.msra.mxu0 0.0
        %5674 = vmatprep.subr.mxu0 0.0
        %5675 = vmatpush2.xpose.msra.mxu0 0.0
        %5676 = vmatprep.subr.mxu0 0.0
        %5677 = vmatpush2.xpose.msra.mxu0 0.0
        %5678 = vmatprep.subr.mxu0 0.0
        %5679 = vmatpush2.xpose.msra.mxu0 0.0
        %5680 = vmatprep.subr.mxu0 0.0
        %5681 = vmatpush2.xpose.msra.mxu0 0.0
        %5682 = vmatprep.subr.mxu0 0.0
        %5683 = vmatpush2.xpose.msra.mxu0 0.0
        %5684 = vmatprep.subr.mxu0 0.0
        %5685 = vmatpush2.xpose.msra.mxu0 0.0
        %5686 = vmatprep.subr.mxu0 0.0
        %5687 = vmatpush2.xpose.msra.mxu0 0.0
        %5688 = vmatprep.subr.mxu0 0.0
        %5689 = vmatpush2.xpose.msra.mxu0 0.0
        %5690 = vmatprep.subr.mxu0 0.0
        %5691 = vmatpush2.xpose.msra.mxu0 0.0
        %5692 = vmatprep.subr.mxu0 0.0
        %5693 = vmatpush2.xpose.msra.mxu0 0.0
        %5694 = vmatprep.subr.mxu0 0.0
        %5695 = vmatpush2.xpose.msra.mxu0 0.0
        %5696 = vmatprep.mubr.f32.mxu0 0.0
        %5697 = vmatmul.mubr.f32.gmra.mxu0 %v5627
        %v5698 = vpop.f32.mrf.mxu0
        %v5699 = vadd.f32 0.0, %v5698
        %v5700 = vpop.f32.mrf.mxu0
        %5701 = vdwg.mxu0
        %vm5702 = vcmask 57344
        %v5703 = vsel %vm5702, %v5699, -inf
        %5704 = vmax.xlane.f32.xlu0 %v5703
        %v5705 = vpop.xlane.xlu0 %5704
        %v5706 = vsub.f32 %v5699, %v5705
        %v5707 = vmul.f32 %v5706, 1.442695
        %v5708 = vpow.pop %v5707
        %v5709 = vsel %vm5702, %v5708, 0.0
        %5710 = vadd.xlane.f32.xlu0 %v5709
        %v5711 = vpop.xlane.xlu0 %5710
        %v5712 = vrcp.pop %v5711
        %v5713 = vmul.f32 %v5708, %v5712
        %v5715 = vsel %vm285, %v5713, 0
        %5717 = vmatprep.subr.mxu0 0.0
        %5718 = vmatpush1.msra.mxu0 0.0
        %5719 = vmatprep.subr.mxu0 0.0
        %5720 = vmatpush1.msra.mxu0 0.0
        %5721 = vmatprep.subr.mxu0 0.0
        %5722 = vmatpush1.msra.mxu0 0.0
        %5723 = vmatprep.subr.mxu0 0.0
        %5724 = vmatpush1.msra.mxu0 0.0
        %5725 = vmatprep.subr.mxu0 0.0
        %5726 = vmatpush1.msra.mxu0 0.0
        %5727 = vmatprep.subr.mxu0 0.0
        %5728 = vmatpush1.msra.mxu0 0.0
        %5729 = vmatprep.subr.mxu0 0.0
        %5730 = vmatpush1.msra.mxu0 0.0
        %5731 = vmatprep.subr.mxu0 0.0
        %5732 = vmatpush1.msra.mxu0 0.0
        %5733 = vmatprep.subr.mxu0 0.0
        %5734 = vmatpush1.msra.mxu0 0.0
        %5735 = vmatprep.subr.mxu0 0.0
        %5736 = vmatpush1.msra.mxu0 0.0
        %5737 = vmatprep.subr.mxu0 0.0
        %5738 = vmatpush1.msra.mxu0 0.0
        %5739 = vmatprep.subr.mxu0 0.0
        %5740 = vmatpush1.msra.mxu0 0.0
        %5741 = vmatprep.subr.mxu0 0.0
        %5742 = vmatpush1.msra.mxu0 0.0
        %5743 = vmatprep.subr.mxu0 0.0
        %5744 = vmatpush1.msra.mxu0 0.0
        %5745 = vmatprep.subr.mxu0 0.0
        %5746 = vmatpush1.msra.mxu0 0.0
        %5747 = vmatprep.subr.mxu0 0.0
        %5748 = vmatpush1.msra.mxu0 %v5624
        %5749 = vmatprep.subr.mxu0 0.0
        %5750 = vmatpush2.msra.mxu0 0.0
        %5751 = vmatprep.subr.mxu0 0.0
        %5752 = vmatpush2.msra.mxu0 0.0
        %5753 = vmatprep.subr.mxu0 0.0
        %5754 = vmatpush2.msra.mxu0 0.0
        %5755 = vmatprep.subr.mxu0 0.0
        %5756 = vmatpush2.msra.mxu0 0.0
        %5757 = vmatprep.subr.mxu0 0.0
        %5758 = vmatpush2.msra.mxu0 0.0
        %5759 = vmatprep.subr.mxu0 0.0
        %5760 = vmatpush2.msra.mxu0 0.0
        %5761 = vmatprep.subr.mxu0 0.0
        %5762 = vmatpush2.msra.mxu0 0.0
        %5763 = vmatprep.subr.mxu0 0.0
        %5764 = vmatpush2.msra.mxu0 0.0
        %5765 = vmatprep.subr.mxu0 0.0
        %5766 = vmatpush2.msra.mxu0 0.0
        %5767 = vmatprep.subr.mxu0 0.0
        %5768 = vmatpush2.msra.mxu0 0.0
        %5769 = vmatprep.subr.mxu0 0.0
        %5770 = vmatpush2.msra.mxu0 0.0
        %5771 = vmatprep.subr.mxu0 0.0
        %5772 = vmatpush2.msra.mxu0 0.0
        %5773 = vmatprep.subr.mxu0 0.0
        %5774 = vmatpush2.msra.mxu0 0.0
        %5775 = vmatprep.subr.mxu0 0.0
        %5776 = vmatpush2.msra.mxu0 0.0
        %5777 = vmatprep.subr.mxu0 0.0
        %5778 = vmatpush2.msra.mxu0 0.0
        %5779 = vmatprep.subr.mxu0 0.0
        %5780 = vmatpush2.msra.mxu0 0.0
        %5781 = vmatprep.mubr.f32.mxu0 0.0
        %5782 = vmatmul.mubr.f32.gmra.mxu0 %v5715
        %v5783 = vpop.f32.mrf.mxu0
        %v5784 = vadd.f32 0.0, %v5783
        %v5785 = vpop.f32.mrf.mxu0
        %5786 = vdwg.mxu0
        %vm5787 = vcmask 253952
        %5788 = vst.msk [vmem:[%s202] sm:$0x1] %vm5787, %v5784
        %s5789 = sand.u32 %s116, 1
        %s5790 = scalar_lea.sflag [#allocation4], %s5789
        %s5791 = sand.u32 %s116, 1
        %s5792 = scalar_lea.vmem [#allocation5], %s5791
        // Predicated region
        $region41: #{my_transformer_forward.1} parent=35 // pred_check
          %p5793 = pneg %p126
        $region42: #{my_transformer_forward.1} parent=35 // pred_check_branch
          %5795 = sbr.rel (%p5793) target = $region44
        $region43: #{my_transformer_forward.1} parent=35 // pred_region
          %s5797 = ssub.s32 16, 16
          %5798 = vsyncadd %s5790, %s5797
          %s5799 = smul.addr %s19, 16
          %s5800 = scalar_lea.hbm %s4, %s5799
          %s5802 = sshll.u32 %s5792, 4
          %s5803 = int_to_ptr.vmem [resolvable:$true] %s5802
          %5805 = dma.vmem_to_hbm [thread:$0]  %s5803, 16, %s5800, %s5790
        $region44: #{my_transformer_forward.1} parent=35 // pred_fallthru
          _
      $region36: #{my_transformer_forward.1} parent=5 // pred_fallthru
        _
      %p5806 = scmp.le.s32.totalorder 2, %s14
      // Predicated region
      $region45: #{my_transformer_forward.1} parent=5 // pred_check
        %p5807 = pneg %p5806
      $region46: #{my_transformer_forward.1} parent=5 // pred_check_branch
        %5809 = sbr.rel (%p5807) target = $region48
      $region47: #{my_transformer_forward.1} parent=5 // pred_region
        %s5810 = ssub.s32 %s14, 2
        // Predicated region
        $region49: #{my_transformer_forward.1} parent=47 // pred_check
          %p5811 = pneg %p132
        $region50: #{my_transformer_forward.1} parent=47 // pred_check_branch
          %5813 = sbr.rel (%p5811) target = $region52
        $region51: #{my_transformer_forward.1} parent=47 // pred_region
          %s5814 = sand.u32 %s117, 1
          %s5815 = scalar_lea.sflag [#allocation4], %s5814
          %s5816 = sand.u32 %s117, 1
          %s5817 = scalar_lea.vmem [#allocation5], %s5816
          %5818 = dma.done %s5815, 16
        $region52: #{my_transformer_forward.1} parent=47 // pred_fallthru
          _
      $region48: #{my_transformer_forward.1} parent=5 // pred_fallthru
        _
    $region6: #{my_transformer_forward.1} parent=1 // loop_footer
      %s18 = sadd.s32 1, %s14
    $region7: #{my_transformer_forward.1} parent=1 // loop_footer_branch
      %13 = sbr.rel target = $region3
    $region8: #{my_transformer_forward.1} parent=1 // loop_exit
      _
    %5819 = vsyncpa [#allocation3], 1
    %s5820 = scalar_lea.sflag [#allocation3], 1
    %5821 = vsyncpa %s5820, 1
    %5822 = vsyncpa [#allocation4], 1
    %s5823 = scalar_lea.sflag [#allocation4], 1
    %5824 = vsyncpa %s5823, 1

</llo_original>
